<compile_context>
chip_gen: v7x
topology: tpu7x:2x2x1
jax: 0.10.0
libtpu: 0.0.40
codegen_flags: <defaults>
</compile_context>

<pallas_src>
import jax
import jax.numpy as jnp
from jax.experimental import pallas as pl
from jax.experimental.pallas import tpu as pltpu


def _round_up(x, m):
    return (x + m - 1) // m * m


def basic_block_kernel(xpad_ref, w1_ref, s1_ref, b1_ref,
                       w2_ref, s2_ref, b2_ref, out_ref, acc_ref, hbuf_ref):
    # xpad_ref : (nb, H+2, Wxp, Cp)  bf16  spatially padded conv input (NHWC)
    # w1_ref   : (3, 3*Cp, Cp)       bf16  conv1 weight, (dy, ci) folded along K
    # s1/b1    : (1, Cp)             f32   folded BN1 scale / bias
    # w2_ref   : (3, 3*Cp, Cp)       bf16  conv2 weight (same folding)
    # s2/b2    : (1, Cp)             f32   folded BN2 scale / bias
    # out_ref  : (nb, H, W, Cp)      f32
    # acc_ref  : (nb*H*W, Cp)        f32   flat VMEM conv accumulator (reused)
    # hbuf_ref : (nb, H+2, Wxp, Cp)  bf16  VMEM halo buffer for conv2
    nb, H, W, Cp = out_ref.shape
    m = nb * H * W
    cdt = hbuf_ref.dtype
    Whp = hbuf_ref.shape[2]

    def conv3x3(src_ref, w_ref):
        """3x3 stride-1 conv of the padded src into acc_ref (flat (m, Cp)).

        For each dx shift, the three dy taps are concatenated along the
        channel (lane) axis into a (m, 3*Cp) LHS and consumed by a single
        K=3*Cp MXU matmul.  dx=0 writes the accumulator, dx=1/2 accumulate.
        """
        # TODO(synk): if the bundle dump shows all three dx slabs staying live
        # (vreg spills), bound live ranges with lax.fori_loop(..., unroll=True).
        for dx in range(3):
            slab = src_ref[:, :, dx:dx + W, :]                    # (nb, H+2, W, Cp) bf16
            a = jnp.concatenate(
                [slab[:, dy:dy + H] for dy in range(3)], axis=-1  # (nb, H, W, 3*Cp)
            ).reshape(m, 3 * Cp)
            contrib = jnp.dot(a, w_ref[dx],
                              preferred_element_type=jnp.float32)  # (m, Cp) f32
            if dx == 0:
                acc_ref[...] = contrib        # first tap: plain store, no zero-fill
            else:
                acc_ref[...] += contrib

    # ---- conv1 + bn1 (folded affine) + relu, f32 elementwise ----
    conv3x3(xpad_ref, w1_ref)
    h = jnp.maximum(acc_ref[...] * s1_ref[...] + b1_ref[...], 0.0)   # (m, Cp) f32

    # ---- stage h into the conv2 halo scratch: zero ONLY the 1-px border ----
    # (Border is re-zeroed every step: scratch is per-core, so guarding this
    #  with program_id==0 would skip the init on the 2nd v7x TensorCore.)
    hbuf_ref[:, 0:1, :, :] = jnp.zeros((nb, 1, Whp, Cp), cdt)              # top row
    hbuf_ref[:, H + 1:H + 2, :, :] = jnp.zeros((nb, 1, Whp, Cp), cdt)      # bottom row
    hbuf_ref[:, 1:H + 1, 0:1, :] = jnp.zeros((nb, H, 1, Cp), cdt)          # left col
    hbuf_ref[:, 1:H + 1, W + 1:W + 2, :] = jnp.zeros((nb, H, 1, Cp), cdt)  # right col
    hbuf_ref[:, 1:H + 1, 1:W + 1, :] = h.reshape(nb, H, W, Cp).astype(cdt)

    # ---- conv2 + bn2 ----
    conv3x3(hbuf_ref, w2_ref)
    o = acc_ref[...] * s2_ref[...] + b2_ref[...]                      # (m, Cp) f32

    # ---- identity residual sliced from xpad's interior (bf16) + final relu ----
    res = xpad_ref[:, 1:H + 1, 1:W + 1, :].reshape(m, Cp).astype(jnp.float32)
    out_ref[...] = jnp.maximum(o + res, 0.0).reshape(nb, H, W, Cp).astype(out_ref.dtype)


def _fold_bn(gamma, beta, mean, var, eps, cp):
    scale = gamma / jnp.sqrt(var + eps)
    bias = beta - mean * scale
    scale = jnp.pad(scale, (0, cp - scale.shape[0]))
    bias = jnp.pad(bias, (0, cp - bias.shape[0]))
    return (scale.reshape(1, cp).astype(jnp.float32),
            bias.reshape(1, cp).astype(jnp.float32))


def _per_step_vmem_bytes(nb, H, W, Wxp, Cp):
    """Approximate per-grid-step VMEM footprint (double-buffered I/O + scratch)."""
    bf16, f32 = 2, 4
    m = nb * H * W
    xpad_blk = nb * (H + 2) * Wxp * Cp * bf16
    out_blk = m * Cp * f32
    w_blk = 2 * 3 * (3 * Cp) * Cp * bf16
    sb_blk = 4 * Cp * f32
    acc = m * Cp * f32
    hbuf = nb * (H + 2) * Wxp * Cp * bf16
    return 2 * (xpad_blk + out_blk + w_blk + sb_blk) + acc + hbuf


def _choose_nb(N, H, W, Wxp, Cp, budget_bytes=20 * 1024 * 1024):
    """Largest divisor of N whose footprint fits the budget, keeping >=2 grid
    steps when N >= 2 so both v7x TensorCores get work."""
    best = 1
    for cand in range(1, N + 1):
        if N % cand:
            continue
        if N >= 2 and N // cand < 2:
            continue
        if _per_step_vmem_bytes(cand, H, W, Wxp, Cp) <= budget_bytes:
            best = cand
    return best


def basic_block(x_nchw, params, eps=1e-5, compute_dtype=jnp.bfloat16, nb=None):
    """x_nchw: (N, C, H, W) float32.  params: PyTorch-shaped tensors."""
    N, Cin, H, W = x_nchw.shape
    Cout = params["w1"].shape[0]
    assert Cin == Cout, "identity residual path requires in_channels == out_channels"
    # TODO(synk): stride != 1 / projection residual paths are not implemented.

    Cp = _round_up(max(Cin, Cout), 128)   # lane-dense channel padding
    Wxp = _round_up(W + 2, 8)             # sublane-aligned padded width
    # TODO(synk): for C < 128 stages an im2col K=9*Cin formulation would avoid
    # paying ~2x (or more) for the channel padding on the MXU and in HBM.
    # TODO(synk): W % 8 != 0 (e.g. 7x7 stages) stays correct but the flat<->4D
    # reshapes become real relayouts; pad W to 8 and mask the store for those.

    # NCHW -> NHWC (channels on the lane axis), single padded bf16 input slab.
    # TODO(synk): in a full network keep activations NHWC/Cp end-to-end and
    # fuse these transposes/pads into the producer (extra HBM passes here).
    x = jnp.transpose(x_nchw, (0, 2, 3, 1)).astype(jnp.float32)
    xpad = jnp.pad(x, ((0, 0), (1, 1), (1, Wxp - W - 1), (0, Cp - Cin)))
    xpad = xpad.astype(compute_dtype)                                          # bf16

    def prep_w(w):
        # OIHW -> HWIO -> channel pad -> fold (dy, ci) along K: (dx, 3*Cp, Cp)
        w = jnp.transpose(w, (2, 3, 1, 0))                                     # (dy,dx,ci,co)
        w = jnp.pad(w, ((0, 0), (0, 0), (0, Cp - w.shape[2]), (0, Cp - w.shape[3])))
        w = jnp.transpose(w, (1, 0, 2, 3)).reshape(3, 3 * Cp, Cp)              # (dx, dy*Cp+ci, co)
        return w.astype(compute_dtype)
        # TODO(synk): on v7x an fp8 weight path could ~2x MXU throughput once
        # the kernel is MXU-bound; kept bf16 for accuracy here.

    w1 = prep_w(params["w1"])
    w2 = prep_w(params["w2"])
    s1, b1 = _fold_bn(params["g1"], params["be1"], params["m1"], params["v1"], eps, Cp)
    s2, b2 = _fold_bn(params["g2"], params["be2"], params["m2"], params["v2"], eps, Cp)

    if nb is None:
        nb = _choose_nb(N, H, W, Wxp, Cp)
    assert N % nb == 0, f"batch {N} must be divisible by images-per-step {nb}"

    footprint = _per_step_vmem_bytes(nb, H, W, Wxp, Cp)
    vmem_limit_bytes = int(max(footprint + (8 << 20), 32 << 20))

    grid_spec = pltpu.PrefetchScalarGridSpec(
        num_scalar_prefetch=0,
        grid=(N // nb,),
        in_specs=[
            pl.BlockSpec((nb, H + 2, Wxp, Cp), lambda n: (n, 0, 0, 0)),  # xpad
            pl.BlockSpec((3, 3 * Cp, Cp), lambda n: (0, 0, 0)),          # w1 (folded)
            pl.BlockSpec((1, Cp), lambda n: (0, 0)),                     # s1
            pl.BlockSpec((1, Cp), lambda n: (0, 0)),                     # b1
            pl.BlockSpec((3, 3 * Cp, Cp), lambda n: (0, 0, 0)),          # w2 (folded)
            pl.BlockSpec((1, Cp), lambda n: (0, 0)),                     # s2
            pl.BlockSpec((1, Cp), lambda n: (0, 0)),                     # b2
        ],
        out_specs=pl.BlockSpec((nb, H, W, Cp), lambda n: (n, 0, 0, 0)),
        scratch_shapes=[
            pltpu.VMEM((nb * H * W, Cp), jnp.float32),         # flat conv accumulator
            pltpu.VMEM((nb, H + 2, Wxp, Cp), compute_dtype),   # conv2 halo buffer
        ],
    )

    out_padded = pl.pallas_call(
        basic_block_kernel,
        out_shape=jax.ShapeDtypeStruct((N, H, W, Cp), jnp.float32),
        grid_spec=grid_spec,
        compiler_params=pltpu.CompilerParams(
            # Batch axis is fully independent -> megacore-shardable on v7x.
            dimension_semantics=("parallel",),
            vmem_limit_bytes=vmem_limit_bytes,
        ),
    )(xpad, w1, s1, b1, w2, s2, b2)

    out = out_padded[:, :, :, :Cout]           # drop channel padding
    return jnp.transpose(out, (0, 3, 1, 2))    # back to NCHW


def basic_block_reference(x, p, eps=1e-5, compute_dtype=jnp.bfloat16):
    """Pure-JAX NCHW reference with matching conv precision (bf16 matmul
    inputs, f32 accumulation) for validating the kernel math."""
    def conv(x, w):
        return jax.lax.conv_general_dilated(
            x.astype(compute_dtype), w.astype(compute_dtype),
            window_strides=(1, 1), padding=((1, 1), (1, 1)),
            dimension_numbers=("NCHW", "OIHW", "NCHW"),
            preferred_element_type=jnp.float32)

    def bn(y, g, b, m, v):
        g, b, m, v = (t[None, :, None, None] for t in (g, b, m, v))
        return (y - m) / jnp.sqrt(v + eps) * g + b

    out = jax.nn.relu(bn(conv(x, p["w1"]), p["g1"], p["be1"], p["m1"], p["v1"]))
    out = bn(conv(out, p["w2"]), p["g2"], p["be2"], p["m2"], p["v2"])
    out = out + x
    return jax.nn.relu(out)


if __name__ == "__main__":
    # Small deterministic setup: BasicBlock(4, 4), input (2, 4, 16, 16).
    N, C, H, W = 2, 4, 16, 16
    key = jax.random.PRNGKey(0)
    ks = jax.random.split(key, 11)

    params = {
        "w1": 0.1 * jax.random.normal(ks[0], (C, C, 3, 3), jnp.float32),   # OIHW
        "w2": 0.1 * jax.random.normal(ks[1], (C, C, 3, 3), jnp.float32),
        "g1": jax.random.uniform(ks[2], (C,), jnp.float32, 0.5, 1.5),
        "be1": 0.1 * jax.random.normal(ks[3], (C,), jnp.float32),
        "m1": 0.1 * jax.random.normal(ks[4], (C,), jnp.float32),
        "v1": jax.random.uniform(ks[5], (C,), jnp.float32, 0.5, 1.5),
        "g2": jax.random.uniform(ks[6], (C,), jnp.float32, 0.5, 1.5),
        "be2": 0.1 * jax.random.normal(ks[7], (C,), jnp.float32),
        "m2": 0.1 * jax.random.normal(ks[8], (C,), jnp.float32),
        "v2": jax.random.uniform(ks[9], (C,), jnp.float32, 0.5, 1.5),
    }
    x = jax.random.normal(ks[10], (N, C, H, W), jnp.float32)

    out = jax.block_until_ready(basic_block(x, params))
    ref = jax.block_until_ready(basic_block_reference(x, params))

    assert out.shape == (N, C, H, W)
    max_err = float(jnp.max(jnp.abs(out - ref)))
    # bf16 MXU inputs with f32 accumulation; the kernel also carries the
    # identity residual in bf16 (sliced from the padded input) while the
    # reference adds it in f32, so the tolerance covers that extra ~1e-3
    # rounding on top of accumulation-order / folded-BN differences.
    assert jnp.allclose(out, ref, rtol=3e-2, atol=3e-2), max_err

    # TODO(synk): training-mode BatchNorm (batch statistics) is not implemented;
    # BN runs in inference mode with folded running stats.
    print("KERNEL_OK")
</pallas_src>

<mosaic_0001>
module attributes {stable_mosaic.version = 11 : i64} {
  func.func @basic_block_kernel(%arg0: i32, %arg1: memref<1x18x24x128xbf16, #tpu.memory_space<vmem>>, %arg2: memref<3x384x128xbf16, #tpu.memory_space<vmem>>, %arg3: memref<1x128xf32, #tpu.memory_space<vmem>>, %arg4: memref<1x128xf32, #tpu.memory_space<vmem>>, %arg5: memref<3x384x128xbf16, #tpu.memory_space<vmem>>, %arg6: memref<1x128xf32, #tpu.memory_space<vmem>>, %arg7: memref<1x128xf32, #tpu.memory_space<vmem>>, %arg8: memref<1x16x16x128xf32, #tpu.memory_space<vmem>>, %arg9: memref<256x128xf32, #tpu.memory_space<vmem>>, %arg10: memref<1x18x24x128xbf16, #tpu.memory_space<vmem>>) attributes {dimension_semantics = [#tpu.dimension_semantics<parallel>], iteration_bounds = array<i64: 2>, scalar_prefetch = 0 : i64, scratch_operands = 2 : i64, tpu.core_type = #tpu.core_type<tc>, window_params = [{transform_indices = @transform_0, window_bounds = array<i64: 1, 18, 24, 128>}, {pipeline_mode = #tpu.pipeline_mode<synchronous>, transform_indices = @transform_1, window_bounds = array<i64: 3, 384, 128>}, {pipeline_mode = #tpu.pipeline_mode<synchronous>, transform_indices = @transform_2, window_bounds = array<i64: 1, 128>}, {pipeline_mode = #tpu.pipeline_mode<synchronous>, transform_indices = @transform_3, window_bounds = array<i64: 1, 128>}, {pipeline_mode = #tpu.pipeline_mode<synchronous>, transform_indices = @transform_4, window_bounds = array<i64: 3, 384, 128>}, {pipeline_mode = #tpu.pipeline_mode<synchronous>, transform_indices = @transform_5, window_bounds = array<i64: 1, 128>}, {pipeline_mode = #tpu.pipeline_mode<synchronous>, transform_indices = @transform_6, window_bounds = array<i64: 1, 128>}, {transform_indices = @transform_7, window_bounds = array<i64: 1, 16, 16, 128>}]} {
    %c0 = arith.constant 0 : index
    %c0_0 = arith.constant 0 : index
    %c0_1 = arith.constant 0 : index
    %c0_2 = arith.constant 0 : index
    %0 = vector.load %arg1[%c0, %c0_0, %c0_1, %c0_2] : memref<1x18x24x128xbf16, #tpu.memory_space<vmem>>, vector<1x18x16x128xbf16>
    %1 = vector.extract_strided_slice %0 {offsets = [0, 0, 0, 0], sizes = [1, 16, 16, 128], strides = [1, 1, 1, 1]} : vector<1x18x16x128xbf16> to vector<1x16x16x128xbf16>
    %2 = vector.extract_strided_slice %0 {offsets = [0, 1, 0, 0], sizes = [1, 16, 16, 128], strides = [1, 1, 1, 1]} : vector<1x18x16x128xbf16> to vector<1x16x16x128xbf16>
    %3 = vector.extract_strided_slice %0 {offsets = [0, 2, 0, 0], sizes = [1, 16, 16, 128], strides = [1, 1, 1, 1]} : vector<1x18x16x128xbf16> to vector<1x16x16x128xbf16>
    %4 = tpu.concatenate %1, %2, %3 in 3 : vector<1x16x16x128xbf16>, vector<1x16x16x128xbf16>, vector<1x16x16x128xbf16> -> vector<1x16x16x384xbf16>
    %5 = vector.shape_cast %4 : vector<1x16x16x384xbf16> to vector<256x384xbf16>
    %c0_3 = arith.constant 0 : index
    %c0_4 = arith.constant 0 : index
    %c0_5 = arith.constant 0 : index
    %6 = vector.load %arg2[%c0_3, %c0_4, %c0_5] : memref<3x384x128xbf16, #tpu.memory_space<vmem>>, vector<1x384x128xbf16>
    %7 = vector.shape_cast %6 : vector<1x384x128xbf16> to vector<384x128xbf16>
    %cst = arith.constant dense<0.000000e+00> : vector<256x128xf32>
    %8 = tpu.matmul %5, %7, %cst {dimension_numbers = #tpu.dot_dimension_numbers<[1], [0], [0], [1], [0, 0, 1, 1], [], []>} : vector<256x384xbf16>, vector<384x128xbf16>, vector<256x128xf32> -> vector<256x128xf32>
    %c0_6 = arith.constant 0 : index
    %c0_7 = arith.constant 0 : index
    %9 = vector.load %arg9[%c0_6, %c0_7] : memref<256x128xf32, #tpu.memory_space<vmem>>, vector<256x128xf32>
    tpu.vector_store %arg9[%c0_6, %c0_7], %8 {strides = array<i32>} : memref<256x128xf32, #tpu.memory_space<vmem>>, vector<256x128xf32>,
    %c0_8 = arith.constant 0 : index
    %c0_9 = arith.constant 0 : index
    %c1 = arith.constant 1 : index
    %c0_10 = arith.constant 0 : index
    %10 = vector.load %arg1[%c0_8, %c0_9, %c1, %c0_10] : memref<1x18x24x128xbf16, #tpu.memory_space<vmem>>, vector<1x18x16x128xbf16>
    %11 = vector.extract_strided_slice %10 {offsets = [0, 0, 0, 0], sizes = [1, 16, 16, 128], strides = [1, 1, 1, 1]} : vector<1x18x16x128xbf16> to vector<1x16x16x128xbf16>
    %12 = vector.extract_strided_slice %10 {offsets = [0, 1, 0, 0], sizes = [1, 16, 16, 128], strides = [1, 1, 1, 1]} : vector<1x18x16x128xbf16> to vector<1x16x16x128xbf16>
    %13 = vector.extract_strided_slice %10 {offsets = [0, 2, 0, 0], sizes = [1, 16, 16, 128], strides = [1, 1, 1, 1]} : vector<1x18x16x128xbf16> to vector<1x16x16x128xbf16>
    %14 = tpu.concatenate %11, %12, %13 in 3 : vector<1x16x16x128xbf16>, vector<1x16x16x128xbf16>, vector<1x16x16x128xbf16> -> vector<1x16x16x384xbf16>
    %15 = vector.shape_cast %14 : vector<1x16x16x384xbf16> to vector<256x384xbf16>
    %c1_11 = arith.constant 1 : index
    %c0_12 = arith.constant 0 : index
    %c0_13 = arith.constant 0 : index
    %16 = vector.load %arg2[%c1_11, %c0_12, %c0_13] : memref<3x384x128xbf16, #tpu.memory_space<vmem>>, vector<1x384x128xbf16>
    %17 = vector.shape_cast %16 : vector<1x384x128xbf16> to vector<384x128xbf16>
    %cst_14 = arith.constant dense<0.000000e+00> : vector<256x128xf32>
    %18 = tpu.matmul %15, %17, %cst_14 {dimension_numbers = #tpu.dot_dimension_numbers<[1], [0], [0], [1], [0, 0, 1, 1], [], []>} : vector<256x384xbf16>, vector<384x128xbf16>, vector<256x128xf32> -> vector<256x128xf32>
    %c0_15 = arith.constant 0 : index
    %c0_16 = arith.constant 0 : index
    %19 = vector.load %arg9[%c0_15, %c0_16] : memref<256x128xf32, #tpu.memory_space<vmem>>, vector<256x128xf32>
    %20 = arith.addf %19, %18 : vector<256x128xf32>
    %c0_17 = arith.constant 0 : index
    %c0_18 = arith.constant 0 : index
    %21 = vector.load %arg9[%c0_17, %c0_18] : memref<256x128xf32, #tpu.memory_space<vmem>>, vector<256x128xf32>
    tpu.vector_store %arg9[%c0_17, %c0_18], %20 {strides = array<i32>} : memref<256x128xf32, #tpu.memory_space<vmem>>, vector<256x128xf32>,
    %c0_19 = arith.constant 0 : index
    %c0_20 = arith.constant 0 : index
    %c2 = arith.constant 2 : index
    %c0_21 = arith.constant 0 : index
    %22 = vector.load %arg1[%c0_19, %c0_20, %c2, %c0_21] : memref<1x18x24x128xbf16, #tpu.memory_space<vmem>>, vector<1x18x16x128xbf16>
    %23 = vector.extract_strided_slice %22 {offsets = [0, 0, 0, 0], sizes = [1, 16, 16, 128], strides = [1, 1, 1, 1]} : vector<1x18x16x128xbf16> to vector<1x16x16x128xbf16>
    %24 = vector.extract_strided_slice %22 {offsets = [0, 1, 0, 0], sizes = [1, 16, 16, 128], strides = [1, 1, 1, 1]} : vector<1x18x16x128xbf16> to vector<1x16x16x128xbf16>
    %25 = vector.extract_strided_slice %22 {offsets = [0, 2, 0, 0], sizes = [1, 16, 16, 128], strides = [1, 1, 1, 1]} : vector<1x18x16x128xbf16> to vector<1x16x16x128xbf16>
    %26 = tpu.concatenate %23, %24, %25 in 3 : vector<1x16x16x128xbf16>, vector<1x16x16x128xbf16>, vector<1x16x16x128xbf16> -> vector<1x16x16x384xbf16>
    %27 = vector.shape_cast %26 : vector<1x16x16x384xbf16> to vector<256x384xbf16>
    %c2_22 = arith.constant 2 : index
    %c0_23 = arith.constant 0 : index
    %c0_24 = arith.constant 0 : index
    %28 = vector.load %arg2[%c2_22, %c0_23, %c0_24] : memref<3x384x128xbf16, #tpu.memory_space<vmem>>, vector<1x384x128xbf16>
    %29 = vector.shape_cast %28 : vector<1x384x128xbf16> to vector<384x128xbf16>
    %cst_25 = arith.constant dense<0.000000e+00> : vector<256x128xf32>
    %30 = tpu.matmul %27, %29, %cst_25 {dimension_numbers = #tpu.dot_dimension_numbers<[1], [0], [0], [1], [0, 0, 1, 1], [], []>} : vector<256x384xbf16>, vector<384x128xbf16>, vector<256x128xf32> -> vector<256x128xf32>
    %c0_26 = arith.constant 0 : index
    %c0_27 = arith.constant 0 : index
    %31 = vector.load %arg9[%c0_26, %c0_27] : memref<256x128xf32, #tpu.memory_space<vmem>>, vector<256x128xf32>
    %32 = arith.addf %31, %30 : vector<256x128xf32>
    %c0_28 = arith.constant 0 : index
    %c0_29 = arith.constant 0 : index
    %33 = vector.load %arg9[%c0_28, %c0_29] : memref<256x128xf32, #tpu.memory_space<vmem>>, vector<256x128xf32>
    tpu.vector_store %arg9[%c0_28, %c0_29], %32 {strides = array<i32>} : memref<256x128xf32, #tpu.memory_space<vmem>>, vector<256x128xf32>,
    %c0_30 = arith.constant 0 : index
    %c0_31 = arith.constant 0 : index
    %34 = vector.load %arg9[%c0_30, %c0_31] : memref<256x128xf32, #tpu.memory_space<vmem>>, vector<256x128xf32>
    %c0_32 = arith.constant 0 : index
    %c0_33 = arith.constant 0 : index
    %35 = vector.load %arg3[%c0_32, %c0_33] : memref<1x128xf32, #tpu.memory_space<vmem>>, vector<1x128xf32>
    %36 = vector.broadcast %35 : vector<1x128xf32> to vector<256x128xf32>
    %37 = arith.mulf %34, %36 : vector<256x128xf32>
    %c0_34 = arith.constant 0 : index
    %c0_35 = arith.constant 0 : index
    %38 = vector.load %arg4[%c0_34, %c0_35] : memref<1x128xf32, #tpu.memory_space<vmem>>, vector<1x128xf32>
    %39 = vector.broadcast %38 : vector<1x128xf32> to vector<256x128xf32>
    %40 = arith.addf %37, %39 : vector<256x128xf32>
    %cst_36 = arith.constant 0.000000e+00 : f32
    %41 = vector.broadcast %cst_36 : f32 to vector<256x128xf32>
    %42 = arith.maximumf %40, %41 : vector<256x128xf32>
    %cst_37 = arith.constant 0.000000e+00 : bf16
    %43 = vector.broadcast %cst_37 : bf16 to vector<1x1x24x128xbf16>
    %c0_38 = arith.constant 0 : index
    %c0_39 = arith.constant 0 : index
    %c0_40 = arith.constant 0 : index
    %c0_41 = arith.constant 0 : index
    %44 = vector.load %arg10[%c0_38, %c0_39, %c0_40, %c0_41] : memref<1x18x24x128xbf16, #tpu.memory_space<vmem>>, vector<1x1x24x128xbf16>
    tpu.vector_store %arg10[%c0_38, %c0_39, %c0_40, %c0_41], %43 {strides = array<i32>} : memref<1x18x24x128xbf16, #tpu.memory_space<vmem>>, vector<1x1x24x128xbf16>,
    %cst_42 = arith.constant 0.000000e+00 : bf16
    %45 = vector.broadcast %cst_42 : bf16 to vector<1x1x24x128xbf16>
    %c0_43 = arith.constant 0 : index
    %c17 = arith.constant 17 : index
    %c0_44 = arith.constant 0 : index
    %c0_45 = arith.constant 0 : index
    %46 = vector.load %arg10[%c0_43, %c17, %c0_44, %c0_45] : memref<1x18x24x128xbf16, #tpu.memory_space<vmem>>, vector<1x1x24x128xbf16>
    tpu.vector_store %arg10[%c0_43, %c17, %c0_44, %c0_45], %45 {strides = array<i32>} : memref<1x18x24x128xbf16, #tpu.memory_space<vmem>>, vector<1x1x24x128xbf16>,
    %cst_46 = arith.constant 0.000000e+00 : bf16
    %47 = vector.broadcast %cst_46 : bf16 to vector<1x16x1x128xbf16>
    %c0_47 = arith.constant 0 : index
    %c1_48 = arith.constant 1 : index
    %c0_49 = arith.constant 0 : index
    %c0_50 = arith.constant 0 : index
    %48 = vector.load %arg10[%c0_47, %c1_48, %c0_49, %c0_50] : memref<1x18x24x128xbf16, #tpu.memory_space<vmem>>, vector<1x16x1x128xbf16>
    tpu.vector_store %arg10[%c0_47, %c1_48, %c0_49, %c0_50], %47 {strides = array<i32>} : memref<1x18x24x128xbf16, #tpu.memory_space<vmem>>, vector<1x16x1x128xbf16>,
    %cst_51 = arith.constant 0.000000e+00 : bf16
    %49 = vector.broadcast %cst_51 : bf16 to vector<1x16x1x128xbf16>
    %c0_52 = arith.constant 0 : index
    %c1_53 = arith.constant 1 : index
    %c17_54 = arith.constant 17 : index
    %c0_55 = arith.constant 0 : index
    %50 = vector.load %arg10[%c0_52, %c1_53, %c17_54, %c0_55] : memref<1x18x24x128xbf16, #tpu.memory_space<vmem>>, vector<1x16x1x128xbf16>
    tpu.vector_store %arg10[%c0_52, %c1_53, %c17_54, %c0_55], %49 {strides = array<i32>} : memref<1x18x24x128xbf16, #tpu.memory_space<vmem>>, vector<1x16x1x128xbf16>,
    %51 = vector.shape_cast %42 : vector<256x128xf32> to vector<1x16x16x128xf32>
    %52 = arith.truncf %51 : vector<1x16x16x128xf32> to vector<1x16x16x128xbf16>
    %c0_56 = arith.constant 0 : index
    %c1_57 = arith.constant 1 : index
    %c1_58 = arith.constant 1 : index
    %c0_59 = arith.constant 0 : index
    %53 = vector.load %arg10[%c0_56, %c1_57, %c1_58, %c0_59] : memref<1x18x24x128xbf16, #tpu.memory_space<vmem>>, vector<1x16x16x128xbf16>
    tpu.vector_store %arg10[%c0_56, %c1_57, %c1_58, %c0_59], %52 {strides = array<i32>} : memref<1x18x24x128xbf16, #tpu.memory_space<vmem>>, vector<1x16x16x128xbf16>,
    %c0_60 = arith.constant 0 : index
    %c0_61 = arith.constant 0 : index
    %c0_62 = arith.constant 0 : index
    %c0_63 = arith.constant 0 : index
    %54 = vector.load %arg10[%c0_60, %c0_61, %c0_62, %c0_63] : memref<1x18x24x128xbf16, #tpu.memory_space<vmem>>, vector<1x18x16x128xbf16>
    %55 = vector.extract_strided_slice %54 {offsets = [0, 0, 0, 0], sizes = [1, 16, 16, 128], strides = [1, 1, 1, 1]} : vector<1x18x16x128xbf16> to vector<1x16x16x128xbf16>
    %56 = vector.extract_strided_slice %54 {offsets = [0, 1, 0, 0], sizes = [1, 16, 16, 128], strides = [1, 1, 1, 1]} : vector<1x18x16x128xbf16> to vector<1x16x16x128xbf16>
    %57 = vector.extract_strided_slice %54 {offsets = [0, 2, 0, 0], sizes = [1, 16, 16, 128], strides = [1, 1, 1, 1]} : vector<1x18x16x128xbf16> to vector<1x16x16x128xbf16>
    %58 = tpu.concatenate %55, %56, %57 in 3 : vector<1x16x16x128xbf16>, vector<1x16x16x128xbf16>, vector<1x16x16x128xbf16> -> vector<1x16x16x384xbf16>
    %59 = vector.shape_cast %58 : vector<1x16x16x384xbf16> to vector<256x384xbf16>
    %c0_64 = arith.constant 0 : index
    %c0_65 = arith.constant 0 : index
    %c0_66 = arith.constant 0 : index
    %60 = vector.load %arg5[%c0_64, %c0_65, %c0_66] : memref<3x384x128xbf16, #tpu.memory_space<vmem>>, vector<1x384x128xbf16>
    %61 = vector.shape_cast %60 : vector<1x384x128xbf16> to vector<384x128xbf16>
    %cst_67 = arith.constant dense<0.000000e+00> : vector<256x128xf32>
    %62 = tpu.matmul %59, %61, %cst_67 {dimension_numbers = #tpu.dot_dimension_numbers<[1], [0], [0], [1], [0, 0, 1, 1], [], []>} : vector<256x384xbf16>, vector<384x128xbf16>, vector<256x128xf32> -> vector<256x128xf32>
    %c0_68 = arith.constant 0 : index
    %c0_69 = arith.constant 0 : index
    %63 = vector.load %arg9[%c0_68, %c0_69] : memref<256x128xf32, #tpu.memory_space<vmem>>, vector<256x128xf32>
    tpu.vector_store %arg9[%c0_68, %c0_69], %62 {strides = array<i32>} : memref<256x128xf32, #tpu.memory_space<vmem>>, vector<256x128xf32>,
    %c0_70 = arith.constant 0 : index
    %c0_71 = arith.constant 0 : index
    %c1_72 = arith.constant 1 : index
    %c0_73 = arith.constant 0 : index
    %64 = vector.load %arg10[%c0_70, %c0_71, %c1_72, %c0_73] : memref<1x18x24x128xbf16, #tpu.memory_space<vmem>>, vector<1x18x16x128xbf16>
    %65 = vector.extract_strided_slice %64 {offsets = [0, 0, 0, 0], sizes = [1, 16, 16, 128], strides = [1, 1, 1, 1]} : vector<1x18x16x128xbf16> to vector<1x16x16x128xbf16>
    %66 = vector.extract_strided_slice %64 {offsets = [0, 1, 0, 0], sizes = [1, 16, 16, 128], strides = [1, 1, 1, 1]} : vector<1x18x16x128xbf16> to vector<1x16x16x128xbf16>
    %67 = vector.extract_strided_slice %64 {offsets = [0, 2, 0, 0], sizes = [1, 16, 16, 128], strides = [1, 1, 1, 1]} : vector<1x18x16x128xbf16> to vector<1x16x16x128xbf16>
    %68 = tpu.concatenate %65, %66, %67 in 3 : vector<1x16x16x128xbf16>, vector<1x16x16x128xbf16>, vector<1x16x16x128xbf16> -> vector<1x16x16x384xbf16>
    %69 = vector.shape_cast %68 : vector<1x16x16x384xbf16> to vector<256x384xbf16>
    %c1_74 = arith.constant 1 : index
    %c0_75 = arith.constant 0 : index
    %c0_76 = arith.constant 0 : index
    %70 = vector.load %arg5[%c1_74, %c0_75, %c0_76] : memref<3x384x128xbf16, #tpu.memory_space<vmem>>, vector<1x384x128xbf16>
    %71 = vector.shape_cast %70 : vector<1x384x128xbf16> to vector<384x128xbf16>
    %cst_77 = arith.constant dense<0.000000e+00> : vector<256x128xf32>
    %72 = tpu.matmul %69, %71, %cst_77 {dimension_numbers = #tpu.dot_dimension_numbers<[1], [0], [0], [1], [0, 0, 1, 1], [], []>} : vector<256x384xbf16>, vector<384x128xbf16>, vector<256x128xf32> -> vector<256x128xf32>
    %c0_78 = arith.constant 0 : index
    %c0_79 = arith.constant 0 : index
    %73 = vector.load %arg9[%c0_78, %c0_79] : memref<256x128xf32, #tpu.memory_space<vmem>>, vector<256x128xf32>
    %74 = arith.addf %73, %72 : vector<256x128xf32>
    %c0_80 = arith.constant 0 : index
    %c0_81 = arith.constant 0 : index
    %75 = vector.load %arg9[%c0_80, %c0_81] : memref<256x128xf32, #tpu.memory_space<vmem>>, vector<256x128xf32>
    tpu.vector_store %arg9[%c0_80, %c0_81], %74 {strides = array<i32>} : memref<256x128xf32, #tpu.memory_space<vmem>>, vector<256x128xf32>,
    %c0_82 = arith.constant 0 : index
    %c0_83 = arith.constant 0 : index
    %c2_84 = arith.constant 2 : index
    %c0_85 = arith.constant 0 : index
    %76 = vector.load %arg10[%c0_82, %c0_83, %c2_84, %c0_85] : memref<1x18x24x128xbf16, #tpu.memory_space<vmem>>, vector<1x18x16x128xbf16>
    %77 = vector.extract_strided_slice %76 {offsets = [0, 0, 0, 0], sizes = [1, 16, 16, 128], strides = [1, 1, 1, 1]} : vector<1x18x16x128xbf16> to vector<1x16x16x128xbf16>
    %78 = vector.extract_strided_slice %76 {offsets = [0, 1, 0, 0], sizes = [1, 16, 16, 128], strides = [1, 1, 1, 1]} : vector<1x18x16x128xbf16> to vector<1x16x16x128xbf16>
    %79 = vector.extract_strided_slice %76 {offsets = [0, 2, 0, 0], sizes = [1, 16, 16, 128], strides = [1, 1, 1, 1]} : vector<1x18x16x128xbf16> to vector<1x16x16x128xbf16>
    %80 = tpu.concatenate %77, %78, %79 in 3 : vector<1x16x16x128xbf16>, vector<1x16x16x128xbf16>, vector<1x16x16x128xbf16> -> vector<1x16x16x384xbf16>
    %81 = vector.shape_cast %80 : vector<1x16x16x384xbf16> to vector<256x384xbf16>
    %c2_86 = arith.constant 2 : index
    %c0_87 = arith.constant 0 : index
    %c0_88 = arith.constant 0 : index
    %82 = vector.load %arg5[%c2_86, %c0_87, %c0_88] : memref<3x384x128xbf16, #tpu.memory_space<vmem>>, vector<1x384x128xbf16>
    %83 = vector.shape_cast %82 : vector<1x384x128xbf16> to vector<384x128xbf16>
    %cst_89 = arith.constant dense<0.000000e+00> : vector<256x128xf32>
    %84 = tpu.matmul %81, %83, %cst_89 {dimension_numbers = #tpu.dot_dimension_numbers<[1], [0], [0], [1], [0, 0, 1, 1], [], []>} : vector<256x384xbf16>, vector<384x128xbf16>, vector<256x128xf32> -> vector<256x128xf32>
    %c0_90 = arith.constant 0 : index
    %c0_91 = arith.constant 0 : index
    %85 = vector.load %arg9[%c0_90, %c0_91] : memref<256x128xf32, #tpu.memory_space<vmem>>, vector<256x128xf32>
    %86 = arith.addf %85, %84 : vector<256x128xf32>
    %c0_92 = arith.constant 0 : index
    %c0_93 = arith.constant 0 : index
    %87 = vector.load %arg9[%c0_92, %c0_93] : memref<256x128xf32, #tpu.memory_space<vmem>>, vector<256x128xf32>
    tpu.vector_store %arg9[%c0_92, %c0_93], %86 {strides = array<i32>} : memref<256x128xf32, #tpu.memory_space<vmem>>, vector<256x128xf32>,
    %c0_94 = arith.constant 0 : index
    %c0_95 = arith.constant 0 : index
    %88 = vector.load %arg9[%c0_94, %c0_95] : memref<256x128xf32, #tpu.memory_space<vmem>>, vector<256x128xf32>
    %c0_96 = arith.constant 0 : index
    %c0_97 = arith.constant 0 : index
    %89 = vector.load %arg6[%c0_96, %c0_97] : memref<1x128xf32, #tpu.memory_space<vmem>>, vector<1x128xf32>
    %90 = vector.broadcast %89 : vector<1x128xf32> to vector<256x128xf32>
    %91 = arith.mulf %88, %90 : vector<256x128xf32>
    %c0_98 = arith.constant 0 : index
    %c0_99 = arith.constant 0 : index
    %92 = vector.load %arg7[%c0_98, %c0_99] : memref<1x128xf32, #tpu.memory_space<vmem>>, vector<1x128xf32>
    %93 = vector.broadcast %92 : vector<1x128xf32> to vector<256x128xf32>
    %94 = arith.addf %91, %93 : vector<256x128xf32>
    %c0_100 = arith.constant 0 : index
    %c1_101 = arith.constant 1 : index
    %c1_102 = arith.constant 1 : index
    %c0_103 = arith.constant 0 : index
    %95 = vector.load %arg1[%c0_100, %c1_101, %c1_102, %c0_103] : memref<1x18x24x128xbf16, #tpu.memory_space<vmem>>, vector<1x16x16x128xbf16>
    %96 = vector.shape_cast %95 : vector<1x16x16x128xbf16> to vector<256x128xbf16>
    %97 = arith.extf %96 : vector<256x128xbf16> to vector<256x128xf32>
    %98 = arith.addf %94, %97 : vector<256x128xf32>
    %cst_104 = arith.constant 0.000000e+00 : f32
    %99 = vector.broadcast %cst_104 : f32 to vector<256x128xf32>
    %100 = arith.maximumf %98, %99 : vector<256x128xf32>
    %101 = vector.shape_cast %100 : vector<256x128xf32> to vector<1x16x16x128xf32>
    %c0_105 = arith.constant 0 : index
    %c0_106 = arith.constant 0 : index
    %c0_107 = arith.constant 0 : index
    %c0_108 = arith.constant 0 : index
    %102 = vector.load %arg8[%c0_105, %c0_106, %c0_107, %c0_108] : memref<1x16x16x128xf32, #tpu.memory_space<vmem>>, vector<1x16x16x128xf32>
    tpu.vector_store %arg8[%c0_105, %c0_106, %c0_107, %c0_108], %101 {strides = array<i32>} : memref<1x16x16x128xf32, #tpu.memory_space<vmem>>, vector<1x16x16x128xf32>,
    return
  }
  func.func @transform_0(%arg0: i32) -> (i32, i32, i32, i32) {
    %c0_i32 = arith.constant 0 : i32
    %c0_i32_0 = arith.constant 0 : i32
    %c0_i32_1 = arith.constant 0 : i32
    %c0_i32_2 = arith.constant 0 : i32
    return %arg0, %c0_i32, %c0_i32_0, %c0_i32_1 : i32, i32, i32, i32
  }
  func.func @transform_1(%arg0: i32) -> (i32, i32, i32) {
    %c0_i32 = arith.constant 0 : i32
    %c0_i32_0 = arith.constant 0 : i32
    %c0_i32_1 = arith.constant 0 : i32
    %c0_i32_2 = arith.constant 0 : i32
    return %c0_i32, %c0_i32_0, %c0_i32_1 : i32, i32, i32
  }
  func.func @transform_2(%arg0: i32) -> (i32, i32) {
    %c0_i32 = arith.constant 0 : i32
    %c0_i32_0 = arith.constant 0 : i32
    %c0_i32_1 = arith.constant 0 : i32
    return %c0_i32, %c0_i32_0 : i32, i32
  }
  func.func @transform_3(%arg0: i32) -> (i32, i32) {
    %c0_i32 = arith.constant 0 : i32
    %c0_i32_0 = arith.constant 0 : i32
    %c0_i32_1 = arith.constant 0 : i32
    return %c0_i32, %c0_i32_0 : i32, i32
  }
  func.func @transform_4(%arg0: i32) -> (i32, i32, i32) {
    %c0_i32 = arith.constant 0 : i32
    %c0_i32_0 = arith.constant 0 : i32
    %c0_i32_1 = arith.constant 0 : i32
    %c0_i32_2 = arith.constant 0 : i32
    return %c0_i32, %c0_i32_0, %c0_i32_1 : i32, i32, i32
  }
  func.func @transform_5(%arg0: i32) -> (i32, i32) {
    %c0_i32 = arith.constant 0 : i32
    %c0_i32_0 = arith.constant 0 : i32
    %c0_i32_1 = arith.constant 0 : i32
    return %c0_i32, %c0_i32_0 : i32, i32
  }
  func.func @transform_6(%arg0: i32) -> (i32, i32) {
    %c0_i32 = arith.constant 0 : i32
    %c0_i32_0 = arith.constant 0 : i32
    %c0_i32_1 = arith.constant 0 : i32
    return %c0_i32, %c0_i32_0 : i32, i32
  }
  func.func @transform_7(%arg0: i32) -> (i32, i32, i32, i32) {
    %c0_i32 = arith.constant 0 : i32
    %c0_i32_0 = arith.constant 0 : i32
    %c0_i32_1 = arith.constant 0 : i32
    %c0_i32_2 = arith.constant 0 : i32
    return %arg0, %c0_i32, %c0_i32_0, %c0_i32_1 : i32, i32, i32, i32
  }
}

</mosaic_0001>

<llo_original>
// kernel: tpu_custom_call.1
$region0: #{tpu_custom_call.1}
  #allocation0 [shape = 'u32[]', space=smem, size = 0x4, offset = 0x4, fixed_abs, tag = 'smem constant byte address 0x4 - core index']
  #allocation1 [shape = 'u32[144,128]{1,0:T(1,128)}', space=vmem, size = 0x12000, scoped, tag = 'internal scratch']
  #allocation2 [shape = 'f32[256,128]{1,0:T(8,128)}', space=vmem, size = 0x20000, scoped, tag = 'scratch operand']
  #allocation3 [shape = 'bf16[1,18,24,128]{3,2,1,0:T(8,128)(2,1)}', space=vmem, size = 0x1b000, scoped, tag = 'scratch operand']
  %s0 = inlined_call_operand.hbm [shape: bf16[2,18,24,128], index: 0, kind: input, shape index: {}]
  %s1 = inlined_call_operand.hbm [shape: bf16[3,384,128], index: 1, kind: input, shape index: {}]
  %s2 = inlined_call_operand.vmem [shape: f32[1,128], index: 2, kind: input, shape index: {}]
  %s3 = inlined_call_operand.vmem [shape: f32[1,128], index: 3, kind: input, shape index: {}]
  %s4 = inlined_call_operand.hbm [shape: bf16[3,384,128], index: 4, kind: input, shape index: {}]
  %s5 = inlined_call_operand.vmem [shape: f32[1,128], index: 5, kind: input, shape index: {}]
  %s6 = inlined_call_operand.vmem [shape: f32[1,128], index: 6, kind: input, shape index: {}]
  %s7 = inlined_call_operand.hbm [shape: f32[2,16,16,128], index: 7, kind: output, shape index: {}]
  %s8 = sld [smem:[#allocation0]]
  $region73: #{tpu_custom_call.1} parent=0
    _
  %s10 = ssub.s32 1, %s8
  %s11 = scalar_select 0, %s10, %s8
  $region1: #{tpu_custom_call.1} parent=0
    #allocation4 [shape = 'u8[221184]{0}', space=vmem, size = 0x36000, scoped, tag = 'input window, operand 0']
    #allocation5 [shape = 's32[2]{0}', space=sflag, size = 0x8, scoped, tag = 'scoped memory for tpu_custom_call.1']
    #allocation6 [shape = 's32[2]{0}', space=sflag, size = 0x8, scoped, tag = 'scoped memory for tpu_custom_call.1']
    #allocation7 [shape = 'u8[294912]{0}', space=vmem, size = 0x48000, scoped, tag = 'input window, operand 1, single buffered']
    #allocation8 [shape = 's32[1]{0}', space=sflag, size = 0x4, scoped, tag = 'scoped memory for tpu_custom_call.1']
    #allocation9 [shape = 'u8[294912]{0}', space=vmem, size = 0x48000, scoped, tag = 'input window, operand 4, single buffered']
    #allocation10 [shape = 'u8[262144]{0}', space=vmem, size = 0x40000, scoped, tag = 'output window, operand 0']
    %12 = vsyncpa [#allocation5], 0
    %s13 = scalar_lea.sflag [#allocation5], 1
    %14 = vsyncpa %s13, 0
    %15 = vsyncpa [#allocation8], 0
    %16 = vsyncpa [#allocation6], 0
    %s17 = scalar_lea.sflag [#allocation6], 1
    %18 = vsyncpa %s17, 0
    loop: start=0, step=1, limit=4
    $region2: #{tpu_custom_call.1} parent=1 // loop_pre_header
      _
    $region3: #{tpu_custom_call.1} parent=1 // loop_header
      %s20 = sphi 0, %s24
      %p21 = scmp.ge.s32.totalorder %s20, 4
      %s30 = sphi 0, %s32
      %s33 = sphi 0, %s30
      %s34 = sphi 0, %s33
      %s50 = sphi 0, %s34
      %s54 = sphi 0, %s54
      %s56 = sphi 0, %s54
      %s57 = sphi 0, %s56
      %s71 = sphi 0, %s57
      %s75 = sphi 0, %s75
      %s77 = sphi 0, %s75
      %s78 = sphi 0, %s77
      %s92 = sphi 0, %s78
      %s96 = sphi 0, %s96
      %s98 = sphi 0, %s96
      %s99 = sphi 0, %s98
      %s113 = sphi 0, %s99
      %s117 = sphi 0, %s117
      %s119 = sphi 0, %s117
      %s120 = sphi 0, %s119
      %s134 = sphi 0, %s120
      %s138 = sphi 0, %s138
      %s140 = sphi 0, %s138
      %s141 = sphi 0, %s140
      %s155 = sphi 0, %s141
      %s159 = sphi 0, %s159
      %s161 = sphi 0, %s159
      %s162 = sphi 0, %s161
      %s176 = sphi 0, %s162
      %s182 = sphi 0, %s184
      %s185 = sphi 0, %s182
      %s186 = sphi 0, %s185
      %s202 = sphi 0, %s186
    $region4: #{tpu_custom_call.1} parent=1 // loop_header_branch
      %23 = sbr.rel (%p21) target = $region8
    $region5: #{tpu_custom_call.1} parent=1 // loop_body
      %s25 = ssub.s32 %s20, 1
      %s26 = ssub.s32 %s20, 2
      %s27 = sadd.s32 %s20, 1
      %s28 = ssub.s32 %s20, %s27
      %p29 = scmp.eq.s32.totalorder %s28, 0
      %s31 = sadd.s32 %s30, 1
      %s32 = scalar_select %p29, %s30, %s31
      %p35 = pneg %p29
      %p36 = scmp.eq.s32.totalorder %s20, 1
      %p37 = por %p35, %p36
      %p38 = scmp.ne.s32.totalorder %s30, %s33
      %p39 = scmp.eq.s32.totalorder %s20, 0
      %p40 = por %p38, %p39
      %p41 = scmp.ne.s32.totalorder %s30, %s33
      %p42 = scmp.eq.s32.totalorder %s25, 1
      %p43 = por %p41, %p42
      %p44 = scmp.ne.s32.totalorder %s33, %s34
      %p45 = scmp.eq.s32.totalorder %s25, 0
      %p46 = por %p44, %p45
      %p47 = scmp.ne.s32.totalorder %s33, %s34
      %p48 = scmp.eq.s32.totalorder %s26, 1
      %p49 = por %p47, %p48
      %p51 = scmp.ne.s32.totalorder %s34, %s50
      %p52 = scmp.eq.s32.totalorder %s26, 0
      %p53 = por %p51, %p52
      %s55 = sadd.s32 %s54, 1
      %p58 = scmp.eq.s32.totalorder %s20, 1
      %p59 = scmp.ne.s32.totalorder %s54, %s56
      %p60 = scmp.eq.s32.totalorder %s20, 0
      %p61 = por %p59, %p60
      %p62 = scmp.ne.s32.totalorder %s54, %s56
      %p63 = scmp.eq.s32.totalorder %s25, 1
      %p64 = por %p62, %p63
      %p65 = scmp.ne.s32.totalorder %s56, %s57
      %p66 = scmp.eq.s32.totalorder %s25, 0
      %p67 = por %p65, %p66
      %p68 = scmp.ne.s32.totalorder %s56, %s57
      %p69 = scmp.eq.s32.totalorder %s26, 1
      %p70 = por %p68, %p69
      %p72 = scmp.ne.s32.totalorder %s57, %s71
      %p73 = scmp.eq.s32.totalorder %s26, 0
      %p74 = por %p72, %p73
      %s76 = sadd.s32 %s75, 1
      %p79 = scmp.eq.s32.totalorder %s20, 1
      %p80 = scmp.ne.s32.totalorder %s75, %s77
      %p81 = scmp.eq.s32.totalorder %s20, 0
      %p82 = por %p80, %p81
      %p83 = scmp.ne.s32.totalorder %s75, %s77
      %p84 = scmp.eq.s32.totalorder %s25, 1
      %p85 = por %p83, %p84
      %p86 = scmp.ne.s32.totalorder %s77, %s78
      %p87 = scmp.eq.s32.totalorder %s25, 0
      %p88 = por %p86, %p87
      %p89 = scmp.ne.s32.totalorder %s77, %s78
      %p90 = scmp.eq.s32.totalorder %s26, 1
      %p91 = por %p89, %p90
      %p93 = scmp.ne.s32.totalorder %s78, %s92
      %p94 = scmp.eq.s32.totalorder %s26, 0
      %p95 = por %p93, %p94
      %s97 = sadd.s32 %s96, 1
      %p100 = scmp.eq.s32.totalorder %s20, 1
      %p101 = scmp.ne.s32.totalorder %s96, %s98
      %p102 = scmp.eq.s32.totalorder %s20, 0
      %p103 = por %p101, %p102
      %p104 = scmp.ne.s32.totalorder %s96, %s98
      %p105 = scmp.eq.s32.totalorder %s25, 1
      %p106 = por %p104, %p105
      %p107 = scmp.ne.s32.totalorder %s98, %s99
      %p108 = scmp.eq.s32.totalorder %s25, 0
      %p109 = por %p107, %p108
      %p110 = scmp.ne.s32.totalorder %s98, %s99
      %p111 = scmp.eq.s32.totalorder %s26, 1
      %p112 = por %p110, %p111
      %p114 = scmp.ne.s32.totalorder %s99, %s113
      %p115 = scmp.eq.s32.totalorder %s26, 0
      %p116 = por %p114, %p115
      %s118 = sadd.s32 %s117, 1
      %p121 = scmp.eq.s32.totalorder %s20, 1
      %p122 = scmp.ne.s32.totalorder %s117, %s119
      %p123 = scmp.eq.s32.totalorder %s20, 0
      %p124 = por %p122, %p123
      %p125 = scmp.ne.s32.totalorder %s117, %s119
      %p126 = scmp.eq.s32.totalorder %s25, 1
      %p127 = por %p125, %p126
      %p128 = scmp.ne.s32.totalorder %s119, %s120
      %p129 = scmp.eq.s32.totalorder %s25, 0
      %p130 = por %p128, %p129
      %p131 = scmp.ne.s32.totalorder %s119, %s120
      %p132 = scmp.eq.s32.totalorder %s26, 1
      %p133 = por %p131, %p132
      %p135 = scmp.ne.s32.totalorder %s120, %s134
      %p136 = scmp.eq.s32.totalorder %s26, 0
      %p137 = por %p135, %p136
      %s139 = sadd.s32 %s138, 1
      %p142 = scmp.eq.s32.totalorder %s20, 1
      %p143 = scmp.ne.s32.totalorder %s138, %s140
      %p144 = scmp.eq.s32.totalorder %s20, 0
      %p145 = por %p143, %p144
      %p146 = scmp.ne.s32.totalorder %s138, %s140
      %p147 = scmp.eq.s32.totalorder %s25, 1
      %p148 = por %p146, %p147
      %p149 = scmp.ne.s32.totalorder %s140, %s141
      %p150 = scmp.eq.s32.totalorder %s25, 0
      %p151 = por %p149, %p150
      %p152 = scmp.ne.s32.totalorder %s140, %s141
      %p153 = scmp.eq.s32.totalorder %s26, 1
      %p154 = por %p152, %p153
      %p156 = scmp.ne.s32.totalorder %s141, %s155
      %p157 = scmp.eq.s32.totalorder %s26, 0
      %p158 = por %p156, %p157
      %s160 = sadd.s32 %s159, 1
      %p163 = scmp.eq.s32.totalorder %s20, 1
      %p164 = scmp.ne.s32.totalorder %s159, %s161
      %p165 = scmp.eq.s32.totalorder %s20, 0
      %p166 = por %p164, %p165
      %p167 = scmp.ne.s32.totalorder %s159, %s161
      %p168 = scmp.eq.s32.totalorder %s25, 1
      %p169 = por %p167, %p168
      %p170 = scmp.ne.s32.totalorder %s161, %s162
      %p171 = scmp.eq.s32.totalorder %s25, 0
      %p172 = por %p170, %p171
      %p173 = scmp.ne.s32.totalorder %s161, %s162
      %p174 = scmp.eq.s32.totalorder %s26, 1
      %p175 = por %p173, %p174
      %p177 = scmp.ne.s32.totalorder %s162, %s176
      %p178 = scmp.eq.s32.totalorder %s26, 0
      %p179 = por %p177, %p178
      %s180 = ssub.s32 %s20, %s27
      %p181 = scmp.eq.s32.totalorder %s180, 0
      %s183 = sadd.s32 %s182, 1
      %s184 = scalar_select %p181, %s182, %s183
      %p187 = pneg %p181
      %p188 = scmp.eq.s32.totalorder %s20, 1
      %p189 = por %p187, %p188
      %p190 = scmp.ne.s32.totalorder %s182, %s185
      %p191 = scmp.eq.s32.totalorder %s20, 0
      %p192 = por %p190, %p191
      %p193 = scmp.ne.s32.totalorder %s182, %s185
      %p194 = scmp.eq.s32.totalorder %s25, 1
      %p195 = por %p193, %p194
      %p196 = scmp.ne.s32.totalorder %s185, %s186
      %p197 = scmp.eq.s32.totalorder %s25, 0
      %p198 = por %p196, %p197
      %p199 = scmp.ne.s32.totalorder %s185, %s186
      %p200 = scmp.eq.s32.totalorder %s26, 1
      %p201 = por %p199, %p200
      %p203 = scmp.ne.s32.totalorder %s186, %s202
      %p204 = scmp.eq.s32.totalorder %s26, 0
      %p205 = por %p203, %p204
      %p206 = scmp.le.s32.totalorder 1, %s20
      %p207 = scmp.lt.s32.totalorder %s20, 3
      %p208 = pnand %p206, %p207
      %p209 = pneg %p208
      // Predicated region
      $region9: #{tpu_custom_call.1} parent=5 // pred_check
        _
      $region10: #{tpu_custom_call.1} parent=5 // pred_check_branch
        %211 = sbr.rel (%p208) target = $region12
      $region11: #{tpu_custom_call.1} parent=5 // pred_region
        %s212 = ssub.s32 %s20, 1
        // Predicated region
        $region13: #{tpu_custom_call.1} parent=11 // pred_check
          %p213 = pneg %p67
        $region14: #{tpu_custom_call.1} parent=11 // pred_check_branch
          %215 = sbr.rel (%p213) target = $region16
        $region15: #{tpu_custom_call.1} parent=11 // pred_region
          %s217 = ssub.s32 9216, 9216
          %218 = vsyncadd [#allocation8], %s217
          %s219 = sshll.u32 [#allocation7], 4
          %s220 = int_to_ptr.vmem [resolvable:$true] %s219
          %225 = dma.hbm_to_vmem [thread:$0]  %s1, 9216, %s220, [#allocation8], 64, 64, 4
        $region16: #{tpu_custom_call.1} parent=11 // pred_fallthru
          _
        // Predicated region
        $region17: #{tpu_custom_call.1} parent=11 // pred_check
          %p226 = pneg %p88
        $region18: #{tpu_custom_call.1} parent=11 // pred_check_branch
          %228 = sbr.rel (%p226) target = $region20
        $region19: #{tpu_custom_call.1} parent=11 // pred_region
          _
        $region20: #{tpu_custom_call.1} parent=11 // pred_fallthru
          _
        // Predicated region
        $region21: #{tpu_custom_call.1} parent=11 // pred_check
          %p229 = pneg %p109
        $region22: #{tpu_custom_call.1} parent=11 // pred_check_branch
          %231 = sbr.rel (%p229) target = $region24
        $region23: #{tpu_custom_call.1} parent=11 // pred_region
          _
        $region24: #{tpu_custom_call.1} parent=11 // pred_fallthru
          _
        // Predicated region
        $region25: #{tpu_custom_call.1} parent=11 // pred_check
          %p232 = pneg %p130
        $region26: #{tpu_custom_call.1} parent=11 // pred_check_branch
          %234 = sbr.rel (%p232) target = $region28
        $region27: #{tpu_custom_call.1} parent=11 // pred_region
          %s236 = ssub.s32 9216, 9216
          %237 = vsyncadd [#allocation8], %s236
          %s238 = sshll.u32 [#allocation9], 4
          %s239 = int_to_ptr.vmem [resolvable:$true] %s238
          %244 = dma.hbm_to_vmem [thread:$0]  %s4, 9216, %s239, [#allocation8], 64, 64, 4
        $region28: #{tpu_custom_call.1} parent=11 // pred_fallthru
          _
        // Predicated region
        $region29: #{tpu_custom_call.1} parent=11 // pred_check
          %p245 = pneg %p151
        $region30: #{tpu_custom_call.1} parent=11 // pred_check_branch
          %247 = sbr.rel (%p245) target = $region32
        $region31: #{tpu_custom_call.1} parent=11 // pred_region
          _
        $region32: #{tpu_custom_call.1} parent=11 // pred_fallthru
          _
        // Predicated region
        $region33: #{tpu_custom_call.1} parent=11 // pred_check
          %p248 = pneg %p172
        $region34: #{tpu_custom_call.1} parent=11 // pred_check_branch
          %250 = sbr.rel (%p248) target = $region36
        $region35: #{tpu_custom_call.1} parent=11 // pred_region
          _
        $region36: #{tpu_custom_call.1} parent=11 // pred_fallthru
          _
      $region12: #{tpu_custom_call.1} parent=5 // pred_fallthru
        _
      %p251 = scmp.lt.s32.totalorder %s20, 2
      // Predicated region
      $region37: #{tpu_custom_call.1} parent=5 // pred_check
        %p252 = pneg %p251
      $region38: #{tpu_custom_call.1} parent=5 // pred_check_branch
        %254 = sbr.rel (%p252) target = $region40
      $region39: #{tpu_custom_call.1} parent=5 // pred_region
        // Predicated region
        $region41: #{tpu_custom_call.1} parent=39 // pred_check
          %p255 = pneg %p40
        $region42: #{tpu_custom_call.1} parent=39 // pred_check_branch
          %257 = sbr.rel (%p255) target = $region44
        $region43: #{tpu_custom_call.1} parent=39 // pred_region
          %s258 = sand.u32 %s30, 1
          %s259 = scalar_lea.sflag [#allocation5], %s258
          %s260 = sand.u32 %s30, 1
          %s261 = smul.addr %s260, 216
          %s262 = scalar_lea.vmem [#allocation4], %s261
          %s264 = ssub.s32 3456, 3456
          %265 = vsyncadd %s259, %s264
          %s266 = smul.addr %s20, 54
          %s267 = smul.addr %s266, 64
          %s268 = scalar_lea.hbm %s0, %s267
          %s269 = sshll.u32 %s262, 4
          %s270 = int_to_ptr.vmem [resolvable:$true] %s269
          %275 = dma.hbm_to_vmem [thread:$0]  %s268, 3456, %s270, %s259, 64, 64, 4
        $region44: #{tpu_custom_call.1} parent=39 // pred_fallthru
          _
      $region40: #{tpu_custom_call.1} parent=5 // pred_fallthru
        _
      %p276 = scmp.le.s32.totalorder 1, %s20
      %p277 = scmp.lt.s32.totalorder %s20, 3
      %p278 = pnand %p276, %p277
      %p279 = pneg %p278
      // Predicated region
      $region45: #{tpu_custom_call.1} parent=5 // pred_check
        _
      $region46: #{tpu_custom_call.1} parent=5 // pred_check_branch
        %281 = sbr.rel (%p278) target = $region48
      $region47: #{tpu_custom_call.1} parent=5 // pred_region
        %s282 = ssub.s32 %s20, 1
        %s283 = sand.u32 %s33, 1
        %s284 = scalar_lea.sflag [#allocation5], %s283
        %s285 = sand.u32 %s33, 1
        %s286 = smul.addr %s285, 216
        %s287 = scalar_lea.vmem [#allocation4], %s286
        // Predicated region
        $region49: #{tpu_custom_call.1} parent=47 // pred_check
          %p288 = pneg %p46
        $region50: #{tpu_custom_call.1} parent=47 // pred_check_branch
          %290 = sbr.rel (%p288) target = $region52
        $region51: #{tpu_custom_call.1} parent=47 // pred_region
          %291 = dma.done %s284, 3456
        $region52: #{tpu_custom_call.1} parent=47 // pred_fallthru
          _
        // Predicated region
        $region53: #{tpu_custom_call.1} parent=47 // pred_check
          %p292 = pneg %p67
        $region54: #{tpu_custom_call.1} parent=47 // pred_check_branch
          %294 = sbr.rel (%p292) target = $region56
        $region55: #{tpu_custom_call.1} parent=47 // pred_region
          %295 = dma.done [#allocation8], 9216
        $region56: #{tpu_custom_call.1} parent=47 // pred_fallthru
          _
        // Predicated region
        $region57: #{tpu_custom_call.1} parent=47 // pred_check
          %p296 = pneg %p130
        $region58: #{tpu_custom_call.1} parent=47 // pred_check_branch
          %298 = sbr.rel (%p296) target = $region60
        $region59: #{tpu_custom_call.1} parent=47 // pred_region
          %299 = dma.done [#allocation8], 9216
        $region60: #{tpu_custom_call.1} parent=47 // pred_fallthru
          _
        %s300 = sand.u32 %s33, 1
        %s301 = scalar_lea.sflag [#allocation5], %s300
        %s302 = sand.u32 %s33, 1
        %s303 = smul.addr %s302, 216
        %s304 = scalar_lea.vmem [#allocation4], %s303
        %p305 = pneg %p46
        %p306 = pneg %p43
        %p307 = pneg %p67
        %p308 = pneg %p64
        %p309 = pneg %p88
        %p310 = pneg %p85
        %p311 = pneg %p109
        %p312 = pneg %p106
        %p313 = pneg %p130
        %p314 = pneg %p127
        %p315 = pneg %p151
        %p316 = pneg %p148
        %p317 = pneg %p172
        %p318 = pneg %p169
        %p319 = pneg %p198
        %p320 = pneg %p195
        %s321 = sand.u32 %s185, 1
        %s322 = scalar_lea.sflag [#allocation6], %s321
        %s323 = sand.u32 %s185, 1
        %s324 = smul.addr %s323, 256
        %s325 = scalar_lea.vmem [#allocation10], %s324
        %v327 = vld [vmem:[%s287] sm:$0xf]
        %v328 = vld [vmem:[%s287 + $0x4] sm:$0xf]
        %v329 = vld [vmem:[%s287 + $0xc] sm:$0xf]
        %v330 = vld [vmem:[%s287 + $0x10] sm:$0xf]
        %v331 = vld [vmem:[%s287 + $0x18] sm:$0xf]
        %v332 = vld [vmem:[%s287 + $0x1c] sm:$0xf]
        %v333 = vld [vmem:[%s287 + $0x24] sm:$0xf]
        %v334 = vld [vmem:[%s287 + $0x28] sm:$0xf]
        %v335 = vld [vmem:[%s287 + $0x30] sm:$0xf]
        %v336 = vld [vmem:[%s287 + $0x34] sm:$0xf]
        %v337 = vld [vmem:[%s287 + $0x3c] sm:$0xf]
        %v338 = vld [vmem:[%s287 + $0x40] sm:$0xf]
        %v339 = vld [vmem:[%s287 + $0x48] sm:$0xf]
        %v340 = vld [vmem:[%s287 + $0x4c] sm:$0xf]
        %v341 = vld [vmem:[%s287 + $0x54] sm:$0xf]
        %v342 = vld [vmem:[%s287 + $0x58] sm:$0xf]
        %v343 = vld [vmem:[%s287 + $0x60] sm:$0xf]
        %v344 = vld [vmem:[%s287 + $0x64] sm:$0xf]
        %v345 = vld [vmem:[%s287 + $0x6c] sm:$0xf]
        %v346 = vld [vmem:[%s287 + $0x70] sm:$0xf]
        %v347 = vld [vmem:[%s287 + $0x78] sm:$0xf]
        %v348 = vld [vmem:[%s287 + $0x7c] sm:$0xf]
        %v349 = vld [vmem:[%s287 + $0x84] sm:$0xf]
        %v350 = vld [vmem:[%s287 + $0x88] sm:$0xf]
        %v351 = vld [vmem:[%s287 + $0x90] sm:$0xf]
        %v352 = vld [vmem:[%s287 + $0x94] sm:$0xf]
        %v353 = vld [vmem:[%s287 + $0x9c] sm:$0xf]
        %v354 = vld [vmem:[%s287 + $0xa0] sm:$0xf]
        %v355 = vld [vmem:[%s287 + $0xa8] sm:$0xf]
        %v356 = vld [vmem:[%s287 + $0xac] sm:$0xf]
        %v357 = vld [vmem:[%s287 + $0xb4] sm:$0xf]
        %v358 = vld [vmem:[%s287 + $0xb8] sm:$0xf]
        %v359 = vld [vmem:[%s287 + $0xc0] sm:$0xf]
        %v360 = vld [vmem:[%s287 + $0xc4] sm:$0xf]
        %v361 = vld [vmem:[%s287 + $0xcc] sm:$0xf]
        %v362 = vld [vmem:[%s287 + $0xd0] sm:$0xf]
        %v395 = vunpack.c.l.b16 %v327
        %v396 = vunpack.c.l.b16 %v328
        %v397 = vunpack.c.l.b16 %v329
        %v398 = vunpack.c.l.b16 %v330
        %v399 = vunpack.c.l.b16 %v331
        %v400 = vunpack.c.l.b16 %v332
        %v401 = vunpack.c.l.b16 %v333
        %v402 = vunpack.c.l.b16 %v334
        %v403 = vunpack.c.l.b16 %v335
        %v404 = vunpack.c.l.b16 %v336
        %v405 = vunpack.c.l.b16 %v337
        %v406 = vunpack.c.l.b16 %v338
        %v407 = vunpack.c.l.b16 %v339
        %v408 = vunpack.c.l.b16 %v340
        %v409 = vunpack.c.l.b16 %v341
        %v410 = vunpack.c.l.b16 %v342
        %v411 = vunpack.c.l.b16 %v343
        %v412 = vunpack.c.l.b16 %v344
        %v413 = vunpack.c.l.b16 %v345
        %v414 = vunpack.c.l.b16 %v346
        %v415 = vunpack.c.l.b16 %v347
        %v416 = vunpack.c.l.b16 %v348
        %v417 = vunpack.c.l.b16 %v349
        %v418 = vunpack.c.l.b16 %v350
        %v419 = vunpack.c.l.b16 %v351
        %v420 = vunpack.c.l.b16 %v352
        %v421 = vunpack.c.l.b16 %v353
        %v422 = vunpack.c.l.b16 %v354
        %v423 = vunpack.c.l.b16 %v355
        %v424 = vunpack.c.l.b16 %v356
        %v425 = vunpack.c.l.b16 %v357
        %v426 = vunpack.c.l.b16 %v358
        %v427 = vpack.c.b16 %v396, %v395
        %v428 = vpack.c.b16 %v398, %v397
        %v429 = vpack.c.b16 %v400, %v399
        %v430 = vpack.c.b16 %v402, %v401
        %v431 = vpack.c.b16 %v404, %v403
        %v432 = vpack.c.b16 %v406, %v405
        %v433 = vpack.c.b16 %v408, %v407
        %v434 = vpack.c.b16 %v410, %v409
        %v435 = vpack.c.b16 %v412, %v411
        %v436 = vpack.c.b16 %v414, %v413
        %v437 = vpack.c.b16 %v416, %v415
        %v438 = vpack.c.b16 %v418, %v417
        %v439 = vpack.c.b16 %v420, %v419
        %v440 = vpack.c.b16 %v422, %v421
        %v441 = vpack.c.b16 %v424, %v423
        %v442 = vpack.c.b16 %v426, %v425
        %v461 = vunpack.c.l.b16 %v359
        %v462 = vunpack.c.l.b16 %v360
        %v463 = vpack.c.b16 %v462, %v461
        %v467 = vunpack.c.l.b16 %v361
        %v468 = vunpack.c.l.b16 %v362
        %v469 = vpack.c.b16 %v468, %v467
        %v471 = vld [vmem:[#allocation7] sm:$0xf]
        %v472 = vld [vmem:[#allocation7 + $0x4] sm:$0xf]
        %v473 = vld [vmem:[#allocation7 + $0x8] sm:$0xf]
        %v474 = vld [vmem:[#allocation7 + $0xc] sm:$0xf]
        %v475 = vld [vmem:[#allocation7 + $0x10] sm:$0xf]
        %v476 = vld [vmem:[#allocation7 + $0x14] sm:$0xf]
        %v477 = vld [vmem:[#allocation7 + $0x18] sm:$0xf]
        %v478 = vld [vmem:[#allocation7 + $0x1c] sm:$0xf]
        %v479 = vld [vmem:[#allocation7 + $0x20] sm:$0xf]
        %v480 = vld [vmem:[#allocation7 + $0x24] sm:$0xf]
        %v481 = vld [vmem:[#allocation7 + $0x28] sm:$0xf]
        %v482 = vld [vmem:[#allocation7 + $0x2c] sm:$0xf]
        %v483 = vld [vmem:[#allocation7 + $0x30] sm:$0xf]
        %v484 = vld [vmem:[#allocation7 + $0x34] sm:$0xf]
        %v485 = vld [vmem:[#allocation7 + $0x38] sm:$0xf]
        %v486 = vld [vmem:[#allocation7 + $0x3c] sm:$0xf]
        %v487 = vld [vmem:[#allocation7 + $0x40] sm:$0xf]
        %v488 = vld [vmem:[#allocation7 + $0x44] sm:$0xf]
        %v489 = vld [vmem:[#allocation7 + $0x48] sm:$0xf]
        %v490 = vld [vmem:[#allocation7 + $0x4c] sm:$0xf]
        %v491 = vld [vmem:[#allocation7 + $0x50] sm:$0xf]
        %v492 = vld [vmem:[#allocation7 + $0x54] sm:$0xf]
        %v493 = vld [vmem:[#allocation7 + $0x58] sm:$0xf]
        %v494 = vld [vmem:[#allocation7 + $0x5c] sm:$0xf]
        %v495 = vld [vmem:[#allocation7 + $0x60] sm:$0xf]
        %v496 = vld [vmem:[#allocation7 + $0x64] sm:$0xf]
        %v497 = vld [vmem:[#allocation7 + $0x68] sm:$0xf]
        %v498 = vld [vmem:[#allocation7 + $0x6c] sm:$0xf]
        %v499 = vld [vmem:[#allocation7 + $0x70] sm:$0xf]
        %v500 = vld [vmem:[#allocation7 + $0x74] sm:$0xf]
        %v501 = vld [vmem:[#allocation7 + $0x78] sm:$0xf]
        %v502 = vld [vmem:[#allocation7 + $0x7c] sm:$0xf]
        %v503 = vld [vmem:[#allocation7 + $0x80] sm:$0xf]
        %v504 = vld [vmem:[#allocation7 + $0x84] sm:$0xf]
        %v505 = vld [vmem:[#allocation7 + $0x88] sm:$0xf]
        %v506 = vld [vmem:[#allocation7 + $0x8c] sm:$0xf]
        %v507 = vld [vmem:[#allocation7 + $0x90] sm:$0xf]
        %v508 = vld [vmem:[#allocation7 + $0x94] sm:$0xf]
        %v509 = vld [vmem:[#allocation7 + $0x98] sm:$0xf]
        %v510 = vld [vmem:[#allocation7 + $0x9c] sm:$0xf]
        %v511 = vld [vmem:[#allocation7 + $0xa0] sm:$0xf]
        %v512 = vld [vmem:[#allocation7 + $0xa4] sm:$0xf]
        %v513 = vld [vmem:[#allocation7 + $0xa8] sm:$0xf]
        %v514 = vld [vmem:[#allocation7 + $0xac] sm:$0xf]
        %v515 = vld [vmem:[#allocation7 + $0xb0] sm:$0xf]
        %v516 = vld [vmem:[#allocation7 + $0xb4] sm:$0xf]
        %v517 = vld [vmem:[#allocation7 + $0xb8] sm:$0xf]
        %v518 = vld [vmem:[#allocation7 + $0xbc] sm:$0xf]
        %v567 = vunpack.c.l.b16 %v471
        %v568 = vunpack.c.l.b16 %v472
        %v569 = vunpack.c.l.b16 %v473
        %v570 = vunpack.c.l.b16 %v474
        %v571 = vunpack.c.l.b16 %v475
        %v572 = vunpack.c.l.b16 %v476
        %v573 = vunpack.c.l.b16 %v477
        %v574 = vunpack.c.l.b16 %v478
        %v575 = vunpack.c.l.b16 %v479
        %v576 = vunpack.c.l.b16 %v480
        %v577 = vunpack.c.l.b16 %v481
        %v578 = vunpack.c.l.b16 %v482
        %v579 = vunpack.c.l.b16 %v483
        %v580 = vunpack.c.l.b16 %v484
        %v581 = vunpack.c.l.b16 %v485
        %v582 = vunpack.c.l.b16 %v486
        %v583 = vunpack.c.l.b16 %v487
        %v584 = vunpack.c.l.b16 %v488
        %v585 = vunpack.c.l.b16 %v489
        %v586 = vunpack.c.l.b16 %v490
        %v587 = vunpack.c.l.b16 %v491
        %v588 = vunpack.c.l.b16 %v492
        %v589 = vunpack.c.l.b16 %v493
        %v590 = vunpack.c.l.b16 %v494
        %v591 = vunpack.c.l.b16 %v495
        %v592 = vunpack.c.l.b16 %v496
        %v593 = vunpack.c.l.b16 %v497
        %v594 = vunpack.c.l.b16 %v498
        %v595 = vunpack.c.l.b16 %v499
        %v596 = vunpack.c.l.b16 %v500
        %v597 = vunpack.c.l.b16 %v501
        %v598 = vunpack.c.l.b16 %v502
        %v599 = vunpack.c.l.b16 %v503
        %v600 = vunpack.c.l.b16 %v504
        %v601 = vunpack.c.l.b16 %v505
        %v602 = vunpack.c.l.b16 %v506
        %v603 = vunpack.c.l.b16 %v507
        %v604 = vunpack.c.l.b16 %v508
        %v605 = vunpack.c.l.b16 %v509
        %v606 = vunpack.c.l.b16 %v510
        %v607 = vunpack.c.l.b16 %v511
        %v608 = vunpack.c.l.b16 %v512
        %v609 = vunpack.c.l.b16 %v513
        %v610 = vunpack.c.l.b16 %v514
        %v611 = vunpack.c.l.b16 %v515
        %v612 = vunpack.c.l.b16 %v516
        %v613 = vunpack.c.l.b16 %v517
        %v614 = vunpack.c.l.b16 %v518
        %v615 = vpack.c.b16 %v568, %v567
        %v616 = vpack.c.b16 %v570, %v569
        %v617 = vpack.c.b16 %v572, %v571
        %v618 = vpack.c.b16 %v574, %v573
        %v619 = vpack.c.b16 %v576, %v575
        %v620 = vpack.c.b16 %v578, %v577
        %v621 = vpack.c.b16 %v580, %v579
        %v622 = vpack.c.b16 %v582, %v581
        %v623 = vpack.c.b16 %v584, %v583
        %v624 = vpack.c.b16 %v586, %v585
        %v625 = vpack.c.b16 %v588, %v587
        %v626 = vpack.c.b16 %v590, %v589
        %v627 = vpack.c.b16 %v592, %v591
        %v628 = vpack.c.b16 %v594, %v593
        %v629 = vpack.c.b16 %v596, %v595
        %v630 = vpack.c.b16 %v598, %v597
        %v631 = vpack.c.b16 %v600, %v599
        %v632 = vpack.c.b16 %v602, %v601
        %v633 = vpack.c.b16 %v604, %v603
        %v634 = vpack.c.b16 %v606, %v605
        %v635 = vpack.c.b16 %v608, %v607
        %v636 = vpack.c.b16 %v610, %v609
        %v637 = vpack.c.b16 %v612, %v611
        %v638 = vpack.c.b16 %v614, %v613
        %663 = vmatprep.subr.bf16.mxu0 0
        %664 = vmatpush1.bf16.msra.mxu0 %v615
        %665 = vmatprep.subr.bf16.mxu0 0
        %666 = vmatpush1.bf16.msra.mxu0 %v616
        %667 = vmatprep.subr.bf16.mxu0 0
        %668 = vmatpush1.bf16.msra.mxu0 %v617
        %669 = vmatprep.subr.bf16.mxu0 0
        %670 = vmatpush1.bf16.msra.mxu0 %v618
        %671 = vmatprep.subr.bf16.mxu0 0
        %672 = vmatpush1.bf16.msra.mxu0 %v619
        %673 = vmatprep.subr.bf16.mxu0 0
        %674 = vmatpush1.bf16.msra.mxu0 %v620
        %675 = vmatprep.subr.bf16.mxu0 0
        %676 = vmatpush1.bf16.msra.mxu0 %v621
        %677 = vmatprep.subr.bf16.mxu0 0
        %678 = vmatpush1.bf16.msra.mxu0 %v622
        %679 = vmatprep.subr.bf16.mxu0 0
        %680 = vmatpush1.bf16.msra.mxu0 %v623
        %681 = vmatprep.subr.bf16.mxu0 0
        %682 = vmatpush1.bf16.msra.mxu0 %v624
        %683 = vmatprep.subr.bf16.mxu0 0
        %684 = vmatpush1.bf16.msra.mxu0 %v625
        %685 = vmatprep.subr.bf16.mxu0 0
        %686 = vmatpush1.bf16.msra.mxu0 %v626
        %687 = vmatprep.subr.bf16.mxu0 0
        %688 = vmatpush1.bf16.msra.mxu0 %v627
        %689 = vmatprep.subr.bf16.mxu0 0
        %690 = vmatpush1.bf16.msra.mxu0 %v628
        %691 = vmatprep.subr.bf16.mxu0 0
        %692 = vmatpush1.bf16.msra.mxu0 %v629
        %693 = vmatprep.subr.bf16.mxu0 0
        %694 = vmatpush1.bf16.msra.mxu0 %v630
        %695 = vmatprep.mubr.bf16.mxu0 %v428
        %696 = vmatmul.mubr.bf16.gmra.mrb[0].mxu0 %v427
        %v697 = vpop.f32.mrb[0].mxu0
        %v698 = vadd.f32 0.0, %v697
        %v699 = vpop.f32.mrb[0].mxu0
        %v700 = vpop.f32.mrb[0].mxu0
        %v701 = vadd.f32 0.0, %v700
        %v702 = vpop.f32.mrb[0].mxu0
        %703 = vmatprep.mubr.bf16.mxu0 %v429
        %704 = vmatmul.mubr.bf16.gmra.mrb[0].mxu0 %v428
        %v705 = vpop.f32.mrb[0].mxu0
        %v706 = vadd.f32 0.0, %v705
        %v707 = vpop.f32.mrb[0].mxu0
        %v708 = vpop.f32.mrb[0].mxu0
        %v709 = vadd.f32 0.0, %v708
        %v710 = vpop.f32.mrb[0].mxu0
        %711 = vmatprep.mubr.bf16.mxu0 %v430
        %712 = vmatmul.mubr.bf16.gmra.mrb[0].mxu0 %v429
        %v713 = vpop.f32.mrb[0].mxu0
        %v714 = vadd.f32 0.0, %v713
        %v715 = vpop.f32.mrb[0].mxu0
        %v716 = vpop.f32.mrb[0].mxu0
        %v717 = vadd.f32 0.0, %v716
        %v718 = vpop.f32.mrb[0].mxu0
        %719 = vmatprep.mubr.bf16.mxu0 %v431
        %720 = vmatmul.mubr.bf16.gmra.mrb[0].mxu0 %v430
        %v721 = vpop.f32.mrb[0].mxu0
        %v722 = vadd.f32 0.0, %v721
        %v723 = vpop.f32.mrb[0].mxu0
        %v724 = vpop.f32.mrb[0].mxu0
        %v725 = vadd.f32 0.0, %v724
        %v726 = vpop.f32.mrb[0].mxu0
        %727 = vmatprep.mubr.bf16.mxu0 %v432
        %728 = vmatmul.mubr.bf16.gmra.mrb[0].mxu0 %v431
        %v729 = vpop.f32.mrb[0].mxu0
        %v730 = vadd.f32 0.0, %v729
        %v731 = vpop.f32.mrb[0].mxu0
        %v732 = vpop.f32.mrb[0].mxu0
        %v733 = vadd.f32 0.0, %v732
        %v734 = vpop.f32.mrb[0].mxu0
        %735 = vmatprep.mubr.bf16.mxu0 %v433
        %736 = vmatmul.mubr.bf16.gmra.mrb[0].mxu0 %v432
        %v737 = vpop.f32.mrb[0].mxu0
        %v738 = vadd.f32 0.0, %v737
        %v739 = vpop.f32.mrb[0].mxu0
        %v740 = vpop.f32.mrb[0].mxu0
        %v741 = vadd.f32 0.0, %v740
        %v742 = vpop.f32.mrb[0].mxu0
        %743 = vmatprep.mubr.bf16.mxu0 %v434
        %744 = vmatmul.mubr.bf16.gmra.mrb[0].mxu0 %v433
        %v745 = vpop.f32.mrb[0].mxu0
        %v746 = vadd.f32 0.0, %v745
        %v747 = vpop.f32.mrb[0].mxu0
        %v748 = vpop.f32.mrb[0].mxu0
        %v749 = vadd.f32 0.0, %v748
        %v750 = vpop.f32.mrb[0].mxu0
        %751 = vmatprep.mubr.bf16.mxu0 %v435
        %752 = vmatmul.mubr.bf16.gmra.mrb[0].mxu0 %v434
        %v753 = vpop.f32.mrb[0].mxu0
        %v754 = vadd.f32 0.0, %v753
        %v755 = vpop.f32.mrb[0].mxu0
        %v756 = vpop.f32.mrb[0].mxu0
        %v757 = vadd.f32 0.0, %v756
        %v758 = vpop.f32.mrb[0].mxu0
        %759 = vmatprep.mubr.bf16.mxu0 %v436
        %760 = vmatmul.mubr.bf16.gmra.mrb[0].mxu0 %v435
        %v761 = vpop.f32.mrb[0].mxu0
        %v762 = vadd.f32 0.0, %v761
        %v763 = vpop.f32.mrb[0].mxu0
        %v764 = vpop.f32.mrb[0].mxu0
        %v765 = vadd.f32 0.0, %v764
        %v766 = vpop.f32.mrb[0].mxu0
        %767 = vmatprep.mubr.bf16.mxu0 %v437
        %768 = vmatmul.mubr.bf16.gmra.mrb[0].mxu0 %v436
        %v769 = vpop.f32.mrb[0].mxu0
        %v770 = vadd.f32 0.0, %v769
        %v771 = vpop.f32.mrb[0].mxu0
        %v772 = vpop.f32.mrb[0].mxu0
        %v773 = vadd.f32 0.0, %v772
        %v774 = vpop.f32.mrb[0].mxu0
        %775 = vmatprep.mubr.bf16.mxu0 %v438
        %776 = vmatmul.mubr.bf16.gmra.mrb[0].mxu0 %v437
        %v777 = vpop.f32.mrb[0].mxu0
        %v778 = vadd.f32 0.0, %v777
        %v779 = vpop.f32.mrb[0].mxu0
        %v780 = vpop.f32.mrb[0].mxu0
        %v781 = vadd.f32 0.0, %v780
        %v782 = vpop.f32.mrb[0].mxu0
        %783 = vmatprep.mubr.bf16.mxu0 %v439
        %784 = vmatmul.mubr.bf16.gmra.mrb[0].mxu0 %v438
        %v785 = vpop.f32.mrb[0].mxu0
        %v786 = vadd.f32 0.0, %v785
        %v787 = vpop.f32.mrb[0].mxu0
        %v788 = vpop.f32.mrb[0].mxu0
        %v789 = vadd.f32 0.0, %v788
        %v790 = vpop.f32.mrb[0].mxu0
        %791 = vmatprep.mubr.bf16.mxu0 %v440
        %792 = vmatmul.mubr.bf16.gmra.mrb[0].mxu0 %v439
        %v793 = vpop.f32.mrb[0].mxu0
        %v794 = vadd.f32 0.0, %v793
        %v795 = vpop.f32.mrb[0].mxu0
        %v796 = vpop.f32.mrb[0].mxu0
        %v797 = vadd.f32 0.0, %v796
        %v798 = vpop.f32.mrb[0].mxu0
        %799 = vmatprep.mubr.bf16.mxu0 %v441
        %800 = vmatmul.mubr.bf16.gmra.mrb[0].mxu0 %v440
        %v801 = vpop.f32.mrb[0].mxu0
        %v802 = vadd.f32 0.0, %v801
        %v803 = vpop.f32.mrb[0].mxu0
        %v804 = vpop.f32.mrb[0].mxu0
        %v805 = vadd.f32 0.0, %v804
        %v806 = vpop.f32.mrb[0].mxu0
        %807 = vmatprep.mubr.bf16.mxu0 %v442
        %808 = vmatmul.mubr.bf16.gmra.mrb[0].mxu0 %v441
        %v809 = vpop.f32.mrb[0].mxu0
        %v810 = vadd.f32 0.0, %v809
        %v811 = vpop.f32.mrb[0].mxu0
        %v812 = vpop.f32.mrb[0].mxu0
        %v813 = vadd.f32 0.0, %v812
        %v814 = vpop.f32.mrb[0].mxu0
        %815 = vmatprep.mubr.bf16.mxu0 %v463
        %816 = vmatmul.mubr.bf16.gmra.mrb[0].mxu0 %v442
        %v817 = vpop.f32.mrb[0].mxu0
        %v818 = vadd.f32 0.0, %v817
        %v819 = vpop.f32.mrb[0].mxu0
        %v820 = vpop.f32.mrb[0].mxu0
        %v821 = vadd.f32 0.0, %v820
        %v822 = vpop.f32.mrb[0].mxu0
        %823 = vdwg.mxu0
        %824 = vmatprep.subr.bf16.mxu0 0
        %825 = vmatpush1.bf16.msra.mxu0 %v631
        %826 = vmatprep.subr.bf16.mxu0 0
        %827 = vmatpush1.bf16.msra.mxu0 %v632
        %828 = vmatprep.subr.bf16.mxu0 0
        %829 = vmatpush1.bf16.msra.mxu0 %v633
        %830 = vmatprep.subr.bf16.mxu0 0
        %831 = vmatpush1.bf16.msra.mxu0 %v634
        %832 = vmatprep.subr.bf16.mxu0 0
        %833 = vmatpush1.bf16.msra.mxu0 %v635
        %834 = vmatprep.subr.bf16.mxu0 0
        %835 = vmatpush1.bf16.msra.mxu0 %v636
        %836 = vmatprep.subr.bf16.mxu0 0
        %837 = vmatpush1.bf16.msra.mxu0 %v637
        %838 = vmatprep.subr.bf16.mxu0 0
        %839 = vmatpush1.bf16.msra.mxu0 %v638
        %840 = vmatprep.subr.bf16.mxu0 0
        %841 = vmatpush1.bf16.msra.mxu0 0
        %842 = vmatprep.subr.bf16.mxu0 0
        %843 = vmatpush1.bf16.msra.mxu0 0
        %844 = vmatprep.subr.bf16.mxu0 0
        %845 = vmatpush1.bf16.msra.mxu0 0
        %846 = vmatprep.subr.bf16.mxu0 0
        %847 = vmatpush1.bf16.msra.mxu0 0
        %848 = vmatprep.subr.bf16.mxu0 0
        %849 = vmatpush1.bf16.msra.mxu0 0
        %850 = vmatprep.subr.bf16.mxu0 0
        %851 = vmatpush1.bf16.msra.mxu0 0
        %852 = vmatprep.subr.bf16.mxu0 0
        %853 = vmatpush1.bf16.msra.mxu0 0
        %854 = vmatprep.subr.bf16.mxu0 0
        %855 = vmatpush1.bf16.msra.mxu0 0
        %856 = vmatprep.mubr.bf16.mxu0 0
        %857 = vmatmul.mubr.bf16.gmra.mrb[0].mxu0 %v429
        %v858 = vpop.f32.mrb[0].mxu0
        %v859 = vadd.f32 %v698, %v858
        %v860 = vpop.f32.mrb[0].mxu0
        %v861 = vpop.f32.mrb[0].mxu0
        %v862 = vadd.f32 %v701, %v861
        %v863 = vpop.f32.mrb[0].mxu0
        %864 = vmatprep.mubr.bf16.mxu0 0
        %865 = vmatmul.mubr.bf16.gmra.mrb[0].mxu0 %v430
        %v866 = vpop.f32.mrb[0].mxu0
        %v867 = vadd.f32 %v706, %v866
        %v868 = vpop.f32.mrb[0].mxu0
        %v869 = vpop.f32.mrb[0].mxu0
        %v870 = vadd.f32 %v709, %v869
        %v871 = vpop.f32.mrb[0].mxu0
        %872 = vmatprep.mubr.bf16.mxu0 0
        %873 = vmatmul.mubr.bf16.gmra.mrb[0].mxu0 %v431
        %v874 = vpop.f32.mrb[0].mxu0
        %v875 = vadd.f32 %v714, %v874
        %v876 = vpop.f32.mrb[0].mxu0
        %v877 = vpop.f32.mrb[0].mxu0
        %v878 = vadd.f32 %v717, %v877
        %v879 = vpop.f32.mrb[0].mxu0
        %880 = vmatprep.mubr.bf16.mxu0 0
        %881 = vmatmul.mubr.bf16.gmra.mrb[0].mxu0 %v432
        %v882 = vpop.f32.mrb[0].mxu0
        %v883 = vadd.f32 %v722, %v882
        %v884 = vpop.f32.mrb[0].mxu0
        %v885 = vpop.f32.mrb[0].mxu0
        %v886 = vadd.f32 %v725, %v885
        %v887 = vpop.f32.mrb[0].mxu0
        %888 = vmatprep.mubr.bf16.mxu0 0
        %889 = vmatmul.mubr.bf16.gmra.mrb[0].mxu0 %v433
        %v890 = vpop.f32.mrb[0].mxu0
        %v891 = vadd.f32 %v730, %v890
        %v892 = vpop.f32.mrb[0].mxu0
        %v893 = vpop.f32.mrb[0].mxu0
        %v894 = vadd.f32 %v733, %v893
        %v895 = vpop.f32.mrb[0].mxu0
        %896 = vmatprep.mubr.bf16.mxu0 0
        %897 = vmatmul.mubr.bf16.gmra.mrb[0].mxu0 %v434
        %v898 = vpop.f32.mrb[0].mxu0
        %v899 = vadd.f32 %v738, %v898
        %v900 = vpop.f32.mrb[0].mxu0
        %v901 = vpop.f32.mrb[0].mxu0
        %v902 = vadd.f32 %v741, %v901
        %v903 = vpop.f32.mrb[0].mxu0
        %904 = vmatprep.mubr.bf16.mxu0 0
        %905 = vmatmul.mubr.bf16.gmra.mrb[0].mxu0 %v435
        %v906 = vpop.f32.mrb[0].mxu0
        %v907 = vadd.f32 %v746, %v906
        %v908 = vpop.f32.mrb[0].mxu0
        %v909 = vpop.f32.mrb[0].mxu0
        %v910 = vadd.f32 %v749, %v909
        %v911 = vpop.f32.mrb[0].mxu0
        %912 = vmatprep.mubr.bf16.mxu0 0
        %913 = vmatmul.mubr.bf16.gmra.mrb[0].mxu0 %v436
        %v914 = vpop.f32.mrb[0].mxu0
        %v915 = vadd.f32 %v754, %v914
        %v916 = vpop.f32.mrb[0].mxu0
        %v917 = vpop.f32.mrb[0].mxu0
        %v918 = vadd.f32 %v757, %v917
        %v919 = vpop.f32.mrb[0].mxu0
        %920 = vmatprep.mubr.bf16.mxu0 0
        %921 = vmatmul.mubr.bf16.gmra.mrb[0].mxu0 %v437
        %v922 = vpop.f32.mrb[0].mxu0
        %v923 = vadd.f32 %v762, %v922
        %v924 = vpop.f32.mrb[0].mxu0
        %v925 = vpop.f32.mrb[0].mxu0
        %v926 = vadd.f32 %v765, %v925
        %v927 = vpop.f32.mrb[0].mxu0
        %928 = vmatprep.mubr.bf16.mxu0 0
        %929 = vmatmul.mubr.bf16.gmra.mrb[0].mxu0 %v438
        %v930 = vpop.f32.mrb[0].mxu0
        %v931 = vadd.f32 %v770, %v930
        %v932 = vpop.f32.mrb[0].mxu0
        %v933 = vpop.f32.mrb[0].mxu0
        %v934 = vadd.f32 %v773, %v933
        %v935 = vpop.f32.mrb[0].mxu0
        %936 = vmatprep.mubr.bf16.mxu0 0
        %937 = vmatmul.mubr.bf16.gmra.mrb[0].mxu0 %v439
        %v938 = vpop.f32.mrb[0].mxu0
        %v939 = vadd.f32 %v778, %v938
        %v940 = vpop.f32.mrb[0].mxu0
        %v941 = vpop.f32.mrb[0].mxu0
        %v942 = vadd.f32 %v781, %v941
        %v943 = vpop.f32.mrb[0].mxu0
        %944 = vmatprep.mubr.bf16.mxu0 0
        %945 = vmatmul.mubr.bf16.gmra.mrb[0].mxu0 %v440
        %v946 = vpop.f32.mrb[0].mxu0
        %v947 = vadd.f32 %v786, %v946
        %v948 = vpop.f32.mrb[0].mxu0
        %v949 = vpop.f32.mrb[0].mxu0
        %v950 = vadd.f32 %v789, %v949
        %v951 = vpop.f32.mrb[0].mxu0
        %952 = vmatprep.mubr.bf16.mxu0 0
        %953 = vmatmul.mubr.bf16.gmra.mrb[0].mxu0 %v441
        %v954 = vpop.f32.mrb[0].mxu0
        %v955 = vadd.f32 %v794, %v954
        %v956 = vpop.f32.mrb[0].mxu0
        %v957 = vpop.f32.mrb[0].mxu0
        %v958 = vadd.f32 %v797, %v957
        %v959 = vpop.f32.mrb[0].mxu0
        %960 = vmatprep.mubr.bf16.mxu0 0
        %961 = vmatmul.mubr.bf16.gmra.mrb[0].mxu0 %v442
        %v962 = vpop.f32.mrb[0].mxu0
        %v963 = vadd.f32 %v802, %v962
        %v964 = vpop.f32.mrb[0].mxu0
        %v965 = vpop.f32.mrb[0].mxu0
        %v966 = vadd.f32 %v805, %v965
        %v967 = vpop.f32.mrb[0].mxu0
        %968 = vmatprep.mubr.bf16.mxu0 0
        %969 = vmatmul.mubr.bf16.gmra.mrb[0].mxu0 %v463
        %v970 = vpop.f32.mrb[0].mxu0
        %v971 = vadd.f32 %v810, %v970
        %v972 = vpop.f32.mrb[0].mxu0
        %v973 = vpop.f32.mrb[0].mxu0
        %v974 = vadd.f32 %v813, %v973
        %v975 = vpop.f32.mrb[0].mxu0
        %976 = vmatprep.mubr.bf16.mxu0 0
        %977 = vmatmul.mubr.bf16.gmra.mrb[0].mxu0 %v469
        %v978 = vpop.f32.mrb[0].mxu0
        %v979 = vadd.f32 %v818, %v978
        %v980 = vpop.f32.mrb[0].mxu0
        %v981 = vpop.f32.mrb[0].mxu0
        %v982 = vadd.f32 %v821, %v981
        %v983 = vpop.f32.mrb[0].mxu0
        %984 = vdwg.mxu0
        %985 = vst [vmem:[#allocation2] sm:$0xff] %v859
        %986 = vst [vmem:[#allocation2 + $0x8] sm:$0xff] %v862
        %987 = vst [vmem:[#allocation2 + $0x10] sm:$0xff] %v867
        %988 = vst [vmem:[#allocation2 + $0x18] sm:$0xff] %v870
        %989 = vst [vmem:[#allocation2 + $0x20] sm:$0xff] %v875
        %990 = vst [vmem:[#allocation2 + $0x28] sm:$0xff] %v878
        %991 = vst [vmem:[#allocation2 + $0x30] sm:$0xff] %v883
        %992 = vst [vmem:[#allocation2 + $0x38] sm:$0xff] %v886
        %993 = vst [vmem:[#allocation2 + $0x40] sm:$0xff] %v891
        %994 = vst [vmem:[#allocation2 + $0x48] sm:$0xff] %v894
        %995 = vst [vmem:[#allocation2 + $0x50] sm:$0xff] %v899
        %996 = vst [vmem:[#allocation2 + $0x58] sm:$0xff] %v902
        %997 = vst [vmem:[#allocation2 + $0x60] sm:$0xff] %v907
        %998 = vst [vmem:[#allocation2 + $0x68] sm:$0xff] %v910
        %999 = vst [vmem:[#allocation2 + $0x70] sm:$0xff] %v915
        %1000 = vst [vmem:[#allocation2 + $0x78] sm:$0xff] %v918
        %1001 = vst [vmem:[#allocation2 + $0x80] sm:$0xff] %v923
        %1002 = vst [vmem:[#allocation2 + $0x88] sm:$0xff] %v926
        %1003 = vst [vmem:[#allocation2 + $0x90] sm:$0xff] %v931
        %1004 = vst [vmem:[#allocation2 + $0x98] sm:$0xff] %v934
        %1005 = vst [vmem:[#allocation2 + $0xa0] sm:$0xff] %v939
        %1006 = vst [vmem:[#allocation2 + $0xa8] sm:$0xff] %v942
        %1007 = vst [vmem:[#allocation2 + $0xb0] sm:$0xff] %v947
        %1008 = vst [vmem:[#allocation2 + $0xb8] sm:$0xff] %v950
        %1009 = vst [vmem:[#allocation2 + $0xc0] sm:$0xff] %v955
        %1010 = vst [vmem:[#allocation2 + $0xc8] sm:$0xff] %v958
        %1011 = vst [vmem:[#allocation2 + $0xd0] sm:$0xff] %v963
        %1012 = vst [vmem:[#allocation2 + $0xd8] sm:$0xff] %v966
        %1013 = vst [vmem:[#allocation2 + $0xe0] sm:$0xff] %v971
        %1014 = vst [vmem:[#allocation2 + $0xe8] sm:$0xff] %v974
        %1015 = vst [vmem:[#allocation2 + $0xf0] sm:$0xff] %v979
        %1016 = vst [vmem:[#allocation2 + $0xf8] sm:$0xff] %v982
        %v1017 = vld [vmem:[%s287] sm:$0xf]
        %v1018 = vld [vmem:[%s287 + $0x4] sm:$0xf]
        %v1019 = vld [vmem:[%s287 + $0x8] sm:$0x1]
        %v1020 = vld [vmem:[%s287 + $0xc] sm:$0xf]
        %v1021 = vld [vmem:[%s287 + $0x10] sm:$0xf]
        %v1022 = vld [vmem:[%s287 + $0x14] sm:$0x1]
        %v1023 = vld [vmem:[%s287 + $0x18] sm:$0xf]
        %v1024 = vld [vmem:[%s287 + $0x1c] sm:$0xf]
        %v1025 = vld [vmem:[%s287 + $0x20] sm:$0x1]
        %v1026 = vld [vmem:[%s287 + $0x24] sm:$0xf]
        %v1027 = vld [vmem:[%s287 + $0x28] sm:$0xf]
        %v1028 = vld [vmem:[%s287 + $0x2c] sm:$0x1]
        %v1029 = vld [vmem:[%s287 + $0x30] sm:$0xf]
        %v1030 = vld [vmem:[%s287 + $0x34] sm:$0xf]
        %v1031 = vld [vmem:[%s287 + $0x38] sm:$0x1]
        %v1032 = vld [vmem:[%s287 + $0x3c] sm:$0xf]
        %v1033 = vld [vmem:[%s287 + $0x40] sm:$0xf]
        %v1034 = vld [vmem:[%s287 + $0x44] sm:$0x1]
        %v1035 = vld [vmem:[%s287 + $0x48] sm:$0xf]
        %v1036 = vld [vmem:[%s287 + $0x4c] sm:$0xf]
        %v1037 = vld [vmem:[%s287 + $0x50] sm:$0x1]
        %v1038 = vld [vmem:[%s287 + $0x54] sm:$0xf]
        %v1039 = vld [vmem:[%s287 + $0x58] sm:$0xf]
        %v1040 = vld [vmem:[%s287 + $0x5c] sm:$0x1]
        %v1041 = vld [vmem:[%s287 + $0x60] sm:$0xf]
        %v1042 = vld [vmem:[%s287 + $0x64] sm:$0xf]
        %v1043 = vld [vmem:[%s287 + $0x68] sm:$0x1]
        %v1044 = vld [vmem:[%s287 + $0x6c] sm:$0xf]
        %v1045 = vld [vmem:[%s287 + $0x70] sm:$0xf]
        %v1046 = vld [vmem:[%s287 + $0x74] sm:$0x1]
        %v1047 = vld [vmem:[%s287 + $0x78] sm:$0xf]
        %v1048 = vld [vmem:[%s287 + $0x7c] sm:$0xf]
        %v1049 = vld [vmem:[%s287 + $0x80] sm:$0x1]
        %v1050 = vld [vmem:[%s287 + $0x84] sm:$0xf]
        %v1051 = vld [vmem:[%s287 + $0x88] sm:$0xf]
        %v1052 = vld [vmem:[%s287 + $0x8c] sm:$0x1]
        %v1053 = vld [vmem:[%s287 + $0x90] sm:$0xf]
        %v1054 = vld [vmem:[%s287 + $0x94] sm:$0xf]
        %v1055 = vld [vmem:[%s287 + $0x98] sm:$0x1]
        %v1056 = vld [vmem:[%s287 + $0x9c] sm:$0xf]
        %v1057 = vld [vmem:[%s287 + $0xa0] sm:$0xf]
        %v1058 = vld [vmem:[%s287 + $0xa4] sm:$0x1]
        %v1059 = vld [vmem:[%s287 + $0xa8] sm:$0xf]
        %v1060 = vld [vmem:[%s287 + $0xac] sm:$0xf]
        %v1061 = vld [vmem:[%s287 + $0xb0] sm:$0x1]
        %v1062 = vld [vmem:[%s287 + $0xb4] sm:$0xf]
        %v1063 = vld [vmem:[%s287 + $0xb8] sm:$0xf]
        %v1064 = vld [vmem:[%s287 + $0xbc] sm:$0x1]
        %v1065 = vld [vmem:[%s287 + $0xc0] sm:$0xf]
        %v1066 = vld [vmem:[%s287 + $0xc4] sm:$0xf]
        %v1067 = vld [vmem:[%s287 + $0xc8] sm:$0x1]
        %v1068 = vld [vmem:[%s287 + $0xcc] sm:$0xf]
        %v1069 = vld [vmem:[%s287 + $0xd0] sm:$0xf]
        %v1070 = vld [vmem:[%s287 + $0xd4] sm:$0x1]
        %v1119 = vunpack.c.l.b16 %v1017
        %v1120 = vunpack.c.l.b16 %v1018
        %v1121 = vunpack.c.l.b16 %v1019
        %v1122 = vunpack.c.l.b16 %v1020
        %v1123 = vunpack.c.l.b16 %v1021
        %v1124 = vunpack.c.l.b16 %v1022
        %v1125 = vunpack.c.l.b16 %v1023
        %v1126 = vunpack.c.l.b16 %v1024
        %v1127 = vunpack.c.l.b16 %v1025
        %v1128 = vunpack.c.l.b16 %v1026
        %v1129 = vunpack.c.l.b16 %v1027
        %v1130 = vunpack.c.l.b16 %v1028
        %v1131 = vunpack.c.l.b16 %v1029
        %v1132 = vunpack.c.l.b16 %v1030
        %v1133 = vunpack.c.l.b16 %v1031
        %v1134 = vunpack.c.l.b16 %v1032
        %v1135 = vunpack.c.l.b16 %v1033
        %v1136 = vunpack.c.l.b16 %v1034
        %v1137 = vunpack.c.l.b16 %v1035
        %v1138 = vunpack.c.l.b16 %v1036
        %v1139 = vunpack.c.l.b16 %v1037
        %v1140 = vunpack.c.l.b16 %v1038
        %v1141 = vunpack.c.l.b16 %v1039
        %v1142 = vunpack.c.l.b16 %v1040
        %v1143 = vunpack.c.l.b16 %v1041
        %v1144 = vunpack.c.l.b16 %v1042
        %v1145 = vunpack.c.l.b16 %v1043
        %v1146 = vunpack.c.l.b16 %v1044
        %v1147 = vunpack.c.l.b16 %v1045
        %v1148 = vunpack.c.l.b16 %v1046
        %v1149 = vunpack.c.l.b16 %v1047
        %v1150 = vunpack.c.l.b16 %v1048
        %v1151 = vunpack.c.l.b16 %v1049
        %v1152 = vunpack.c.l.b16 %v1050
        %v1153 = vunpack.c.l.b16 %v1051
        %v1154 = vunpack.c.l.b16 %v1052
        %v1155 = vunpack.c.l.b16 %v1053
        %v1156 = vunpack.c.l.b16 %v1054
        %v1157 = vunpack.c.l.b16 %v1055
        %v1158 = vunpack.c.l.b16 %v1056
        %v1159 = vunpack.c.l.b16 %v1057
        %v1160 = vunpack.c.l.b16 %v1058
        %v1161 = vunpack.c.l.b16 %v1059
        %v1162 = vunpack.c.l.b16 %v1060
        %v1163 = vunpack.c.l.b16 %v1061
        %v1164 = vunpack.c.l.b16 %v1062
        %v1165 = vunpack.c.l.b16 %v1063
        %v1166 = vunpack.c.l.b16 %v1064
        %v1167 = vpack.c.b16 %v1120, %v1119
        %v1168 = vpack.c.b16 %v1121, %v1121
        %v1169 = vpack.c.b16 %v1123, %v1122
        %v1170 = vpack.c.b16 %v1124, %v1124
        %v1171 = vpack.c.b16 %v1126, %v1125
        %v1172 = vpack.c.b16 %v1127, %v1127
        %v1173 = vpack.c.b16 %v1129, %v1128
        %v1174 = vpack.c.b16 %v1130, %v1130
        %v1175 = vpack.c.b16 %v1132, %v1131
        %v1176 = vpack.c.b16 %v1133, %v1133
        %v1177 = vpack.c.b16 %v1135, %v1134
        %v1178 = vpack.c.b16 %v1136, %v1136
        %v1179 = vpack.c.b16 %v1138, %v1137
        %v1180 = vpack.c.b16 %v1139, %v1139
        %v1181 = vpack.c.b16 %v1141, %v1140
        %v1182 = vpack.c.b16 %v1142, %v1142
        %v1183 = vpack.c.b16 %v1144, %v1143
        %v1184 = vpack.c.b16 %v1145, %v1145
        %v1185 = vpack.c.b16 %v1147, %v1146
        %v1186 = vpack.c.b16 %v1148, %v1148
        %v1187 = vpack.c.b16 %v1150, %v1149
        %v1188 = vpack.c.b16 %v1151, %v1151
        %v1189 = vpack.c.b16 %v1153, %v1152
        %v1190 = vpack.c.b16 %v1154, %v1154
        %v1191 = vpack.c.b16 %v1156, %v1155
        %v1192 = vpack.c.b16 %v1157, %v1157
        %v1193 = vpack.c.b16 %v1159, %v1158
        %v1194 = vpack.c.b16 %v1160, %v1160
        %v1195 = vpack.c.b16 %v1162, %v1161
        %v1196 = vpack.c.b16 %v1163, %v1163
        %v1197 = vpack.c.b16 %v1165, %v1164
        %v1198 = vpack.c.b16 %v1166, %v1166
        %v1202 = vunpack.c.l.b16 %v1065
        %v1203 = vunpack.c.l.b16 %v1066
        %v1204 = vunpack.c.l.b16 %v1067
        %v1205 = vpack.c.b16 %v1203, %v1202
        %v1206 = vpack.c.b16 %v1204, %v1204
        %v1210 = vunpack.c.l.b16 %v1068
        %v1211 = vunpack.c.l.b16 %v1069
        %v1212 = vunpack.c.l.b16 %v1070
        %v1213 = vpack.c.b16 %v1211, %v1210
        %v1214 = vpack.c.b16 %v1212, %v1212
        %vm1215 = vsmask.f32 7424
        %v1217 = vshrl.u32 %v1167, 16
        %v1219 = vshll.u32 %v1167, 16
        %v1221 = vrot.slane %v1219, 1
        %v1222 = vor.u32 %v1217, %v1221
        %v1224 = vshll.u32 %v1168, 16
        %v1226 = vrot.slane %v1224, 1
        %v1227 = vsel %vm1215, %v1222, %v1226
        %v1229 = vshrl.u32 %v1169, 16
        %v1231 = vshll.u32 %v1169, 16
        %v1233 = vrot.slane %v1231, 1
        %v1234 = vor.u32 %v1229, %v1233
        %v1236 = vshll.u32 %v1170, 16
        %v1238 = vrot.slane %v1236, 1
        %v1239 = vsel %vm1215, %v1234, %v1238
        %v1241 = vshrl.u32 %v1171, 16
        %v1243 = vshll.u32 %v1171, 16
        %v1245 = vrot.slane %v1243, 1
        %v1246 = vor.u32 %v1241, %v1245
        %v1248 = vshll.u32 %v1172, 16
        %v1250 = vrot.slane %v1248, 1
        %v1251 = vsel %vm1215, %v1246, %v1250
        %v1253 = vshrl.u32 %v1173, 16
        %v1255 = vshll.u32 %v1173, 16
        %v1257 = vrot.slane %v1255, 1
        %v1258 = vor.u32 %v1253, %v1257
        %v1260 = vshll.u32 %v1174, 16
        %v1262 = vrot.slane %v1260, 1
        %v1263 = vsel %vm1215, %v1258, %v1262
        %v1265 = vshrl.u32 %v1175, 16
        %v1267 = vshll.u32 %v1175, 16
        %v1269 = vrot.slane %v1267, 1
        %v1270 = vor.u32 %v1265, %v1269
        %v1272 = vshll.u32 %v1176, 16
        %v1274 = vrot.slane %v1272, 1
        %v1275 = vsel %vm1215, %v1270, %v1274
        %v1277 = vshrl.u32 %v1177, 16
        %v1279 = vshll.u32 %v1177, 16
        %v1281 = vrot.slane %v1279, 1
        %v1282 = vor.u32 %v1277, %v1281
        %v1284 = vshll.u32 %v1178, 16
        %v1286 = vrot.slane %v1284, 1
        %v1287 = vsel %vm1215, %v1282, %v1286
        %v1289 = vshrl.u32 %v1179, 16
        %v1291 = vshll.u32 %v1179, 16
        %v1293 = vrot.slane %v1291, 1
        %v1294 = vor.u32 %v1289, %v1293
        %v1296 = vshll.u32 %v1180, 16
        %v1298 = vrot.slane %v1296, 1
        %v1299 = vsel %vm1215, %v1294, %v1298
        %v1301 = vshrl.u32 %v1181, 16
        %v1303 = vshll.u32 %v1181, 16
        %v1305 = vrot.slane %v1303, 1
        %v1306 = vor.u32 %v1301, %v1305
        %v1308 = vshll.u32 %v1182, 16
        %v1310 = vrot.slane %v1308, 1
        %v1311 = vsel %vm1215, %v1306, %v1310
        %v1313 = vshrl.u32 %v1183, 16
        %v1315 = vshll.u32 %v1183, 16
        %v1317 = vrot.slane %v1315, 1
        %v1318 = vor.u32 %v1313, %v1317
        %v1320 = vshll.u32 %v1184, 16
        %v1322 = vrot.slane %v1320, 1
        %v1323 = vsel %vm1215, %v1318, %v1322
        %v1325 = vshrl.u32 %v1185, 16
        %v1327 = vshll.u32 %v1185, 16
        %v1329 = vrot.slane %v1327, 1
        %v1330 = vor.u32 %v1325, %v1329
        %v1332 = vshll.u32 %v1186, 16
        %v1334 = vrot.slane %v1332, 1
        %v1335 = vsel %vm1215, %v1330, %v1334
        %v1337 = vshrl.u32 %v1187, 16
        %v1339 = vshll.u32 %v1187, 16
        %v1341 = vrot.slane %v1339, 1
        %v1342 = vor.u32 %v1337, %v1341
        %v1344 = vshll.u32 %v1188, 16
        %v1346 = vrot.slane %v1344, 1
        %v1347 = vsel %vm1215, %v1342, %v1346
        %v1349 = vshrl.u32 %v1189, 16
        %v1351 = vshll.u32 %v1189, 16
        %v1353 = vrot.slane %v1351, 1
        %v1354 = vor.u32 %v1349, %v1353
        %v1356 = vshll.u32 %v1190, 16
        %v1358 = vrot.slane %v1356, 1
        %v1359 = vsel %vm1215, %v1354, %v1358
        %v1361 = vshrl.u32 %v1191, 16
        %v1363 = vshll.u32 %v1191, 16
        %v1365 = vrot.slane %v1363, 1
        %v1366 = vor.u32 %v1361, %v1365
        %v1368 = vshll.u32 %v1192, 16
        %v1370 = vrot.slane %v1368, 1
        %v1371 = vsel %vm1215, %v1366, %v1370
        %v1373 = vshrl.u32 %v1193, 16
        %v1375 = vshll.u32 %v1193, 16
        %v1377 = vrot.slane %v1375, 1
        %v1378 = vor.u32 %v1373, %v1377
        %v1380 = vshll.u32 %v1194, 16
        %v1382 = vrot.slane %v1380, 1
        %v1383 = vsel %vm1215, %v1378, %v1382
        %v1385 = vshrl.u32 %v1195, 16
        %v1387 = vshll.u32 %v1195, 16
        %v1389 = vrot.slane %v1387, 1
        %v1390 = vor.u32 %v1385, %v1389
        %v1392 = vshll.u32 %v1196, 16
        %v1394 = vrot.slane %v1392, 1
        %v1395 = vsel %vm1215, %v1390, %v1394
        %v1397 = vshrl.u32 %v1197, 16
        %v1399 = vshll.u32 %v1197, 16
        %v1401 = vrot.slane %v1399, 1
        %v1402 = vor.u32 %v1397, %v1401
        %v1404 = vshll.u32 %v1198, 16
        %v1406 = vrot.slane %v1404, 1
        %v1407 = vsel %vm1215, %v1402, %v1406
        %v1409 = vshrl.u32 %v1205, 16
        %v1411 = vshll.u32 %v1205, 16
        %v1413 = vrot.slane %v1411, 1
        %v1414 = vor.u32 %v1409, %v1413
        %v1416 = vshll.u32 %v1206, 16
        %v1418 = vrot.slane %v1416, 1
        %v1419 = vsel %vm1215, %v1414, %v1418
        %v1421 = vshrl.u32 %v1213, 16
        %v1423 = vshll.u32 %v1213, 16
        %v1425 = vrot.slane %v1423, 1
        %v1426 = vor.u32 %v1421, %v1425
        %v1428 = vshll.u32 %v1214, 16
        %v1430 = vrot.slane %v1428, 1
        %v1431 = vsel %vm1215, %v1426, %v1430
        %s1450 = scalar_lea.vmem [#allocation7], 192
        %v1451 = vld [vmem:[%s1450] sm:$0xf]
        %v1452 = vld [vmem:[%s1450 + $0x4] sm:$0xf]
        %v1453 = vld [vmem:[%s1450 + $0x8] sm:$0xf]
        %v1454 = vld [vmem:[%s1450 + $0xc] sm:$0xf]
        %v1455 = vld [vmem:[%s1450 + $0x10] sm:$0xf]
        %v1456 = vld [vmem:[%s1450 + $0x14] sm:$0xf]
        %v1457 = vld [vmem:[%s1450 + $0x18] sm:$0xf]
        %v1458 = vld [vmem:[%s1450 + $0x1c] sm:$0xf]
        %v1459 = vld [vmem:[%s1450 + $0x20] sm:$0xf]
        %v1460 = vld [vmem:[%s1450 + $0x24] sm:$0xf]
        %v1461 = vld [vmem:[%s1450 + $0x28] sm:$0xf]
        %v1462 = vld [vmem:[%s1450 + $0x2c] sm:$0xf]
        %v1463 = vld [vmem:[%s1450 + $0x30] sm:$0xf]
        %v1464 = vld [vmem:[%s1450 + $0x34] sm:$0xf]
        %v1465 = vld [vmem:[%s1450 + $0x38] sm:$0xf]
        %v1466 = vld [vmem:[%s1450 + $0x3c] sm:$0xf]
        %v1467 = vld [vmem:[%s1450 + $0x40] sm:$0xf]
        %v1468 = vld [vmem:[%s1450 + $0x44] sm:$0xf]
        %v1469 = vld [vmem:[%s1450 + $0x48] sm:$0xf]
        %v1470 = vld [vmem:[%s1450 + $0x4c] sm:$0xf]
        %v1471 = vld [vmem:[%s1450 + $0x50] sm:$0xf]
        %v1472 = vld [vmem:[%s1450 + $0x54] sm:$0xf]
        %v1473 = vld [vmem:[%s1450 + $0x58] sm:$0xf]
        %v1474 = vld [vmem:[%s1450 + $0x5c] sm:$0xf]
        %v1475 = vld [vmem:[%s1450 + $0x60] sm:$0xf]
        %v1476 = vld [vmem:[%s1450 + $0x64] sm:$0xf]
        %v1477 = vld [vmem:[%s1450 + $0x68] sm:$0xf]
        %v1478 = vld [vmem:[%s1450 + $0x6c] sm:$0xf]
        %v1479 = vld [vmem:[%s1450 + $0x70] sm:$0xf]
        %v1480 = vld [vmem:[%s1450 + $0x74] sm:$0xf]
        %v1481 = vld [vmem:[%s1450 + $0x78] sm:$0xf]
        %v1482 = vld [vmem:[%s1450 + $0x7c] sm:$0xf]
        %v1483 = vld [vmem:[%s1450 + $0x80] sm:$0xf]
        %v1484 = vld [vmem:[%s1450 + $0x84] sm:$0xf]
        %v1485 = vld [vmem:[%s1450 + $0x88] sm:$0xf]
        %v1486 = vld [vmem:[%s1450 + $0x8c] sm:$0xf]
        %v1487 = vld [vmem:[%s1450 + $0x90] sm:$0xf]
        %v1488 = vld [vmem:[%s1450 + $0x94] sm:$0xf]
        %v1489 = vld [vmem:[%s1450 + $0x98] sm:$0xf]
        %v1490 = vld [vmem:[%s1450 + $0x9c] sm:$0xf]
        %v1491 = vld [vmem:[%s1450 + $0xa0] sm:$0xf]
        %v1492 = vld [vmem:[%s1450 + $0xa4] sm:$0xf]
        %v1493 = vld [vmem:[%s1450 + $0xa8] sm:$0xf]
        %v1494 = vld [vmem:[%s1450 + $0xac] sm:$0xf]
        %v1495 = vld [vmem:[%s1450 + $0xb0] sm:$0xf]
        %v1496 = vld [vmem:[%s1450 + $0xb4] sm:$0xf]
        %v1497 = vld [vmem:[%s1450 + $0xb8] sm:$0xf]
        %v1498 = vld [vmem:[%s1450 + $0xbc] sm:$0xf]
        %v1547 = vunpack.c.l.b16 %v1451
        %v1548 = vunpack.c.l.b16 %v1452
        %v1549 = vunpack.c.l.b16 %v1453
        %v1550 = vunpack.c.l.b16 %v1454
        %v1551 = vunpack.c.l.b16 %v1455
        %v1552 = vunpack.c.l.b16 %v1456
        %v1553 = vunpack.c.l.b16 %v1457
        %v1554 = vunpack.c.l.b16 %v1458
        %v1555 = vunpack.c.l.b16 %v1459
        %v1556 = vunpack.c.l.b16 %v1460
        %v1557 = vunpack.c.l.b16 %v1461
        %v1558 = vunpack.c.l.b16 %v1462
        %v1559 = vunpack.c.l.b16 %v1463
        %v1560 = vunpack.c.l.b16 %v1464
        %v1561 = vunpack.c.l.b16 %v1465
        %v1562 = vunpack.c.l.b16 %v1466
        %v1563 = vunpack.c.l.b16 %v1467
        %v1564 = vunpack.c.l.b16 %v1468
        %v1565 = vunpack.c.l.b16 %v1469
        %v1566 = vunpack.c.l.b16 %v1470
        %v1567 = vunpack.c.l.b16 %v1471
        %v1568 = vunpack.c.l.b16 %v1472
        %v1569 = vunpack.c.l.b16 %v1473
        %v1570 = vunpack.c.l.b16 %v1474
        %v1571 = vunpack.c.l.b16 %v1475
        %v1572 = vunpack.c.l.b16 %v1476
        %v1573 = vunpack.c.l.b16 %v1477
        %v1574 = vunpack.c.l.b16 %v1478
        %v1575 = vunpack.c.l.b16 %v1479
        %v1576 = vunpack.c.l.b16 %v1480
        %v1577 = vunpack.c.l.b16 %v1481
        %v1578 = vunpack.c.l.b16 %v1482
        %v1579 = vunpack.c.l.b16 %v1483
        %v1580 = vunpack.c.l.b16 %v1484
        %v1581 = vunpack.c.l.b16 %v1485
        %v1582 = vunpack.c.l.b16 %v1486
        %v1583 = vunpack.c.l.b16 %v1487
        %v1584 = vunpack.c.l.b16 %v1488
        %v1585 = vunpack.c.l.b16 %v1489
        %v1586 = vunpack.c.l.b16 %v1490
        %v1587 = vunpack.c.l.b16 %v1491
        %v1588 = vunpack.c.l.b16 %v1492
        %v1589 = vunpack.c.l.b16 %v1493
        %v1590 = vunpack.c.l.b16 %v1494
        %v1591 = vunpack.c.l.b16 %v1495
        %v1592 = vunpack.c.l.b16 %v1496
        %v1593 = vunpack.c.l.b16 %v1497
        %v1594 = vunpack.c.l.b16 %v1498
        %v1595 = vpack.c.b16 %v1548, %v1547
        %v1596 = vpack.c.b16 %v1550, %v1549
        %v1597 = vpack.c.b16 %v1552, %v1551
        %v1598 = vpack.c.b16 %v1554, %v1553
        %v1599 = vpack.c.b16 %v1556, %v1555
        %v1600 = vpack.c.b16 %v1558, %v1557
        %v1601 = vpack.c.b16 %v1560, %v1559
        %v1602 = vpack.c.b16 %v1562, %v1561
        %v1603 = vpack.c.b16 %v1564, %v1563
        %v1604 = vpack.c.b16 %v1566, %v1565
        %v1605 = vpack.c.b16 %v1568, %v1567
        %v1606 = vpack.c.b16 %v1570, %v1569
        %v1607 = vpack.c.b16 %v1572, %v1571
        %v1608 = vpack.c.b16 %v1574, %v1573
        %v1609 = vpack.c.b16 %v1576, %v1575
        %v1610 = vpack.c.b16 %v1578, %v1577
        %v1611 = vpack.c.b16 %v1580, %v1579
        %v1612 = vpack.c.b16 %v1582, %v1581
        %v1613 = vpack.c.b16 %v1584, %v1583
        %v1614 = vpack.c.b16 %v1586, %v1585
        %v1615 = vpack.c.b16 %v1588, %v1587
        %v1616 = vpack.c.b16 %v1590, %v1589
        %v1617 = vpack.c.b16 %v1592, %v1591
        %v1618 = vpack.c.b16 %v1594, %v1593
        %1643 = vmatprep.subr.bf16.mxu0 0
        %1644 = vmatpush1.bf16.msra.mxu0 %v1595
        %1645 = vmatprep.subr.bf16.mxu0 0
        %1646 = vmatpush1.bf16.msra.mxu0 %v1596
        %1647 = vmatprep.subr.bf16.mxu0 0
        %1648 = vmatpush1.bf16.msra.mxu0 %v1597
        %1649 = vmatprep.subr.bf16.mxu0 0
        %1650 = vmatpush1.bf16.msra.mxu0 %v1598
        %1651 = vmatprep.subr.bf16.mxu0 0
        %1652 = vmatpush1.bf16.msra.mxu0 %v1599
        %1653 = vmatprep.subr.bf16.mxu0 0
        %1654 = vmatpush1.bf16.msra.mxu0 %v1600
        %1655 = vmatprep.subr.bf16.mxu0 0
        %1656 = vmatpush1.bf16.msra.mxu0 %v1601
        %1657 = vmatprep.subr.bf16.mxu0 0
        %1658 = vmatpush1.bf16.msra.mxu0 %v1602
        %1659 = vmatprep.subr.bf16.mxu0 0
        %1660 = vmatpush1.bf16.msra.mxu0 %v1603
        %1661 = vmatprep.subr.bf16.mxu0 0
        %1662 = vmatpush1.bf16.msra.mxu0 %v1604
        %1663 = vmatprep.subr.bf16.mxu0 0
        %1664 = vmatpush1.bf16.msra.mxu0 %v1605
        %1665 = vmatprep.subr.bf16.mxu0 0
        %1666 = vmatpush1.bf16.msra.mxu0 %v1606
        %1667 = vmatprep.subr.bf16.mxu0 0
        %1668 = vmatpush1.bf16.msra.mxu0 %v1607
        %1669 = vmatprep.subr.bf16.mxu0 0
        %1670 = vmatpush1.bf16.msra.mxu0 %v1608
        %1671 = vmatprep.subr.bf16.mxu0 0
        %1672 = vmatpush1.bf16.msra.mxu0 %v1609
        %1673 = vmatprep.subr.bf16.mxu0 0
        %1674 = vmatpush1.bf16.msra.mxu0 %v1610
        %1675 = vmatprep.mubr.bf16.mxu0 %v1239
        %1676 = vmatmul.mubr.bf16.gmra.mrb[0].mxu0 %v1227
        %v1677 = vpop.f32.mrb[0].mxu0
        %v1678 = vadd.f32 0.0, %v1677
        %v1679 = vpop.f32.mrb[0].mxu0
        %v1680 = vpop.f32.mrb[0].mxu0
        %v1681 = vadd.f32 0.0, %v1680
        %v1682 = vpop.f32.mrb[0].mxu0
        %1683 = vmatprep.mubr.bf16.mxu0 %v1251
        %1684 = vmatmul.mubr.bf16.gmra.mrb[0].mxu0 %v1239
        %v1685 = vpop.f32.mrb[0].mxu0
        %v1686 = vadd.f32 0.0, %v1685
        %v1687 = vpop.f32.mrb[0].mxu0
        %v1688 = vpop.f32.mrb[0].mxu0
        %v1689 = vadd.f32 0.0, %v1688
        %v1690 = vpop.f32.mrb[0].mxu0
        %1691 = vmatprep.mubr.bf16.mxu0 %v1263
        %1692 = vmatmul.mubr.bf16.gmra.mrb[0].mxu0 %v1251
        %v1693 = vpop.f32.mrb[0].mxu0
        %v1694 = vadd.f32 0.0, %v1693
        %v1695 = vpop.f32.mrb[0].mxu0
        %v1696 = vpop.f32.mrb[0].mxu0
        %v1697 = vadd.f32 0.0, %v1696
        %v1698 = vpop.f32.mrb[0].mxu0
        %1699 = vmatprep.mubr.bf16.mxu0 %v1275
        %1700 = vmatmul.mubr.bf16.gmra.mrb[0].mxu0 %v1263
        %v1701 = vpop.f32.mrb[0].mxu0
        %v1702 = vadd.f32 0.0, %v1701
        %v1703 = vpop.f32.mrb[0].mxu0
        %v1704 = vpop.f32.mrb[0].mxu0
        %v1705 = vadd.f32 0.0, %v1704
        %v1706 = vpop.f32.mrb[0].mxu0
        %1707 = vmatprep.mubr.bf16.mxu0 %v1287
        %1708 = vmatmul.mubr.bf16.gmra.mrb[0].mxu0 %v1275
        %v1709 = vpop.f32.mrb[0].mxu0
        %v1710 = vadd.f32 0.0, %v1709
        %v1711 = vpop.f32.mrb[0].mxu0
        %v1712 = vpop.f32.mrb[0].mxu0
        %v1713 = vadd.f32 0.0, %v1712
        %v1714 = vpop.f32.mrb[0].mxu0
        %1715 = vmatprep.mubr.bf16.mxu0 %v1299
        %1716 = vmatmul.mubr.bf16.gmra.mrb[0].mxu0 %v1287
        %v1717 = vpop.f32.mrb[0].mxu0
        %v1718 = vadd.f32 0.0, %v1717
        %v1719 = vpop.f32.mrb[0].mxu0
        %v1720 = vpop.f32.mrb[0].mxu0
        %v1721 = vadd.f32 0.0, %v1720
        %v1722 = vpop.f32.mrb[0].mxu0
        %1723 = vmatprep.mubr.bf16.mxu0 %v1311
        %1724 = vmatmul.mubr.bf16.gmra.mrb[0].mxu0 %v1299
        %v1725 = vpop.f32.mrb[0].mxu0
        %v1726 = vadd.f32 0.0, %v1725
        %v1727 = vpop.f32.mrb[0].mxu0
        %v1728 = vpop.f32.mrb[0].mxu0
        %v1729 = vadd.f32 0.0, %v1728
        %v1730 = vpop.f32.mrb[0].mxu0
        %1731 = vmatprep.mubr.bf16.mxu0 %v1323
        %1732 = vmatmul.mubr.bf16.gmra.mrb[0].mxu0 %v1311
        %v1733 = vpop.f32.mrb[0].mxu0
        %v1734 = vadd.f32 0.0, %v1733
        %v1735 = vpop.f32.mrb[0].mxu0
        %v1736 = vpop.f32.mrb[0].mxu0
        %v1737 = vadd.f32 0.0, %v1736
        %v1738 = vpop.f32.mrb[0].mxu0
        %1739 = vmatprep.mubr.bf16.mxu0 %v1335
        %1740 = vmatmul.mubr.bf16.gmra.mrb[0].mxu0 %v1323
        %v1741 = vpop.f32.mrb[0].mxu0
        %v1742 = vadd.f32 0.0, %v1741
        %v1743 = vpop.f32.mrb[0].mxu0
        %v1744 = vpop.f32.mrb[0].mxu0
        %v1745 = vadd.f32 0.0, %v1744
        %v1746 = vpop.f32.mrb[0].mxu0
        %1747 = vmatprep.mubr.bf16.mxu0 %v1347
        %1748 = vmatmul.mubr.bf16.gmra.mrb[0].mxu0 %v1335
        %v1749 = vpop.f32.mrb[0].mxu0
        %v1750 = vadd.f32 0.0, %v1749
        %v1751 = vpop.f32.mrb[0].mxu0
        %v1752 = vpop.f32.mrb[0].mxu0
        %v1753 = vadd.f32 0.0, %v1752
        %v1754 = vpop.f32.mrb[0].mxu0
        %1755 = vmatprep.mubr.bf16.mxu0 %v1359
        %1756 = vmatmul.mubr.bf16.gmra.mrb[0].mxu0 %v1347
        %v1757 = vpop.f32.mrb[0].mxu0
        %v1758 = vadd.f32 0.0, %v1757
        %v1759 = vpop.f32.mrb[0].mxu0
        %v1760 = vpop.f32.mrb[0].mxu0
        %v1761 = vadd.f32 0.0, %v1760
        %v1762 = vpop.f32.mrb[0].mxu0
        %1763 = vmatprep.mubr.bf16.mxu0 %v1371
        %1764 = vmatmul.mubr.bf16.gmra.mrb[0].mxu0 %v1359
        %v1765 = vpop.f32.mrb[0].mxu0
        %v1766 = vadd.f32 0.0, %v1765
        %v1767 = vpop.f32.mrb[0].mxu0
        %v1768 = vpop.f32.mrb[0].mxu0
        %v1769 = vadd.f32 0.0, %v1768
        %v1770 = vpop.f32.mrb[0].mxu0
        %1771 = vmatprep.mubr.bf16.mxu0 %v1383
        %1772 = vmatmul.mubr.bf16.gmra.mrb[0].mxu0 %v1371
        %v1773 = vpop.f32.mrb[0].mxu0
        %v1774 = vadd.f32 0.0, %v1773
        %v1775 = vpop.f32.mrb[0].mxu0
        %v1776 = vpop.f32.mrb[0].mxu0
        %v1777 = vadd.f32 0.0, %v1776
        %v1778 = vpop.f32.mrb[0].mxu0
        %1779 = vmatprep.mubr.bf16.mxu0 %v1395
        %1780 = vmatmul.mubr.bf16.gmra.mrb[0].mxu0 %v1383
        %v1781 = vpop.f32.mrb[0].mxu0
        %v1782 = vadd.f32 0.0, %v1781
        %v1783 = vpop.f32.mrb[0].mxu0
        %v1784 = vpop.f32.mrb[0].mxu0
        %v1785 = vadd.f32 0.0, %v1784
        %v1786 = vpop.f32.mrb[0].mxu0
        %1787 = vmatprep.mubr.bf16.mxu0 %v1407
        %1788 = vmatmul.mubr.bf16.gmra.mrb[0].mxu0 %v1395
        %v1789 = vpop.f32.mrb[0].mxu0
        %v1790 = vadd.f32 0.0, %v1789
        %v1791 = vpop.f32.mrb[0].mxu0
        %v1792 = vpop.f32.mrb[0].mxu0
        %v1793 = vadd.f32 0.0, %v1792
        %v1794 = vpop.f32.mrb[0].mxu0
        %1795 = vmatprep.mubr.bf16.mxu0 %v1419
        %1796 = vmatmul.mubr.bf16.gmra.mrb[0].mxu0 %v1407
        %v1797 = vpop.f32.mrb[0].mxu0
        %v1798 = vadd.f32 0.0, %v1797
        %v1799 = vpop.f32.mrb[0].mxu0
        %v1800 = vpop.f32.mrb[0].mxu0
        %v1801 = vadd.f32 0.0, %v1800
        %v1802 = vpop.f32.mrb[0].mxu0
        %1803 = vdwg.mxu0
        %1804 = vmatprep.subr.bf16.mxu0 0
        %1805 = vmatpush1.bf16.msra.mxu0 %v1611
        %1806 = vmatprep.subr.bf16.mxu0 0
        %1807 = vmatpush1.bf16.msra.mxu0 %v1612
        %1808 = vmatprep.subr.bf16.mxu0 0
        %1809 = vmatpush1.bf16.msra.mxu0 %v1613
        %1810 = vmatprep.subr.bf16.mxu0 0
        %1811 = vmatpush1.bf16.msra.mxu0 %v1614
        %1812 = vmatprep.subr.bf16.mxu0 0
        %1813 = vmatpush1.bf16.msra.mxu0 %v1615
        %1814 = vmatprep.subr.bf16.mxu0 0
        %1815 = vmatpush1.bf16.msra.mxu0 %v1616
        %1816 = vmatprep.subr.bf16.mxu0 0
        %1817 = vmatpush1.bf16.msra.mxu0 %v1617
        %1818 = vmatprep.subr.bf16.mxu0 0
        %1819 = vmatpush1.bf16.msra.mxu0 %v1618
        %1820 = vmatprep.subr.bf16.mxu0 0
        %1821 = vmatpush1.bf16.msra.mxu0 0
        %1822 = vmatprep.subr.bf16.mxu0 0
        %1823 = vmatpush1.bf16.msra.mxu0 0
        %1824 = vmatprep.subr.bf16.mxu0 0
        %1825 = vmatpush1.bf16.msra.mxu0 0
        %1826 = vmatprep.subr.bf16.mxu0 0
        %1827 = vmatpush1.bf16.msra.mxu0 0
        %1828 = vmatprep.subr.bf16.mxu0 0
        %1829 = vmatpush1.bf16.msra.mxu0 0
        %1830 = vmatprep.subr.bf16.mxu0 0
        %1831 = vmatpush1.bf16.msra.mxu0 0
        %1832 = vmatprep.subr.bf16.mxu0 0
        %1833 = vmatpush1.bf16.msra.mxu0 0
        %1834 = vmatprep.subr.bf16.mxu0 0
        %1835 = vmatpush1.bf16.msra.mxu0 0
        %1836 = vmatprep.mubr.bf16.mxu0 0
        %1837 = vmatmul.mubr.bf16.gmra.mrb[0].mxu0 %v1251
        %v1838 = vpop.f32.mrb[0].mxu0
        %v1839 = vadd.f32 %v1678, %v1838
        %v1840 = vpop.f32.mrb[0].mxu0
        %v1841 = vpop.f32.mrb[0].mxu0
        %v1842 = vadd.f32 %v1681, %v1841
        %v1843 = vpop.f32.mrb[0].mxu0
        %1844 = vmatprep.mubr.bf16.mxu0 0
        %1845 = vmatmul.mubr.bf16.gmra.mrb[0].mxu0 %v1263
        %v1846 = vpop.f32.mrb[0].mxu0
        %v1847 = vadd.f32 %v1686, %v1846
        %v1848 = vpop.f32.mrb[0].mxu0
        %v1849 = vpop.f32.mrb[0].mxu0
        %v1850 = vadd.f32 %v1689, %v1849
        %v1851 = vpop.f32.mrb[0].mxu0
        %1852 = vmatprep.mubr.bf16.mxu0 0
        %1853 = vmatmul.mubr.bf16.gmra.mrb[0].mxu0 %v1275
        %v1854 = vpop.f32.mrb[0].mxu0
        %v1855 = vadd.f32 %v1694, %v1854
        %v1856 = vpop.f32.mrb[0].mxu0
        %v1857 = vpop.f32.mrb[0].mxu0
        %v1858 = vadd.f32 %v1697, %v1857
        %v1859 = vpop.f32.mrb[0].mxu0
        %1860 = vmatprep.mubr.bf16.mxu0 0
        %1861 = vmatmul.mubr.bf16.gmra.mrb[0].mxu0 %v1287
        %v1862 = vpop.f32.mrb[0].mxu0
        %v1863 = vadd.f32 %v1702, %v1862
        %v1864 = vpop.f32.mrb[0].mxu0
        %v1865 = vpop.f32.mrb[0].mxu0
        %v1866 = vadd.f32 %v1705, %v1865
        %v1867 = vpop.f32.mrb[0].mxu0
        %1868 = vmatprep.mubr.bf16.mxu0 0
        %1869 = vmatmul.mubr.bf16.gmra.mrb[0].mxu0 %v1299
        %v1870 = vpop.f32.mrb[0].mxu0
        %v1871 = vadd.f32 %v1710, %v1870
        %v1872 = vpop.f32.mrb[0].mxu0
        %v1873 = vpop.f32.mrb[0].mxu0
        %v1874 = vadd.f32 %v1713, %v1873
        %v1875 = vpop.f32.mrb[0].mxu0
        %1876 = vmatprep.mubr.bf16.mxu0 0
        %1877 = vmatmul.mubr.bf16.gmra.mrb[0].mxu0 %v1311
        %v1878 = vpop.f32.mrb[0].mxu0
        %v1879 = vadd.f32 %v1718, %v1878
        %v1880 = vpop.f32.mrb[0].mxu0
        %v1881 = vpop.f32.mrb[0].mxu0
        %v1882 = vadd.f32 %v1721, %v1881
        %v1883 = vpop.f32.mrb[0].mxu0
        %1884 = vmatprep.mubr.bf16.mxu0 0
        %1885 = vmatmul.mubr.bf16.gmra.mrb[0].mxu0 %v1323
        %v1886 = vpop.f32.mrb[0].mxu0
        %v1887 = vadd.f32 %v1726, %v1886
        %v1888 = vpop.f32.mrb[0].mxu0
        %v1889 = vpop.f32.mrb[0].mxu0
        %v1890 = vadd.f32 %v1729, %v1889
        %v1891 = vpop.f32.mrb[0].mxu0
        %1892 = vmatprep.mubr.bf16.mxu0 0
        %1893 = vmatmul.mubr.bf16.gmra.mrb[0].mxu0 %v1335
        %v1894 = vpop.f32.mrb[0].mxu0
        %v1895 = vadd.f32 %v1734, %v1894
        %v1896 = vpop.f32.mrb[0].mxu0
        %v1897 = vpop.f32.mrb[0].mxu0
        %v1898 = vadd.f32 %v1737, %v1897
        %v1899 = vpop.f32.mrb[0].mxu0
        %1900 = vmatprep.mubr.bf16.mxu0 0
        %1901 = vmatmul.mubr.bf16.gmra.mrb[0].mxu0 %v1347
        %v1902 = vpop.f32.mrb[0].mxu0
        %v1903 = vadd.f32 %v1742, %v1902
        %v1904 = vpop.f32.mrb[0].mxu0
        %v1905 = vpop.f32.mrb[0].mxu0
        %v1906 = vadd.f32 %v1745, %v1905
        %v1907 = vpop.f32.mrb[0].mxu0
        %1908 = vmatprep.mubr.bf16.mxu0 0
        %1909 = vmatmul.mubr.bf16.gmra.mrb[0].mxu0 %v1359
        %v1910 = vpop.f32.mrb[0].mxu0
        %v1911 = vadd.f32 %v1750, %v1910
        %v1912 = vpop.f32.mrb[0].mxu0
        %v1913 = vpop.f32.mrb[0].mxu0
        %v1914 = vadd.f32 %v1753, %v1913
        %v1915 = vpop.f32.mrb[0].mxu0
        %1916 = vmatprep.mubr.bf16.mxu0 0
        %1917 = vmatmul.mubr.bf16.gmra.mrb[0].mxu0 %v1371
        %v1918 = vpop.f32.mrb[0].mxu0
        %v1919 = vadd.f32 %v1758, %v1918
        %v1920 = vpop.f32.mrb[0].mxu0
        %v1921 = vpop.f32.mrb[0].mxu0
        %v1922 = vadd.f32 %v1761, %v1921
        %v1923 = vpop.f32.mrb[0].mxu0
        %1924 = vmatprep.mubr.bf16.mxu0 0
        %1925 = vmatmul.mubr.bf16.gmra.mrb[0].mxu0 %v1383
        %v1926 = vpop.f32.mrb[0].mxu0
        %v1927 = vadd.f32 %v1766, %v1926
        %v1928 = vpop.f32.mrb[0].mxu0
        %v1929 = vpop.f32.mrb[0].mxu0
        %v1930 = vadd.f32 %v1769, %v1929
        %v1931 = vpop.f32.mrb[0].mxu0
        %1932 = vmatprep.mubr.bf16.mxu0 0
        %1933 = vmatmul.mubr.bf16.gmra.mrb[0].mxu0 %v1395
        %v1934 = vpop.f32.mrb[0].mxu0
        %v1935 = vadd.f32 %v1774, %v1934
        %v1936 = vpop.f32.mrb[0].mxu0
        %v1937 = vpop.f32.mrb[0].mxu0
        %v1938 = vadd.f32 %v1777, %v1937
        %v1939 = vpop.f32.mrb[0].mxu0
        %1940 = vmatprep.mubr.bf16.mxu0 0
        %1941 = vmatmul.mubr.bf16.gmra.mrb[0].mxu0 %v1407
        %v1942 = vpop.f32.mrb[0].mxu0
        %v1943 = vadd.f32 %v1782, %v1942
        %v1944 = vpop.f32.mrb[0].mxu0
        %v1945 = vpop.f32.mrb[0].mxu0
        %v1946 = vadd.f32 %v1785, %v1945
        %v1947 = vpop.f32.mrb[0].mxu0
        %1948 = vmatprep.mubr.bf16.mxu0 0
        %1949 = vmatmul.mubr.bf16.gmra.mrb[0].mxu0 %v1419
        %v1950 = vpop.f32.mrb[0].mxu0
        %v1951 = vadd.f32 %v1790, %v1950
        %v1952 = vpop.f32.mrb[0].mxu0
        %v1953 = vpop.f32.mrb[0].mxu0
        %v1954 = vadd.f32 %v1793, %v1953
        %v1955 = vpop.f32.mrb[0].mxu0
        %1956 = vmatprep.mubr.bf16.mxu0 0
        %1957 = vmatmul.mubr.bf16.gmra.mrb[0].mxu0 %v1431
        %v1958 = vpop.f32.mrb[0].mxu0
        %v1959 = vadd.f32 %v1798, %v1958
        %v1960 = vpop.f32.mrb[0].mxu0
        %v1961 = vpop.f32.mrb[0].mxu0
        %v1962 = vadd.f32 %v1801, %v1961
        %v1963 = vpop.f32.mrb[0].mxu0
        %1964 = vdwg.mxu0
        %v1965 = vld [vmem:[#allocation2] sm:$0xff]
        %v1966 = vld [vmem:[#allocation2 + $0x8] sm:$0xff]
        %v1967 = vld [vmem:[#allocation2 + $0x10] sm:$0xff]
        %v1968 = vld [vmem:[#allocation2 + $0x18] sm:$0xff]
        %v1969 = vld [vmem:[#allocation2 + $0x20] sm:$0xff]
        %v1970 = vld [vmem:[#allocation2 + $0x28] sm:$0xff]
        %v1971 = vld [vmem:[#allocation2 + $0x30] sm:$0xff]
        %v1972 = vld [vmem:[#allocation2 + $0x38] sm:$0xff]
        %v1973 = vld [vmem:[#allocation2 + $0x40] sm:$0xff]
        %v1974 = vld [vmem:[#allocation2 + $0x48] sm:$0xff]
        %v1975 = vld [vmem:[#allocation2 + $0x50] sm:$0xff]
        %v1976 = vld [vmem:[#allocation2 + $0x58] sm:$0xff]
        %v1977 = vld [vmem:[#allocation2 + $0x60] sm:$0xff]
        %v1978 = vld [vmem:[#allocation2 + $0x68] sm:$0xff]
        %v1979 = vld [vmem:[#allocation2 + $0x70] sm:$0xff]
        %v1980 = vld [vmem:[#allocation2 + $0x78] sm:$0xff]
        %v1981 = vld [vmem:[#allocation2 + $0x80] sm:$0xff]
        %v1982 = vld [vmem:[#allocation2 + $0x88] sm:$0xff]
        %v1983 = vld [vmem:[#allocation2 + $0x90] sm:$0xff]
        %v1984 = vld [vmem:[#allocation2 + $0x98] sm:$0xff]
        %v1985 = vld [vmem:[#allocation2 + $0xa0] sm:$0xff]
        %v1986 = vld [vmem:[#allocation2 + $0xa8] sm:$0xff]
        %v1987 = vld [vmem:[#allocation2 + $0xb0] sm:$0xff]
        %v1988 = vld [vmem:[#allocation2 + $0xb8] sm:$0xff]
        %v1989 = vld [vmem:[#allocation2 + $0xc0] sm:$0xff]
        %v1990 = vld [vmem:[#allocation2 + $0xc8] sm:$0xff]
        %v1991 = vld [vmem:[#allocation2 + $0xd0] sm:$0xff]
        %v1992 = vld [vmem:[#allocation2 + $0xd8] sm:$0xff]
        %v1993 = vld [vmem:[#allocation2 + $0xe0] sm:$0xff]
        %v1994 = vld [vmem:[#allocation2 + $0xe8] sm:$0xff]
        %v1995 = vld [vmem:[#allocation2 + $0xf0] sm:$0xff]
        %v1996 = vld [vmem:[#allocation2 + $0xf8] sm:$0xff]
        %v1997 = vadd.f32 %v1965, %v1839
        %v1998 = vadd.f32 %v1966, %v1842
        %v1999 = vadd.f32 %v1967, %v1847
        %v2000 = vadd.f32 %v1968, %v1850
        %v2001 = vadd.f32 %v1969, %v1855
        %v2002 = vadd.f32 %v1970, %v1858
        %v2003 = vadd.f32 %v1971, %v1863
        %v2004 = vadd.f32 %v1972, %v1866
        %v2005 = vadd.f32 %v1973, %v1871
        %v2006 = vadd.f32 %v1974, %v1874
        %v2007 = vadd.f32 %v1975, %v1879
        %v2008 = vadd.f32 %v1976, %v1882
        %v2009 = vadd.f32 %v1977, %v1887
        %v2010 = vadd.f32 %v1978, %v1890
        %v2011 = vadd.f32 %v1979, %v1895
        %v2012 = vadd.f32 %v1980, %v1898
        %v2013 = vadd.f32 %v1981, %v1903
        %v2014 = vadd.f32 %v1982, %v1906
        %v2015 = vadd.f32 %v1983, %v1911
        %v2016 = vadd.f32 %v1984, %v1914
        %v2017 = vadd.f32 %v1985, %v1919
        %v2018 = vadd.f32 %v1986, %v1922
        %v2019 = vadd.f32 %v1987, %v1927
        %v2020 = vadd.f32 %v1988, %v1930
        %v2021 = vadd.f32 %v1989, %v1935
        %v2022 = vadd.f32 %v1990, %v1938
        %v2023 = vadd.f32 %v1991, %v1943
        %v2024 = vadd.f32 %v1992, %v1946
        %v2025 = vadd.f32 %v1993, %v1951
        %v2026 = vadd.f32 %v1994, %v1954
        %v2027 = vadd.f32 %v1995, %v1959
        %v2028 = vadd.f32 %v1996, %v1962
        %2029 = vst [vmem:[#allocation2] sm:$0xff] %v1997
        %2030 = vst [vmem:[#allocation2 + $0x8] sm:$0xff] %v1998
        %2031 = vst [vmem:[#allocation2 + $0x10] sm:$0xff] %v1999
        %2032 = vst [vmem:[#allocation2 + $0x18] sm:$0xff] %v2000
        %2033 = vst [vmem:[#allocation2 + $0x20] sm:$0xff] %v2001
        %2034 = vst [vmem:[#allocation2 + $0x28] sm:$0xff] %v2002
        %2035 = vst [vmem:[#allocation2 + $0x30] sm:$0xff] %v2003
        %2036 = vst [vmem:[#allocation2 + $0x38] sm:$0xff] %v2004
        %2037 = vst [vmem:[#allocation2 + $0x40] sm:$0xff] %v2005
        %2038 = vst [vmem:[#allocation2 + $0x48] sm:$0xff] %v2006
        %2039 = vst [vmem:[#allocation2 + $0x50] sm:$0xff] %v2007
        %2040 = vst [vmem:[#allocation2 + $0x58] sm:$0xff] %v2008
        %2041 = vst [vmem:[#allocation2 + $0x60] sm:$0xff] %v2009
        %2042 = vst [vmem:[#allocation2 + $0x68] sm:$0xff] %v2010
        %2043 = vst [vmem:[#allocation2 + $0x70] sm:$0xff] %v2011
        %2044 = vst [vmem:[#allocation2 + $0x78] sm:$0xff] %v2012
        %2045 = vst [vmem:[#allocation2 + $0x80] sm:$0xff] %v2013
        %2046 = vst [vmem:[#allocation2 + $0x88] sm:$0xff] %v2014
        %2047 = vst [vmem:[#allocation2 + $0x90] sm:$0xff] %v2015
        %2048 = vst [vmem:[#allocation2 + $0x98] sm:$0xff] %v2016
        %2049 = vst [vmem:[#allocation2 + $0xa0] sm:$0xff] %v2017
        %2050 = vst [vmem:[#allocation2 + $0xa8] sm:$0xff] %v2018
        %2051 = vst [vmem:[#allocation2 + $0xb0] sm:$0xff] %v2019
        %2052 = vst [vmem:[#allocation2 + $0xb8] sm:$0xff] %v2020
        %2053 = vst [vmem:[#allocation2 + $0xc0] sm:$0xff] %v2021
        %2054 = vst [vmem:[#allocation2 + $0xc8] sm:$0xff] %v2022
        %2055 = vst [vmem:[#allocation2 + $0xd0] sm:$0xff] %v2023
        %2056 = vst [vmem:[#allocation2 + $0xd8] sm:$0xff] %v2024
        %2057 = vst [vmem:[#allocation2 + $0xe0] sm:$0xff] %v2025
        %2058 = vst [vmem:[#allocation2 + $0xe8] sm:$0xff] %v2026
        %2059 = vst [vmem:[#allocation2 + $0xf0] sm:$0xff] %v2027
        %2060 = vst [vmem:[#allocation2 + $0xf8] sm:$0xff] %v2028
        %v2061 = vld [vmem:[%s287] sm:$0xe]
        %v2062 = vld [vmem:[%s287 + $0x4] sm:$0xf]
        %v2063 = vld [vmem:[%s287 + $0x8] sm:$0x1]
        %v2064 = vld [vmem:[%s287 + $0xc] sm:$0xe]
        %v2065 = vld [vmem:[%s287 + $0x10] sm:$0xf]
        %v2066 = vld [vmem:[%s287 + $0x14] sm:$0x1]
        %v2067 = vld [vmem:[%s287 + $0x18] sm:$0xe]
        %v2068 = vld [vmem:[%s287 + $0x1c] sm:$0xf]
        %v2069 = vld [vmem:[%s287 + $0x20] sm:$0x1]
        %v2070 = vld [vmem:[%s287 + $0x24] sm:$0xe]
        %v2071 = vld [vmem:[%s287 + $0x28] sm:$0xf]
        %v2072 = vld [vmem:[%s287 + $0x2c] sm:$0x1]
        %v2073 = vld [vmem:[%s287 + $0x30] sm:$0xe]
        %v2074 = vld [vmem:[%s287 + $0x34] sm:$0xf]
        %v2075 = vld [vmem:[%s287 + $0x38] sm:$0x1]
        %v2076 = vld [vmem:[%s287 + $0x3c] sm:$0xe]
        %v2077 = vld [vmem:[%s287 + $0x40] sm:$0xf]
        %v2078 = vld [vmem:[%s287 + $0x44] sm:$0x1]
        %v2079 = vld [vmem:[%s287 + $0x48] sm:$0xe]
        %v2080 = vld [vmem:[%s287 + $0x4c] sm:$0xf]
        %v2081 = vld [vmem:[%s287 + $0x50] sm:$0x1]
        %v2082 = vld [vmem:[%s287 + $0x54] sm:$0xe]
        %v2083 = vld [vmem:[%s287 + $0x58] sm:$0xf]
        %v2084 = vld [vmem:[%s287 + $0x5c] sm:$0x1]
        %v2085 = vld [vmem:[%s287 + $0x60] sm:$0xe]
        %v2086 = vld [vmem:[%s287 + $0x64] sm:$0xf]
        %v2087 = vld [vmem:[%s287 + $0x68] sm:$0x1]
        %v2088 = vld [vmem:[%s287 + $0x6c] sm:$0xe]
        %v2089 = vld [vmem:[%s287 + $0x70] sm:$0xf]
        %v2090 = vld [vmem:[%s287 + $0x74] sm:$0x1]
        %v2091 = vld [vmem:[%s287 + $0x78] sm:$0xe]
        %v2092 = vld [vmem:[%s287 + $0x7c] sm:$0xf]
        %v2093 = vld [vmem:[%s287 + $0x80] sm:$0x1]
        %v2094 = vld [vmem:[%s287 + $0x84] sm:$0xe]
        %v2095 = vld [vmem:[%s287 + $0x88] sm:$0xf]
        %v2096 = vld [vmem:[%s287 + $0x8c] sm:$0x1]
        %v2097 = vld [vmem:[%s287 + $0x90] sm:$0xe]
        %v2098 = vld [vmem:[%s287 + $0x94] sm:$0xf]
        %v2099 = vld [vmem:[%s287 + $0x98] sm:$0x1]
        %v2100 = vld [vmem:[%s287 + $0x9c] sm:$0xe]
        %v2101 = vld [vmem:[%s287 + $0xa0] sm:$0xf]
        %v2102 = vld [vmem:[%s287 + $0xa4] sm:$0x1]
        %v2103 = vld [vmem:[%s287 + $0xa8] sm:$0xe]
        %v2104 = vld [vmem:[%s287 + $0xac] sm:$0xf]
        %v2105 = vld [vmem:[%s287 + $0xb0] sm:$0x1]
        %v2106 = vld [vmem:[%s287 + $0xb4] sm:$0xe]
        %v2107 = vld [vmem:[%s287 + $0xb8] sm:$0xf]
        %v2108 = vld [vmem:[%s287 + $0xbc] sm:$0x1]
        %v2109 = vld [vmem:[%s287 + $0xc0] sm:$0xe]
        %v2110 = vld [vmem:[%s287 + $0xc4] sm:$0xf]
        %v2111 = vld [vmem:[%s287 + $0xc8] sm:$0x1]
        %v2112 = vld [vmem:[%s287 + $0xcc] sm:$0xe]
        %v2113 = vld [vmem:[%s287 + $0xd0] sm:$0xf]
        %v2114 = vld [vmem:[%s287 + $0xd4] sm:$0x1]
        %v2163 = vunpack.c.l.b16 %v2061
        %v2164 = vunpack.c.l.b16 %v2062
        %v2165 = vunpack.c.l.b16 %v2063
        %v2166 = vunpack.c.l.b16 %v2064
        %v2167 = vunpack.c.l.b16 %v2065
        %v2168 = vunpack.c.l.b16 %v2066
        %v2169 = vunpack.c.l.b16 %v2067
        %v2170 = vunpack.c.l.b16 %v2068
        %v2171 = vunpack.c.l.b16 %v2069
        %v2172 = vunpack.c.l.b16 %v2070
        %v2173 = vunpack.c.l.b16 %v2071
        %v2174 = vunpack.c.l.b16 %v2072
        %v2175 = vunpack.c.l.b16 %v2073
        %v2176 = vunpack.c.l.b16 %v2074
        %v2177 = vunpack.c.l.b16 %v2075
        %v2178 = vunpack.c.l.b16 %v2076
        %v2179 = vunpack.c.l.b16 %v2077
        %v2180 = vunpack.c.l.b16 %v2078
        %v2181 = vunpack.c.l.b16 %v2079
        %v2182 = vunpack.c.l.b16 %v2080
        %v2183 = vunpack.c.l.b16 %v2081
        %v2184 = vunpack.c.l.b16 %v2082
        %v2185 = vunpack.c.l.b16 %v2083
        %v2186 = vunpack.c.l.b16 %v2084
        %v2187 = vunpack.c.l.b16 %v2085
        %v2188 = vunpack.c.l.b16 %v2086
        %v2189 = vunpack.c.l.b16 %v2087
        %v2190 = vunpack.c.l.b16 %v2088
        %v2191 = vunpack.c.l.b16 %v2089
        %v2192 = vunpack.c.l.b16 %v2090
        %v2193 = vunpack.c.l.b16 %v2091
        %v2194 = vunpack.c.l.b16 %v2092
        %v2195 = vunpack.c.l.b16 %v2093
        %v2196 = vunpack.c.l.b16 %v2094
        %v2197 = vunpack.c.l.b16 %v2095
        %v2198 = vunpack.c.l.b16 %v2096
        %v2199 = vunpack.c.l.b16 %v2097
        %v2200 = vunpack.c.l.b16 %v2098
        %v2201 = vunpack.c.l.b16 %v2099
        %v2202 = vunpack.c.l.b16 %v2100
        %v2203 = vunpack.c.l.b16 %v2101
        %v2204 = vunpack.c.l.b16 %v2102
        %v2205 = vunpack.c.l.b16 %v2103
        %v2206 = vunpack.c.l.b16 %v2104
        %v2207 = vunpack.c.l.b16 %v2105
        %v2208 = vunpack.c.l.b16 %v2106
        %v2209 = vunpack.c.l.b16 %v2107
        %v2210 = vunpack.c.l.b16 %v2108
        %v2211 = vpack.c.b16 %v2164, %v2163
        %v2212 = vpack.c.b16 %v2165, %v2165
        %v2213 = vpack.c.b16 %v2167, %v2166
        %v2214 = vpack.c.b16 %v2168, %v2168
        %v2215 = vpack.c.b16 %v2170, %v2169
        %v2216 = vpack.c.b16 %v2171, %v2171
        %v2217 = vpack.c.b16 %v2173, %v2172
        %v2218 = vpack.c.b16 %v2174, %v2174
        %v2219 = vpack.c.b16 %v2176, %v2175
        %v2220 = vpack.c.b16 %v2177, %v2177
        %v2221 = vpack.c.b16 %v2179, %v2178
        %v2222 = vpack.c.b16 %v2180, %v2180
        %v2223 = vpack.c.b16 %v2182, %v2181
        %v2224 = vpack.c.b16 %v2183, %v2183
        %v2225 = vpack.c.b16 %v2185, %v2184
        %v2226 = vpack.c.b16 %v2186, %v2186
        %v2227 = vpack.c.b16 %v2188, %v2187
        %v2228 = vpack.c.b16 %v2189, %v2189
        %v2229 = vpack.c.b16 %v2191, %v2190
        %v2230 = vpack.c.b16 %v2192, %v2192
        %v2231 = vpack.c.b16 %v2194, %v2193
        %v2232 = vpack.c.b16 %v2195, %v2195
        %v2233 = vpack.c.b16 %v2197, %v2196
        %v2234 = vpack.c.b16 %v2198, %v2198
        %v2235 = vpack.c.b16 %v2200, %v2199
        %v2236 = vpack.c.b16 %v2201, %v2201
        %v2237 = vpack.c.b16 %v2203, %v2202
        %v2238 = vpack.c.b16 %v2204, %v2204
        %v2239 = vpack.c.b16 %v2206, %v2205
        %v2240 = vpack.c.b16 %v2207, %v2207
        %v2241 = vpack.c.b16 %v2209, %v2208
        %v2242 = vpack.c.b16 %v2210, %v2210
        %v2246 = vunpack.c.l.b16 %v2109
        %v2247 = vunpack.c.l.b16 %v2110
        %v2248 = vunpack.c.l.b16 %v2111
        %v2249 = vpack.c.b16 %v2247, %v2246
        %v2250 = vpack.c.b16 %v2248, %v2248
        %v2254 = vunpack.c.l.b16 %v2112
        %v2255 = vunpack.c.l.b16 %v2113
        %v2256 = vunpack.c.l.b16 %v2114
        %v2257 = vpack.c.b16 %v2255, %v2254
        %v2258 = vpack.c.b16 %v2256, %v2256
        %vm2259 = vcmask 1046528
        %v2260 = vrot.slane %v2211, 1
        %v2261 = vrot.slane %v2212, 1
        %v2262 = vsel %vm2259, %v2260, %v2261
        %v2263 = vrot.slane %v2213, 1
        %v2264 = vrot.slane %v2214, 1
        %v2265 = vsel %vm2259, %v2263, %v2264
        %v2266 = vrot.slane %v2215, 1
        %v2267 = vrot.slane %v2216, 1
        %v2268 = vsel %vm2259, %v2266, %v2267
        %v2269 = vrot.slane %v2217, 1
        %v2270 = vrot.slane %v2218, 1
        %v2271 = vsel %vm2259, %v2269, %v2270
        %v2272 = vrot.slane %v2219, 1
        %v2273 = vrot.slane %v2220, 1
        %v2274 = vsel %vm2259, %v2272, %v2273
        %v2275 = vrot.slane %v2221, 1
        %v2276 = vrot.slane %v2222, 1
        %v2277 = vsel %vm2259, %v2275, %v2276
        %v2278 = vrot.slane %v2223, 1
        %v2279 = vrot.slane %v2224, 1
        %v2280 = vsel %vm2259, %v2278, %v2279
        %v2281 = vrot.slane %v2225, 1
        %v2282 = vrot.slane %v2226, 1
        %v2283 = vsel %vm2259, %v2281, %v2282
        %v2284 = vrot.slane %v2227, 1
        %v2285 = vrot.slane %v2228, 1
        %v2286 = vsel %vm2259, %v2284, %v2285
        %v2287 = vrot.slane %v2229, 1
        %v2288 = vrot.slane %v2230, 1
        %v2289 = vsel %vm2259, %v2287, %v2288
        %v2290 = vrot.slane %v2231, 1
        %v2291 = vrot.slane %v2232, 1
        %v2292 = vsel %vm2259, %v2290, %v2291
        %v2293 = vrot.slane %v2233, 1
        %v2294 = vrot.slane %v2234, 1
        %v2295 = vsel %vm2259, %v2293, %v2294
        %v2296 = vrot.slane %v2235, 1
        %v2297 = vrot.slane %v2236, 1
        %v2298 = vsel %vm2259, %v2296, %v2297
        %v2299 = vrot.slane %v2237, 1
        %v2300 = vrot.slane %v2238, 1
        %v2301 = vsel %vm2259, %v2299, %v2300
        %v2302 = vrot.slane %v2239, 1
        %v2303 = vrot.slane %v2240, 1
        %v2304 = vsel %vm2259, %v2302, %v2303
        %v2305 = vrot.slane %v2241, 1
        %v2306 = vrot.slane %v2242, 1
        %v2307 = vsel %vm2259, %v2305, %v2306
        %v2308 = vrot.slane %v2249, 1
        %v2309 = vrot.slane %v2250, 1
        %v2310 = vsel %vm2259, %v2308, %v2309
        %v2311 = vrot.slane %v2257, 1
        %v2312 = vrot.slane %v2258, 1
        %v2313 = vsel %vm2259, %v2311, %v2312
        %s2332 = scalar_lea.vmem [#allocation7], 384
        %v2333 = vld [vmem:[%s2332] sm:$0xf]
        %v2334 = vld [vmem:[%s2332 + $0x4] sm:$0xf]
        %v2335 = vld [vmem:[%s2332 + $0x8] sm:$0xf]
        %v2336 = vld [vmem:[%s2332 + $0xc] sm:$0xf]
        %v2337 = vld [vmem:[%s2332 + $0x10] sm:$0xf]
        %v2338 = vld [vmem:[%s2332 + $0x14] sm:$0xf]
        %v2339 = vld [vmem:[%s2332 + $0x18] sm:$0xf]
        %v2340 = vld [vmem:[%s2332 + $0x1c] sm:$0xf]
        %v2341 = vld [vmem:[%s2332 + $0x20] sm:$0xf]
        %v2342 = vld [vmem:[%s2332 + $0x24] sm:$0xf]
        %v2343 = vld [vmem:[%s2332 + $0x28] sm:$0xf]
        %v2344 = vld [vmem:[%s2332 + $0x2c] sm:$0xf]
        %v2345 = vld [vmem:[%s2332 + $0x30] sm:$0xf]
        %v2346 = vld [vmem:[%s2332 + $0x34] sm:$0xf]
        %v2347 = vld [vmem:[%s2332 + $0x38] sm:$0xf]
        %v2348 = vld [vmem:[%s2332 + $0x3c] sm:$0xf]
        %v2349 = vld [vmem:[%s2332 + $0x40] sm:$0xf]
        %v2350 = vld [vmem:[%s2332 + $0x44] sm:$0xf]
        %v2351 = vld [vmem:[%s2332 + $0x48] sm:$0xf]
        %v2352 = vld [vmem:[%s2332 + $0x4c] sm:$0xf]
        %v2353 = vld [vmem:[%s2332 + $0x50] sm:$0xf]
        %v2354 = vld [vmem:[%s2332 + $0x54] sm:$0xf]
        %v2355 = vld [vmem:[%s2332 + $0x58] sm:$0xf]
        %v2356 = vld [vmem:[%s2332 + $0x5c] sm:$0xf]
        %v2357 = vld [vmem:[%s2332 + $0x60] sm:$0xf]
        %v2358 = vld [vmem:[%s2332 + $0x64] sm:$0xf]
        %v2359 = vld [vmem:[%s2332 + $0x68] sm:$0xf]
        %v2360 = vld [vmem:[%s2332 + $0x6c] sm:$0xf]
        %v2361 = vld [vmem:[%s2332 + $0x70] sm:$0xf]
        %v2362 = vld [vmem:[%s2332 + $0x74] sm:$0xf]
        %v2363 = vld [vmem:[%s2332 + $0x78] sm:$0xf]
        %v2364 = vld [vmem:[%s2332 + $0x7c] sm:$0xf]
        %v2365 = vld [vmem:[%s2332 + $0x80] sm:$0xf]
        %v2366 = vld [vmem:[%s2332 + $0x84] sm:$0xf]
        %v2367 = vld [vmem:[%s2332 + $0x88] sm:$0xf]
        %v2368 = vld [vmem:[%s2332 + $0x8c] sm:$0xf]
        %v2369 = vld [vmem:[%s2332 + $0x90] sm:$0xf]
        %v2370 = vld [vmem:[%s2332 + $0x94] sm:$0xf]
        %v2371 = vld [vmem:[%s2332 + $0x98] sm:$0xf]
        %v2372 = vld [vmem:[%s2332 + $0x9c] sm:$0xf]
        %v2373 = vld [vmem:[%s2332 + $0xa0] sm:$0xf]
        %v2374 = vld [vmem:[%s2332 + $0xa4] sm:$0xf]
        %v2375 = vld [vmem:[%s2332 + $0xa8] sm:$0xf]
        %v2376 = vld [vmem:[%s2332 + $0xac] sm:$0xf]
        %v2377 = vld [vmem:[%s2332 + $0xb0] sm:$0xf]
        %v2378 = vld [vmem:[%s2332 + $0xb4] sm:$0xf]
        %v2379 = vld [vmem:[%s2332 + $0xb8] sm:$0xf]
        %v2380 = vld [vmem:[%s2332 + $0xbc] sm:$0xf]
        %v2429 = vunpack.c.l.b16 %v2333
        %v2430 = vunpack.c.l.b16 %v2334
        %v2431 = vunpack.c.l.b16 %v2335
        %v2432 = vunpack.c.l.b16 %v2336
        %v2433 = vunpack.c.l.b16 %v2337
        %v2434 = vunpack.c.l.b16 %v2338
        %v2435 = vunpack.c.l.b16 %v2339
        %v2436 = vunpack.c.l.b16 %v2340
        %v2437 = vunpack.c.l.b16 %v2341
        %v2438 = vunpack.c.l.b16 %v2342
        %v2439 = vunpack.c.l.b16 %v2343
        %v2440 = vunpack.c.l.b16 %v2344
        %v2441 = vunpack.c.l.b16 %v2345
        %v2442 = vunpack.c.l.b16 %v2346
        %v2443 = vunpack.c.l.b16 %v2347
        %v2444 = vunpack.c.l.b16 %v2348
        %v2445 = vunpack.c.l.b16 %v2349
        %v2446 = vunpack.c.l.b16 %v2350
        %v2447 = vunpack.c.l.b16 %v2351
        %v2448 = vunpack.c.l.b16 %v2352
        %v2449 = vunpack.c.l.b16 %v2353
        %v2450 = vunpack.c.l.b16 %v2354
        %v2451 = vunpack.c.l.b16 %v2355
        %v2452 = vunpack.c.l.b16 %v2356
        %v2453 = vunpack.c.l.b16 %v2357
        %v2454 = vunpack.c.l.b16 %v2358
        %v2455 = vunpack.c.l.b16 %v2359
        %v2456 = vunpack.c.l.b16 %v2360
        %v2457 = vunpack.c.l.b16 %v2361
        %v2458 = vunpack.c.l.b16 %v2362
        %v2459 = vunpack.c.l.b16 %v2363
        %v2460 = vunpack.c.l.b16 %v2364
        %v2461 = vunpack.c.l.b16 %v2365
        %v2462 = vunpack.c.l.b16 %v2366
        %v2463 = vunpack.c.l.b16 %v2367
        %v2464 = vunpack.c.l.b16 %v2368
        %v2465 = vunpack.c.l.b16 %v2369
        %v2466 = vunpack.c.l.b16 %v2370
        %v2467 = vunpack.c.l.b16 %v2371
        %v2468 = vunpack.c.l.b16 %v2372
        %v2469 = vunpack.c.l.b16 %v2373
        %v2470 = vunpack.c.l.b16 %v2374
        %v2471 = vunpack.c.l.b16 %v2375
        %v2472 = vunpack.c.l.b16 %v2376
        %v2473 = vunpack.c.l.b16 %v2377
        %v2474 = vunpack.c.l.b16 %v2378
        %v2475 = vunpack.c.l.b16 %v2379
        %v2476 = vunpack.c.l.b16 %v2380
        %v2477 = vpack.c.b16 %v2430, %v2429
        %v2478 = vpack.c.b16 %v2432, %v2431
        %v2479 = vpack.c.b16 %v2434, %v2433
        %v2480 = vpack.c.b16 %v2436, %v2435
        %v2481 = vpack.c.b16 %v2438, %v2437
        %v2482 = vpack.c.b16 %v2440, %v2439
        %v2483 = vpack.c.b16 %v2442, %v2441
        %v2484 = vpack.c.b16 %v2444, %v2443
        %v2485 = vpack.c.b16 %v2446, %v2445
        %v2486 = vpack.c.b16 %v2448, %v2447
        %v2487 = vpack.c.b16 %v2450, %v2449
        %v2488 = vpack.c.b16 %v2452, %v2451
        %v2489 = vpack.c.b16 %v2454, %v2453
        %v2490 = vpack.c.b16 %v2456, %v2455
        %v2491 = vpack.c.b16 %v2458, %v2457
        %v2492 = vpack.c.b16 %v2460, %v2459
        %v2493 = vpack.c.b16 %v2462, %v2461
        %v2494 = vpack.c.b16 %v2464, %v2463
        %v2495 = vpack.c.b16 %v2466, %v2465
        %v2496 = vpack.c.b16 %v2468, %v2467
        %v2497 = vpack.c.b16 %v2470, %v2469
        %v2498 = vpack.c.b16 %v2472, %v2471
        %v2499 = vpack.c.b16 %v2474, %v2473
        %v2500 = vpack.c.b16 %v2476, %v2475
        %2525 = vmatprep.subr.bf16.mxu0 0
        %2526 = vmatpush1.bf16.msra.mxu0 %v2477
        %2527 = vmatprep.subr.bf16.mxu0 0
        %2528 = vmatpush1.bf16.msra.mxu0 %v2478
        %2529 = vmatprep.subr.bf16.mxu0 0
        %2530 = vmatpush1.bf16.msra.mxu0 %v2479
        %2531 = vmatprep.subr.bf16.mxu0 0
        %2532 = vmatpush1.bf16.msra.mxu0 %v2480
        %2533 = vmatprep.subr.bf16.mxu0 0
        %2534 = vmatpush1.bf16.msra.mxu0 %v2481
        %2535 = vmatprep.subr.bf16.mxu0 0
        %2536 = vmatpush1.bf16.msra.mxu0 %v2482
        %2537 = vmatprep.subr.bf16.mxu0 0
        %2538 = vmatpush1.bf16.msra.mxu0 %v2483
        %2539 = vmatprep.subr.bf16.mxu0 0
        %2540 = vmatpush1.bf16.msra.mxu0 %v2484
        %2541 = vmatprep.subr.bf16.mxu0 0
        %2542 = vmatpush1.bf16.msra.mxu0 %v2485
        %2543 = vmatprep.subr.bf16.mxu0 0
        %2544 = vmatpush1.bf16.msra.mxu0 %v2486
        %2545 = vmatprep.subr.bf16.mxu0 0
        %2546 = vmatpush1.bf16.msra.mxu0 %v2487
        %2547 = vmatprep.subr.bf16.mxu0 0
        %2548 = vmatpush1.bf16.msra.mxu0 %v2488
        %2549 = vmatprep.subr.bf16.mxu0 0
        %2550 = vmatpush1.bf16.msra.mxu0 %v2489
        %2551 = vmatprep.subr.bf16.mxu0 0
        %2552 = vmatpush1.bf16.msra.mxu0 %v2490
        %2553 = vmatprep.subr.bf16.mxu0 0
        %2554 = vmatpush1.bf16.msra.mxu0 %v2491
        %2555 = vmatprep.subr.bf16.mxu0 0
        %2556 = vmatpush1.bf16.msra.mxu0 %v2492
        %2557 = vmatprep.mubr.bf16.mxu0 %v2265
        %2558 = vmatmul.mubr.bf16.gmra.mrb[0].mxu0 %v2262
        %v2559 = vpop.f32.mrb[0].mxu0
        %v2560 = vadd.f32 0.0, %v2559
        %v2561 = vpop.f32.mrb[0].mxu0
        %v2562 = vpop.f32.mrb[0].mxu0
        %v2563 = vadd.f32 0.0, %v2562
        %v2564 = vpop.f32.mrb[0].mxu0
        %2565 = vmatprep.mubr.bf16.mxu0 %v2268
        %2566 = vmatmul.mubr.bf16.gmra.mrb[0].mxu0 %v2265
        %v2567 = vpop.f32.mrb[0].mxu0
        %v2568 = vadd.f32 0.0, %v2567
        %v2569 = vpop.f32.mrb[0].mxu0
        %v2570 = vpop.f32.mrb[0].mxu0
        %v2571 = vadd.f32 0.0, %v2570
        %v2572 = vpop.f32.mrb[0].mxu0
        %2573 = vmatprep.mubr.bf16.mxu0 %v2271
        %2574 = vmatmul.mubr.bf16.gmra.mrb[0].mxu0 %v2268
        %v2575 = vpop.f32.mrb[0].mxu0
        %v2576 = vadd.f32 0.0, %v2575
        %v2577 = vpop.f32.mrb[0].mxu0
        %v2578 = vpop.f32.mrb[0].mxu0
        %v2579 = vadd.f32 0.0, %v2578
        %v2580 = vpop.f32.mrb[0].mxu0
        %2581 = vmatprep.mubr.bf16.mxu0 %v2274
        %2582 = vmatmul.mubr.bf16.gmra.mrb[0].mxu0 %v2271
        %v2583 = vpop.f32.mrb[0].mxu0
        %v2584 = vadd.f32 0.0, %v2583
        %v2585 = vpop.f32.mrb[0].mxu0
        %v2586 = vpop.f32.mrb[0].mxu0
        %v2587 = vadd.f32 0.0, %v2586
        %v2588 = vpop.f32.mrb[0].mxu0
        %2589 = vmatprep.mubr.bf16.mxu0 %v2277
        %2590 = vmatmul.mubr.bf16.gmra.mrb[0].mxu0 %v2274
        %v2591 = vpop.f32.mrb[0].mxu0
        %v2592 = vadd.f32 0.0, %v2591
        %v2593 = vpop.f32.mrb[0].mxu0
        %v2594 = vpop.f32.mrb[0].mxu0
        %v2595 = vadd.f32 0.0, %v2594
        %v2596 = vpop.f32.mrb[0].mxu0
        %2597 = vmatprep.mubr.bf16.mxu0 %v2280
        %2598 = vmatmul.mubr.bf16.gmra.mrb[0].mxu0 %v2277
        %v2599 = vpop.f32.mrb[0].mxu0
        %v2600 = vadd.f32 0.0, %v2599
        %v2601 = vpop.f32.mrb[0].mxu0
        %v2602 = vpop.f32.mrb[0].mxu0
        %v2603 = vadd.f32 0.0, %v2602
        %v2604 = vpop.f32.mrb[0].mxu0
        %2605 = vmatprep.mubr.bf16.mxu0 %v2283
        %2606 = vmatmul.mubr.bf16.gmra.mrb[0].mxu0 %v2280
        %v2607 = vpop.f32.mrb[0].mxu0
        %v2608 = vadd.f32 0.0, %v2607
        %v2609 = vpop.f32.mrb[0].mxu0
        %v2610 = vpop.f32.mrb[0].mxu0
        %v2611 = vadd.f32 0.0, %v2610
        %v2612 = vpop.f32.mrb[0].mxu0
        %2613 = vmatprep.mubr.bf16.mxu0 %v2286
        %2614 = vmatmul.mubr.bf16.gmra.mrb[0].mxu0 %v2283
        %v2615 = vpop.f32.mrb[0].mxu0
        %v2616 = vadd.f32 0.0, %v2615
        %v2617 = vpop.f32.mrb[0].mxu0
        %v2618 = vpop.f32.mrb[0].mxu0
        %v2619 = vadd.f32 0.0, %v2618
        %v2620 = vpop.f32.mrb[0].mxu0
        %2621 = vmatprep.mubr.bf16.mxu0 %v2289
        %2622 = vmatmul.mubr.bf16.gmra.mrb[0].mxu0 %v2286
        %v2623 = vpop.f32.mrb[0].mxu0
        %v2624 = vadd.f32 0.0, %v2623
        %v2625 = vpop.f32.mrb[0].mxu0
        %v2626 = vpop.f32.mrb[0].mxu0
        %v2627 = vadd.f32 0.0, %v2626
        %v2628 = vpop.f32.mrb[0].mxu0
        %2629 = vmatprep.mubr.bf16.mxu0 %v2292
        %2630 = vmatmul.mubr.bf16.gmra.mrb[0].mxu0 %v2289
        %v2631 = vpop.f32.mrb[0].mxu0
        %v2632 = vadd.f32 0.0, %v2631
        %v2633 = vpop.f32.mrb[0].mxu0
        %v2634 = vpop.f32.mrb[0].mxu0
        %v2635 = vadd.f32 0.0, %v2634
        %v2636 = vpop.f32.mrb[0].mxu0
        %2637 = vmatprep.mubr.bf16.mxu0 %v2295
        %2638 = vmatmul.mubr.bf16.gmra.mrb[0].mxu0 %v2292
        %v2639 = vpop.f32.mrb[0].mxu0
        %v2640 = vadd.f32 0.0, %v2639
        %v2641 = vpop.f32.mrb[0].mxu0
        %v2642 = vpop.f32.mrb[0].mxu0
        %v2643 = vadd.f32 0.0, %v2642
        %v2644 = vpop.f32.mrb[0].mxu0
        %2645 = vmatprep.mubr.bf16.mxu0 %v2298
        %2646 = vmatmul.mubr.bf16.gmra.mrb[0].mxu0 %v2295
        %v2647 = vpop.f32.mrb[0].mxu0
        %v2648 = vadd.f32 0.0, %v2647
        %v2649 = vpop.f32.mrb[0].mxu0
        %v2650 = vpop.f32.mrb[0].mxu0
        %v2651 = vadd.f32 0.0, %v2650
        %v2652 = vpop.f32.mrb[0].mxu0
        %2653 = vmatprep.mubr.bf16.mxu0 %v2301
        %2654 = vmatmul.mubr.bf16.gmra.mrb[0].mxu0 %v2298
        %v2655 = vpop.f32.mrb[0].mxu0
        %v2656 = vadd.f32 0.0, %v2655
        %v2657 = vpop.f32.mrb[0].mxu0
        %v2658 = vpop.f32.mrb[0].mxu0
        %v2659 = vadd.f32 0.0, %v2658
        %v2660 = vpop.f32.mrb[0].mxu0
        %2661 = vmatprep.mubr.bf16.mxu0 %v2304
        %2662 = vmatmul.mubr.bf16.gmra.mrb[0].mxu0 %v2301
        %v2663 = vpop.f32.mrb[0].mxu0
        %v2664 = vadd.f32 0.0, %v2663
        %v2665 = vpop.f32.mrb[0].mxu0
        %v2666 = vpop.f32.mrb[0].mxu0
        %v2667 = vadd.f32 0.0, %v2666
        %v2668 = vpop.f32.mrb[0].mxu0
        %2669 = vmatprep.mubr.bf16.mxu0 %v2307
        %2670 = vmatmul.mubr.bf16.gmra.mrb[0].mxu0 %v2304
        %v2671 = vpop.f32.mrb[0].mxu0
        %v2672 = vadd.f32 0.0, %v2671
        %v2673 = vpop.f32.mrb[0].mxu0
        %v2674 = vpop.f32.mrb[0].mxu0
        %v2675 = vadd.f32 0.0, %v2674
        %v2676 = vpop.f32.mrb[0].mxu0
        %2677 = vmatprep.mubr.bf16.mxu0 %v2310
        %2678 = vmatmul.mubr.bf16.gmra.mrb[0].mxu0 %v2307
        %v2679 = vpop.f32.mrb[0].mxu0
        %v2680 = vadd.f32 0.0, %v2679
        %v2681 = vpop.f32.mrb[0].mxu0
        %v2682 = vpop.f32.mrb[0].mxu0
        %v2683 = vadd.f32 0.0, %v2682
        %v2684 = vpop.f32.mrb[0].mxu0
        %2685 = vdwg.mxu0
        %2686 = vmatprep.subr.bf16.mxu0 0
        %2687 = vmatpush1.bf16.msra.mxu0 %v2493
        %2688 = vmatprep.subr.bf16.mxu0 0
        %2689 = vmatpush1.bf16.msra.mxu0 %v2494
        %2690 = vmatprep.subr.bf16.mxu0 0
        %2691 = vmatpush1.bf16.msra.mxu0 %v2495
        %2692 = vmatprep.subr.bf16.mxu0 0
        %2693 = vmatpush1.bf16.msra.mxu0 %v2496
        %2694 = vmatprep.subr.bf16.mxu0 0
        %2695 = vmatpush1.bf16.msra.mxu0 %v2497
        %2696 = vmatprep.subr.bf16.mxu0 0
        %2697 = vmatpush1.bf16.msra.mxu0 %v2498
        %2698 = vmatprep.subr.bf16.mxu0 0
        %2699 = vmatpush1.bf16.msra.mxu0 %v2499
        %2700 = vmatprep.subr.bf16.mxu0 0
        %2701 = vmatpush1.bf16.msra.mxu0 %v2500
        %2702 = vmatprep.subr.bf16.mxu0 0
        %2703 = vmatpush1.bf16.msra.mxu0 0
        %2704 = vmatprep.subr.bf16.mxu0 0
        %2705 = vmatpush1.bf16.msra.mxu0 0
        %2706 = vmatprep.subr.bf16.mxu0 0
        %2707 = vmatpush1.bf16.msra.mxu0 0
        %2708 = vmatprep.subr.bf16.mxu0 0
        %2709 = vmatpush1.bf16.msra.mxu0 0
        %2710 = vmatprep.subr.bf16.mxu0 0
        %2711 = vmatpush1.bf16.msra.mxu0 0
        %2712 = vmatprep.subr.bf16.mxu0 0
        %2713 = vmatpush1.bf16.msra.mxu0 0
        %2714 = vmatprep.subr.bf16.mxu0 0
        %2715 = vmatpush1.bf16.msra.mxu0 0
        %2716 = vmatprep.subr.bf16.mxu0 0
        %2717 = vmatpush1.bf16.msra.mxu0 0
        %2718 = vmatprep.mubr.bf16.mxu0 0
        %2719 = vmatmul.mubr.bf16.gmra.mrb[0].mxu0 %v2268
        %v2720 = vpop.f32.mrb[0].mxu0
        %v2721 = vadd.f32 %v2560, %v2720
        %v2722 = vpop.f32.mrb[0].mxu0
        %v2723 = vpop.f32.mrb[0].mxu0
        %v2724 = vadd.f32 %v2563, %v2723
        %v2725 = vpop.f32.mrb[0].mxu0
        %2726 = vmatprep.mubr.bf16.mxu0 0
        %2727 = vmatmul.mubr.bf16.gmra.mrb[0].mxu0 %v2271
        %v2728 = vpop.f32.mrb[0].mxu0
        %v2729 = vadd.f32 %v2568, %v2728
        %v2730 = vpop.f32.mrb[0].mxu0
        %v2731 = vpop.f32.mrb[0].mxu0
        %v2732 = vadd.f32 %v2571, %v2731
        %v2733 = vpop.f32.mrb[0].mxu0
        %2734 = vmatprep.mubr.bf16.mxu0 0
        %2735 = vmatmul.mubr.bf16.gmra.mrb[0].mxu0 %v2274
        %v2736 = vpop.f32.mrb[0].mxu0
        %v2737 = vadd.f32 %v2576, %v2736
        %v2738 = vpop.f32.mrb[0].mxu0
        %v2739 = vpop.f32.mrb[0].mxu0
        %v2740 = vadd.f32 %v2579, %v2739
        %v2741 = vpop.f32.mrb[0].mxu0
        %2742 = vmatprep.mubr.bf16.mxu0 0
        %2743 = vmatmul.mubr.bf16.gmra.mrb[0].mxu0 %v2277
        %v2744 = vpop.f32.mrb[0].mxu0
        %v2745 = vadd.f32 %v2584, %v2744
        %v2746 = vpop.f32.mrb[0].mxu0
        %v2747 = vpop.f32.mrb[0].mxu0
        %v2748 = vadd.f32 %v2587, %v2747
        %v2749 = vpop.f32.mrb[0].mxu0
        %2750 = vmatprep.mubr.bf16.mxu0 0
        %2751 = vmatmul.mubr.bf16.gmra.mrb[0].mxu0 %v2280
        %v2752 = vpop.f32.mrb[0].mxu0
        %v2753 = vadd.f32 %v2592, %v2752
        %v2754 = vpop.f32.mrb[0].mxu0
        %v2755 = vpop.f32.mrb[0].mxu0
        %v2756 = vadd.f32 %v2595, %v2755
        %v2757 = vpop.f32.mrb[0].mxu0
        %2758 = vmatprep.mubr.bf16.mxu0 0
        %2759 = vmatmul.mubr.bf16.gmra.mrb[0].mxu0 %v2283
        %v2760 = vpop.f32.mrb[0].mxu0
        %v2761 = vadd.f32 %v2600, %v2760
        %v2762 = vpop.f32.mrb[0].mxu0
        %v2763 = vpop.f32.mrb[0].mxu0
        %v2764 = vadd.f32 %v2603, %v2763
        %v2765 = vpop.f32.mrb[0].mxu0
        %2766 = vmatprep.mubr.bf16.mxu0 0
        %2767 = vmatmul.mubr.bf16.gmra.mrb[0].mxu0 %v2286
        %v2768 = vpop.f32.mrb[0].mxu0
        %v2769 = vadd.f32 %v2608, %v2768
        %v2770 = vpop.f32.mrb[0].mxu0
        %v2771 = vpop.f32.mrb[0].mxu0
        %v2772 = vadd.f32 %v2611, %v2771
        %v2773 = vpop.f32.mrb[0].mxu0
        %2774 = vmatprep.mubr.bf16.mxu0 0
        %2775 = vmatmul.mubr.bf16.gmra.mrb[0].mxu0 %v2289
        %v2776 = vpop.f32.mrb[0].mxu0
        %v2777 = vadd.f32 %v2616, %v2776
        %v2778 = vpop.f32.mrb[0].mxu0
        %v2779 = vpop.f32.mrb[0].mxu0
        %v2780 = vadd.f32 %v2619, %v2779
        %v2781 = vpop.f32.mrb[0].mxu0
        %2782 = vmatprep.mubr.bf16.mxu0 0
        %2783 = vmatmul.mubr.bf16.gmra.mrb[0].mxu0 %v2292
        %v2784 = vpop.f32.mrb[0].mxu0
        %v2785 = vadd.f32 %v2624, %v2784
        %v2786 = vpop.f32.mrb[0].mxu0
        %v2787 = vpop.f32.mrb[0].mxu0
        %v2788 = vadd.f32 %v2627, %v2787
        %v2789 = vpop.f32.mrb[0].mxu0
        %2790 = vmatprep.mubr.bf16.mxu0 0
        %2791 = vmatmul.mubr.bf16.gmra.mrb[0].mxu0 %v2295
        %v2792 = vpop.f32.mrb[0].mxu0
        %v2793 = vadd.f32 %v2632, %v2792
        %v2794 = vpop.f32.mrb[0].mxu0
        %v2795 = vpop.f32.mrb[0].mxu0
        %v2796 = vadd.f32 %v2635, %v2795
        %v2797 = vpop.f32.mrb[0].mxu0
        %2798 = vmatprep.mubr.bf16.mxu0 0
        %2799 = vmatmul.mubr.bf16.gmra.mrb[0].mxu0 %v2298
        %v2800 = vpop.f32.mrb[0].mxu0
        %v2801 = vadd.f32 %v2640, %v2800
        %v2802 = vpop.f32.mrb[0].mxu0
        %v2803 = vpop.f32.mrb[0].mxu0
        %v2804 = vadd.f32 %v2643, %v2803
        %v2805 = vpop.f32.mrb[0].mxu0
        %2806 = vmatprep.mubr.bf16.mxu0 0
        %2807 = vmatmul.mubr.bf16.gmra.mrb[0].mxu0 %v2301
        %v2808 = vpop.f32.mrb[0].mxu0
        %v2809 = vadd.f32 %v2648, %v2808
        %v2810 = vpop.f32.mrb[0].mxu0
        %v2811 = vpop.f32.mrb[0].mxu0
        %v2812 = vadd.f32 %v2651, %v2811
        %v2813 = vpop.f32.mrb[0].mxu0
        %2814 = vmatprep.mubr.bf16.mxu0 0
        %2815 = vmatmul.mubr.bf16.gmra.mrb[0].mxu0 %v2304
        %v2816 = vpop.f32.mrb[0].mxu0
        %v2817 = vadd.f32 %v2656, %v2816
        %v2818 = vpop.f32.mrb[0].mxu0
        %v2819 = vpop.f32.mrb[0].mxu0
        %v2820 = vadd.f32 %v2659, %v2819
        %v2821 = vpop.f32.mrb[0].mxu0
        %2822 = vmatprep.mubr.bf16.mxu0 0
        %2823 = vmatmul.mubr.bf16.gmra.mrb[0].mxu0 %v2307
        %v2824 = vpop.f32.mrb[0].mxu0
        %v2825 = vadd.f32 %v2664, %v2824
        %v2826 = vpop.f32.mrb[0].mxu0
        %v2827 = vpop.f32.mrb[0].mxu0
        %v2828 = vadd.f32 %v2667, %v2827
        %v2829 = vpop.f32.mrb[0].mxu0
        %2830 = vmatprep.mubr.bf16.mxu0 0
        %2831 = vmatmul.mubr.bf16.gmra.mrb[0].mxu0 %v2310
        %v2832 = vpop.f32.mrb[0].mxu0
        %v2833 = vadd.f32 %v2672, %v2832
        %v2834 = vpop.f32.mrb[0].mxu0
        %v2835 = vpop.f32.mrb[0].mxu0
        %v2836 = vadd.f32 %v2675, %v2835
        %v2837 = vpop.f32.mrb[0].mxu0
        %2838 = vmatprep.mubr.bf16.mxu0 0
        %2839 = vmatmul.mubr.bf16.gmra.mrb[0].mxu0 %v2313
        %v2840 = vpop.f32.mrb[0].mxu0
        %v2841 = vadd.f32 %v2680, %v2840
        %v2842 = vpop.f32.mrb[0].mxu0
        %v2843 = vpop.f32.mrb[0].mxu0
        %v2844 = vadd.f32 %v2683, %v2843
        %v2845 = vpop.f32.mrb[0].mxu0
        %2846 = vdwg.mxu0
        %v2847 = vld [vmem:[#allocation2] sm:$0xff]
        %v2848 = vld [vmem:[#allocation2 + $0x8] sm:$0xff]
        %v2849 = vld [vmem:[#allocation2 + $0x10] sm:$0xff]
        %v2850 = vld [vmem:[#allocation2 + $0x18] sm:$0xff]
        %v2851 = vld [vmem:[#allocation2 + $0x20] sm:$0xff]
        %v2852 = vld [vmem:[#allocation2 + $0x28] sm:$0xff]
        %v2853 = vld [vmem:[#allocation2 + $0x30] sm:$0xff]
        %v2854 = vld [vmem:[#allocation2 + $0x38] sm:$0xff]
        %v2855 = vld [vmem:[#allocation2 + $0x40] sm:$0xff]
        %v2856 = vld [vmem:[#allocation2 + $0x48] sm:$0xff]
        %v2857 = vld [vmem:[#allocation2 + $0x50] sm:$0xff]
        %v2858 = vld [vmem:[#allocation2 + $0x58] sm:$0xff]
        %v2859 = vld [vmem:[#allocation2 + $0x60] sm:$0xff]
        %v2860 = vld [vmem:[#allocation2 + $0x68] sm:$0xff]
        %v2861 = vld [vmem:[#allocation2 + $0x70] sm:$0xff]
        %v2862 = vld [vmem:[#allocation2 + $0x78] sm:$0xff]
        %v2863 = vld [vmem:[#allocation2 + $0x80] sm:$0xff]
        %v2864 = vld [vmem:[#allocation2 + $0x88] sm:$0xff]
        %v2865 = vld [vmem:[#allocation2 + $0x90] sm:$0xff]
        %v2866 = vld [vmem:[#allocation2 + $0x98] sm:$0xff]
        %v2867 = vld [vmem:[#allocation2 + $0xa0] sm:$0xff]
        %v2868 = vld [vmem:[#allocation2 + $0xa8] sm:$0xff]
        %v2869 = vld [vmem:[#allocation2 + $0xb0] sm:$0xff]
        %v2870 = vld [vmem:[#allocation2 + $0xb8] sm:$0xff]
        %v2871 = vld [vmem:[#allocation2 + $0xc0] sm:$0xff]
        %v2872 = vld [vmem:[#allocation2 + $0xc8] sm:$0xff]
        %v2873 = vld [vmem:[#allocation2 + $0xd0] sm:$0xff]
        %v2874 = vld [vmem:[#allocation2 + $0xd8] sm:$0xff]
        %v2875 = vld [vmem:[#allocation2 + $0xe0] sm:$0xff]
        %v2876 = vld [vmem:[#allocation2 + $0xe8] sm:$0xff]
        %v2877 = vld [vmem:[#allocation2 + $0xf0] sm:$0xff]
        %v2878 = vld [vmem:[#allocation2 + $0xf8] sm:$0xff]
        %v2879 = vadd.f32 %v2847, %v2721
        %v2880 = vadd.f32 %v2848, %v2724
        %v2881 = vadd.f32 %v2849, %v2729
        %v2882 = vadd.f32 %v2850, %v2732
        %v2883 = vadd.f32 %v2851, %v2737
        %v2884 = vadd.f32 %v2852, %v2740
        %v2885 = vadd.f32 %v2853, %v2745
        %v2886 = vadd.f32 %v2854, %v2748
        %v2887 = vadd.f32 %v2855, %v2753
        %v2888 = vadd.f32 %v2856, %v2756
        %v2889 = vadd.f32 %v2857, %v2761
        %v2890 = vadd.f32 %v2858, %v2764
        %v2891 = vadd.f32 %v2859, %v2769
        %v2892 = vadd.f32 %v2860, %v2772
        %v2893 = vadd.f32 %v2861, %v2777
        %v2894 = vadd.f32 %v2862, %v2780
        %v2895 = vadd.f32 %v2863, %v2785
        %v2896 = vadd.f32 %v2864, %v2788
        %v2897 = vadd.f32 %v2865, %v2793
        %v2898 = vadd.f32 %v2866, %v2796
        %v2899 = vadd.f32 %v2867, %v2801
        %v2900 = vadd.f32 %v2868, %v2804
        %v2901 = vadd.f32 %v2869, %v2809
        %v2902 = vadd.f32 %v2870, %v2812
        %v2903 = vadd.f32 %v2871, %v2817
        %v2904 = vadd.f32 %v2872, %v2820
        %v2905 = vadd.f32 %v2873, %v2825
        %v2906 = vadd.f32 %v2874, %v2828
        %v2907 = vadd.f32 %v2875, %v2833
        %v2908 = vadd.f32 %v2876, %v2836
        %v2909 = vadd.f32 %v2877, %v2841
        %v2910 = vadd.f32 %v2878, %v2844
        %2911 = vst [vmem:[#allocation2] sm:$0xff] %v2879
        %2912 = vst [vmem:[#allocation2 + $0x8] sm:$0xff] %v2880
        %2913 = vst [vmem:[#allocation2 + $0x10] sm:$0xff] %v2881
        %2914 = vst [vmem:[#allocation2 + $0x18] sm:$0xff] %v2882
        %2915 = vst [vmem:[#allocation2 + $0x20] sm:$0xff] %v2883
        %2916 = vst [vmem:[#allocation2 + $0x28] sm:$0xff] %v2884
        %2917 = vst [vmem:[#allocation2 + $0x30] sm:$0xff] %v2885
        %2918 = vst [vmem:[#allocation2 + $0x38] sm:$0xff] %v2886
        %2919 = vst [vmem:[#allocation2 + $0x40] sm:$0xff] %v2887
        %2920 = vst [vmem:[#allocation2 + $0x48] sm:$0xff] %v2888
        %2921 = vst [vmem:[#allocation2 + $0x50] sm:$0xff] %v2889
        %2922 = vst [vmem:[#allocation2 + $0x58] sm:$0xff] %v2890
        %2923 = vst [vmem:[#allocation2 + $0x60] sm:$0xff] %v2891
        %2924 = vst [vmem:[#allocation2 + $0x68] sm:$0xff] %v2892
        %2925 = vst [vmem:[#allocation2 + $0x70] sm:$0xff] %v2893
        %2926 = vst [vmem:[#allocation2 + $0x78] sm:$0xff] %v2894
        %2927 = vst [vmem:[#allocation2 + $0x80] sm:$0xff] %v2895
        %2928 = vst [vmem:[#allocation2 + $0x88] sm:$0xff] %v2896
        %2929 = vst [vmem:[#allocation2 + $0x90] sm:$0xff] %v2897
        %2930 = vst [vmem:[#allocation2 + $0x98] sm:$0xff] %v2898
        %2931 = vst [vmem:[#allocation2 + $0xa0] sm:$0xff] %v2899
        %2932 = vst [vmem:[#allocation2 + $0xa8] sm:$0xff] %v2900
        %2933 = vst [vmem:[#allocation2 + $0xb0] sm:$0xff] %v2901
        %2934 = vst [vmem:[#allocation2 + $0xb8] sm:$0xff] %v2902
        %2935 = vst [vmem:[#allocation2 + $0xc0] sm:$0xff] %v2903
        %2936 = vst [vmem:[#allocation2 + $0xc8] sm:$0xff] %v2904
        %2937 = vst [vmem:[#allocation2 + $0xd0] sm:$0xff] %v2905
        %2938 = vst [vmem:[#allocation2 + $0xd8] sm:$0xff] %v2906
        %2939 = vst [vmem:[#allocation2 + $0xe0] sm:$0xff] %v2907
        %2940 = vst [vmem:[#allocation2 + $0xe8] sm:$0xff] %v2908
        %2941 = vst [vmem:[#allocation2 + $0xf0] sm:$0xff] %v2909
        %2942 = vst [vmem:[#allocation2 + $0xf8] sm:$0xff] %v2910
        %v2943 = vld [vmem:[#allocation2] sm:$0xff]
        %v2944 = vld [vmem:[#allocation2 + $0x8] sm:$0xff]
        %v2945 = vld [vmem:[#allocation2 + $0x10] sm:$0xff]
        %v2946 = vld [vmem:[#allocation2 + $0x18] sm:$0xff]
        %v2947 = vld [vmem:[#allocation2 + $0x20] sm:$0xff]
        %v2948 = vld [vmem:[#allocation2 + $0x28] sm:$0xff]
        %v2949 = vld [vmem:[#allocation2 + $0x30] sm:$0xff]
        %v2950 = vld [vmem:[#allocation2 + $0x38] sm:$0xff]
        %v2951 = vld [vmem:[#allocation2 + $0x40] sm:$0xff]
        %v2952 = vld [vmem:[#allocation2 + $0x48] sm:$0xff]
        %v2953 = vld [vmem:[#allocation2 + $0x50] sm:$0xff]
        %v2954 = vld [vmem:[#allocation2 + $0x58] sm:$0xff]
        %v2955 = vld [vmem:[#allocation2 + $0x60] sm:$0xff]
        %v2956 = vld [vmem:[#allocation2 + $0x68] sm:$0xff]
        %v2957 = vld [vmem:[#allocation2 + $0x70] sm:$0xff]
        %v2958 = vld [vmem:[#allocation2 + $0x78] sm:$0xff]
        %v2959 = vld [vmem:[#allocation2 + $0x80] sm:$0xff]
        %v2960 = vld [vmem:[#allocation2 + $0x88] sm:$0xff]
        %v2961 = vld [vmem:[#allocation2 + $0x90] sm:$0xff]
        %v2962 = vld [vmem:[#allocation2 + $0x98] sm:$0xff]
        %v2963 = vld [vmem:[#allocation2 + $0xa0] sm:$0xff]
        %v2964 = vld [vmem:[#allocation2 + $0xa8] sm:$0xff]
        %v2965 = vld [vmem:[#allocation2 + $0xb0] sm:$0xff]
        %v2966 = vld [vmem:[#allocation2 + $0xb8] sm:$0xff]
        %v2967 = vld [vmem:[#allocation2 + $0xc0] sm:$0xff]
        %v2968 = vld [vmem:[#allocation2 + $0xc8] sm:$0xff]
        %v2969 = vld [vmem:[#allocation2 + $0xd0] sm:$0xff]
        %v2970 = vld [vmem:[#allocation2 + $0xd8] sm:$0xff]
        %v2971 = vld [vmem:[#allocation2 + $0xe0] sm:$0xff]
        %v2972 = vld [vmem:[#allocation2 + $0xe8] sm:$0xff]
        %v2973 = vld [vmem:[#allocation2 + $0xf0] sm:$0xff]
        %v2974 = vld [vmem:[#allocation2 + $0xf8] sm:$0xff]
        %v2975 = vld [vmem:[%s2] sm:$0x1]
        %v2977 = vlaneseq
        %v2978 = vshrl.u32 %v2977, 7
        %v2979 = vsub.s32 0, %v2978
        %v2980 = vrot.slane %v2975, %v2979
        %v2982 = vmul.f32 %v2943, %v2980
        %v2983 = vmul.f32 %v2944, %v2980
        %v2984 = vmul.f32 %v2945, %v2980
        %v2985 = vmul.f32 %v2946, %v2980
        %v2986 = vmul.f32 %v2947, %v2980
        %v2987 = vmul.f32 %v2948, %v2980
        %v2988 = vmul.f32 %v2949, %v2980
        %v2989 = vmul.f32 %v2950, %v2980
        %v2990 = vmul.f32 %v2951, %v2980
        %v2991 = vmul.f32 %v2952, %v2980
        %v2992 = vmul.f32 %v2953, %v2980
        %v2993 = vmul.f32 %v2954, %v2980
        %v2994 = vmul.f32 %v2955, %v2980
        %v2995 = vmul.f32 %v2956, %v2980
        %v2996 = vmul.f32 %v2957, %v2980
        %v2997 = vmul.f32 %v2958, %v2980
        %v2998 = vmul.f32 %v2959, %v2980
        %v2999 = vmul.f32 %v2960, %v2980
        %v3000 = vmul.f32 %v2961, %v2980
        %v3001 = vmul.f32 %v2962, %v2980
        %v3002 = vmul.f32 %v2963, %v2980
        %v3003 = vmul.f32 %v2964, %v2980
        %v3004 = vmul.f32 %v2965, %v2980
        %v3005 = vmul.f32 %v2966, %v2980
        %v3006 = vmul.f32 %v2967, %v2980
        %v3007 = vmul.f32 %v2968, %v2980
        %v3008 = vmul.f32 %v2969, %v2980
        %v3009 = vmul.f32 %v2970, %v2980
        %v3010 = vmul.f32 %v2971, %v2980
        %v3011 = vmul.f32 %v2972, %v2980
        %v3012 = vmul.f32 %v2973, %v2980
        %v3013 = vmul.f32 %v2974, %v2980
        %v3014 = vld [vmem:[%s3] sm:$0x1]
        %v3016 = vlaneseq
        %v3017 = vshrl.u32 %v3016, 7
        %v3018 = vsub.s32 0, %v3017
        %v3019 = vrot.slane %v3014, %v3018
        %v3021 = vadd.f32 %v2982, %v3019
        %v3022 = vadd.f32 %v2983, %v3019
        %v3023 = vadd.f32 %v2984, %v3019
        %v3024 = vadd.f32 %v2985, %v3019
        %v3025 = vadd.f32 %v2986, %v3019
        %v3026 = vadd.f32 %v2987, %v3019
        %v3027 = vadd.f32 %v2988, %v3019
        %v3028 = vadd.f32 %v2989, %v3019
        %v3029 = vadd.f32 %v2990, %v3019
        %v3030 = vadd.f32 %v2991, %v3019
        %v3031 = vadd.f32 %v2992, %v3019
        %v3032 = vadd.f32 %v2993, %v3019
        %v3033 = vadd.f32 %v2994, %v3019
        %v3034 = vadd.f32 %v2995, %v3019
        %v3035 = vadd.f32 %v2996, %v3019
        %v3036 = vadd.f32 %v2997, %v3019
        %v3037 = vadd.f32 %v2998, %v3019
        %v3038 = vadd.f32 %v2999, %v3019
        %v3039 = vadd.f32 %v3000, %v3019
        %v3040 = vadd.f32 %v3001, %v3019
        %v3041 = vadd.f32 %v3002, %v3019
        %v3042 = vadd.f32 %v3003, %v3019
        %v3043 = vadd.f32 %v3004, %v3019
        %v3044 = vadd.f32 %v3005, %v3019
        %v3045 = vadd.f32 %v3006, %v3019
        %v3046 = vadd.f32 %v3007, %v3019
        %v3047 = vadd.f32 %v3008, %v3019
        %v3048 = vadd.f32 %v3009, %v3019
        %v3049 = vadd.f32 %v3010, %v3019
        %v3050 = vadd.f32 %v3011, %v3019
        %v3051 = vadd.f32 %v3012, %v3019
        %v3052 = vadd.f32 %v3013, %v3019
        %v3053 = vmax.f32 %v3021, 0.0
        %v3054 = vmax.f32 %v3022, 0.0
        %v3055 = vmax.f32 %v3023, 0.0
        %v3056 = vmax.f32 %v3024, 0.0
        %v3057 = vmax.f32 %v3025, 0.0
        %v3058 = vmax.f32 %v3026, 0.0
        %v3059 = vmax.f32 %v3027, 0.0
        %v3060 = vmax.f32 %v3028, 0.0
        %v3061 = vmax.f32 %v3029, 0.0
        %v3062 = vmax.f32 %v3030, 0.0
        %v3063 = vmax.f32 %v3031, 0.0
        %v3064 = vmax.f32 %v3032, 0.0
        %v3065 = vmax.f32 %v3033, 0.0
        %v3066 = vmax.f32 %v3034, 0.0
        %v3067 = vmax.f32 %v3035, 0.0
        %v3068 = vmax.f32 %v3036, 0.0
        %v3069 = vmax.f32 %v3037, 0.0
        %v3070 = vmax.f32 %v3038, 0.0
        %v3071 = vmax.f32 %v3039, 0.0
        %v3072 = vmax.f32 %v3040, 0.0
        %v3073 = vmax.f32 %v3041, 0.0
        %v3074 = vmax.f32 %v3042, 0.0
        %v3075 = vmax.f32 %v3043, 0.0
        %v3076 = vmax.f32 %v3044, 0.0
        %v3077 = vmax.f32 %v3045, 0.0
        %v3078 = vmax.f32 %v3046, 0.0
        %v3079 = vmax.f32 %v3047, 0.0
        %v3080 = vmax.f32 %v3048, 0.0
        %v3081 = vmax.f32 %v3049, 0.0
        %v3082 = vmax.f32 %v3050, 0.0
        %v3083 = vmax.f32 %v3051, 0.0
        %v3084 = vmax.f32 %v3052, 0.0
        %3085 = vst [vmem:[#allocation3] sm:$0xf] 0
        %3086 = vst [vmem:[#allocation3 + $0x4] sm:$0xf] 0
        %3087 = vst [vmem:[#allocation3 + $0x8] sm:$0xf] 0
        %s3088 = scalar_lea.vmem [#allocation3], 204
        %3089 = vst [vmem:[%s3088] sm:$0xf] 0
        %3090 = vst [vmem:[%s3088 + $0x4] sm:$0xf] 0
        %3091 = vst [vmem:[%s3088 + $0x8] sm:$0xf] 0
        %s3092 = scalar_lea.vmem [#allocation3], 12
        %vm3093 = vcmask 1040384
        %vm3094 = vsmask.f32 256
        %vm3095 = vmand %vm3093, %vm3094
        %v3096 = vld [vmem:[%s3092] sm:$0x1]
        %v3097 = vsel %vm3095, 0, %v3096
        %3098 = vst [vmem:[%s3092] sm:$0x1] %v3097
        %v3099 = vld [vmem:[%s3092 + $0xc] sm:$0x1]
        %v3100 = vsel %vm3095, 0, %v3099
        %3101 = vst [vmem:[%s3092 + $0xc] sm:$0x1] %v3100
        %v3102 = vld [vmem:[%s3092 + $0x18] sm:$0x1]
        %v3103 = vsel %vm3095, 0, %v3102
        %3104 = vst [vmem:[%s3092 + $0x18] sm:$0x1] %v3103
        %v3105 = vld [vmem:[%s3092 + $0x24] sm:$0x1]
        %v3106 = vsel %vm3095, 0, %v3105
        %3107 = vst [vmem:[%s3092 + $0x24] sm:$0x1] %v3106
        %v3108 = vld [vmem:[%s3092 + $0x30] sm:$0x1]
        %v3109 = vsel %vm3095, 0, %v3108
        %3110 = vst [vmem:[%s3092 + $0x30] sm:$0x1] %v3109
        %v3111 = vld [vmem:[%s3092 + $0x3c] sm:$0x1]
        %v3112 = vsel %vm3095, 0, %v3111
        %3113 = vst [vmem:[%s3092 + $0x3c] sm:$0x1] %v3112
        %v3114 = vld [vmem:[%s3092 + $0x48] sm:$0x1]
        %v3115 = vsel %vm3095, 0, %v3114
        %3116 = vst [vmem:[%s3092 + $0x48] sm:$0x1] %v3115
        %v3117 = vld [vmem:[%s3092 + $0x54] sm:$0x1]
        %v3118 = vsel %vm3095, 0, %v3117
        %3119 = vst [vmem:[%s3092 + $0x54] sm:$0x1] %v3118
        %v3120 = vld [vmem:[%s3092 + $0x60] sm:$0x1]
        %v3121 = vsel %vm3095, 0, %v3120
        %3122 = vst [vmem:[%s3092 + $0x60] sm:$0x1] %v3121
        %v3123 = vld [vmem:[%s3092 + $0x6c] sm:$0x1]
        %v3124 = vsel %vm3095, 0, %v3123
        %3125 = vst [vmem:[%s3092 + $0x6c] sm:$0x1] %v3124
        %v3126 = vld [vmem:[%s3092 + $0x78] sm:$0x1]
        %v3127 = vsel %vm3095, 0, %v3126
        %3128 = vst [vmem:[%s3092 + $0x78] sm:$0x1] %v3127
        %v3129 = vld [vmem:[%s3092 + $0x84] sm:$0x1]
        %v3130 = vsel %vm3095, 0, %v3129
        %3131 = vst [vmem:[%s3092 + $0x84] sm:$0x1] %v3130
        %v3132 = vld [vmem:[%s3092 + $0x90] sm:$0x1]
        %v3133 = vsel %vm3095, 0, %v3132
        %3134 = vst [vmem:[%s3092 + $0x90] sm:$0x1] %v3133
        %v3135 = vld [vmem:[%s3092 + $0x9c] sm:$0x1]
        %v3136 = vsel %vm3095, 0, %v3135
        %3137 = vst [vmem:[%s3092 + $0x9c] sm:$0x1] %v3136
        %v3138 = vld [vmem:[%s3092 + $0xa8] sm:$0x1]
        %v3139 = vsel %vm3095, 0, %v3138
        %3140 = vst [vmem:[%s3092 + $0xa8] sm:$0x1] %v3139
        %v3141 = vld [vmem:[%s3092 + $0xb4] sm:$0x1]
        %v3142 = vsel %vm3095, 0, %v3141
        %3143 = vst [vmem:[%s3092 + $0xb4] sm:$0x1] %v3142
        %vm3144 = vsmask.f32 7938
        %vm3145 = vmand %vm3093, %vm3144
        %v3146 = vld [vmem:[%s3092 + $0x8] sm:$0x1]
        %v3147 = vsel %vm3145, 0, %v3146
        %3148 = vst [vmem:[%s3092 + $0x8] sm:$0x1] %v3147
        %v3149 = vld [vmem:[%s3092 + $0x14] sm:$0x1]
        %v3150 = vsel %vm3145, 0, %v3149
        %3151 = vst [vmem:[%s3092 + $0x14] sm:$0x1] %v3150
        %v3152 = vld [vmem:[%s3092 + $0x20] sm:$0x1]
        %v3153 = vsel %vm3145, 0, %v3152
        %3154 = vst [vmem:[%s3092 + $0x20] sm:$0x1] %v3153
        %v3155 = vld [vmem:[%s3092 + $0x2c] sm:$0x1]
        %v3156 = vsel %vm3145, 0, %v3155
        %3157 = vst [vmem:[%s3092 + $0x2c] sm:$0x1] %v3156
        %v3158 = vld [vmem:[%s3092 + $0x38] sm:$0x1]
        %v3159 = vsel %vm3145, 0, %v3158
        %3160 = vst [vmem:[%s3092 + $0x38] sm:$0x1] %v3159
        %v3161 = vld [vmem:[%s3092 + $0x44] sm:$0x1]
        %v3162 = vsel %vm3145, 0, %v3161
        %3163 = vst [vmem:[%s3092 + $0x44] sm:$0x1] %v3162
        %v3164 = vld [vmem:[%s3092 + $0x50] sm:$0x1]
        %v3165 = vsel %vm3145, 0, %v3164
        %3166 = vst [vmem:[%s3092 + $0x50] sm:$0x1] %v3165
        %v3167 = vld [vmem:[%s3092 + $0x5c] sm:$0x1]
        %v3168 = vsel %vm3145, 0, %v3167
        %3169 = vst [vmem:[%s3092 + $0x5c] sm:$0x1] %v3168
        %v3170 = vld [vmem:[%s3092 + $0x68] sm:$0x1]
        %v3171 = vsel %vm3145, 0, %v3170
        %3172 = vst [vmem:[%s3092 + $0x68] sm:$0x1] %v3171
        %v3173 = vld [vmem:[%s3092 + $0x74] sm:$0x1]
        %v3174 = vsel %vm3145, 0, %v3173
        %3175 = vst [vmem:[%s3092 + $0x74] sm:$0x1] %v3174
        %v3176 = vld [vmem:[%s3092 + $0x80] sm:$0x1]
        %v3177 = vsel %vm3145, 0, %v3176
        %3178 = vst [vmem:[%s3092 + $0x80] sm:$0x1] %v3177
        %v3179 = vld [vmem:[%s3092 + $0x8c] sm:$0x1]
        %v3180 = vsel %vm3145, 0, %v3179
        %3181 = vst [vmem:[%s3092 + $0x8c] sm:$0x1] %v3180
        %v3182 = vld [vmem:[%s3092 + $0x98] sm:$0x1]
        %v3183 = vsel %vm3145, 0, %v3182
        %3184 = vst [vmem:[%s3092 + $0x98] sm:$0x1] %v3183
        %v3185 = vld [vmem:[%s3092 + $0xa4] sm:$0x1]
        %v3186 = vsel %vm3145, 0, %v3185
        %3187 = vst [vmem:[%s3092 + $0xa4] sm:$0x1] %v3186
        %v3188 = vld [vmem:[%s3092 + $0xb0] sm:$0x1]
        %v3189 = vsel %vm3145, 0, %v3188
        %3190 = vst [vmem:[%s3092 + $0xb0] sm:$0x1] %v3189
        %v3191 = vld [vmem:[%s3092 + $0xbc] sm:$0x1]
        %v3192 = vsel %vm3145, 0, %v3191
        %3193 = vst [vmem:[%s3092 + $0xbc] sm:$0x1] %v3192
        %v3194 = vpack.c.bf16 %v3054, %v3053
        %v3195 = vpack.c.bf16 %v3056, %v3055
        %v3196 = vpack.c.bf16 %v3058, %v3057
        %v3197 = vpack.c.bf16 %v3060, %v3059
        %v3198 = vpack.c.bf16 %v3062, %v3061
        %v3199 = vpack.c.bf16 %v3064, %v3063
        %v3200 = vpack.c.bf16 %v3066, %v3065
        %v3201 = vpack.c.bf16 %v3068, %v3067
        %v3202 = vpack.c.bf16 %v3070, %v3069
        %v3203 = vpack.c.bf16 %v3072, %v3071
        %v3204 = vpack.c.bf16 %v3074, %v3073
        %v3205 = vpack.c.bf16 %v3076, %v3075
        %v3206 = vpack.c.bf16 %v3078, %v3077
        %v3207 = vpack.c.bf16 %v3080, %v3079
        %v3208 = vpack.c.bf16 %v3082, %v3081
        %v3209 = vpack.c.bf16 %v3084, %v3083
        %v3226 = vunpack.c.l.b16 %v3194
        %v3227 = vunpack.c.h.b16 %v3194
        %v3228 = vunpack.c.l.b16 %v3195
        %v3229 = vunpack.c.h.b16 %v3195
        %v3230 = vunpack.c.l.b16 %v3196
        %v3231 = vunpack.c.h.b16 %v3196
        %v3232 = vunpack.c.l.b16 %v3197
        %v3233 = vunpack.c.h.b16 %v3197
        %v3234 = vunpack.c.l.b16 %v3198
        %v3235 = vunpack.c.h.b16 %v3198
        %v3236 = vunpack.c.l.b16 %v3199
        %v3237 = vunpack.c.h.b16 %v3199
        %v3238 = vunpack.c.l.b16 %v3200
        %v3239 = vunpack.c.h.b16 %v3200
        %v3240 = vunpack.c.l.b16 %v3201
        %v3241 = vunpack.c.h.b16 %v3201
        %v3242 = vunpack.c.l.b16 %v3202
        %v3243 = vunpack.c.h.b16 %v3202
        %v3244 = vunpack.c.l.b16 %v3203
        %v3245 = vunpack.c.h.b16 %v3203
        %v3246 = vunpack.c.l.b16 %v3204
        %v3247 = vunpack.c.h.b16 %v3204
        %v3248 = vunpack.c.l.b16 %v3205
        %v3249 = vunpack.c.h.b16 %v3205
        %v3250 = vunpack.c.l.b16 %v3206
        %v3251 = vunpack.c.h.b16 %v3206
        %v3252 = vunpack.c.l.b16 %v3207
        %v3253 = vunpack.c.h.b16 %v3207
        %v3254 = vunpack.c.l.b16 %v3208
        %v3255 = vunpack.c.h.b16 %v3208
        %v3256 = vunpack.c.l.b16 %v3209
        %v3257 = vunpack.c.h.b16 %v3209
        %v3258 = vpack.c.b16 %v3226, %v3226
        %v3259 = vpack.c.b16 %v3227, %v3227
        %v3260 = vpack.c.b16 %v3228, %v3228
        %v3261 = vpack.c.b16 %v3229, %v3229
        %v3262 = vpack.c.b16 %v3230, %v3230
        %v3263 = vpack.c.b16 %v3231, %v3231
        %v3264 = vpack.c.b16 %v3232, %v3232
        %v3265 = vpack.c.b16 %v3233, %v3233
        %v3266 = vpack.c.b16 %v3234, %v3234
        %v3267 = vpack.c.b16 %v3235, %v3235
        %v3268 = vpack.c.b16 %v3236, %v3236
        %v3269 = vpack.c.b16 %v3237, %v3237
        %v3270 = vpack.c.b16 %v3238, %v3238
        %v3271 = vpack.c.b16 %v3239, %v3239
        %v3272 = vpack.c.b16 %v3240, %v3240
        %v3273 = vpack.c.b16 %v3241, %v3241
        %v3274 = vpack.c.b16 %v3242, %v3242
        %v3275 = vpack.c.b16 %v3243, %v3243
        %v3276 = vpack.c.b16 %v3244, %v3244
        %v3277 = vpack.c.b16 %v3245, %v3245
        %v3278 = vpack.c.b16 %v3246, %v3246
        %v3279 = vpack.c.b16 %v3247, %v3247
        %v3280 = vpack.c.b16 %v3248, %v3248
        %v3281 = vpack.c.b16 %v3249, %v3249
        %v3282 = vpack.c.b16 %v3250, %v3250
        %v3283 = vpack.c.b16 %v3251, %v3251
        %v3284 = vpack.c.b16 %v3252, %v3252
        %v3285 = vpack.c.b16 %v3253, %v3253
        %v3286 = vpack.c.b16 %v3254, %v3254
        %v3287 = vpack.c.b16 %v3255, %v3255
        %v3288 = vpack.c.b16 %v3256, %v3256
        %v3289 = vpack.c.b16 %v3257, %v3257
        %vm3290 = vsmask.f32 4368
        %vm3291 = vmor %vm3094, %vm3290
        %v3293 = vshrl.u32 %v3258, 16
        %v3295 = vrot.slane %v3293, 7
        %v3296 = vshll.u32 %v3258, 16
        %v3298 = vor.u32 %v3295, %v3296
        %v3299 = vrot.slane %v3295, 4
        %v3301 = vshrl.u32 %v3259, 16
        %v3303 = vrot.slane %v3301, 7
        %v3304 = vshll.u32 %v3259, 16
        %v3306 = vor.u32 %v3303, %v3304
        %v3307 = vsel %vm3291, %v3299, %v3306
        %v3308 = vrot.slane %v3303, 4
        %v3310 = vshrl.u32 %v3260, 16
        %v3312 = vrot.slane %v3310, 7
        %v3313 = vshll.u32 %v3260, 16
        %v3315 = vor.u32 %v3312, %v3313
        %v3316 = vrot.slane %v3312, 4
        %v3318 = vshrl.u32 %v3261, 16
        %v3320 = vrot.slane %v3318, 7
        %v3321 = vshll.u32 %v3261, 16
        %v3323 = vor.u32 %v3320, %v3321
        %v3324 = vsel %vm3291, %v3316, %v3323
        %v3325 = vrot.slane %v3320, 4
        %v3327 = vshrl.u32 %v3262, 16
        %v3329 = vrot.slane %v3327, 7
        %v3330 = vshll.u32 %v3262, 16
        %v3332 = vor.u32 %v3329, %v3330
        %v3333 = vrot.slane %v3329, 4
        %v3335 = vshrl.u32 %v3263, 16
        %v3337 = vrot.slane %v3335, 7
        %v3338 = vshll.u32 %v3263, 16
        %v3340 = vor.u32 %v3337, %v3338
        %v3341 = vsel %vm3291, %v3333, %v3340
        %v3342 = vrot.slane %v3337, 4
        %v3344 = vshrl.u32 %v3264, 16
        %v3346 = vrot.slane %v3344, 7
        %v3347 = vshll.u32 %v3264, 16
        %v3349 = vor.u32 %v3346, %v3347
        %v3350 = vrot.slane %v3346, 4
        %v3352 = vshrl.u32 %v3265, 16
        %v3354 = vrot.slane %v3352, 7
        %v3355 = vshll.u32 %v3265, 16
        %v3357 = vor.u32 %v3354, %v3355
        %v3358 = vsel %vm3291, %v3350, %v3357
        %v3359 = vrot.slane %v3354, 4
        %v3361 = vshrl.u32 %v3266, 16
        %v3363 = vrot.slane %v3361, 7
        %v3364 = vshll.u32 %v3266, 16
        %v3366 = vor.u32 %v3363, %v3364
        %v3367 = vrot.slane %v3363, 4
        %v3369 = vshrl.u32 %v3267, 16
        %v3371 = vrot.slane %v3369, 7
        %v3372 = vshll.u32 %v3267, 16
        %v3374 = vor.u32 %v3371, %v3372
        %v3375 = vsel %vm3291, %v3367, %v3374
        %v3376 = vrot.slane %v3371, 4
        %v3378 = vshrl.u32 %v3268, 16
        %v3380 = vrot.slane %v3378, 7
        %v3381 = vshll.u32 %v3268, 16
        %v3383 = vor.u32 %v3380, %v3381
        %v3384 = vrot.slane %v3380, 4
        %v3386 = vshrl.u32 %v3269, 16
        %v3388 = vrot.slane %v3386, 7
        %v3389 = vshll.u32 %v3269, 16
        %v3391 = vor.u32 %v3388, %v3389
        %v3392 = vsel %vm3291, %v3384, %v3391
        %v3393 = vrot.slane %v3388, 4
        %v3395 = vshrl.u32 %v3270, 16
        %v3397 = vrot.slane %v3395, 7
        %v3398 = vshll.u32 %v3270, 16
        %v3400 = vor.u32 %v3397, %v3398
        %v3401 = vrot.slane %v3397, 4
        %v3403 = vshrl.u32 %v3271, 16
        %v3405 = vrot.slane %v3403, 7
        %v3406 = vshll.u32 %v3271, 16
        %v3408 = vor.u32 %v3405, %v3406
        %v3409 = vsel %vm3291, %v3401, %v3408
        %v3410 = vrot.slane %v3405, 4
        %v3412 = vshrl.u32 %v3272, 16
        %v3414 = vrot.slane %v3412, 7
        %v3415 = vshll.u32 %v3272, 16
        %v3417 = vor.u32 %v3414, %v3415
        %v3418 = vrot.slane %v3414, 4
        %v3420 = vshrl.u32 %v3273, 16
        %v3422 = vrot.slane %v3420, 7
        %v3423 = vshll.u32 %v3273, 16
        %v3425 = vor.u32 %v3422, %v3423
        %v3426 = vsel %vm3291, %v3418, %v3425
        %v3427 = vrot.slane %v3422, 4
        %v3429 = vshrl.u32 %v3274, 16
        %v3431 = vrot.slane %v3429, 7
        %v3432 = vshll.u32 %v3274, 16
        %v3434 = vor.u32 %v3431, %v3432
        %v3435 = vrot.slane %v3431, 4
        %v3437 = vshrl.u32 %v3275, 16
        %v3439 = vrot.slane %v3437, 7
        %v3440 = vshll.u32 %v3275, 16
        %v3442 = vor.u32 %v3439, %v3440
        %v3443 = vsel %vm3291, %v3435, %v3442
        %v3444 = vrot.slane %v3439, 4
        %v3446 = vshrl.u32 %v3276, 16
        %v3448 = vrot.slane %v3446, 7
        %v3449 = vshll.u32 %v3276, 16
        %v3451 = vor.u32 %v3448, %v3449
        %v3452 = vrot.slane %v3448, 4
        %v3454 = vshrl.u32 %v3277, 16
        %v3456 = vrot.slane %v3454, 7
        %v3457 = vshll.u32 %v3277, 16
        %v3459 = vor.u32 %v3456, %v3457
        %v3460 = vsel %vm3291, %v3452, %v3459
        %v3461 = vrot.slane %v3456, 4
        %v3463 = vshrl.u32 %v3278, 16
        %v3465 = vrot.slane %v3463, 7
        %v3466 = vshll.u32 %v3278, 16
        %v3468 = vor.u32 %v3465, %v3466
        %v3469 = vrot.slane %v3465, 4
        %v3471 = vshrl.u32 %v3279, 16
        %v3473 = vrot.slane %v3471, 7
        %v3474 = vshll.u32 %v3279, 16
        %v3476 = vor.u32 %v3473, %v3474
        %v3477 = vsel %vm3291, %v3469, %v3476
        %v3478 = vrot.slane %v3473, 4
        %v3480 = vshrl.u32 %v3280, 16
        %v3482 = vrot.slane %v3480, 7
        %v3483 = vshll.u32 %v3280, 16
        %v3485 = vor.u32 %v3482, %v3483
        %v3486 = vrot.slane %v3482, 4
        %v3488 = vshrl.u32 %v3281, 16
        %v3490 = vrot.slane %v3488, 7
        %v3491 = vshll.u32 %v3281, 16
        %v3493 = vor.u32 %v3490, %v3491
        %v3494 = vsel %vm3291, %v3486, %v3493
        %v3495 = vrot.slane %v3490, 4
        %v3497 = vshrl.u32 %v3282, 16
        %v3499 = vrot.slane %v3497, 7
        %v3500 = vshll.u32 %v3282, 16
        %v3502 = vor.u32 %v3499, %v3500
        %v3503 = vrot.slane %v3499, 4
        %v3505 = vshrl.u32 %v3283, 16
        %v3507 = vrot.slane %v3505, 7
        %v3508 = vshll.u32 %v3283, 16
        %v3510 = vor.u32 %v3507, %v3508
        %v3511 = vsel %vm3291, %v3503, %v3510
        %v3512 = vrot.slane %v3507, 4
        %v3514 = vshrl.u32 %v3284, 16
        %v3516 = vrot.slane %v3514, 7
        %v3517 = vshll.u32 %v3284, 16
        %v3519 = vor.u32 %v3516, %v3517
        %v3520 = vrot.slane %v3516, 4
        %v3522 = vshrl.u32 %v3285, 16
        %v3524 = vrot.slane %v3522, 7
        %v3525 = vshll.u32 %v3285, 16
        %v3527 = vor.u32 %v3524, %v3525
        %v3528 = vsel %vm3291, %v3520, %v3527
        %v3529 = vrot.slane %v3524, 4
        %v3531 = vshrl.u32 %v3286, 16
        %v3533 = vrot.slane %v3531, 7
        %v3534 = vshll.u32 %v3286, 16
        %v3536 = vor.u32 %v3533, %v3534
        %v3537 = vrot.slane %v3533, 4
        %v3539 = vshrl.u32 %v3287, 16
        %v3541 = vrot.slane %v3539, 7
        %v3542 = vshll.u32 %v3287, 16
        %v3544 = vor.u32 %v3541, %v3542
        %v3545 = vsel %vm3291, %v3537, %v3544
        %v3546 = vrot.slane %v3541, 4
        %v3548 = vshrl.u32 %v3288, 16
        %v3550 = vrot.slane %v3548, 7
        %v3551 = vshll.u32 %v3288, 16
        %v3553 = vor.u32 %v3550, %v3551
        %v3554 = vrot.slane %v3550, 4
        %v3556 = vshrl.u32 %v3289, 16
        %v3558 = vrot.slane %v3556, 7
        %v3559 = vshll.u32 %v3289, 16
        %v3561 = vor.u32 %v3558, %v3559
        %v3562 = vsel %vm3291, %v3554, %v3561
        %v3563 = vrot.slane %v3558, 4
        %vm3612 = vcmask 1043456
        %vm3613 = vmand %vm3612, %vm3144
        %v3614 = vld [vmem:[%s3092] sm:$0xf]
        %v3615 = vsel %vm3613, %v3298, %v3614
        %3616 = vst [vmem:[%s3092] sm:$0xf] %v3615
        %3617 = vst [vmem:[%s3092 + $0x4] sm:$0xf] %v3307
        %v3618 = vld [vmem:[%s3092 + $0x8] sm:$0x1]
        %v3619 = vsel %vm3095, %v3308, %v3618
        %3620 = vst [vmem:[%s3092 + $0x8] sm:$0x1] %v3619
        %v3621 = vld [vmem:[%s3092 + $0xc] sm:$0xf]
        %v3622 = vsel %vm3613, %v3315, %v3621
        %3623 = vst [vmem:[%s3092 + $0xc] sm:$0xf] %v3622
        %3624 = vst [vmem:[%s3092 + $0x10] sm:$0xf] %v3324
        %v3625 = vld [vmem:[%s3092 + $0x14] sm:$0x1]
        %v3626 = vsel %vm3095, %v3325, %v3625
        %3627 = vst [vmem:[%s3092 + $0x14] sm:$0x1] %v3626
        %v3628 = vld [vmem:[%s3092 + $0x18] sm:$0xf]
        %v3629 = vsel %vm3613, %v3332, %v3628
        %3630 = vst [vmem:[%s3092 + $0x18] sm:$0xf] %v3629
        %3631 = vst [vmem:[%s3092 + $0x1c] sm:$0xf] %v3341
        %v3632 = vld [vmem:[%s3092 + $0x20] sm:$0x1]
        %v3633 = vsel %vm3095, %v3342, %v3632
        %3634 = vst [vmem:[%s3092 + $0x20] sm:$0x1] %v3633
        %v3635 = vld [vmem:[%s3092 + $0x24] sm:$0xf]
        %v3636 = vsel %vm3613, %v3349, %v3635
        %3637 = vst [vmem:[%s3092 + $0x24] sm:$0xf] %v3636
        %3638 = vst [vmem:[%s3092 + $0x28] sm:$0xf] %v3358
        %v3639 = vld [vmem:[%s3092 + $0x2c] sm:$0x1]
        %v3640 = vsel %vm3095, %v3359, %v3639
        %3641 = vst [vmem:[%s3092 + $0x2c] sm:$0x1] %v3640
        %v3642 = vld [vmem:[%s3092 + $0x30] sm:$0xf]
        %v3643 = vsel %vm3613, %v3366, %v3642
        %3644 = vst [vmem:[%s3092 + $0x30] sm:$0xf] %v3643
        %3645 = vst [vmem:[%s3092 + $0x34] sm:$0xf] %v3375
        %v3646 = vld [vmem:[%s3092 + $0x38] sm:$0x1]
        %v3647 = vsel %vm3095, %v3376, %v3646
        %3648 = vst [vmem:[%s3092 + $0x38] sm:$0x1] %v3647
        %v3649 = vld [vmem:[%s3092 + $0x3c] sm:$0xf]
        %v3650 = vsel %vm3613, %v3383, %v3649
        %3651 = vst [vmem:[%s3092 + $0x3c] sm:$0xf] %v3650
        %3652 = vst [vmem:[%s3092 + $0x40] sm:$0xf] %v3392
        %v3653 = vld [vmem:[%s3092 + $0x44] sm:$0x1]
        %v3654 = vsel %vm3095, %v3393, %v3653
        %3655 = vst [vmem:[%s3092 + $0x44] sm:$0x1] %v3654
        %v3656 = vld [vmem:[%s3092 + $0x48] sm:$0xf]
        %v3657 = vsel %vm3613, %v3400, %v3656
        %3658 = vst [vmem:[%s3092 + $0x48] sm:$0xf] %v3657
        %3659 = vst [vmem:[%s3092 + $0x4c] sm:$0xf] %v3409
        %v3660 = vld [vmem:[%s3092 + $0x50] sm:$0x1]
        %v3661 = vsel %vm3095, %v3410, %v3660
        %3662 = vst [vmem:[%s3092 + $0x50] sm:$0x1] %v3661
        %v3663 = vld [vmem:[%s3092 + $0x54] sm:$0xf]
        %v3664 = vsel %vm3613, %v3417, %v3663
        %3665 = vst [vmem:[%s3092 + $0x54] sm:$0xf] %v3664
        %3666 = vst [vmem:[%s3092 + $0x58] sm:$0xf] %v3426
        %v3667 = vld [vmem:[%s3092 + $0x5c] sm:$0x1]
        %v3668 = vsel %vm3095, %v3427, %v3667
        %3669 = vst [vmem:[%s3092 + $0x5c] sm:$0x1] %v3668
        %v3670 = vld [vmem:[%s3092 + $0x60] sm:$0xf]
        %v3671 = vsel %vm3613, %v3434, %v3670
        %3672 = vst [vmem:[%s3092 + $0x60] sm:$0xf] %v3671
        %3673 = vst [vmem:[%s3092 + $0x64] sm:$0xf] %v3443
        %v3674 = vld [vmem:[%s3092 + $0x68] sm:$0x1]
        %v3675 = vsel %vm3095, %v3444, %v3674
        %3676 = vst [vmem:[%s3092 + $0x68] sm:$0x1] %v3675
        %v3677 = vld [vmem:[%s3092 + $0x6c] sm:$0xf]
        %v3678 = vsel %vm3613, %v3451, %v3677
        %3679 = vst [vmem:[%s3092 + $0x6c] sm:$0xf] %v3678
        %3680 = vst [vmem:[%s3092 + $0x70] sm:$0xf] %v3460
        %v3681 = vld [vmem:[%s3092 + $0x74] sm:$0x1]
        %v3682 = vsel %vm3095, %v3461, %v3681
        %3683 = vst [vmem:[%s3092 + $0x74] sm:$0x1] %v3682
        %v3684 = vld [vmem:[%s3092 + $0x78] sm:$0xf]
        %v3685 = vsel %vm3613, %v3468, %v3684
        %3686 = vst [vmem:[%s3092 + $0x78] sm:$0xf] %v3685
        %3687 = vst [vmem:[%s3092 + $0x7c] sm:$0xf] %v3477
        %v3688 = vld [vmem:[%s3092 + $0x80] sm:$0x1]
        %v3689 = vsel %vm3095, %v3478, %v3688
        %3690 = vst [vmem:[%s3092 + $0x80] sm:$0x1] %v3689
        %v3691 = vld [vmem:[%s3092 + $0x84] sm:$0xf]
        %v3692 = vsel %vm3613, %v3485, %v3691
        %3693 = vst [vmem:[%s3092 + $0x84] sm:$0xf] %v3692
        %3694 = vst [vmem:[%s3092 + $0x88] sm:$0xf] %v3494
        %v3695 = vld [vmem:[%s3092 + $0x8c] sm:$0x1]
        %v3696 = vsel %vm3095, %v3495, %v3695
        %3697 = vst [vmem:[%s3092 + $0x8c] sm:$0x1] %v3696
        %v3698 = vld [vmem:[%s3092 + $0x90] sm:$0xf]
        %v3699 = vsel %vm3613, %v3502, %v3698
        %3700 = vst [vmem:[%s3092 + $0x90] sm:$0xf] %v3699
        %3701 = vst [vmem:[%s3092 + $0x94] sm:$0xf] %v3511
        %v3702 = vld [vmem:[%s3092 + $0x98] sm:$0x1]
        %v3703 = vsel %vm3095, %v3512, %v3702
        %3704 = vst [vmem:[%s3092 + $0x98] sm:$0x1] %v3703
        %v3705 = vld [vmem:[%s3092 + $0x9c] sm:$0xf]
        %v3706 = vsel %vm3613, %v3519, %v3705
        %3707 = vst [vmem:[%s3092 + $0x9c] sm:$0xf] %v3706
        %3708 = vst [vmem:[%s3092 + $0xa0] sm:$0xf] %v3528
        %v3709 = vld [vmem:[%s3092 + $0xa4] sm:$0x1]
        %v3710 = vsel %vm3095, %v3529, %v3709
        %3711 = vst [vmem:[%s3092 + $0xa4] sm:$0x1] %v3710
        %v3712 = vld [vmem:[%s3092 + $0xa8] sm:$0xf]
        %v3713 = vsel %vm3613, %v3536, %v3712
        %3714 = vst [vmem:[%s3092 + $0xa8] sm:$0xf] %v3713
        %3715 = vst [vmem:[%s3092 + $0xac] sm:$0xf] %v3545
        %v3716 = vld [vmem:[%s3092 + $0xb0] sm:$0x1]
        %v3717 = vsel %vm3095, %v3546, %v3716
        %3718 = vst [vmem:[%s3092 + $0xb0] sm:$0x1] %v3717
        %v3719 = vld [vmem:[%s3092 + $0xb4] sm:$0xf]
        %v3720 = vsel %vm3613, %v3553, %v3719
        %3721 = vst [vmem:[%s3092 + $0xb4] sm:$0xf] %v3720
        %3722 = vst [vmem:[%s3092 + $0xb8] sm:$0xf] %v3562
        %v3723 = vld [vmem:[%s3092 + $0xbc] sm:$0x1]
        %v3724 = vsel %vm3095, %v3563, %v3723
        %3725 = vst [vmem:[%s3092 + $0xbc] sm:$0x1] %v3724
        %v3726 = vld [vmem:[#allocation3] sm:$0xf]
        %v3727 = vld [vmem:[#allocation3 + $0x4] sm:$0xf]
        %v3728 = vld [vmem:[#allocation3 + $0xc] sm:$0xf]
        %v3729 = vld [vmem:[#allocation3 + $0x10] sm:$0xf]
        %v3730 = vld [vmem:[#allocation3 + $0x18] sm:$0xf]
        %v3731 = vld [vmem:[#allocation3 + $0x1c] sm:$0xf]
        %v3732 = vld [vmem:[#allocation3 + $0x24] sm:$0xf]
        %v3733 = vld [vmem:[#allocation3 + $0x28] sm:$0xf]
        %v3734 = vld [vmem:[#allocation3 + $0x30] sm:$0xf]
        %v3735 = vld [vmem:[#allocation3 + $0x34] sm:$0xf]
        %v3736 = vld [vmem:[#allocation3 + $0x3c] sm:$0xf]
        %v3737 = vld [vmem:[#allocation3 + $0x40] sm:$0xf]
        %v3738 = vld [vmem:[#allocation3 + $0x48] sm:$0xf]
        %v3739 = vld [vmem:[#allocation3 + $0x4c] sm:$0xf]
        %v3740 = vld [vmem:[#allocation3 + $0x54] sm:$0xf]
        %v3741 = vld [vmem:[#allocation3 + $0x58] sm:$0xf]
        %v3742 = vld [vmem:[#allocation3 + $0x60] sm:$0xf]
        %v3743 = vld [vmem:[#allocation3 + $0x64] sm:$0xf]
        %v3744 = vld [vmem:[#allocation3 + $0x6c] sm:$0xf]
        %v3745 = vld [vmem:[#allocation3 + $0x70] sm:$0xf]
        %v3746 = vld [vmem:[#allocation3 + $0x78] sm:$0xf]
        %v3747 = vld [vmem:[#allocation3 + $0x7c] sm:$0xf]
        %v3748 = vld [vmem:[#allocation3 + $0x84] sm:$0xf]
        %v3749 = vld [vmem:[#allocation3 + $0x88] sm:$0xf]
        %v3750 = vld [vmem:[#allocation3 + $0x90] sm:$0xf]
        %v3751 = vld [vmem:[#allocation3 + $0x94] sm:$0xf]
        %v3752 = vld [vmem:[#allocation3 + $0x9c] sm:$0xf]
        %v3753 = vld [vmem:[#allocation3 + $0xa0] sm:$0xf]
        %v3754 = vld [vmem:[#allocation3 + $0xa8] sm:$0xf]
        %v3755 = vld [vmem:[#allocation3 + $0xac] sm:$0xf]
        %v3756 = vld [vmem:[#allocation3 + $0xb4] sm:$0xf]
        %v3757 = vld [vmem:[#allocation3 + $0xb8] sm:$0xf]
        %v3758 = vld [vmem:[#allocation3 + $0xc0] sm:$0xf]
        %v3759 = vld [vmem:[#allocation3 + $0xc4] sm:$0xf]
        %v3760 = vld [vmem:[#allocation3 + $0xcc] sm:$0xf]
        %v3761 = vld [vmem:[#allocation3 + $0xd0] sm:$0xf]
        %v3794 = vunpack.c.l.b16 %v3726
        %v3795 = vunpack.c.l.b16 %v3727
        %v3796 = vunpack.c.l.b16 %v3728
        %v3797 = vunpack.c.l.b16 %v3729
        %v3798 = vunpack.c.l.b16 %v3730
        %v3799 = vunpack.c.l.b16 %v3731
        %v3800 = vunpack.c.l.b16 %v3732
        %v3801 = vunpack.c.l.b16 %v3733
        %v3802 = vunpack.c.l.b16 %v3734
        %v3803 = vunpack.c.l.b16 %v3735
        %v3804 = vunpack.c.l.b16 %v3736
        %v3805 = vunpack.c.l.b16 %v3737
        %v3806 = vunpack.c.l.b16 %v3738
        %v3807 = vunpack.c.l.b16 %v3739
        %v3808 = vunpack.c.l.b16 %v3740
        %v3809 = vunpack.c.l.b16 %v3741
        %v3810 = vunpack.c.l.b16 %v3742
        %v3811 = vunpack.c.l.b16 %v3743
        %v3812 = vunpack.c.l.b16 %v3744
        %v3813 = vunpack.c.l.b16 %v3745
        %v3814 = vunpack.c.l.b16 %v3746
        %v3815 = vunpack.c.l.b16 %v3747
        %v3816 = vunpack.c.l.b16 %v3748
        %v3817 = vunpack.c.l.b16 %v3749
        %v3818 = vunpack.c.l.b16 %v3750
        %v3819 = vunpack.c.l.b16 %v3751
        %v3820 = vunpack.c.l.b16 %v3752
        %v3821 = vunpack.c.l.b16 %v3753
        %v3822 = vunpack.c.l.b16 %v3754
        %v3823 = vunpack.c.l.b16 %v3755
        %v3824 = vunpack.c.l.b16 %v3756
        %v3825 = vunpack.c.l.b16 %v3757
        %v3826 = vpack.c.b16 %v3795, %v3794
        %v3827 = vpack.c.b16 %v3797, %v3796
        %v3828 = vpack.c.b16 %v3799, %v3798
        %v3829 = vpack.c.b16 %v3801, %v3800
        %v3830 = vpack.c.b16 %v3803, %v3802
        %v3831 = vpack.c.b16 %v3805, %v3804
        %v3832 = vpack.c.b16 %v3807, %v3806
        %v3833 = vpack.c.b16 %v3809, %v3808
        %v3834 = vpack.c.b16 %v3811, %v3810
        %v3835 = vpack.c.b16 %v3813, %v3812
        %v3836 = vpack.c.b16 %v3815, %v3814
        %v3837 = vpack.c.b16 %v3817, %v3816
        %v3838 = vpack.c.b16 %v3819, %v3818
        %v3839 = vpack.c.b16 %v3821, %v3820
        %v3840 = vpack.c.b16 %v3823, %v3822
        %v3841 = vpack.c.b16 %v3825, %v3824
        %v3860 = vunpack.c.l.b16 %v3758
        %v3861 = vunpack.c.l.b16 %v3759
        %v3862 = vpack.c.b16 %v3861, %v3860
        %v3866 = vunpack.c.l.b16 %v3760
        %v3867 = vunpack.c.l.b16 %v3761
        %v3868 = vpack.c.b16 %v3867, %v3866
        %v3870 = vld [vmem:[#allocation9] sm:$0xf]
        %v3871 = vld [vmem:[#allocation9 + $0x4] sm:$0xf]
        %v3872 = vld [vmem:[#allocation9 + $0x8] sm:$0xf]
        %v3873 = vld [vmem:[#allocation9 + $0xc] sm:$0xf]
        %v3874 = vld [vmem:[#allocation9 + $0x10] sm:$0xf]
        %v3875 = vld [vmem:[#allocation9 + $0x14] sm:$0xf]
        %v3876 = vld [vmem:[#allocation9 + $0x18] sm:$0xf]
        %v3877 = vld [vmem:[#allocation9 + $0x1c] sm:$0xf]
        %v3878 = vld [vmem:[#allocation9 + $0x20] sm:$0xf]
        %v3879 = vld [vmem:[#allocation9 + $0x24] sm:$0xf]
        %v3880 = vld [vmem:[#allocation9 + $0x28] sm:$0xf]
        %v3881 = vld [vmem:[#allocation9 + $0x2c] sm:$0xf]
        %v3882 = vld [vmem:[#allocation9 + $0x30] sm:$0xf]
        %v3883 = vld [vmem:[#allocation9 + $0x34] sm:$0xf]
        %v3884 = vld [vmem:[#allocation9 + $0x38] sm:$0xf]
        %v3885 = vld [vmem:[#allocation9 + $0x3c] sm:$0xf]
        %v3886 = vld [vmem:[#allocation9 + $0x40] sm:$0xf]
        %v3887 = vld [vmem:[#allocation9 + $0x44] sm:$0xf]
        %v3888 = vld [vmem:[#allocation9 + $0x48] sm:$0xf]
        %v3889 = vld [vmem:[#allocation9 + $0x4c] sm:$0xf]
        %v3890 = vld [vmem:[#allocation9 + $0x50] sm:$0xf]
        %v3891 = vld [vmem:[#allocation9 + $0x54] sm:$0xf]
        %v3892 = vld [vmem:[#allocation9 + $0x58] sm:$0xf]
        %v3893 = vld [vmem:[#allocation9 + $0x5c] sm:$0xf]
        %v3894 = vld [vmem:[#allocation9 + $0x60] sm:$0xf]
        %v3895 = vld [vmem:[#allocation9 + $0x64] sm:$0xf]
        %v3896 = vld [vmem:[#allocation9 + $0x68] sm:$0xf]
        %v3897 = vld [vmem:[#allocation9 + $0x6c] sm:$0xf]
        %v3898 = vld [vmem:[#allocation9 + $0x70] sm:$0xf]
        %v3899 = vld [vmem:[#allocation9 + $0x74] sm:$0xf]
        %v3900 = vld [vmem:[#allocation9 + $0x78] sm:$0xf]
        %v3901 = vld [vmem:[#allocation9 + $0x7c] sm:$0xf]
        %v3902 = vld [vmem:[#allocation9 + $0x80] sm:$0xf]
        %v3903 = vld [vmem:[#allocation9 + $0x84] sm:$0xf]
        %v3904 = vld [vmem:[#allocation9 + $0x88] sm:$0xf]
        %v3905 = vld [vmem:[#allocation9 + $0x8c] sm:$0xf]
        %v3906 = vld [vmem:[#allocation9 + $0x90] sm:$0xf]
        %v3907 = vld [vmem:[#allocation9 + $0x94] sm:$0xf]
        %v3908 = vld [vmem:[#allocation9 + $0x98] sm:$0xf]
        %v3909 = vld [vmem:[#allocation9 + $0x9c] sm:$0xf]
        %v3910 = vld [vmem:[#allocation9 + $0xa0] sm:$0xf]
        %v3911 = vld [vmem:[#allocation9 + $0xa4] sm:$0xf]
        %v3912 = vld [vmem:[#allocation9 + $0xa8] sm:$0xf]
        %v3913 = vld [vmem:[#allocation9 + $0xac] sm:$0xf]
        %v3914 = vld [vmem:[#allocation9 + $0xb0] sm:$0xf]
        %v3915 = vld [vmem:[#allocation9 + $0xb4] sm:$0xf]
        %v3916 = vld [vmem:[#allocation9 + $0xb8] sm:$0xf]
        %v3917 = vld [vmem:[#allocation9 + $0xbc] sm:$0xf]
        %v3966 = vunpack.c.l.b16 %v3870
        %v3967 = vunpack.c.l.b16 %v3871
        %v3968 = vunpack.c.l.b16 %v3872
        %v3969 = vunpack.c.l.b16 %v3873
        %v3970 = vunpack.c.l.b16 %v3874
        %v3971 = vunpack.c.l.b16 %v3875
        %v3972 = vunpack.c.l.b16 %v3876
        %v3973 = vunpack.c.l.b16 %v3877
        %v3974 = vunpack.c.l.b16 %v3878
        %v3975 = vunpack.c.l.b16 %v3879
        %v3976 = vunpack.c.l.b16 %v3880
        %v3977 = vunpack.c.l.b16 %v3881
        %v3978 = vunpack.c.l.b16 %v3882
        %v3979 = vunpack.c.l.b16 %v3883
        %v3980 = vunpack.c.l.b16 %v3884
        %v3981 = vunpack.c.l.b16 %v3885
        %v3982 = vunpack.c.l.b16 %v3886
        %v3983 = vunpack.c.l.b16 %v3887
        %v3984 = vunpack.c.l.b16 %v3888
        %v3985 = vunpack.c.l.b16 %v3889
        %v3986 = vunpack.c.l.b16 %v3890
        %v3987 = vunpack.c.l.b16 %v3891
        %v3988 = vunpack.c.l.b16 %v3892
        %v3989 = vunpack.c.l.b16 %v3893
        %v3990 = vunpack.c.l.b16 %v3894
        %v3991 = vunpack.c.l.b16 %v3895
        %v3992 = vunpack.c.l.b16 %v3896
        %v3993 = vunpack.c.l.b16 %v3897
        %v3994 = vunpack.c.l.b16 %v3898
        %v3995 = vunpack.c.l.b16 %v3899
        %v3996 = vunpack.c.l.b16 %v3900
        %v3997 = vunpack.c.l.b16 %v3901
        %v3998 = vunpack.c.l.b16 %v3902
        %v3999 = vunpack.c.l.b16 %v3903
        %v4000 = vunpack.c.l.b16 %v3904
        %v4001 = vunpack.c.l.b16 %v3905
        %v4002 = vunpack.c.l.b16 %v3906
        %v4003 = vunpack.c.l.b16 %v3907
        %v4004 = vunpack.c.l.b16 %v3908
        %v4005 = vunpack.c.l.b16 %v3909
        %v4006 = vunpack.c.l.b16 %v3910
        %v4007 = vunpack.c.l.b16 %v3911
        %v4008 = vunpack.c.l.b16 %v3912
        %v4009 = vunpack.c.l.b16 %v3913
        %v4010 = vunpack.c.l.b16 %v3914
        %v4011 = vunpack.c.l.b16 %v3915
        %v4012 = vunpack.c.l.b16 %v3916
        %v4013 = vunpack.c.l.b16 %v3917
        %v4014 = vpack.c.b16 %v3967, %v3966
        %v4015 = vpack.c.b16 %v3969, %v3968
        %v4016 = vpack.c.b16 %v3971, %v3970
        %v4017 = vpack.c.b16 %v3973, %v3972
        %v4018 = vpack.c.b16 %v3975, %v3974
        %v4019 = vpack.c.b16 %v3977, %v3976
        %v4020 = vpack.c.b16 %v3979, %v3978
        %v4021 = vpack.c.b16 %v3981, %v3980
        %v4022 = vpack.c.b16 %v3983, %v3982
        %v4023 = vpack.c.b16 %v3985, %v3984
        %v4024 = vpack.c.b16 %v3987, %v3986
        %v4025 = vpack.c.b16 %v3989, %v3988
        %v4026 = vpack.c.b16 %v3991, %v3990
        %v4027 = vpack.c.b16 %v3993, %v3992
        %v4028 = vpack.c.b16 %v3995, %v3994
        %v4029 = vpack.c.b16 %v3997, %v3996
        %v4030 = vpack.c.b16 %v3999, %v3998
        %v4031 = vpack.c.b16 %v4001, %v4000
        %v4032 = vpack.c.b16 %v4003, %v4002
        %v4033 = vpack.c.b16 %v4005, %v4004
        %v4034 = vpack.c.b16 %v4007, %v4006
        %v4035 = vpack.c.b16 %v4009, %v4008
        %v4036 = vpack.c.b16 %v4011, %v4010
        %v4037 = vpack.c.b16 %v4013, %v4012
        %4062 = vmatprep.subr.bf16.mxu0 0
        %4063 = vmatpush1.bf16.msra.mxu0 %v4014
        %4064 = vmatprep.subr.bf16.mxu0 0
        %4065 = vmatpush1.bf16.msra.mxu0 %v4015
        %4066 = vmatprep.subr.bf16.mxu0 0
        %4067 = vmatpush1.bf16.msra.mxu0 %v4016
        %4068 = vmatprep.subr.bf16.mxu0 0
        %4069 = vmatpush1.bf16.msra.mxu0 %v4017
        %4070 = vmatprep.subr.bf16.mxu0 0
        %4071 = vmatpush1.bf16.msra.mxu0 %v4018
        %4072 = vmatprep.subr.bf16.mxu0 0
        %4073 = vmatpush1.bf16.msra.mxu0 %v4019
        %4074 = vmatprep.subr.bf16.mxu0 0
        %4075 = vmatpush1.bf16.msra.mxu0 %v4020
        %4076 = vmatprep.subr.bf16.mxu0 0
        %4077 = vmatpush1.bf16.msra.mxu0 %v4021
        %4078 = vmatprep.subr.bf16.mxu0 0
        %4079 = vmatpush1.bf16.msra.mxu0 %v4022
        %4080 = vmatprep.subr.bf16.mxu0 0
        %4081 = vmatpush1.bf16.msra.mxu0 %v4023
        %4082 = vmatprep.subr.bf16.mxu0 0
        %4083 = vmatpush1.bf16.msra.mxu0 %v4024
        %4084 = vmatprep.subr.bf16.mxu0 0
        %4085 = vmatpush1.bf16.msra.mxu0 %v4025
        %4086 = vmatprep.subr.bf16.mxu0 0
        %4087 = vmatpush1.bf16.msra.mxu0 %v4026
        %4088 = vmatprep.subr.bf16.mxu0 0
        %4089 = vmatpush1.bf16.msra.mxu0 %v4027
        %4090 = vmatprep.subr.bf16.mxu0 0
        %4091 = vmatpush1.bf16.msra.mxu0 %v4028
        %4092 = vmatprep.subr.bf16.mxu0 0
        %4093 = vmatpush1.bf16.msra.mxu0 %v4029
        %4094 = vmatprep.mubr.bf16.mxu0 %v3827
        %4095 = vmatmul.mubr.bf16.gmra.mrb[0].mxu0 %v3826
        %v4096 = vpop.f32.mrb[0].mxu0
        %v4097 = vadd.f32 0.0, %v4096
        %v4098 = vpop.f32.mrb[0].mxu0
        %v4099 = vpop.f32.mrb[0].mxu0
        %v4100 = vadd.f32 0.0, %v4099
        %v4101 = vpop.f32.mrb[0].mxu0
        %4102 = vmatprep.mubr.bf16.mxu0 %v3828
        %4103 = vmatmul.mubr.bf16.gmra.mrb[0].mxu0 %v3827
        %v4104 = vpop.f32.mrb[0].mxu0
        %v4105 = vadd.f32 0.0, %v4104
        %v4106 = vpop.f32.mrb[0].mxu0
        %v4107 = vpop.f32.mrb[0].mxu0
        %v4108 = vadd.f32 0.0, %v4107
        %v4109 = vpop.f32.mrb[0].mxu0
        %4110 = vmatprep.mubr.bf16.mxu0 %v3829
        %4111 = vmatmul.mubr.bf16.gmra.mrb[0].mxu0 %v3828
        %v4112 = vpop.f32.mrb[0].mxu0
        %v4113 = vadd.f32 0.0, %v4112
        %v4114 = vpop.f32.mrb[0].mxu0
        %v4115 = vpop.f32.mrb[0].mxu0
        %v4116 = vadd.f32 0.0, %v4115
        %v4117 = vpop.f32.mrb[0].mxu0
        %4118 = vmatprep.mubr.bf16.mxu0 %v3830
        %4119 = vmatmul.mubr.bf16.gmra.mrb[0].mxu0 %v3829
        %v4120 = vpop.f32.mrb[0].mxu0
        %v4121 = vadd.f32 0.0, %v4120
        %v4122 = vpop.f32.mrb[0].mxu0
        %v4123 = vpop.f32.mrb[0].mxu0
        %v4124 = vadd.f32 0.0, %v4123
        %v4125 = vpop.f32.mrb[0].mxu0
        %4126 = vmatprep.mubr.bf16.mxu0 %v3831
        %4127 = vmatmul.mubr.bf16.gmra.mrb[0].mxu0 %v3830
        %v4128 = vpop.f32.mrb[0].mxu0
        %v4129 = vadd.f32 0.0, %v4128
        %v4130 = vpop.f32.mrb[0].mxu0
        %v4131 = vpop.f32.mrb[0].mxu0
        %v4132 = vadd.f32 0.0, %v4131
        %v4133 = vpop.f32.mrb[0].mxu0
        %4134 = vmatprep.mubr.bf16.mxu0 %v3832
        %4135 = vmatmul.mubr.bf16.gmra.mrb[0].mxu0 %v3831
        %v4136 = vpop.f32.mrb[0].mxu0
        %v4137 = vadd.f32 0.0, %v4136
        %v4138 = vpop.f32.mrb[0].mxu0
        %v4139 = vpop.f32.mrb[0].mxu0
        %v4140 = vadd.f32 0.0, %v4139
        %v4141 = vpop.f32.mrb[0].mxu0
        %4142 = vmatprep.mubr.bf16.mxu0 %v3833
        %4143 = vmatmul.mubr.bf16.gmra.mrb[0].mxu0 %v3832
        %v4144 = vpop.f32.mrb[0].mxu0
        %v4145 = vadd.f32 0.0, %v4144
        %v4146 = vpop.f32.mrb[0].mxu0
        %v4147 = vpop.f32.mrb[0].mxu0
        %v4148 = vadd.f32 0.0, %v4147
        %v4149 = vpop.f32.mrb[0].mxu0
        %4150 = vmatprep.mubr.bf16.mxu0 %v3834
        %4151 = vmatmul.mubr.bf16.gmra.mrb[0].mxu0 %v3833
        %v4152 = vpop.f32.mrb[0].mxu0
        %v4153 = vadd.f32 0.0, %v4152
        %v4154 = vpop.f32.mrb[0].mxu0
        %v4155 = vpop.f32.mrb[0].mxu0
        %v4156 = vadd.f32 0.0, %v4155
        %v4157 = vpop.f32.mrb[0].mxu0
        %4158 = vmatprep.mubr.bf16.mxu0 %v3835
        %4159 = vmatmul.mubr.bf16.gmra.mrb[0].mxu0 %v3834
        %v4160 = vpop.f32.mrb[0].mxu0
        %v4161 = vadd.f32 0.0, %v4160
        %v4162 = vpop.f32.mrb[0].mxu0
        %v4163 = vpop.f32.mrb[0].mxu0
        %v4164 = vadd.f32 0.0, %v4163
        %v4165 = vpop.f32.mrb[0].mxu0
        %4166 = vmatprep.mubr.bf16.mxu0 %v3836
        %4167 = vmatmul.mubr.bf16.gmra.mrb[0].mxu0 %v3835
        %v4168 = vpop.f32.mrb[0].mxu0
        %v4169 = vadd.f32 0.0, %v4168
        %v4170 = vpop.f32.mrb[0].mxu0
        %v4171 = vpop.f32.mrb[0].mxu0
        %v4172 = vadd.f32 0.0, %v4171
        %v4173 = vpop.f32.mrb[0].mxu0
        %4174 = vmatprep.mubr.bf16.mxu0 %v3837
        %4175 = vmatmul.mubr.bf16.gmra.mrb[0].mxu0 %v3836
        %v4176 = vpop.f32.mrb[0].mxu0
        %v4177 = vadd.f32 0.0, %v4176
        %v4178 = vpop.f32.mrb[0].mxu0
        %v4179 = vpop.f32.mrb[0].mxu0
        %v4180 = vadd.f32 0.0, %v4179
        %v4181 = vpop.f32.mrb[0].mxu0
        %4182 = vmatprep.mubr.bf16.mxu0 %v3838
        %4183 = vmatmul.mubr.bf16.gmra.mrb[0].mxu0 %v3837
        %v4184 = vpop.f32.mrb[0].mxu0
        %v4185 = vadd.f32 0.0, %v4184
        %v4186 = vpop.f32.mrb[0].mxu0
        %v4187 = vpop.f32.mrb[0].mxu0
        %v4188 = vadd.f32 0.0, %v4187
        %v4189 = vpop.f32.mrb[0].mxu0
        %4190 = vmatprep.mubr.bf16.mxu0 %v3839
        %4191 = vmatmul.mubr.bf16.gmra.mrb[0].mxu0 %v3838
        %v4192 = vpop.f32.mrb[0].mxu0
        %v4193 = vadd.f32 0.0, %v4192
        %v4194 = vpop.f32.mrb[0].mxu0
        %v4195 = vpop.f32.mrb[0].mxu0
        %v4196 = vadd.f32 0.0, %v4195
        %v4197 = vpop.f32.mrb[0].mxu0
        %4198 = vmatprep.mubr.bf16.mxu0 %v3840
        %4199 = vmatmul.mubr.bf16.gmra.mrb[0].mxu0 %v3839
        %v4200 = vpop.f32.mrb[0].mxu0
        %v4201 = vadd.f32 0.0, %v4200
        %v4202 = vpop.f32.mrb[0].mxu0
        %v4203 = vpop.f32.mrb[0].mxu0
        %v4204 = vadd.f32 0.0, %v4203
        %v4205 = vpop.f32.mrb[0].mxu0
        %4206 = vmatprep.mubr.bf16.mxu0 %v3841
        %4207 = vmatmul.mubr.bf16.gmra.mrb[0].mxu0 %v3840
        %v4208 = vpop.f32.mrb[0].mxu0
        %v4209 = vadd.f32 0.0, %v4208
        %v4210 = vpop.f32.mrb[0].mxu0
        %v4211 = vpop.f32.mrb[0].mxu0
        %v4212 = vadd.f32 0.0, %v4211
        %v4213 = vpop.f32.mrb[0].mxu0
        %4214 = vmatprep.mubr.bf16.mxu0 %v3862
        %4215 = vmatmul.mubr.bf16.gmra.mrb[0].mxu0 %v3841
        %v4216 = vpop.f32.mrb[0].mxu0
        %v4217 = vadd.f32 0.0, %v4216
        %v4218 = vpop.f32.mrb[0].mxu0
        %v4219 = vpop.f32.mrb[0].mxu0
        %v4220 = vadd.f32 0.0, %v4219
        %v4221 = vpop.f32.mrb[0].mxu0
        %4222 = vdwg.mxu0
        %4223 = vmatprep.subr.bf16.mxu0 0
        %4224 = vmatpush1.bf16.msra.mxu0 %v4030
        %4225 = vmatprep.subr.bf16.mxu0 0
        %4226 = vmatpush1.bf16.msra.mxu0 %v4031
        %4227 = vmatprep.subr.bf16.mxu0 0
        %4228 = vmatpush1.bf16.msra.mxu0 %v4032
        %4229 = vmatprep.subr.bf16.mxu0 0
        %4230 = vmatpush1.bf16.msra.mxu0 %v4033
        %4231 = vmatprep.subr.bf16.mxu0 0
        %4232 = vmatpush1.bf16.msra.mxu0 %v4034
        %4233 = vmatprep.subr.bf16.mxu0 0
        %4234 = vmatpush1.bf16.msra.mxu0 %v4035
        %4235 = vmatprep.subr.bf16.mxu0 0
        %4236 = vmatpush1.bf16.msra.mxu0 %v4036
        %4237 = vmatprep.subr.bf16.mxu0 0
        %4238 = vmatpush1.bf16.msra.mxu0 %v4037
        %4239 = vmatprep.subr.bf16.mxu0 0
        %4240 = vmatpush1.bf16.msra.mxu0 0
        %4241 = vmatprep.subr.bf16.mxu0 0
        %4242 = vmatpush1.bf16.msra.mxu0 0
        %4243 = vmatprep.subr.bf16.mxu0 0
        %4244 = vmatpush1.bf16.msra.mxu0 0
        %4245 = vmatprep.subr.bf16.mxu0 0
        %4246 = vmatpush1.bf16.msra.mxu0 0
        %4247 = vmatprep.subr.bf16.mxu0 0
        %4248 = vmatpush1.bf16.msra.mxu0 0
        %4249 = vmatprep.subr.bf16.mxu0 0
        %4250 = vmatpush1.bf16.msra.mxu0 0
        %4251 = vmatprep.subr.bf16.mxu0 0
        %4252 = vmatpush1.bf16.msra.mxu0 0
        %4253 = vmatprep.subr.bf16.mxu0 0
        %4254 = vmatpush1.bf16.msra.mxu0 0
        %4255 = vmatprep.mubr.bf16.mxu0 0
        %4256 = vmatmul.mubr.bf16.gmra.mrb[0].mxu0 %v3828
        %v4257 = vpop.f32.mrb[0].mxu0
        %v4258 = vadd.f32 %v4097, %v4257
        %v4259 = vpop.f32.mrb[0].mxu0
        %v4260 = vpop.f32.mrb[0].mxu0
        %v4261 = vadd.f32 %v4100, %v4260
        %v4262 = vpop.f32.mrb[0].mxu0
        %4263 = vmatprep.mubr.bf16.mxu0 0
        %4264 = vmatmul.mubr.bf16.gmra.mrb[0].mxu0 %v3829
        %v4265 = vpop.f32.mrb[0].mxu0
        %v4266 = vadd.f32 %v4105, %v4265
        %v4267 = vpop.f32.mrb[0].mxu0
        %v4268 = vpop.f32.mrb[0].mxu0
        %v4269 = vadd.f32 %v4108, %v4268
        %v4270 = vpop.f32.mrb[0].mxu0
        %4271 = vmatprep.mubr.bf16.mxu0 0
        %4272 = vmatmul.mubr.bf16.gmra.mrb[0].mxu0 %v3830
        %v4273 = vpop.f32.mrb[0].mxu0
        %v4274 = vadd.f32 %v4113, %v4273
        %v4275 = vpop.f32.mrb[0].mxu0
        %v4276 = vpop.f32.mrb[0].mxu0
        %v4277 = vadd.f32 %v4116, %v4276
        %v4278 = vpop.f32.mrb[0].mxu0
        %4279 = vmatprep.mubr.bf16.mxu0 0
        %4280 = vmatmul.mubr.bf16.gmra.mrb[0].mxu0 %v3831
        %v4281 = vpop.f32.mrb[0].mxu0
        %v4282 = vadd.f32 %v4121, %v4281
        %v4283 = vpop.f32.mrb[0].mxu0
        %v4284 = vpop.f32.mrb[0].mxu0
        %v4285 = vadd.f32 %v4124, %v4284
        %v4286 = vpop.f32.mrb[0].mxu0
        %4287 = vmatprep.mubr.bf16.mxu0 0
        %4288 = vmatmul.mubr.bf16.gmra.mrb[0].mxu0 %v3832
        %v4289 = vpop.f32.mrb[0].mxu0
        %v4290 = vadd.f32 %v4129, %v4289
        %v4291 = vpop.f32.mrb[0].mxu0
        %v4292 = vpop.f32.mrb[0].mxu0
        %v4293 = vadd.f32 %v4132, %v4292
        %v4294 = vpop.f32.mrb[0].mxu0
        %4295 = vmatprep.mubr.bf16.mxu0 0
        %4296 = vmatmul.mubr.bf16.gmra.mrb[0].mxu0 %v3833
        %v4297 = vpop.f32.mrb[0].mxu0
        %v4298 = vadd.f32 %v4137, %v4297
        %v4299 = vpop.f32.mrb[0].mxu0
        %v4300 = vpop.f32.mrb[0].mxu0
        %v4301 = vadd.f32 %v4140, %v4300
        %v4302 = vpop.f32.mrb[0].mxu0
        %4303 = vmatprep.mubr.bf16.mxu0 0
        %4304 = vmatmul.mubr.bf16.gmra.mrb[0].mxu0 %v3834
        %v4305 = vpop.f32.mrb[0].mxu0
        %v4306 = vadd.f32 %v4145, %v4305
        %v4307 = vpop.f32.mrb[0].mxu0
        %v4308 = vpop.f32.mrb[0].mxu0
        %v4309 = vadd.f32 %v4148, %v4308
        %v4310 = vpop.f32.mrb[0].mxu0
        %4311 = vmatprep.mubr.bf16.mxu0 0
        %4312 = vmatmul.mubr.bf16.gmra.mrb[0].mxu0 %v3835
        %v4313 = vpop.f32.mrb[0].mxu0
        %v4314 = vadd.f32 %v4153, %v4313
        %v4315 = vpop.f32.mrb[0].mxu0
        %v4316 = vpop.f32.mrb[0].mxu0
        %v4317 = vadd.f32 %v4156, %v4316
        %v4318 = vpop.f32.mrb[0].mxu0
        %4319 = vmatprep.mubr.bf16.mxu0 0
        %4320 = vmatmul.mubr.bf16.gmra.mrb[0].mxu0 %v3836
        %v4321 = vpop.f32.mrb[0].mxu0
        %v4322 = vadd.f32 %v4161, %v4321
        %v4323 = vpop.f32.mrb[0].mxu0
        %v4324 = vpop.f32.mrb[0].mxu0
        %v4325 = vadd.f32 %v4164, %v4324
        %v4326 = vpop.f32.mrb[0].mxu0
        %4327 = vmatprep.mubr.bf16.mxu0 0
        %4328 = vmatmul.mubr.bf16.gmra.mrb[0].mxu0 %v3837
        %v4329 = vpop.f32.mrb[0].mxu0
        %v4330 = vadd.f32 %v4169, %v4329
        %v4331 = vpop.f32.mrb[0].mxu0
        %v4332 = vpop.f32.mrb[0].mxu0
        %v4333 = vadd.f32 %v4172, %v4332
        %v4334 = vpop.f32.mrb[0].mxu0
        %4335 = vmatprep.mubr.bf16.mxu0 0
        %4336 = vmatmul.mubr.bf16.gmra.mrb[0].mxu0 %v3838
        %v4337 = vpop.f32.mrb[0].mxu0
        %v4338 = vadd.f32 %v4177, %v4337
        %v4339 = vpop.f32.mrb[0].mxu0
        %v4340 = vpop.f32.mrb[0].mxu0
        %v4341 = vadd.f32 %v4180, %v4340
        %v4342 = vpop.f32.mrb[0].mxu0
        %4343 = vmatprep.mubr.bf16.mxu0 0
        %4344 = vmatmul.mubr.bf16.gmra.mrb[0].mxu0 %v3839
        %v4345 = vpop.f32.mrb[0].mxu0
        %v4346 = vadd.f32 %v4185, %v4345
        %v4347 = vpop.f32.mrb[0].mxu0
        %v4348 = vpop.f32.mrb[0].mxu0
        %v4349 = vadd.f32 %v4188, %v4348
        %v4350 = vpop.f32.mrb[0].mxu0
        %4351 = vmatprep.mubr.bf16.mxu0 0
        %4352 = vmatmul.mubr.bf16.gmra.mrb[0].mxu0 %v3840
        %v4353 = vpop.f32.mrb[0].mxu0
        %v4354 = vadd.f32 %v4193, %v4353
        %v4355 = vpop.f32.mrb[0].mxu0
        %v4356 = vpop.f32.mrb[0].mxu0
        %v4357 = vadd.f32 %v4196, %v4356
        %v4358 = vpop.f32.mrb[0].mxu0
        %4359 = vmatprep.mubr.bf16.mxu0 0
        %4360 = vmatmul.mubr.bf16.gmra.mrb[0].mxu0 %v3841
        %v4361 = vpop.f32.mrb[0].mxu0
        %v4362 = vadd.f32 %v4201, %v4361
        %v4363 = vpop.f32.mrb[0].mxu0
        %v4364 = vpop.f32.mrb[0].mxu0
        %v4365 = vadd.f32 %v4204, %v4364
        %v4366 = vpop.f32.mrb[0].mxu0
        %4367 = vmatprep.mubr.bf16.mxu0 0
        %4368 = vmatmul.mubr.bf16.gmra.mrb[0].mxu0 %v3862
        %v4369 = vpop.f32.mrb[0].mxu0
        %v4370 = vadd.f32 %v4209, %v4369
        %v4371 = vpop.f32.mrb[0].mxu0
        %v4372 = vpop.f32.mrb[0].mxu0
        %v4373 = vadd.f32 %v4212, %v4372
        %v4374 = vpop.f32.mrb[0].mxu0
        %4375 = vmatprep.mubr.bf16.mxu0 0
        %4376 = vmatmul.mubr.bf16.gmra.mrb[0].mxu0 %v3868
        %v4377 = vpop.f32.mrb[0].mxu0
        %v4378 = vadd.f32 %v4217, %v4377
        %v4379 = vpop.f32.mrb[0].mxu0
        %v4380 = vpop.f32.mrb[0].mxu0
        %v4381 = vadd.f32 %v4220, %v4380
        %v4382 = vpop.f32.mrb[0].mxu0
        %4383 = vdwg.mxu0
        %4384 = vst [vmem:[#allocation2] sm:$0xff] %v4258
        %4385 = vst [vmem:[#allocation2 + $0x8] sm:$0xff] %v4261
        %4386 = vst [vmem:[#allocation2 + $0x10] sm:$0xff] %v4266
        %4387 = vst [vmem:[#allocation2 + $0x18] sm:$0xff] %v4269
        %4388 = vst [vmem:[#allocation2 + $0x20] sm:$0xff] %v4274
        %4389 = vst [vmem:[#allocation2 + $0x28] sm:$0xff] %v4277
        %4390 = vst [vmem:[#allocation2 + $0x30] sm:$0xff] %v4282
        %4391 = vst [vmem:[#allocation2 + $0x38] sm:$0xff] %v4285
        %4392 = vst [vmem:[#allocation2 + $0x40] sm:$0xff] %v4290
        %4393 = vst [vmem:[#allocation2 + $0x48] sm:$0xff] %v4293
        %4394 = vst [vmem:[#allocation2 + $0x50] sm:$0xff] %v4298
        %4395 = vst [vmem:[#allocation2 + $0x58] sm:$0xff] %v4301
        %4396 = vst [vmem:[#allocation2 + $0x60] sm:$0xff] %v4306
        %4397 = vst [vmem:[#allocation2 + $0x68] sm:$0xff] %v4309
        %4398 = vst [vmem:[#allocation2 + $0x70] sm:$0xff] %v4314
        %4399 = vst [vmem:[#allocation2 + $0x78] sm:$0xff] %v4317
        %4400 = vst [vmem:[#allocation2 + $0x80] sm:$0xff] %v4322
        %4401 = vst [vmem:[#allocation2 + $0x88] sm:$0xff] %v4325
        %4402 = vst [vmem:[#allocation2 + $0x90] sm:$0xff] %v4330
        %4403 = vst [vmem:[#allocation2 + $0x98] sm:$0xff] %v4333
        %4404 = vst [vmem:[#allocation2 + $0xa0] sm:$0xff] %v4338
        %4405 = vst [vmem:[#allocation2 + $0xa8] sm:$0xff] %v4341
        %4406 = vst [vmem:[#allocation2 + $0xb0] sm:$0xff] %v4346
        %4407 = vst [vmem:[#allocation2 + $0xb8] sm:$0xff] %v4349
        %4408 = vst [vmem:[#allocation2 + $0xc0] sm:$0xff] %v4354
        %4409 = vst [vmem:[#allocation2 + $0xc8] sm:$0xff] %v4357
        %4410 = vst [vmem:[#allocation2 + $0xd0] sm:$0xff] %v4362
        %4411 = vst [vmem:[#allocation2 + $0xd8] sm:$0xff] %v4365
        %4412 = vst [vmem:[#allocation2 + $0xe0] sm:$0xff] %v4370
        %4413 = vst [vmem:[#allocation2 + $0xe8] sm:$0xff] %v4373
        %4414 = vst [vmem:[#allocation2 + $0xf0] sm:$0xff] %v4378
        %4415 = vst [vmem:[#allocation2 + $0xf8] sm:$0xff] %v4381
        %v4416 = vld [vmem:[#allocation3] sm:$0xf]
        %v4417 = vld [vmem:[#allocation3 + $0x4] sm:$0xf]
        %v4418 = vld [vmem:[#allocation3 + $0x8] sm:$0x1]
        %v4419 = vld [vmem:[#allocation3 + $0xc] sm:$0xf]
        %v4420 = vld [vmem:[#allocation3 + $0x10] sm:$0xf]
        %v4421 = vld [vmem:[#allocation3 + $0x14] sm:$0x1]
        %v4422 = vld [vmem:[#allocation3 + $0x18] sm:$0xf]
        %v4423 = vld [vmem:[#allocation3 + $0x1c] sm:$0xf]
        %v4424 = vld [vmem:[#allocation3 + $0x20] sm:$0x1]
        %v4425 = vld [vmem:[#allocation3 + $0x24] sm:$0xf]
        %v4426 = vld [vmem:[#allocation3 + $0x28] sm:$0xf]
        %v4427 = vld [vmem:[#allocation3 + $0x2c] sm:$0x1]
        %v4428 = vld [vmem:[#allocation3 + $0x30] sm:$0xf]
        %v4429 = vld [vmem:[#allocation3 + $0x34] sm:$0xf]
        %v4430 = vld [vmem:[#allocation3 + $0x38] sm:$0x1]
        %v4431 = vld [vmem:[#allocation3 + $0x3c] sm:$0xf]
        %v4432 = vld [vmem:[#allocation3 + $0x40] sm:$0xf]
        %v4433 = vld [vmem:[#allocation3 + $0x44] sm:$0x1]
        %v4434 = vld [vmem:[#allocation3 + $0x48] sm:$0xf]
        %v4435 = vld [vmem:[#allocation3 + $0x4c] sm:$0xf]
        %v4436 = vld [vmem:[#allocation3 + $0x50] sm:$0x1]
        %v4437 = vld [vmem:[#allocation3 + $0x54] sm:$0xf]
        %v4438 = vld [vmem:[#allocation3 + $0x58] sm:$0xf]
        %v4439 = vld [vmem:[#allocation3 + $0x5c] sm:$0x1]
        %v4440 = vld [vmem:[#allocation3 + $0x60] sm:$0xf]
        %v4441 = vld [vmem:[#allocation3 + $0x64] sm:$0xf]
        %v4442 = vld [vmem:[#allocation3 + $0x68] sm:$0x1]
        %v4443 = vld [vmem:[#allocation3 + $0x6c] sm:$0xf]
        %v4444 = vld [vmem:[#allocation3 + $0x70] sm:$0xf]
        %v4445 = vld [vmem:[#allocation3 + $0x74] sm:$0x1]
        %v4446 = vld [vmem:[#allocation3 + $0x78] sm:$0xf]
        %v4447 = vld [vmem:[#allocation3 + $0x7c] sm:$0xf]
        %v4448 = vld [vmem:[#allocation3 + $0x80] sm:$0x1]
        %v4449 = vld [vmem:[#allocation3 + $0x84] sm:$0xf]
        %v4450 = vld [vmem:[#allocation3 + $0x88] sm:$0xf]
        %v4451 = vld [vmem:[#allocation3 + $0x8c] sm:$0x1]
        %v4452 = vld [vmem:[#allocation3 + $0x90] sm:$0xf]
        %v4453 = vld [vmem:[#allocation3 + $0x94] sm:$0xf]
        %v4454 = vld [vmem:[#allocation3 + $0x98] sm:$0x1]
        %v4455 = vld [vmem:[#allocation3 + $0x9c] sm:$0xf]
        %v4456 = vld [vmem:[#allocation3 + $0xa0] sm:$0xf]
        %v4457 = vld [vmem:[#allocation3 + $0xa4] sm:$0x1]
        %v4458 = vld [vmem:[#allocation3 + $0xa8] sm:$0xf]
        %v4459 = vld [vmem:[#allocation3 + $0xac] sm:$0xf]
        %v4460 = vld [vmem:[#allocation3 + $0xb0] sm:$0x1]
        %v4461 = vld [vmem:[#allocation3 + $0xb4] sm:$0xf]
        %v4462 = vld [vmem:[#allocation3 + $0xb8] sm:$0xf]
        %v4463 = vld [vmem:[#allocation3 + $0xbc] sm:$0x1]
        %v4464 = vld [vmem:[#allocation3 + $0xc0] sm:$0xf]
        %v4465 = vld [vmem:[#allocation3 + $0xc4] sm:$0xf]
        %v4466 = vld [vmem:[#allocation3 + $0xc8] sm:$0x1]
        %v4467 = vld [vmem:[#allocation3 + $0xcc] sm:$0xf]
        %v4468 = vld [vmem:[#allocation3 + $0xd0] sm:$0xf]
        %v4469 = vld [vmem:[#allocation3 + $0xd4] sm:$0x1]
        %v4518 = vunpack.c.l.b16 %v4416
        %v4519 = vunpack.c.l.b16 %v4417
        %v4520 = vunpack.c.l.b16 %v4418
        %v4521 = vunpack.c.l.b16 %v4419
        %v4522 = vunpack.c.l.b16 %v4420
        %v4523 = vunpack.c.l.b16 %v4421
        %v4524 = vunpack.c.l.b16 %v4422
        %v4525 = vunpack.c.l.b16 %v4423
        %v4526 = vunpack.c.l.b16 %v4424
        %v4527 = vunpack.c.l.b16 %v4425
        %v4528 = vunpack.c.l.b16 %v4426
        %v4529 = vunpack.c.l.b16 %v4427
        %v4530 = vunpack.c.l.b16 %v4428
        %v4531 = vunpack.c.l.b16 %v4429
        %v4532 = vunpack.c.l.b16 %v4430
        %v4533 = vunpack.c.l.b16 %v4431
        %v4534 = vunpack.c.l.b16 %v4432
        %v4535 = vunpack.c.l.b16 %v4433
        %v4536 = vunpack.c.l.b16 %v4434
        %v4537 = vunpack.c.l.b16 %v4435
        %v4538 = vunpack.c.l.b16 %v4436
        %v4539 = vunpack.c.l.b16 %v4437
        %v4540 = vunpack.c.l.b16 %v4438
        %v4541 = vunpack.c.l.b16 %v4439
        %v4542 = vunpack.c.l.b16 %v4440
        %v4543 = vunpack.c.l.b16 %v4441
        %v4544 = vunpack.c.l.b16 %v4442
        %v4545 = vunpack.c.l.b16 %v4443
        %v4546 = vunpack.c.l.b16 %v4444
        %v4547 = vunpack.c.l.b16 %v4445
        %v4548 = vunpack.c.l.b16 %v4446
        %v4549 = vunpack.c.l.b16 %v4447
        %v4550 = vunpack.c.l.b16 %v4448
        %v4551 = vunpack.c.l.b16 %v4449
        %v4552 = vunpack.c.l.b16 %v4450
        %v4553 = vunpack.c.l.b16 %v4451
        %v4554 = vunpack.c.l.b16 %v4452
        %v4555 = vunpack.c.l.b16 %v4453
        %v4556 = vunpack.c.l.b16 %v4454
        %v4557 = vunpack.c.l.b16 %v4455
        %v4558 = vunpack.c.l.b16 %v4456
        %v4559 = vunpack.c.l.b16 %v4457
        %v4560 = vunpack.c.l.b16 %v4458
        %v4561 = vunpack.c.l.b16 %v4459
        %v4562 = vunpack.c.l.b16 %v4460
        %v4563 = vunpack.c.l.b16 %v4461
        %v4564 = vunpack.c.l.b16 %v4462
        %v4565 = vunpack.c.l.b16 %v4463
        %v4566 = vpack.c.b16 %v4519, %v4518
        %v4567 = vpack.c.b16 %v4520, %v4520
        %v4568 = vpack.c.b16 %v4522, %v4521
        %v4569 = vpack.c.b16 %v4523, %v4523
        %v4570 = vpack.c.b16 %v4525, %v4524
        %v4571 = vpack.c.b16 %v4526, %v4526
        %v4572 = vpack.c.b16 %v4528, %v4527
        %v4573 = vpack.c.b16 %v4529, %v4529
        %v4574 = vpack.c.b16 %v4531, %v4530
        %v4575 = vpack.c.b16 %v4532, %v4532
        %v4576 = vpack.c.b16 %v4534, %v4533
        %v4577 = vpack.c.b16 %v4535, %v4535
        %v4578 = vpack.c.b16 %v4537, %v4536
        %v4579 = vpack.c.b16 %v4538, %v4538
        %v4580 = vpack.c.b16 %v4540, %v4539
        %v4581 = vpack.c.b16 %v4541, %v4541
        %v4582 = vpack.c.b16 %v4543, %v4542
        %v4583 = vpack.c.b16 %v4544, %v4544
        %v4584 = vpack.c.b16 %v4546, %v4545
        %v4585 = vpack.c.b16 %v4547, %v4547
        %v4586 = vpack.c.b16 %v4549, %v4548
        %v4587 = vpack.c.b16 %v4550, %v4550
        %v4588 = vpack.c.b16 %v4552, %v4551
        %v4589 = vpack.c.b16 %v4553, %v4553
        %v4590 = vpack.c.b16 %v4555, %v4554
        %v4591 = vpack.c.b16 %v4556, %v4556
        %v4592 = vpack.c.b16 %v4558, %v4557
        %v4593 = vpack.c.b16 %v4559, %v4559
        %v4594 = vpack.c.b16 %v4561, %v4560
        %v4595 = vpack.c.b16 %v4562, %v4562
        %v4596 = vpack.c.b16 %v4564, %v4563
        %v4597 = vpack.c.b16 %v4565, %v4565
        %v4601 = vunpack.c.l.b16 %v4464
        %v4602 = vunpack.c.l.b16 %v4465
        %v4603 = vunpack.c.l.b16 %v4466
        %v4604 = vpack.c.b16 %v4602, %v4601
        %v4605 = vpack.c.b16 %v4603, %v4603
        %v4609 = vunpack.c.l.b16 %v4467
        %v4610 = vunpack.c.l.b16 %v4468
        %v4611 = vunpack.c.l.b16 %v4469
        %v4612 = vpack.c.b16 %v4610, %v4609
        %v4613 = vpack.c.b16 %v4611, %v4611
        %v4615 = vshrl.u32 %v4566, 16
        %v4617 = vshll.u32 %v4566, 16
        %v4619 = vrot.slane %v4617, 1
        %v4620 = vor.u32 %v4615, %v4619
        %v4622 = vshll.u32 %v4567, 16
        %v4624 = vrot.slane %v4622, 1
        %v4625 = vsel %vm1215, %v4620, %v4624
        %v4627 = vshrl.u32 %v4568, 16
        %v4629 = vshll.u32 %v4568, 16
        %v4631 = vrot.slane %v4629, 1
        %v4632 = vor.u32 %v4627, %v4631
        %v4634 = vshll.u32 %v4569, 16
        %v4636 = vrot.slane %v4634, 1
        %v4637 = vsel %vm1215, %v4632, %v4636
        %v4639 = vshrl.u32 %v4570, 16
        %v4641 = vshll.u32 %v4570, 16
        %v4643 = vrot.slane %v4641, 1
        %v4644 = vor.u32 %v4639, %v4643
        %v4646 = vshll.u32 %v4571, 16
        %v4648 = vrot.slane %v4646, 1
        %v4649 = vsel %vm1215, %v4644, %v4648
        %v4651 = vshrl.u32 %v4572, 16
        %v4653 = vshll.u32 %v4572, 16
        %v4655 = vrot.slane %v4653, 1
        %v4656 = vor.u32 %v4651, %v4655
        %v4658 = vshll.u32 %v4573, 16
        %v4660 = vrot.slane %v4658, 1
        %v4661 = vsel %vm1215, %v4656, %v4660
        %v4663 = vshrl.u32 %v4574, 16
        %v4665 = vshll.u32 %v4574, 16
        %v4667 = vrot.slane %v4665, 1
        %v4668 = vor.u32 %v4663, %v4667
        %v4670 = vshll.u32 %v4575, 16
        %v4672 = vrot.slane %v4670, 1
        %v4673 = vsel %vm1215, %v4668, %v4672
        %v4675 = vshrl.u32 %v4576, 16
        %v4677 = vshll.u32 %v4576, 16
        %v4679 = vrot.slane %v4677, 1
        %v4680 = vor.u32 %v4675, %v4679
        %v4682 = vshll.u32 %v4577, 16
        %v4684 = vrot.slane %v4682, 1
        %v4685 = vsel %vm1215, %v4680, %v4684
        %v4687 = vshrl.u32 %v4578, 16
        %v4689 = vshll.u32 %v4578, 16
        %v4691 = vrot.slane %v4689, 1
        %v4692 = vor.u32 %v4687, %v4691
        %v4694 = vshll.u32 %v4579, 16
        %v4696 = vrot.slane %v4694, 1
        %v4697 = vsel %vm1215, %v4692, %v4696
        %v4699 = vshrl.u32 %v4580, 16
        %v4701 = vshll.u32 %v4580, 16
        %v4703 = vrot.slane %v4701, 1
        %v4704 = vor.u32 %v4699, %v4703
        %v4706 = vshll.u32 %v4581, 16
        %v4708 = vrot.slane %v4706, 1
        %v4709 = vsel %vm1215, %v4704, %v4708
        %v4711 = vshrl.u32 %v4582, 16
        %v4713 = vshll.u32 %v4582, 16
        %v4715 = vrot.slane %v4713, 1
        %v4716 = vor.u32 %v4711, %v4715
        %v4718 = vshll.u32 %v4583, 16
        %v4720 = vrot.slane %v4718, 1
        %v4721 = vsel %vm1215, %v4716, %v4720
        %v4723 = vshrl.u32 %v4584, 16
        %v4725 = vshll.u32 %v4584, 16
        %v4727 = vrot.slane %v4725, 1
        %v4728 = vor.u32 %v4723, %v4727
        %v4730 = vshll.u32 %v4585, 16
        %v4732 = vrot.slane %v4730, 1
        %v4733 = vsel %vm1215, %v4728, %v4732
        %v4735 = vshrl.u32 %v4586, 16
        %v4737 = vshll.u32 %v4586, 16
        %v4739 = vrot.slane %v4737, 1
        %v4740 = vor.u32 %v4735, %v4739
        %v4742 = vshll.u32 %v4587, 16
        %v4744 = vrot.slane %v4742, 1
        %v4745 = vsel %vm1215, %v4740, %v4744
        %v4747 = vshrl.u32 %v4588, 16
        %v4749 = vshll.u32 %v4588, 16
        %v4751 = vrot.slane %v4749, 1
        %v4752 = vor.u32 %v4747, %v4751
        %v4754 = vshll.u32 %v4589, 16
        %v4756 = vrot.slane %v4754, 1
        %v4757 = vsel %vm1215, %v4752, %v4756
        %v4759 = vshrl.u32 %v4590, 16
        %v4761 = vshll.u32 %v4590, 16
        %v4763 = vrot.slane %v4761, 1
        %v4764 = vor.u32 %v4759, %v4763
        %v4766 = vshll.u32 %v4591, 16
        %v4768 = vrot.slane %v4766, 1
        %v4769 = vsel %vm1215, %v4764, %v4768
        %v4771 = vshrl.u32 %v4592, 16
        %v4773 = vshll.u32 %v4592, 16
        %v4775 = vrot.slane %v4773, 1
        %v4776 = vor.u32 %v4771, %v4775
        %v4778 = vshll.u32 %v4593, 16
        %v4780 = vrot.slane %v4778, 1
        %v4781 = vsel %vm1215, %v4776, %v4780
        %v4783 = vshrl.u32 %v4594, 16
        %v4785 = vshll.u32 %v4594, 16
        %v4787 = vrot.slane %v4785, 1
        %v4788 = vor.u32 %v4783, %v4787
        %v4790 = vshll.u32 %v4595, 16
        %v4792 = vrot.slane %v4790, 1
        %v4793 = vsel %vm1215, %v4788, %v4792
        %v4795 = vshrl.u32 %v4596, 16
        %v4797 = vshll.u32 %v4596, 16
        %v4799 = vrot.slane %v4797, 1
        %v4800 = vor.u32 %v4795, %v4799
        %v4802 = vshll.u32 %v4597, 16
        %v4804 = vrot.slane %v4802, 1
        %v4805 = vsel %vm1215, %v4800, %v4804
        %v4807 = vshrl.u32 %v4604, 16
        %v4809 = vshll.u32 %v4604, 16
        %v4811 = vrot.slane %v4809, 1
        %v4812 = vor.u32 %v4807, %v4811
        %v4814 = vshll.u32 %v4605, 16
        %v4816 = vrot.slane %v4814, 1
        %v4817 = vsel %vm1215, %v4812, %v4816
        %v4819 = vshrl.u32 %v4612, 16
        %v4821 = vshll.u32 %v4612, 16
        %v4823 = vrot.slane %v4821, 1
        %v4824 = vor.u32 %v4819, %v4823
        %v4826 = vshll.u32 %v4613, 16
        %v4828 = vrot.slane %v4826, 1
        %v4829 = vsel %vm1215, %v4824, %v4828
        %s4848 = scalar_lea.vmem [#allocation9], 192
        %v4849 = vld [vmem:[%s4848] sm:$0xf]
        %v4850 = vld [vmem:[%s4848 + $0x4] sm:$0xf]
        %v4851 = vld [vmem:[%s4848 + $0x8] sm:$0xf]
        %v4852 = vld [vmem:[%s4848 + $0xc] sm:$0xf]
        %v4853 = vld [vmem:[%s4848 + $0x10] sm:$0xf]
        %v4854 = vld [vmem:[%s4848 + $0x14] sm:$0xf]
        %v4855 = vld [vmem:[%s4848 + $0x18] sm:$0xf]
        %v4856 = vld [vmem:[%s4848 + $0x1c] sm:$0xf]
        %v4857 = vld [vmem:[%s4848 + $0x20] sm:$0xf]
        %v4858 = vld [vmem:[%s4848 + $0x24] sm:$0xf]
        %v4859 = vld [vmem:[%s4848 + $0x28] sm:$0xf]
        %v4860 = vld [vmem:[%s4848 + $0x2c] sm:$0xf]
        %v4861 = vld [vmem:[%s4848 + $0x30] sm:$0xf]
        %v4862 = vld [vmem:[%s4848 + $0x34] sm:$0xf]
        %v4863 = vld [vmem:[%s4848 + $0x38] sm:$0xf]
        %v4864 = vld [vmem:[%s4848 + $0x3c] sm:$0xf]
        %v4865 = vld [vmem:[%s4848 + $0x40] sm:$0xf]
        %v4866 = vld [vmem:[%s4848 + $0x44] sm:$0xf]
        %v4867 = vld [vmem:[%s4848 + $0x48] sm:$0xf]
        %v4868 = vld [vmem:[%s4848 + $0x4c] sm:$0xf]
        %v4869 = vld [vmem:[%s4848 + $0x50] sm:$0xf]
        %v4870 = vld [vmem:[%s4848 + $0x54] sm:$0xf]
        %v4871 = vld [vmem:[%s4848 + $0x58] sm:$0xf]
        %v4872 = vld [vmem:[%s4848 + $0x5c] sm:$0xf]
        %v4873 = vld [vmem:[%s4848 + $0x60] sm:$0xf]
        %v4874 = vld [vmem:[%s4848 + $0x64] sm:$0xf]
        %v4875 = vld [vmem:[%s4848 + $0x68] sm:$0xf]
        %v4876 = vld [vmem:[%s4848 + $0x6c] sm:$0xf]
        %v4877 = vld [vmem:[%s4848 + $0x70] sm:$0xf]
        %v4878 = vld [vmem:[%s4848 + $0x74] sm:$0xf]
        %v4879 = vld [vmem:[%s4848 + $0x78] sm:$0xf]
        %v4880 = vld [vmem:[%s4848 + $0x7c] sm:$0xf]
        %v4881 = vld [vmem:[%s4848 + $0x80] sm:$0xf]
        %v4882 = vld [vmem:[%s4848 + $0x84] sm:$0xf]
        %v4883 = vld [vmem:[%s4848 + $0x88] sm:$0xf]
        %v4884 = vld [vmem:[%s4848 + $0x8c] sm:$0xf]
        %v4885 = vld [vmem:[%s4848 + $0x90] sm:$0xf]
        %v4886 = vld [vmem:[%s4848 + $0x94] sm:$0xf]
        %v4887 = vld [vmem:[%s4848 + $0x98] sm:$0xf]
        %v4888 = vld [vmem:[%s4848 + $0x9c] sm:$0xf]
        %v4889 = vld [vmem:[%s4848 + $0xa0] sm:$0xf]
        %v4890 = vld [vmem:[%s4848 + $0xa4] sm:$0xf]
        %v4891 = vld [vmem:[%s4848 + $0xa8] sm:$0xf]
        %v4892 = vld [vmem:[%s4848 + $0xac] sm:$0xf]
        %v4893 = vld [vmem:[%s4848 + $0xb0] sm:$0xf]
        %v4894 = vld [vmem:[%s4848 + $0xb4] sm:$0xf]
        %v4895 = vld [vmem:[%s4848 + $0xb8] sm:$0xf]
        %v4896 = vld [vmem:[%s4848 + $0xbc] sm:$0xf]
        %v4945 = vunpack.c.l.b16 %v4849
        %v4946 = vunpack.c.l.b16 %v4850
        %v4947 = vunpack.c.l.b16 %v4851
        %v4948 = vunpack.c.l.b16 %v4852
        %v4949 = vunpack.c.l.b16 %v4853
        %v4950 = vunpack.c.l.b16 %v4854
        %v4951 = vunpack.c.l.b16 %v4855
        %v4952 = vunpack.c.l.b16 %v4856
        %v4953 = vunpack.c.l.b16 %v4857
        %v4954 = vunpack.c.l.b16 %v4858
        %v4955 = vunpack.c.l.b16 %v4859
        %v4956 = vunpack.c.l.b16 %v4860
        %v4957 = vunpack.c.l.b16 %v4861
        %v4958 = vunpack.c.l.b16 %v4862
        %v4959 = vunpack.c.l.b16 %v4863
        %v4960 = vunpack.c.l.b16 %v4864
        %v4961 = vunpack.c.l.b16 %v4865
        %v4962 = vunpack.c.l.b16 %v4866
        %v4963 = vunpack.c.l.b16 %v4867
        %v4964 = vunpack.c.l.b16 %v4868
        %v4965 = vunpack.c.l.b16 %v4869
        %v4966 = vunpack.c.l.b16 %v4870
        %v4967 = vunpack.c.l.b16 %v4871
        %v4968 = vunpack.c.l.b16 %v4872
        %v4969 = vunpack.c.l.b16 %v4873
        %v4970 = vunpack.c.l.b16 %v4874
        %v4971 = vunpack.c.l.b16 %v4875
        %v4972 = vunpack.c.l.b16 %v4876
        %v4973 = vunpack.c.l.b16 %v4877
        %v4974 = vunpack.c.l.b16 %v4878
        %v4975 = vunpack.c.l.b16 %v4879
        %v4976 = vunpack.c.l.b16 %v4880
        %v4977 = vunpack.c.l.b16 %v4881
        %v4978 = vunpack.c.l.b16 %v4882
        %v4979 = vunpack.c.l.b16 %v4883
        %v4980 = vunpack.c.l.b16 %v4884
        %v4981 = vunpack.c.l.b16 %v4885
        %v4982 = vunpack.c.l.b16 %v4886
        %v4983 = vunpack.c.l.b16 %v4887
        %v4984 = vunpack.c.l.b16 %v4888
        %v4985 = vunpack.c.l.b16 %v4889
        %v4986 = vunpack.c.l.b16 %v4890
        %v4987 = vunpack.c.l.b16 %v4891
        %v4988 = vunpack.c.l.b16 %v4892
        %v4989 = vunpack.c.l.b16 %v4893
        %v4990 = vunpack.c.l.b16 %v4894
        %v4991 = vunpack.c.l.b16 %v4895
        %v4992 = vunpack.c.l.b16 %v4896
        %v4993 = vpack.c.b16 %v4946, %v4945
        %v4994 = vpack.c.b16 %v4948, %v4947
        %v4995 = vpack.c.b16 %v4950, %v4949
        %v4996 = vpack.c.b16 %v4952, %v4951
        %v4997 = vpack.c.b16 %v4954, %v4953
        %v4998 = vpack.c.b16 %v4956, %v4955
        %v4999 = vpack.c.b16 %v4958, %v4957
        %v5000 = vpack.c.b16 %v4960, %v4959
        %v5001 = vpack.c.b16 %v4962, %v4961
        %v5002 = vpack.c.b16 %v4964, %v4963
        %v5003 = vpack.c.b16 %v4966, %v4965
        %v5004 = vpack.c.b16 %v4968, %v4967
        %v5005 = vpack.c.b16 %v4970, %v4969
        %v5006 = vpack.c.b16 %v4972, %v4971
        %v5007 = vpack.c.b16 %v4974, %v4973
        %v5008 = vpack.c.b16 %v4976, %v4975
        %v5009 = vpack.c.b16 %v4978, %v4977
        %v5010 = vpack.c.b16 %v4980, %v4979
        %v5011 = vpack.c.b16 %v4982, %v4981
        %v5012 = vpack.c.b16 %v4984, %v4983
        %v5013 = vpack.c.b16 %v4986, %v4985
        %v5014 = vpack.c.b16 %v4988, %v4987
        %v5015 = vpack.c.b16 %v4990, %v4989
        %v5016 = vpack.c.b16 %v4992, %v4991
        %5041 = vmatprep.subr.bf16.mxu0 0
        %5042 = vmatpush1.bf16.msra.mxu0 %v4993
        %5043 = vmatprep.subr.bf16.mxu0 0
        %5044 = vmatpush1.bf16.msra.mxu0 %v4994
        %5045 = vmatprep.subr.bf16.mxu0 0
        %5046 = vmatpush1.bf16.msra.mxu0 %v4995
        %5047 = vmatprep.subr.bf16.mxu0 0
        %5048 = vmatpush1.bf16.msra.mxu0 %v4996
        %5049 = vmatprep.subr.bf16.mxu0 0
        %5050 = vmatpush1.bf16.msra.mxu0 %v4997
        %5051 = vmatprep.subr.bf16.mxu0 0
        %5052 = vmatpush1.bf16.msra.mxu0 %v4998
        %5053 = vmatprep.subr.bf16.mxu0 0
        %5054 = vmatpush1.bf16.msra.mxu0 %v4999
        %5055 = vmatprep.subr.bf16.mxu0 0
        %5056 = vmatpush1.bf16.msra.mxu0 %v5000
        %5057 = vmatprep.subr.bf16.mxu0 0
        %5058 = vmatpush1.bf16.msra.mxu0 %v5001
        %5059 = vmatprep.subr.bf16.mxu0 0
        %5060 = vmatpush1.bf16.msra.mxu0 %v5002
        %5061 = vmatprep.subr.bf16.mxu0 0
        %5062 = vmatpush1.bf16.msra.mxu0 %v5003
        %5063 = vmatprep.subr.bf16.mxu0 0
        %5064 = vmatpush1.bf16.msra.mxu0 %v5004
        %5065 = vmatprep.subr.bf16.mxu0 0
        %5066 = vmatpush1.bf16.msra.mxu0 %v5005
        %5067 = vmatprep.subr.bf16.mxu0 0
        %5068 = vmatpush1.bf16.msra.mxu0 %v5006
        %5069 = vmatprep.subr.bf16.mxu0 0
        %5070 = vmatpush1.bf16.msra.mxu0 %v5007
        %5071 = vmatprep.subr.bf16.mxu0 0
        %5072 = vmatpush1.bf16.msra.mxu0 %v5008
        %5073 = vmatprep.mubr.bf16.mxu0 %v4637
        %5074 = vmatmul.mubr.bf16.gmra.mrb[0].mxu0 %v4625
        %v5075 = vpop.f32.mrb[0].mxu0
        %v5076 = vadd.f32 0.0, %v5075
        %v5077 = vpop.f32.mrb[0].mxu0
        %v5078 = vpop.f32.mrb[0].mxu0
        %v5079 = vadd.f32 0.0, %v5078
        %v5080 = vpop.f32.mrb[0].mxu0
        %5081 = vmatprep.mubr.bf16.mxu0 %v4649
        %5082 = vmatmul.mubr.bf16.gmra.mrb[0].mxu0 %v4637
        %v5083 = vpop.f32.mrb[0].mxu0
        %v5084 = vadd.f32 0.0, %v5083
        %v5085 = vpop.f32.mrb[0].mxu0
        %v5086 = vpop.f32.mrb[0].mxu0
        %v5087 = vadd.f32 0.0, %v5086
        %v5088 = vpop.f32.mrb[0].mxu0
        %5089 = vmatprep.mubr.bf16.mxu0 %v4661
        %5090 = vmatmul.mubr.bf16.gmra.mrb[0].mxu0 %v4649
        %v5091 = vpop.f32.mrb[0].mxu0
        %v5092 = vadd.f32 0.0, %v5091
        %v5093 = vpop.f32.mrb[0].mxu0
        %v5094 = vpop.f32.mrb[0].mxu0
        %v5095 = vadd.f32 0.0, %v5094
        %v5096 = vpop.f32.mrb[0].mxu0
        %5097 = vmatprep.mubr.bf16.mxu0 %v4673
        %5098 = vmatmul.mubr.bf16.gmra.mrb[0].mxu0 %v4661
        %v5099 = vpop.f32.mrb[0].mxu0
        %v5100 = vadd.f32 0.0, %v5099
        %v5101 = vpop.f32.mrb[0].mxu0
        %v5102 = vpop.f32.mrb[0].mxu0
        %v5103 = vadd.f32 0.0, %v5102
        %v5104 = vpop.f32.mrb[0].mxu0
        %5105 = vmatprep.mubr.bf16.mxu0 %v4685
        %5106 = vmatmul.mubr.bf16.gmra.mrb[0].mxu0 %v4673
        %v5107 = vpop.f32.mrb[0].mxu0
        %v5108 = vadd.f32 0.0, %v5107
        %v5109 = vpop.f32.mrb[0].mxu0
        %v5110 = vpop.f32.mrb[0].mxu0
        %v5111 = vadd.f32 0.0, %v5110
        %v5112 = vpop.f32.mrb[0].mxu0
        %5113 = vmatprep.mubr.bf16.mxu0 %v4697
        %5114 = vmatmul.mubr.bf16.gmra.mrb[0].mxu0 %v4685
        %v5115 = vpop.f32.mrb[0].mxu0
        %v5116 = vadd.f32 0.0, %v5115
        %v5117 = vpop.f32.mrb[0].mxu0
        %v5118 = vpop.f32.mrb[0].mxu0
        %v5119 = vadd.f32 0.0, %v5118
        %v5120 = vpop.f32.mrb[0].mxu0
        %5121 = vmatprep.mubr.bf16.mxu0 %v4709
        %5122 = vmatmul.mubr.bf16.gmra.mrb[0].mxu0 %v4697
        %v5123 = vpop.f32.mrb[0].mxu0
        %v5124 = vadd.f32 0.0, %v5123
        %v5125 = vpop.f32.mrb[0].mxu0
        %v5126 = vpop.f32.mrb[0].mxu0
        %v5127 = vadd.f32 0.0, %v5126
        %v5128 = vpop.f32.mrb[0].mxu0
        %5129 = vmatprep.mubr.bf16.mxu0 %v4721
        %5130 = vmatmul.mubr.bf16.gmra.mrb[0].mxu0 %v4709
        %v5131 = vpop.f32.mrb[0].mxu0
        %v5132 = vadd.f32 0.0, %v5131
        %v5133 = vpop.f32.mrb[0].mxu0
        %v5134 = vpop.f32.mrb[0].mxu0
        %v5135 = vadd.f32 0.0, %v5134
        %v5136 = vpop.f32.mrb[0].mxu0
        %5137 = vmatprep.mubr.bf16.mxu0 %v4733
        %5138 = vmatmul.mubr.bf16.gmra.mrb[0].mxu0 %v4721
        %v5139 = vpop.f32.mrb[0].mxu0
        %v5140 = vadd.f32 0.0, %v5139
        %v5141 = vpop.f32.mrb[0].mxu0
        %v5142 = vpop.f32.mrb[0].mxu0
        %v5143 = vadd.f32 0.0, %v5142
        %v5144 = vpop.f32.mrb[0].mxu0
        %5145 = vmatprep.mubr.bf16.mxu0 %v4745
        %5146 = vmatmul.mubr.bf16.gmra.mrb[0].mxu0 %v4733
        %v5147 = vpop.f32.mrb[0].mxu0
        %v5148 = vadd.f32 0.0, %v5147
        %v5149 = vpop.f32.mrb[0].mxu0
        %v5150 = vpop.f32.mrb[0].mxu0
        %v5151 = vadd.f32 0.0, %v5150
        %v5152 = vpop.f32.mrb[0].mxu0
        %5153 = vmatprep.mubr.bf16.mxu0 %v4757
        %5154 = vmatmul.mubr.bf16.gmra.mrb[0].mxu0 %v4745
        %v5155 = vpop.f32.mrb[0].mxu0
        %v5156 = vadd.f32 0.0, %v5155
        %v5157 = vpop.f32.mrb[0].mxu0
        %v5158 = vpop.f32.mrb[0].mxu0
        %v5159 = vadd.f32 0.0, %v5158
        %v5160 = vpop.f32.mrb[0].mxu0
        %5161 = vmatprep.mubr.bf16.mxu0 %v4769
        %5162 = vmatmul.mubr.bf16.gmra.mrb[0].mxu0 %v4757
        %v5163 = vpop.f32.mrb[0].mxu0
        %v5164 = vadd.f32 0.0, %v5163
        %v5165 = vpop.f32.mrb[0].mxu0
        %v5166 = vpop.f32.mrb[0].mxu0
        %v5167 = vadd.f32 0.0, %v5166
        %v5168 = vpop.f32.mrb[0].mxu0
        %5169 = vmatprep.mubr.bf16.mxu0 %v4781
        %5170 = vmatmul.mubr.bf16.gmra.mrb[0].mxu0 %v4769
        %v5171 = vpop.f32.mrb[0].mxu0
        %v5172 = vadd.f32 0.0, %v5171
        %v5173 = vpop.f32.mrb[0].mxu0
        %v5174 = vpop.f32.mrb[0].mxu0
        %v5175 = vadd.f32 0.0, %v5174
        %v5176 = vpop.f32.mrb[0].mxu0
        %5177 = vmatprep.mubr.bf16.mxu0 %v4793
        %5178 = vmatmul.mubr.bf16.gmra.mrb[0].mxu0 %v4781
        %v5179 = vpop.f32.mrb[0].mxu0
        %v5180 = vadd.f32 0.0, %v5179
        %v5181 = vpop.f32.mrb[0].mxu0
        %v5182 = vpop.f32.mrb[0].mxu0
        %v5183 = vadd.f32 0.0, %v5182
        %v5184 = vpop.f32.mrb[0].mxu0
        %5185 = vmatprep.mubr.bf16.mxu0 %v4805
        %5186 = vmatmul.mubr.bf16.gmra.mrb[0].mxu0 %v4793
        %v5187 = vpop.f32.mrb[0].mxu0
        %v5188 = vadd.f32 0.0, %v5187
        %v5189 = vpop.f32.mrb[0].mxu0
        %v5190 = vpop.f32.mrb[0].mxu0
        %v5191 = vadd.f32 0.0, %v5190
        %v5192 = vpop.f32.mrb[0].mxu0
        %5193 = vmatprep.mubr.bf16.mxu0 %v4817
        %5194 = vmatmul.mubr.bf16.gmra.mrb[0].mxu0 %v4805
        %v5195 = vpop.f32.mrb[0].mxu0
        %v5196 = vadd.f32 0.0, %v5195
        %v5197 = vpop.f32.mrb[0].mxu0
        %v5198 = vpop.f32.mrb[0].mxu0
        %v5199 = vadd.f32 0.0, %v5198
        %v5200 = vpop.f32.mrb[0].mxu0
        %5201 = vdwg.mxu0
        %5202 = vmatprep.subr.bf16.mxu0 0
        %5203 = vmatpush1.bf16.msra.mxu0 %v5009
        %5204 = vmatprep.subr.bf16.mxu0 0
        %5205 = vmatpush1.bf16.msra.mxu0 %v5010
        %5206 = vmatprep.subr.bf16.mxu0 0
        %5207 = vmatpush1.bf16.msra.mxu0 %v5011
        %5208 = vmatprep.subr.bf16.mxu0 0
        %5209 = vmatpush1.bf16.msra.mxu0 %v5012
        %5210 = vmatprep.subr.bf16.mxu0 0
        %5211 = vmatpush1.bf16.msra.mxu0 %v5013
        %5212 = vmatprep.subr.bf16.mxu0 0
        %5213 = vmatpush1.bf16.msra.mxu0 %v5014
        %5214 = vmatprep.subr.bf16.mxu0 0
        %5215 = vmatpush1.bf16.msra.mxu0 %v5015
        %5216 = vmatprep.subr.bf16.mxu0 0
        %5217 = vmatpush1.bf16.msra.mxu0 %v5016
        %5218 = vmatprep.subr.bf16.mxu0 0
        %5219 = vmatpush1.bf16.msra.mxu0 0
        %5220 = vmatprep.subr.bf16.mxu0 0
        %5221 = vmatpush1.bf16.msra.mxu0 0
        %5222 = vmatprep.subr.bf16.mxu0 0
        %5223 = vmatpush1.bf16.msra.mxu0 0
        %5224 = vmatprep.subr.bf16.mxu0 0
        %5225 = vmatpush1.bf16.msra.mxu0 0
        %5226 = vmatprep.subr.bf16.mxu0 0
        %5227 = vmatpush1.bf16.msra.mxu0 0
        %5228 = vmatprep.subr.bf16.mxu0 0
        %5229 = vmatpush1.bf16.msra.mxu0 0
        %5230 = vmatprep.subr.bf16.mxu0 0
        %5231 = vmatpush1.bf16.msra.mxu0 0
        %5232 = vmatprep.subr.bf16.mxu0 0
        %5233 = vmatpush1.bf16.msra.mxu0 0
        %5234 = vmatprep.mubr.bf16.mxu0 0
        %5235 = vmatmul.mubr.bf16.gmra.mrb[0].mxu0 %v4649
        %v5236 = vpop.f32.mrb[0].mxu0
        %v5237 = vadd.f32 %v5076, %v5236
        %v5238 = vpop.f32.mrb[0].mxu0
        %v5239 = vpop.f32.mrb[0].mxu0
        %v5240 = vadd.f32 %v5079, %v5239
        %v5241 = vpop.f32.mrb[0].mxu0
        %5242 = vmatprep.mubr.bf16.mxu0 0
        %5243 = vmatmul.mubr.bf16.gmra.mrb[0].mxu0 %v4661
        %v5244 = vpop.f32.mrb[0].mxu0
        %v5245 = vadd.f32 %v5084, %v5244
        %v5246 = vpop.f32.mrb[0].mxu0
        %v5247 = vpop.f32.mrb[0].mxu0
        %v5248 = vadd.f32 %v5087, %v5247
        %v5249 = vpop.f32.mrb[0].mxu0
        %5250 = vmatprep.mubr.bf16.mxu0 0
        %5251 = vmatmul.mubr.bf16.gmra.mrb[0].mxu0 %v4673
        %v5252 = vpop.f32.mrb[0].mxu0
        %v5253 = vadd.f32 %v5092, %v5252
        %v5254 = vpop.f32.mrb[0].mxu0
        %v5255 = vpop.f32.mrb[0].mxu0
        %v5256 = vadd.f32 %v5095, %v5255
        %v5257 = vpop.f32.mrb[0].mxu0
        %5258 = vmatprep.mubr.bf16.mxu0 0
        %5259 = vmatmul.mubr.bf16.gmra.mrb[0].mxu0 %v4685
        %v5260 = vpop.f32.mrb[0].mxu0
        %v5261 = vadd.f32 %v5100, %v5260
        %v5262 = vpop.f32.mrb[0].mxu0
        %v5263 = vpop.f32.mrb[0].mxu0
        %v5264 = vadd.f32 %v5103, %v5263
        %v5265 = vpop.f32.mrb[0].mxu0
        %5266 = vmatprep.mubr.bf16.mxu0 0
        %5267 = vmatmul.mubr.bf16.gmra.mrb[0].mxu0 %v4697
        %v5268 = vpop.f32.mrb[0].mxu0
        %v5269 = vadd.f32 %v5108, %v5268
        %v5270 = vpop.f32.mrb[0].mxu0
        %v5271 = vpop.f32.mrb[0].mxu0
        %v5272 = vadd.f32 %v5111, %v5271
        %v5273 = vpop.f32.mrb[0].mxu0
        %5274 = vmatprep.mubr.bf16.mxu0 0
        %5275 = vmatmul.mubr.bf16.gmra.mrb[0].mxu0 %v4709
        %v5276 = vpop.f32.mrb[0].mxu0
        %v5277 = vadd.f32 %v5116, %v5276
        %v5278 = vpop.f32.mrb[0].mxu0
        %v5279 = vpop.f32.mrb[0].mxu0
        %v5280 = vadd.f32 %v5119, %v5279
        %v5281 = vpop.f32.mrb[0].mxu0
        %5282 = vmatprep.mubr.bf16.mxu0 0
        %5283 = vmatmul.mubr.bf16.gmra.mrb[0].mxu0 %v4721
        %v5284 = vpop.f32.mrb[0].mxu0
        %v5285 = vadd.f32 %v5124, %v5284
        %v5286 = vpop.f32.mrb[0].mxu0
        %v5287 = vpop.f32.mrb[0].mxu0
        %v5288 = vadd.f32 %v5127, %v5287
        %v5289 = vpop.f32.mrb[0].mxu0
        %5290 = vmatprep.mubr.bf16.mxu0 0
        %5291 = vmatmul.mubr.bf16.gmra.mrb[0].mxu0 %v4733
        %v5292 = vpop.f32.mrb[0].mxu0
        %v5293 = vadd.f32 %v5132, %v5292
        %v5294 = vpop.f32.mrb[0].mxu0
        %v5295 = vpop.f32.mrb[0].mxu0
        %v5296 = vadd.f32 %v5135, %v5295
        %v5297 = vpop.f32.mrb[0].mxu0
        %5298 = vmatprep.mubr.bf16.mxu0 0
        %5299 = vmatmul.mubr.bf16.gmra.mrb[0].mxu0 %v4745
        %v5300 = vpop.f32.mrb[0].mxu0
        %v5301 = vadd.f32 %v5140, %v5300
        %v5302 = vpop.f32.mrb[0].mxu0
        %v5303 = vpop.f32.mrb[0].mxu0
        %v5304 = vadd.f32 %v5143, %v5303
        %v5305 = vpop.f32.mrb[0].mxu0
        %5306 = vmatprep.mubr.bf16.mxu0 0
        %5307 = vmatmul.mubr.bf16.gmra.mrb[0].mxu0 %v4757
        %v5308 = vpop.f32.mrb[0].mxu0
        %v5309 = vadd.f32 %v5148, %v5308
        %v5310 = vpop.f32.mrb[0].mxu0
        %v5311 = vpop.f32.mrb[0].mxu0
        %v5312 = vadd.f32 %v5151, %v5311
        %v5313 = vpop.f32.mrb[0].mxu0
        %5314 = vmatprep.mubr.bf16.mxu0 0
        %5315 = vmatmul.mubr.bf16.gmra.mrb[0].mxu0 %v4769
        %v5316 = vpop.f32.mrb[0].mxu0
        %v5317 = vadd.f32 %v5156, %v5316
        %v5318 = vpop.f32.mrb[0].mxu0
        %v5319 = vpop.f32.mrb[0].mxu0
        %v5320 = vadd.f32 %v5159, %v5319
        %v5321 = vpop.f32.mrb[0].mxu0
        %5322 = vmatprep.mubr.bf16.mxu0 0
        %5323 = vmatmul.mubr.bf16.gmra.mrb[0].mxu0 %v4781
        %v5324 = vpop.f32.mrb[0].mxu0
        %v5325 = vadd.f32 %v5164, %v5324
        %v5326 = vpop.f32.mrb[0].mxu0
        %v5327 = vpop.f32.mrb[0].mxu0
        %v5328 = vadd.f32 %v5167, %v5327
        %v5329 = vpop.f32.mrb[0].mxu0
        %5330 = vmatprep.mubr.bf16.mxu0 0
        %5331 = vmatmul.mubr.bf16.gmra.mrb[0].mxu0 %v4793
        %v5332 = vpop.f32.mrb[0].mxu0
        %v5333 = vadd.f32 %v5172, %v5332
        %v5334 = vpop.f32.mrb[0].mxu0
        %v5335 = vpop.f32.mrb[0].mxu0
        %v5336 = vadd.f32 %v5175, %v5335
        %v5337 = vpop.f32.mrb[0].mxu0
        %5338 = vmatprep.mubr.bf16.mxu0 0
        %5339 = vmatmul.mubr.bf16.gmra.mrb[0].mxu0 %v4805
        %v5340 = vpop.f32.mrb[0].mxu0
        %v5341 = vadd.f32 %v5180, %v5340
        %v5342 = vpop.f32.mrb[0].mxu0
        %v5343 = vpop.f32.mrb[0].mxu0
        %v5344 = vadd.f32 %v5183, %v5343
        %v5345 = vpop.f32.mrb[0].mxu0
        %5346 = vmatprep.mubr.bf16.mxu0 0
        %5347 = vmatmul.mubr.bf16.gmra.mrb[0].mxu0 %v4817
        %v5348 = vpop.f32.mrb[0].mxu0
        %v5349 = vadd.f32 %v5188, %v5348
        %v5350 = vpop.f32.mrb[0].mxu0
        %v5351 = vpop.f32.mrb[0].mxu0
        %v5352 = vadd.f32 %v5191, %v5351
        %v5353 = vpop.f32.mrb[0].mxu0
        %5354 = vmatprep.mubr.bf16.mxu0 0
        %5355 = vmatmul.mubr.bf16.gmra.mrb[0].mxu0 %v4829
        %v5356 = vpop.f32.mrb[0].mxu0
        %v5357 = vadd.f32 %v5196, %v5356
        %v5358 = vpop.f32.mrb[0].mxu0
        %v5359 = vpop.f32.mrb[0].mxu0
        %v5360 = vadd.f32 %v5199, %v5359
        %v5361 = vpop.f32.mrb[0].mxu0
        %5362 = vdwg.mxu0
        %v5363 = vld [vmem:[#allocation2] sm:$0xff]
        %v5364 = vld [vmem:[#allocation2 + $0x8] sm:$0xff]
        %v5365 = vld [vmem:[#allocation2 + $0x10] sm:$0xff]
        %v5366 = vld [vmem:[#allocation2 + $0x18] sm:$0xff]
        %v5367 = vld [vmem:[#allocation2 + $0x20] sm:$0xff]
        %v5368 = vld [vmem:[#allocation2 + $0x28] sm:$0xff]
        %v5369 = vld [vmem:[#allocation2 + $0x30] sm:$0xff]
        %v5370 = vld [vmem:[#allocation2 + $0x38] sm:$0xff]
        %v5371 = vld [vmem:[#allocation2 + $0x40] sm:$0xff]
        %v5372 = vld [vmem:[#allocation2 + $0x48] sm:$0xff]
        %v5373 = vld [vmem:[#allocation2 + $0x50] sm:$0xff]
        %v5374 = vld [vmem:[#allocation2 + $0x58] sm:$0xff]
        %v5375 = vld [vmem:[#allocation2 + $0x60] sm:$0xff]
        %v5376 = vld [vmem:[#allocation2 + $0x68] sm:$0xff]
        %v5377 = vld [vmem:[#allocation2 + $0x70] sm:$0xff]
        %v5378 = vld [vmem:[#allocation2 + $0x78] sm:$0xff]
        %v5379 = vld [vmem:[#allocation2 + $0x80] sm:$0xff]
        %v5380 = vld [vmem:[#allocation2 + $0x88] sm:$0xff]
        %v5381 = vld [vmem:[#allocation2 + $0x90] sm:$0xff]
        %v5382 = vld [vmem:[#allocation2 + $0x98] sm:$0xff]
        %v5383 = vld [vmem:[#allocation2 + $0xa0] sm:$0xff]
        %v5384 = vld [vmem:[#allocation2 + $0xa8] sm:$0xff]
        %v5385 = vld [vmem:[#allocation2 + $0xb0] sm:$0xff]
        %v5386 = vld [vmem:[#allocation2 + $0xb8] sm:$0xff]
        %v5387 = vld [vmem:[#allocation2 + $0xc0] sm:$0xff]
        %v5388 = vld [vmem:[#allocation2 + $0xc8] sm:$0xff]
        %v5389 = vld [vmem:[#allocation2 + $0xd0] sm:$0xff]
        %v5390 = vld [vmem:[#allocation2 + $0xd8] sm:$0xff]
        %v5391 = vld [vmem:[#allocation2 + $0xe0] sm:$0xff]
        %v5392 = vld [vmem:[#allocation2 + $0xe8] sm:$0xff]
        %v5393 = vld [vmem:[#allocation2 + $0xf0] sm:$0xff]
        %v5394 = vld [vmem:[#allocation2 + $0xf8] sm:$0xff]
        %v5395 = vadd.f32 %v5363, %v5237
        %v5396 = vadd.f32 %v5364, %v5240
        %v5397 = vadd.f32 %v5365, %v5245
        %v5398 = vadd.f32 %v5366, %v5248
        %v5399 = vadd.f32 %v5367, %v5253
        %v5400 = vadd.f32 %v5368, %v5256
        %v5401 = vadd.f32 %v5369, %v5261
        %v5402 = vadd.f32 %v5370, %v5264
        %v5403 = vadd.f32 %v5371, %v5269
        %v5404 = vadd.f32 %v5372, %v5272
        %v5405 = vadd.f32 %v5373, %v5277
        %v5406 = vadd.f32 %v5374, %v5280
        %v5407 = vadd.f32 %v5375, %v5285
        %v5408 = vadd.f32 %v5376, %v5288
        %v5409 = vadd.f32 %v5377, %v5293
        %v5410 = vadd.f32 %v5378, %v5296
        %v5411 = vadd.f32 %v5379, %v5301
        %v5412 = vadd.f32 %v5380, %v5304
        %v5413 = vadd.f32 %v5381, %v5309
        %v5414 = vadd.f32 %v5382, %v5312
        %v5415 = vadd.f32 %v5383, %v5317
        %v5416 = vadd.f32 %v5384, %v5320
        %v5417 = vadd.f32 %v5385, %v5325
        %v5418 = vadd.f32 %v5386, %v5328
        %v5419 = vadd.f32 %v5387, %v5333
        %v5420 = vadd.f32 %v5388, %v5336
        %v5421 = vadd.f32 %v5389, %v5341
        %v5422 = vadd.f32 %v5390, %v5344
        %v5423 = vadd.f32 %v5391, %v5349
        %v5424 = vadd.f32 %v5392, %v5352
        %v5425 = vadd.f32 %v5393, %v5357
        %v5426 = vadd.f32 %v5394, %v5360
        %5427 = vst [vmem:[#allocation2] sm:$0xff] %v5395
        %5428 = vst [vmem:[#allocation2 + $0x8] sm:$0xff] %v5396
        %5429 = vst [vmem:[#allocation2 + $0x10] sm:$0xff] %v5397
        %5430 = vst [vmem:[#allocation2 + $0x18] sm:$0xff] %v5398
        %5431 = vst [vmem:[#allocation2 + $0x20] sm:$0xff] %v5399
        %5432 = vst [vmem:[#allocation2 + $0x28] sm:$0xff] %v5400
        %5433 = vst [vmem:[#allocation2 + $0x30] sm:$0xff] %v5401
        %5434 = vst [vmem:[#allocation2 + $0x38] sm:$0xff] %v5402
        %5435 = vst [vmem:[#allocation2 + $0x40] sm:$0xff] %v5403
        %5436 = vst [vmem:[#allocation2 + $0x48] sm:$0xff] %v5404
        %5437 = vst [vmem:[#allocation2 + $0x50] sm:$0xff] %v5405
        %5438 = vst [vmem:[#allocation2 + $0x58] sm:$0xff] %v5406
        %5439 = vst [vmem:[#allocation2 + $0x60] sm:$0xff] %v5407
        %5440 = vst [vmem:[#allocation2 + $0x68] sm:$0xff] %v5408
        %5441 = vst [vmem:[#allocation2 + $0x70] sm:$0xff] %v5409
        %5442 = vst [vmem:[#allocation2 + $0x78] sm:$0xff] %v5410
        %5443 = vst [vmem:[#allocation2 + $0x80] sm:$0xff] %v5411
        %5444 = vst [vmem:[#allocation2 + $0x88] sm:$0xff] %v5412
        %5445 = vst [vmem:[#allocation2 + $0x90] sm:$0xff] %v5413
        %5446 = vst [vmem:[#allocation2 + $0x98] sm:$0xff] %v5414
        %5447 = vst [vmem:[#allocation2 + $0xa0] sm:$0xff] %v5415
        %5448 = vst [vmem:[#allocation2 + $0xa8] sm:$0xff] %v5416
        %5449 = vst [vmem:[#allocation2 + $0xb0] sm:$0xff] %v5417
        %5450 = vst [vmem:[#allocation2 + $0xb8] sm:$0xff] %v5418
        %5451 = vst [vmem:[#allocation2 + $0xc0] sm:$0xff] %v5419
        %5452 = vst [vmem:[#allocation2 + $0xc8] sm:$0xff] %v5420
        %5453 = vst [vmem:[#allocation2 + $0xd0] sm:$0xff] %v5421
        %5454 = vst [vmem:[#allocation2 + $0xd8] sm:$0xff] %v5422
        %5455 = vst [vmem:[#allocation2 + $0xe0] sm:$0xff] %v5423
        %5456 = vst [vmem:[#allocation2 + $0xe8] sm:$0xff] %v5424
        %5457 = vst [vmem:[#allocation2 + $0xf0] sm:$0xff] %v5425
        %5458 = vst [vmem:[#allocation2 + $0xf8] sm:$0xff] %v5426
        %v5459 = vld [vmem:[#allocation3] sm:$0xe]
        %v5460 = vld [vmem:[#allocation3 + $0x4] sm:$0xf]
        %v5461 = vld [vmem:[#allocation3 + $0x8] sm:$0x1]
        %v5462 = vld [vmem:[#allocation3 + $0xc] sm:$0xe]
        %v5463 = vld [vmem:[#allocation3 + $0x10] sm:$0xf]
        %v5464 = vld [vmem:[#allocation3 + $0x14] sm:$0x1]
        %v5465 = vld [vmem:[#allocation3 + $0x18] sm:$0xe]
        %v5466 = vld [vmem:[#allocation3 + $0x1c] sm:$0xf]
        %v5467 = vld [vmem:[#allocation3 + $0x20] sm:$0x1]
        %v5468 = vld [vmem:[#allocation3 + $0x24] sm:$0xe]
        %v5469 = vld [vmem:[#allocation3 + $0x28] sm:$0xf]
        %v5470 = vld [vmem:[#allocation3 + $0x2c] sm:$0x1]
        %v5471 = vld [vmem:[#allocation3 + $0x30] sm:$0xe]
        %v5472 = vld [vmem:[#allocation3 + $0x34] sm:$0xf]
        %v5473 = vld [vmem:[#allocation3 + $0x38] sm:$0x1]
        %v5474 = vld [vmem:[#allocation3 + $0x3c] sm:$0xe]
        %v5475 = vld [vmem:[#allocation3 + $0x40] sm:$0xf]
        %v5476 = vld [vmem:[#allocation3 + $0x44] sm:$0x1]
        %v5477 = vld [vmem:[#allocation3 + $0x48] sm:$0xe]
        %v5478 = vld [vmem:[#allocation3 + $0x4c] sm:$0xf]
        %v5479 = vld [vmem:[#allocation3 + $0x50] sm:$0x1]
        %v5480 = vld [vmem:[#allocation3 + $0x54] sm:$0xe]
        %v5481 = vld [vmem:[#allocation3 + $0x58] sm:$0xf]
        %v5482 = vld [vmem:[#allocation3 + $0x5c] sm:$0x1]
        %v5483 = vld [vmem:[#allocation3 + $0x60] sm:$0xe]
        %v5484 = vld [vmem:[#allocation3 + $0x64] sm:$0xf]
        %v5485 = vld [vmem:[#allocation3 + $0x68] sm:$0x1]
        %v5486 = vld [vmem:[#allocation3 + $0x6c] sm:$0xe]
        %v5487 = vld [vmem:[#allocation3 + $0x70] sm:$0xf]
        %v5488 = vld [vmem:[#allocation3 + $0x74] sm:$0x1]
        %v5489 = vld [vmem:[#allocation3 + $0x78] sm:$0xe]
        %v5490 = vld [vmem:[#allocation3 + $0x7c] sm:$0xf]
        %v5491 = vld [vmem:[#allocation3 + $0x80] sm:$0x1]
        %v5492 = vld [vmem:[#allocation3 + $0x84] sm:$0xe]
        %v5493 = vld [vmem:[#allocation3 + $0x88] sm:$0xf]
        %v5494 = vld [vmem:[#allocation3 + $0x8c] sm:$0x1]
        %v5495 = vld [vmem:[#allocation3 + $0x90] sm:$0xe]
        %v5496 = vld [vmem:[#allocation3 + $0x94] sm:$0xf]
        %v5497 = vld [vmem:[#allocation3 + $0x98] sm:$0x1]
        %v5498 = vld [vmem:[#allocation3 + $0x9c] sm:$0xe]
        %v5499 = vld [vmem:[#allocation3 + $0xa0] sm:$0xf]
        %v5500 = vld [vmem:[#allocation3 + $0xa4] sm:$0x1]
        %v5501 = vld [vmem:[#allocation3 + $0xa8] sm:$0xe]
        %v5502 = vld [vmem:[#allocation3 + $0xac] sm:$0xf]
        %v5503 = vld [vmem:[#allocation3 + $0xb0] sm:$0x1]
        %v5504 = vld [vmem:[#allocation3 + $0xb4] sm:$0xe]
        %v5505 = vld [vmem:[#allocation3 + $0xb8] sm:$0xf]
        %v5506 = vld [vmem:[#allocation3 + $0xbc] sm:$0x1]
        %v5507 = vld [vmem:[#allocation3 + $0xc0] sm:$0xe]
        %v5508 = vld [vmem:[#allocation3 + $0xc4] sm:$0xf]
        %v5509 = vld [vmem:[#allocation3 + $0xc8] sm:$0x1]
        %v5510 = vld [vmem:[#allocation3 + $0xcc] sm:$0xe]
        %v5511 = vld [vmem:[#allocation3 + $0xd0] sm:$0xf]
        %v5512 = vld [vmem:[#allocation3 + $0xd4] sm:$0x1]
        %v5561 = vunpack.c.l.b16 %v5459
        %v5562 = vunpack.c.l.b16 %v5460
        %v5563 = vunpack.c.l.b16 %v5461
        %v5564 = vunpack.c.l.b16 %v5462
        %v5565 = vunpack.c.l.b16 %v5463
        %v5566 = vunpack.c.l.b16 %v5464
        %v5567 = vunpack.c.l.b16 %v5465
        %v5568 = vunpack.c.l.b16 %v5466
        %v5569 = vunpack.c.l.b16 %v5467
        %v5570 = vunpack.c.l.b16 %v5468
        %v5571 = vunpack.c.l.b16 %v5469
        %v5572 = vunpack.c.l.b16 %v5470
        %v5573 = vunpack.c.l.b16 %v5471
        %v5574 = vunpack.c.l.b16 %v5472
        %v5575 = vunpack.c.l.b16 %v5473
        %v5576 = vunpack.c.l.b16 %v5474
        %v5577 = vunpack.c.l.b16 %v5475
        %v5578 = vunpack.c.l.b16 %v5476
        %v5579 = vunpack.c.l.b16 %v5477
        %v5580 = vunpack.c.l.b16 %v5478
        %v5581 = vunpack.c.l.b16 %v5479
        %v5582 = vunpack.c.l.b16 %v5480
        %v5583 = vunpack.c.l.b16 %v5481
        %v5584 = vunpack.c.l.b16 %v5482
        %v5585 = vunpack.c.l.b16 %v5483
        %v5586 = vunpack.c.l.b16 %v5484
        %v5587 = vunpack.c.l.b16 %v5485
        %v5588 = vunpack.c.l.b16 %v5486
        %v5589 = vunpack.c.l.b16 %v5487
        %v5590 = vunpack.c.l.b16 %v5488
        %v5591 = vunpack.c.l.b16 %v5489
        %v5592 = vunpack.c.l.b16 %v5490
        %v5593 = vunpack.c.l.b16 %v5491
        %v5594 = vunpack.c.l.b16 %v5492
        %v5595 = vunpack.c.l.b16 %v5493
        %v5596 = vunpack.c.l.b16 %v5494
        %v5597 = vunpack.c.l.b16 %v5495
        %v5598 = vunpack.c.l.b16 %v5496
        %v5599 = vunpack.c.l.b16 %v5497
        %v5600 = vunpack.c.l.b16 %v5498
        %v5601 = vunpack.c.l.b16 %v5499
        %v5602 = vunpack.c.l.b16 %v5500
        %v5603 = vunpack.c.l.b16 %v5501
        %v5604 = vunpack.c.l.b16 %v5502
        %v5605 = vunpack.c.l.b16 %v5503
        %v5606 = vunpack.c.l.b16 %v5504
        %v5607 = vunpack.c.l.b16 %v5505
        %v5608 = vunpack.c.l.b16 %v5506
        %v5609 = vpack.c.b16 %v5562, %v5561
        %v5610 = vpack.c.b16 %v5563, %v5563
        %v5611 = vpack.c.b16 %v5565, %v5564
        %v5612 = vpack.c.b16 %v5566, %v5566
        %v5613 = vpack.c.b16 %v5568, %v5567
        %v5614 = vpack.c.b16 %v5569, %v5569
        %v5615 = vpack.c.b16 %v5571, %v5570
        %v5616 = vpack.c.b16 %v5572, %v5572
        %v5617 = vpack.c.b16 %v5574, %v5573
        %v5618 = vpack.c.b16 %v5575, %v5575
        %v5619 = vpack.c.b16 %v5577, %v5576
        %v5620 = vpack.c.b16 %v5578, %v5578
        %v5621 = vpack.c.b16 %v5580, %v5579
        %v5622 = vpack.c.b16 %v5581, %v5581
        %v5623 = vpack.c.b16 %v5583, %v5582
        %v5624 = vpack.c.b16 %v5584, %v5584
        %v5625 = vpack.c.b16 %v5586, %v5585
        %v5626 = vpack.c.b16 %v5587, %v5587
        %v5627 = vpack.c.b16 %v5589, %v5588
        %v5628 = vpack.c.b16 %v5590, %v5590
        %v5629 = vpack.c.b16 %v5592, %v5591
        %v5630 = vpack.c.b16 %v5593, %v5593
        %v5631 = vpack.c.b16 %v5595, %v5594
        %v5632 = vpack.c.b16 %v5596, %v5596
        %v5633 = vpack.c.b16 %v5598, %v5597
        %v5634 = vpack.c.b16 %v5599, %v5599
        %v5635 = vpack.c.b16 %v5601, %v5600
        %v5636 = vpack.c.b16 %v5602, %v5602
        %v5637 = vpack.c.b16 %v5604, %v5603
        %v5638 = vpack.c.b16 %v5605, %v5605
        %v5639 = vpack.c.b16 %v5607, %v5606
        %v5640 = vpack.c.b16 %v5608, %v5608
        %v5644 = vunpack.c.l.b16 %v5507
        %v5645 = vunpack.c.l.b16 %v5508
        %v5646 = vunpack.c.l.b16 %v5509
        %v5647 = vpack.c.b16 %v5645, %v5644
        %v5648 = vpack.c.b16 %v5646, %v5646
        %v5652 = vunpack.c.l.b16 %v5510
        %v5653 = vunpack.c.l.b16 %v5511
        %v5654 = vunpack.c.l.b16 %v5512
        %v5655 = vpack.c.b16 %v5653, %v5652
        %v5656 = vpack.c.b16 %v5654, %v5654
        %v5657 = vrot.slane %v5609, 1
        %v5658 = vrot.slane %v5610, 1
        %v5659 = vsel %vm2259, %v5657, %v5658
        %v5660 = vrot.slane %v5611, 1
        %v5661 = vrot.slane %v5612, 1
        %v5662 = vsel %vm2259, %v5660, %v5661
        %v5663 = vrot.slane %v5613, 1
        %v5664 = vrot.slane %v5614, 1
        %v5665 = vsel %vm2259, %v5663, %v5664
        %v5666 = vrot.slane %v5615, 1
        %v5667 = vrot.slane %v5616, 1
        %v5668 = vsel %vm2259, %v5666, %v5667
        %v5669 = vrot.slane %v5617, 1
        %v5670 = vrot.slane %v5618, 1
        %v5671 = vsel %vm2259, %v5669, %v5670
        %v5672 = vrot.slane %v5619, 1
        %v5673 = vrot.slane %v5620, 1
        %v5674 = vsel %vm2259, %v5672, %v5673
        %v5675 = vrot.slane %v5621, 1
        %v5676 = vrot.slane %v5622, 1
        %v5677 = vsel %vm2259, %v5675, %v5676
        %v5678 = vrot.slane %v5623, 1
        %v5679 = vrot.slane %v5624, 1
        %v5680 = vsel %vm2259, %v5678, %v5679
        %v5681 = vrot.slane %v5625, 1
        %v5682 = vrot.slane %v5626, 1
        %v5683 = vsel %vm2259, %v5681, %v5682
        %v5684 = vrot.slane %v5627, 1
        %v5685 = vrot.slane %v5628, 1
        %v5686 = vsel %vm2259, %v5684, %v5685
        %v5687 = vrot.slane %v5629, 1
        %v5688 = vrot.slane %v5630, 1
        %v5689 = vsel %vm2259, %v5687, %v5688
        %v5690 = vrot.slane %v5631, 1
        %v5691 = vrot.slane %v5632, 1
        %v5692 = vsel %vm2259, %v5690, %v5691
        %v5693 = vrot.slane %v5633, 1
        %v5694 = vrot.slane %v5634, 1
        %v5695 = vsel %vm2259, %v5693, %v5694
        %v5696 = vrot.slane %v5635, 1
        %v5697 = vrot.slane %v5636, 1
        %v5698 = vsel %vm2259, %v5696, %v5697
        %v5699 = vrot.slane %v5637, 1
        %v5700 = vrot.slane %v5638, 1
        %v5701 = vsel %vm2259, %v5699, %v5700
        %v5702 = vrot.slane %v5639, 1
        %v5703 = vrot.slane %v5640, 1
        %v5704 = vsel %vm2259, %v5702, %v5703
        %v5705 = vrot.slane %v5647, 1
        %v5706 = vrot.slane %v5648, 1
        %v5707 = vsel %vm2259, %v5705, %v5706
        %v5708 = vrot.slane %v5655, 1
        %v5709 = vrot.slane %v5656, 1
        %v5710 = vsel %vm2259, %v5708, %v5709
        %s5729 = scalar_lea.vmem [#allocation9], 384
        %v5730 = vld [vmem:[%s5729] sm:$0xf]
        %v5731 = vld [vmem:[%s5729 + $0x4] sm:$0xf]
        %v5732 = vld [vmem:[%s5729 + $0x8] sm:$0xf]
        %v5733 = vld [vmem:[%s5729 + $0xc] sm:$0xf]
        %v5734 = vld [vmem:[%s5729 + $0x10] sm:$0xf]
        %v5735 = vld [vmem:[%s5729 + $0x14] sm:$0xf]
        %v5736 = vld [vmem:[%s5729 + $0x18] sm:$0xf]
        %v5737 = vld [vmem:[%s5729 + $0x1c] sm:$0xf]
        %v5738 = vld [vmem:[%s5729 + $0x20] sm:$0xf]
        %v5739 = vld [vmem:[%s5729 + $0x24] sm:$0xf]
        %v5740 = vld [vmem:[%s5729 + $0x28] sm:$0xf]
        %v5741 = vld [vmem:[%s5729 + $0x2c] sm:$0xf]
        %v5742 = vld [vmem:[%s5729 + $0x30] sm:$0xf]
        %v5743 = vld [vmem:[%s5729 + $0x34] sm:$0xf]
        %v5744 = vld [vmem:[%s5729 + $0x38] sm:$0xf]
        %v5745 = vld [vmem:[%s5729 + $0x3c] sm:$0xf]
        %v5746 = vld [vmem:[%s5729 + $0x40] sm:$0xf]
        %v5747 = vld [vmem:[%s5729 + $0x44] sm:$0xf]
        %v5748 = vld [vmem:[%s5729 + $0x48] sm:$0xf]
        %v5749 = vld [vmem:[%s5729 + $0x4c] sm:$0xf]
        %v5750 = vld [vmem:[%s5729 + $0x50] sm:$0xf]
        %v5751 = vld [vmem:[%s5729 + $0x54] sm:$0xf]
        %v5752 = vld [vmem:[%s5729 + $0x58] sm:$0xf]
        %v5753 = vld [vmem:[%s5729 + $0x5c] sm:$0xf]
        %v5754 = vld [vmem:[%s5729 + $0x60] sm:$0xf]
        %v5755 = vld [vmem:[%s5729 + $0x64] sm:$0xf]
        %v5756 = vld [vmem:[%s5729 + $0x68] sm:$0xf]
        %v5757 = vld [vmem:[%s5729 + $0x6c] sm:$0xf]
        %v5758 = vld [vmem:[%s5729 + $0x70] sm:$0xf]
        %v5759 = vld [vmem:[%s5729 + $0x74] sm:$0xf]
        %v5760 = vld [vmem:[%s5729 + $0x78] sm:$0xf]
        %v5761 = vld [vmem:[%s5729 + $0x7c] sm:$0xf]
        %v5762 = vld [vmem:[%s5729 + $0x80] sm:$0xf]
        %v5763 = vld [vmem:[%s5729 + $0x84] sm:$0xf]
        %v5764 = vld [vmem:[%s5729 + $0x88] sm:$0xf]
        %v5765 = vld [vmem:[%s5729 + $0x8c] sm:$0xf]
        %v5766 = vld [vmem:[%s5729 + $0x90] sm:$0xf]
        %v5767 = vld [vmem:[%s5729 + $0x94] sm:$0xf]
        %v5768 = vld [vmem:[%s5729 + $0x98] sm:$0xf]
        %v5769 = vld [vmem:[%s5729 + $0x9c] sm:$0xf]
        %v5770 = vld [vmem:[%s5729 + $0xa0] sm:$0xf]
        %v5771 = vld [vmem:[%s5729 + $0xa4] sm:$0xf]
        %v5772 = vld [vmem:[%s5729 + $0xa8] sm:$0xf]
        %v5773 = vld [vmem:[%s5729 + $0xac] sm:$0xf]
        %v5774 = vld [vmem:[%s5729 + $0xb0] sm:$0xf]
        %v5775 = vld [vmem:[%s5729 + $0xb4] sm:$0xf]
        %v5776 = vld [vmem:[%s5729 + $0xb8] sm:$0xf]
        %v5777 = vld [vmem:[%s5729 + $0xbc] sm:$0xf]
        %v5826 = vunpack.c.l.b16 %v5730
        %v5827 = vunpack.c.l.b16 %v5731
        %v5828 = vunpack.c.l.b16 %v5732
        %v5829 = vunpack.c.l.b16 %v5733
        %v5830 = vunpack.c.l.b16 %v5734
        %v5831 = vunpack.c.l.b16 %v5735
        %v5832 = vunpack.c.l.b16 %v5736
        %v5833 = vunpack.c.l.b16 %v5737
        %v5834 = vunpack.c.l.b16 %v5738
        %v5835 = vunpack.c.l.b16 %v5739
        %v5836 = vunpack.c.l.b16 %v5740
        %v5837 = vunpack.c.l.b16 %v5741
        %v5838 = vunpack.c.l.b16 %v5742
        %v5839 = vunpack.c.l.b16 %v5743
        %v5840 = vunpack.c.l.b16 %v5744
        %v5841 = vunpack.c.l.b16 %v5745
        %v5842 = vunpack.c.l.b16 %v5746
        %v5843 = vunpack.c.l.b16 %v5747
        %v5844 = vunpack.c.l.b16 %v5748
        %v5845 = vunpack.c.l.b16 %v5749
        %v5846 = vunpack.c.l.b16 %v5750
        %v5847 = vunpack.c.l.b16 %v5751
        %v5848 = vunpack.c.l.b16 %v5752
        %v5849 = vunpack.c.l.b16 %v5753
        %v5850 = vunpack.c.l.b16 %v5754
        %v5851 = vunpack.c.l.b16 %v5755
        %v5852 = vunpack.c.l.b16 %v5756
        %v5853 = vunpack.c.l.b16 %v5757
        %v5854 = vunpack.c.l.b16 %v5758
        %v5855 = vunpack.c.l.b16 %v5759
        %v5856 = vunpack.c.l.b16 %v5760
        %v5857 = vunpack.c.l.b16 %v5761
        %v5858 = vunpack.c.l.b16 %v5762
        %v5859 = vunpack.c.l.b16 %v5763
        %v5860 = vunpack.c.l.b16 %v5764
        %v5861 = vunpack.c.l.b16 %v5765
        %v5862 = vunpack.c.l.b16 %v5766
        %v5863 = vunpack.c.l.b16 %v5767
        %v5864 = vunpack.c.l.b16 %v5768
        %v5865 = vunpack.c.l.b16 %v5769
        %v5866 = vunpack.c.l.b16 %v5770
        %v5867 = vunpack.c.l.b16 %v5771
        %v5868 = vunpack.c.l.b16 %v5772
        %v5869 = vunpack.c.l.b16 %v5773
        %v5870 = vunpack.c.l.b16 %v5774
        %v5871 = vunpack.c.l.b16 %v5775
        %v5872 = vunpack.c.l.b16 %v5776
        %v5873 = vunpack.c.l.b16 %v5777
        %v5874 = vpack.c.b16 %v5827, %v5826
        %v5875 = vpack.c.b16 %v5829, %v5828
        %v5876 = vpack.c.b16 %v5831, %v5830
        %v5877 = vpack.c.b16 %v5833, %v5832
        %v5878 = vpack.c.b16 %v5835, %v5834
        %v5879 = vpack.c.b16 %v5837, %v5836
        %v5880 = vpack.c.b16 %v5839, %v5838
        %v5881 = vpack.c.b16 %v5841, %v5840
        %v5882 = vpack.c.b16 %v5843, %v5842
        %v5883 = vpack.c.b16 %v5845, %v5844
        %v5884 = vpack.c.b16 %v5847, %v5846
        %v5885 = vpack.c.b16 %v5849, %v5848
        %v5886 = vpack.c.b16 %v5851, %v5850
        %v5887 = vpack.c.b16 %v5853, %v5852
        %v5888 = vpack.c.b16 %v5855, %v5854
        %v5889 = vpack.c.b16 %v5857, %v5856
        %v5890 = vpack.c.b16 %v5859, %v5858
        %v5891 = vpack.c.b16 %v5861, %v5860
        %v5892 = vpack.c.b16 %v5863, %v5862
        %v5893 = vpack.c.b16 %v5865, %v5864
        %v5894 = vpack.c.b16 %v5867, %v5866
        %v5895 = vpack.c.b16 %v5869, %v5868
        %v5896 = vpack.c.b16 %v5871, %v5870
        %v5897 = vpack.c.b16 %v5873, %v5872
        %5922 = vmatprep.subr.bf16.mxu0 0
        %5923 = vmatpush1.bf16.msra.mxu0 %v5874
        %5924 = vmatprep.subr.bf16.mxu0 0
        %5925 = vmatpush1.bf16.msra.mxu0 %v5875
        %5926 = vmatprep.subr.bf16.mxu0 0
        %5927 = vmatpush1.bf16.msra.mxu0 %v5876
        %5928 = vmatprep.subr.bf16.mxu0 0
        %5929 = vmatpush1.bf16.msra.mxu0 %v5877
        %5930 = vmatprep.subr.bf16.mxu0 0
        %5931 = vmatpush1.bf16.msra.mxu0 %v5878
        %5932 = vmatprep.subr.bf16.mxu0 0
        %5933 = vmatpush1.bf16.msra.mxu0 %v5879
        %5934 = vmatprep.subr.bf16.mxu0 0
        %5935 = vmatpush1.bf16.msra.mxu0 %v5880
        %5936 = vmatprep.subr.bf16.mxu0 0
        %5937 = vmatpush1.bf16.msra.mxu0 %v5881
        %5938 = vmatprep.subr.bf16.mxu0 0
        %5939 = vmatpush1.bf16.msra.mxu0 %v5882
        %5940 = vmatprep.subr.bf16.mxu0 0
        %5941 = vmatpush1.bf16.msra.mxu0 %v5883
        %5942 = vmatprep.subr.bf16.mxu0 0
        %5943 = vmatpush1.bf16.msra.mxu0 %v5884
        %5944 = vmatprep.subr.bf16.mxu0 0
        %5945 = vmatpush1.bf16.msra.mxu0 %v5885
        %5946 = vmatprep.subr.bf16.mxu0 0
        %5947 = vmatpush1.bf16.msra.mxu0 %v5886
        %5948 = vmatprep.subr.bf16.mxu0 0
        %5949 = vmatpush1.bf16.msra.mxu0 %v5887
        %5950 = vmatprep.subr.bf16.mxu0 0
        %5951 = vmatpush1.bf16.msra.mxu0 %v5888
        %5952 = vmatprep.subr.bf16.mxu0 0
        %5953 = vmatpush1.bf16.msra.mxu0 %v5889
        %5954 = vmatprep.mubr.bf16.mxu0 %v5662
        %5955 = vmatmul.mubr.bf16.gmra.mrb[0].mxu0 %v5659
        %v5956 = vpop.f32.mrb[0].mxu0
        %v5957 = vadd.f32 0.0, %v5956
        %v5958 = vpop.f32.mrb[0].mxu0
        %v5959 = vpop.f32.mrb[0].mxu0
        %v5960 = vadd.f32 0.0, %v5959
        %v5961 = vpop.f32.mrb[0].mxu0
        %5962 = vmatprep.mubr.bf16.mxu0 %v5665
        %5963 = vmatmul.mubr.bf16.gmra.mrb[0].mxu0 %v5662
        %v5964 = vpop.f32.mrb[0].mxu0
        %v5965 = vadd.f32 0.0, %v5964
        %v5966 = vpop.f32.mrb[0].mxu0
        %v5967 = vpop.f32.mrb[0].mxu0
        %v5968 = vadd.f32 0.0, %v5967
        %v5969 = vpop.f32.mrb[0].mxu0
        %5970 = vmatprep.mubr.bf16.mxu0 %v5668
        %5971 = vmatmul.mubr.bf16.gmra.mrb[0].mxu0 %v5665
        %v5972 = vpop.f32.mrb[0].mxu0
        %v5973 = vadd.f32 0.0, %v5972
        %v5974 = vpop.f32.mrb[0].mxu0
        %v5975 = vpop.f32.mrb[0].mxu0
        %v5976 = vadd.f32 0.0, %v5975
        %v5977 = vpop.f32.mrb[0].mxu0
        %5978 = vmatprep.mubr.bf16.mxu0 %v5671
        %5979 = vmatmul.mubr.bf16.gmra.mrb[0].mxu0 %v5668
        %v5980 = vpop.f32.mrb[0].mxu0
        %v5981 = vadd.f32 0.0, %v5980
        %v5982 = vpop.f32.mrb[0].mxu0
        %v5983 = vpop.f32.mrb[0].mxu0
        %v5984 = vadd.f32 0.0, %v5983
        %v5985 = vpop.f32.mrb[0].mxu0
        %5986 = vmatprep.mubr.bf16.mxu0 %v5674
        %5987 = vmatmul.mubr.bf16.gmra.mrb[0].mxu0 %v5671
        %v5988 = vpop.f32.mrb[0].mxu0
        %v5989 = vadd.f32 0.0, %v5988
        %v5990 = vpop.f32.mrb[0].mxu0
        %v5991 = vpop.f32.mrb[0].mxu0
        %v5992 = vadd.f32 0.0, %v5991
        %v5993 = vpop.f32.mrb[0].mxu0
        %5994 = vmatprep.mubr.bf16.mxu0 %v5677
        %5995 = vmatmul.mubr.bf16.gmra.mrb[0].mxu0 %v5674
        %v5996 = vpop.f32.mrb[0].mxu0
        %v5997 = vadd.f32 0.0, %v5996
        %v5998 = vpop.f32.mrb[0].mxu0
        %v5999 = vpop.f32.mrb[0].mxu0
        %v6000 = vadd.f32 0.0, %v5999
        %v6001 = vpop.f32.mrb[0].mxu0
        %6002 = vmatprep.mubr.bf16.mxu0 %v5680
        %6003 = vmatmul.mubr.bf16.gmra.mrb[0].mxu0 %v5677
        %v6004 = vpop.f32.mrb[0].mxu0
        %v6005 = vadd.f32 0.0, %v6004
        %v6006 = vpop.f32.mrb[0].mxu0
        %v6007 = vpop.f32.mrb[0].mxu0
        %v6008 = vadd.f32 0.0, %v6007
        %v6009 = vpop.f32.mrb[0].mxu0
        %6010 = vmatprep.mubr.bf16.mxu0 %v5683
        %6011 = vmatmul.mubr.bf16.gmra.mrb[0].mxu0 %v5680
        %v6012 = vpop.f32.mrb[0].mxu0
        %v6013 = vadd.f32 0.0, %v6012
        %v6014 = vpop.f32.mrb[0].mxu0
        %v6015 = vpop.f32.mrb[0].mxu0
        %v6016 = vadd.f32 0.0, %v6015
        %v6017 = vpop.f32.mrb[0].mxu0
        %6018 = vmatprep.mubr.bf16.mxu0 %v5686
        %6019 = vmatmul.mubr.bf16.gmra.mrb[0].mxu0 %v5683
        %v6020 = vpop.f32.mrb[0].mxu0
        %v6021 = vadd.f32 0.0, %v6020
        %v6022 = vpop.f32.mrb[0].mxu0
        %v6023 = vpop.f32.mrb[0].mxu0
        %v6024 = vadd.f32 0.0, %v6023
        %v6025 = vpop.f32.mrb[0].mxu0
        %6026 = vmatprep.mubr.bf16.mxu0 %v5689
        %6027 = vmatmul.mubr.bf16.gmra.mrb[0].mxu0 %v5686
        %v6028 = vpop.f32.mrb[0].mxu0
        %v6029 = vadd.f32 0.0, %v6028
        %v6030 = vpop.f32.mrb[0].mxu0
        %v6031 = vpop.f32.mrb[0].mxu0
        %v6032 = vadd.f32 0.0, %v6031
        %v6033 = vpop.f32.mrb[0].mxu0
        %6034 = vmatprep.mubr.bf16.mxu0 %v5692
        %6035 = vmatmul.mubr.bf16.gmra.mrb[0].mxu0 %v5689
        %v6036 = vpop.f32.mrb[0].mxu0
        %v6037 = vadd.f32 0.0, %v6036
        %v6038 = vpop.f32.mrb[0].mxu0
        %v6039 = vpop.f32.mrb[0].mxu0
        %v6040 = vadd.f32 0.0, %v6039
        %v6041 = vpop.f32.mrb[0].mxu0
        %6042 = vmatprep.mubr.bf16.mxu0 %v5695
        %6043 = vmatmul.mubr.bf16.gmra.mrb[0].mxu0 %v5692
        %v6044 = vpop.f32.mrb[0].mxu0
        %v6045 = vadd.f32 0.0, %v6044
        %v6046 = vpop.f32.mrb[0].mxu0
        %v6047 = vpop.f32.mrb[0].mxu0
        %v6048 = vadd.f32 0.0, %v6047
        %v6049 = vpop.f32.mrb[0].mxu0
        %6050 = vmatprep.mubr.bf16.mxu0 %v5698
        %6051 = vmatmul.mubr.bf16.gmra.mrb[0].mxu0 %v5695
        %v6052 = vpop.f32.mrb[0].mxu0
        %v6053 = vadd.f32 0.0, %v6052
        %v6054 = vpop.f32.mrb[0].mxu0
        %v6055 = vpop.f32.mrb[0].mxu0
        %v6056 = vadd.f32 0.0, %v6055
        %v6057 = vpop.f32.mrb[0].mxu0
        %6058 = vmatprep.mubr.bf16.mxu0 %v5701
        %6059 = vmatmul.mubr.bf16.gmra.mrb[0].mxu0 %v5698
        %v6060 = vpop.f32.mrb[0].mxu0
        %v6061 = vadd.f32 0.0, %v6060
        %v6062 = vpop.f32.mrb[0].mxu0
        %v6063 = vpop.f32.mrb[0].mxu0
        %v6064 = vadd.f32 0.0, %v6063
        %v6065 = vpop.f32.mrb[0].mxu0
        %6066 = vmatprep.mubr.bf16.mxu0 %v5704
        %6067 = vmatmul.mubr.bf16.gmra.mrb[0].mxu0 %v5701
        %v6068 = vpop.f32.mrb[0].mxu0
        %v6069 = vadd.f32 0.0, %v6068
        %v6070 = vpop.f32.mrb[0].mxu0
        %v6071 = vpop.f32.mrb[0].mxu0
        %v6072 = vadd.f32 0.0, %v6071
        %v6073 = vpop.f32.mrb[0].mxu0
        %6074 = vmatprep.mubr.bf16.mxu0 %v5707
        %6075 = vmatmul.mubr.bf16.gmra.mrb[0].mxu0 %v5704
        %v6076 = vpop.f32.mrb[0].mxu0
        %v6077 = vadd.f32 0.0, %v6076
        %v6078 = vpop.f32.mrb[0].mxu0
        %v6079 = vpop.f32.mrb[0].mxu0
        %v6080 = vadd.f32 0.0, %v6079
        %v6081 = vpop.f32.mrb[0].mxu0
        %6082 = vdwg.mxu0
        %6083 = vmatprep.subr.bf16.mxu0 0
        %6084 = vmatpush1.bf16.msra.mxu0 %v5890
        %6085 = vmatprep.subr.bf16.mxu0 0
        %6086 = vmatpush1.bf16.msra.mxu0 %v5891
        %6087 = vmatprep.subr.bf16.mxu0 0
        %6088 = vmatpush1.bf16.msra.mxu0 %v5892
        %6089 = vmatprep.subr.bf16.mxu0 0
        %6090 = vmatpush1.bf16.msra.mxu0 %v5893
        %6091 = vmatprep.subr.bf16.mxu0 0
        %6092 = vmatpush1.bf16.msra.mxu0 %v5894
        %6093 = vmatprep.subr.bf16.mxu0 0
        %6094 = vmatpush1.bf16.msra.mxu0 %v5895
        %6095 = vmatprep.subr.bf16.mxu0 0
        %6096 = vmatpush1.bf16.msra.mxu0 %v5896
        %6097 = vmatprep.subr.bf16.mxu0 0
        %6098 = vmatpush1.bf16.msra.mxu0 %v5897
        %6099 = vmatprep.subr.bf16.mxu0 0
        %6100 = vmatpush1.bf16.msra.mxu0 0
        %6101 = vmatprep.subr.bf16.mxu0 0
        %6102 = vmatpush1.bf16.msra.mxu0 0
        %6103 = vmatprep.subr.bf16.mxu0 0
        %6104 = vmatpush1.bf16.msra.mxu0 0
        %6105 = vmatprep.subr.bf16.mxu0 0
        %6106 = vmatpush1.bf16.msra.mxu0 0
        %6107 = vmatprep.subr.bf16.mxu0 0
        %6108 = vmatpush1.bf16.msra.mxu0 0
        %6109 = vmatprep.subr.bf16.mxu0 0
        %6110 = vmatpush1.bf16.msra.mxu0 0
        %6111 = vmatprep.subr.bf16.mxu0 0
        %6112 = vmatpush1.bf16.msra.mxu0 0
        %6113 = vmatprep.subr.bf16.mxu0 0
        %6114 = vmatpush1.bf16.msra.mxu0 0
        %6115 = vmatprep.mubr.bf16.mxu0 0
        %6116 = vmatmul.mubr.bf16.gmra.mrb[0].mxu0 %v5665
        %v6117 = vpop.f32.mrb[0].mxu0
        %v6118 = vadd.f32 %v5957, %v6117
        %v6119 = vpop.f32.mrb[0].mxu0
        %v6120 = vpop.f32.mrb[0].mxu0
        %v6121 = vadd.f32 %v5960, %v6120
        %v6122 = vpop.f32.mrb[0].mxu0
        %6123 = vmatprep.mubr.bf16.mxu0 0
        %6124 = vmatmul.mubr.bf16.gmra.mrb[0].mxu0 %v5668
        %v6125 = vpop.f32.mrb[0].mxu0
        %v6126 = vadd.f32 %v5965, %v6125
        %v6127 = vpop.f32.mrb[0].mxu0
        %v6128 = vpop.f32.mrb[0].mxu0
        %v6129 = vadd.f32 %v5968, %v6128
        %v6130 = vpop.f32.mrb[0].mxu0
        %6131 = vmatprep.mubr.bf16.mxu0 0
        %6132 = vmatmul.mubr.bf16.gmra.mrb[0].mxu0 %v5671
        %v6133 = vpop.f32.mrb[0].mxu0
        %v6134 = vadd.f32 %v5973, %v6133
        %v6135 = vpop.f32.mrb[0].mxu0
        %v6136 = vpop.f32.mrb[0].mxu0
        %v6137 = vadd.f32 %v5976, %v6136
        %v6138 = vpop.f32.mrb[0].mxu0
        %6139 = vmatprep.mubr.bf16.mxu0 0
        %6140 = vmatmul.mubr.bf16.gmra.mrb[0].mxu0 %v5674
        %v6141 = vpop.f32.mrb[0].mxu0
        %v6142 = vadd.f32 %v5981, %v6141
        %v6143 = vpop.f32.mrb[0].mxu0
        %v6144 = vpop.f32.mrb[0].mxu0
        %v6145 = vadd.f32 %v5984, %v6144
        %v6146 = vpop.f32.mrb[0].mxu0
        %6147 = vmatprep.mubr.bf16.mxu0 0
        %6148 = vmatmul.mubr.bf16.gmra.mrb[0].mxu0 %v5677
        %v6149 = vpop.f32.mrb[0].mxu0
        %v6150 = vadd.f32 %v5989, %v6149
        %v6151 = vpop.f32.mrb[0].mxu0
        %v6152 = vpop.f32.mrb[0].mxu0
        %v6153 = vadd.f32 %v5992, %v6152
        %v6154 = vpop.f32.mrb[0].mxu0
        %6155 = vmatprep.mubr.bf16.mxu0 0
        %6156 = vmatmul.mubr.bf16.gmra.mrb[0].mxu0 %v5680
        %v6157 = vpop.f32.mrb[0].mxu0
        %v6158 = vadd.f32 %v5997, %v6157
        %v6159 = vpop.f32.mrb[0].mxu0
        %v6160 = vpop.f32.mrb[0].mxu0
        %v6161 = vadd.f32 %v6000, %v6160
        %v6162 = vpop.f32.mrb[0].mxu0
        %6163 = vmatprep.mubr.bf16.mxu0 0
        %6164 = vmatmul.mubr.bf16.gmra.mrb[0].mxu0 %v5683
        %v6165 = vpop.f32.mrb[0].mxu0
        %v6166 = vadd.f32 %v6005, %v6165
        %v6167 = vpop.f32.mrb[0].mxu0
        %v6168 = vpop.f32.mrb[0].mxu0
        %v6169 = vadd.f32 %v6008, %v6168
        %v6170 = vpop.f32.mrb[0].mxu0
        %6171 = vmatprep.mubr.bf16.mxu0 0
        %6172 = vmatmul.mubr.bf16.gmra.mrb[0].mxu0 %v5686
        %v6173 = vpop.f32.mrb[0].mxu0
        %v6174 = vadd.f32 %v6013, %v6173
        %v6175 = vpop.f32.mrb[0].mxu0
        %v6176 = vpop.f32.mrb[0].mxu0
        %v6177 = vadd.f32 %v6016, %v6176
        %v6178 = vpop.f32.mrb[0].mxu0
        %6179 = vmatprep.mubr.bf16.mxu0 0
        %6180 = vmatmul.mubr.bf16.gmra.mrb[0].mxu0 %v5689
        %v6181 = vpop.f32.mrb[0].mxu0
        %v6182 = vadd.f32 %v6021, %v6181
        %v6183 = vpop.f32.mrb[0].mxu0
        %v6184 = vpop.f32.mrb[0].mxu0
        %v6185 = vadd.f32 %v6024, %v6184
        %v6186 = vpop.f32.mrb[0].mxu0
        %6187 = vmatprep.mubr.bf16.mxu0 0
        %6188 = vmatmul.mubr.bf16.gmra.mrb[0].mxu0 %v5692
        %v6189 = vpop.f32.mrb[0].mxu0
        %v6190 = vadd.f32 %v6029, %v6189
        %v6191 = vpop.f32.mrb[0].mxu0
        %v6192 = vpop.f32.mrb[0].mxu0
        %v6193 = vadd.f32 %v6032, %v6192
        %v6194 = vpop.f32.mrb[0].mxu0
        %6195 = vmatprep.mubr.bf16.mxu0 0
        %6196 = vmatmul.mubr.bf16.gmra.mrb[0].mxu0 %v5695
        %v6197 = vpop.f32.mrb[0].mxu0
        %v6198 = vadd.f32 %v6037, %v6197
        %v6199 = vpop.f32.mrb[0].mxu0
        %v6200 = vpop.f32.mrb[0].mxu0
        %v6201 = vadd.f32 %v6040, %v6200
        %v6202 = vpop.f32.mrb[0].mxu0
        %6203 = vmatprep.mubr.bf16.mxu0 0
        %6204 = vmatmul.mubr.bf16.gmra.mrb[0].mxu0 %v5698
        %v6205 = vpop.f32.mrb[0].mxu0
        %v6206 = vadd.f32 %v6045, %v6205
        %v6207 = vpop.f32.mrb[0].mxu0
        %v6208 = vpop.f32.mrb[0].mxu0
        %v6209 = vadd.f32 %v6048, %v6208
        %v6210 = vpop.f32.mrb[0].mxu0
        %6211 = vmatprep.mubr.bf16.mxu0 0
        %6212 = vmatmul.mubr.bf16.gmra.mrb[0].mxu0 %v5701
        %v6213 = vpop.f32.mrb[0].mxu0
        %v6214 = vadd.f32 %v6053, %v6213
        %v6215 = vpop.f32.mrb[0].mxu0
        %v6216 = vpop.f32.mrb[0].mxu0
        %v6217 = vadd.f32 %v6056, %v6216
        %v6218 = vpop.f32.mrb[0].mxu0
        %6219 = vmatprep.mubr.bf16.mxu0 0
        %6220 = vmatmul.mubr.bf16.gmra.mrb[0].mxu0 %v5704
        %v6221 = vpop.f32.mrb[0].mxu0
        %v6222 = vadd.f32 %v6061, %v6221
        %v6223 = vpop.f32.mrb[0].mxu0
        %v6224 = vpop.f32.mrb[0].mxu0
        %v6225 = vadd.f32 %v6064, %v6224
        %v6226 = vpop.f32.mrb[0].mxu0
        %6227 = vmatprep.mubr.bf16.mxu0 0
        %6228 = vmatmul.mubr.bf16.gmra.mrb[0].mxu0 %v5707
        %v6229 = vpop.f32.mrb[0].mxu0
        %v6230 = vadd.f32 %v6069, %v6229
        %v6231 = vpop.f32.mrb[0].mxu0
        %v6232 = vpop.f32.mrb[0].mxu0
        %v6233 = vadd.f32 %v6072, %v6232
        %v6234 = vpop.f32.mrb[0].mxu0
        %6235 = vmatprep.mubr.bf16.mxu0 0
        %6236 = vmatmul.mubr.bf16.gmra.mrb[0].mxu0 %v5710
        %v6237 = vpop.f32.mrb[0].mxu0
        %v6238 = vadd.f32 %v6077, %v6237
        %v6239 = vpop.f32.mrb[0].mxu0
        %v6240 = vpop.f32.mrb[0].mxu0
        %v6241 = vadd.f32 %v6080, %v6240
        %v6242 = vpop.f32.mrb[0].mxu0
        %6243 = vdwg.mxu0
        %v6244 = vld [vmem:[#allocation2] sm:$0xff]
        %v6245 = vld [vmem:[#allocation2 + $0x8] sm:$0xff]
        %v6246 = vld [vmem:[#allocation2 + $0x10] sm:$0xff]
        %v6247 = vld [vmem:[#allocation2 + $0x18] sm:$0xff]
        %v6248 = vld [vmem:[#allocation2 + $0x20] sm:$0xff]
        %v6249 = vld [vmem:[#allocation2 + $0x28] sm:$0xff]
        %v6250 = vld [vmem:[#allocation2 + $0x30] sm:$0xff]
        %v6251 = vld [vmem:[#allocation2 + $0x38] sm:$0xff]
        %v6252 = vld [vmem:[#allocation2 + $0x40] sm:$0xff]
        %v6253 = vld [vmem:[#allocation2 + $0x48] sm:$0xff]
        %v6254 = vld [vmem:[#allocation2 + $0x50] sm:$0xff]
        %v6255 = vld [vmem:[#allocation2 + $0x58] sm:$0xff]
        %v6256 = vld [vmem:[#allocation2 + $0x60] sm:$0xff]
        %v6257 = vld [vmem:[#allocation2 + $0x68] sm:$0xff]
        %v6258 = vld [vmem:[#allocation2 + $0x70] sm:$0xff]
        %v6259 = vld [vmem:[#allocation2 + $0x78] sm:$0xff]
        %v6260 = vld [vmem:[#allocation2 + $0x80] sm:$0xff]
        %v6261 = vld [vmem:[#allocation2 + $0x88] sm:$0xff]
        %v6262 = vld [vmem:[#allocation2 + $0x90] sm:$0xff]
        %v6263 = vld [vmem:[#allocation2 + $0x98] sm:$0xff]
        %v6264 = vld [vmem:[#allocation2 + $0xa0] sm:$0xff]
        %v6265 = vld [vmem:[#allocation2 + $0xa8] sm:$0xff]
        %v6266 = vld [vmem:[#allocation2 + $0xb0] sm:$0xff]
        %v6267 = vld [vmem:[#allocation2 + $0xb8] sm:$0xff]
        %v6268 = vld [vmem:[#allocation2 + $0xc0] sm:$0xff]
        %v6269 = vld [vmem:[#allocation2 + $0xc8] sm:$0xff]
        %v6270 = vld [vmem:[#allocation2 + $0xd0] sm:$0xff]
        %v6271 = vld [vmem:[#allocation2 + $0xd8] sm:$0xff]
        %v6272 = vld [vmem:[#allocation2 + $0xe0] sm:$0xff]
        %v6273 = vld [vmem:[#allocation2 + $0xe8] sm:$0xff]
        %v6274 = vld [vmem:[#allocation2 + $0xf0] sm:$0xff]
        %v6275 = vld [vmem:[#allocation2 + $0xf8] sm:$0xff]
        %v6276 = vadd.f32 %v6244, %v6118
        %v6277 = vadd.f32 %v6245, %v6121
        %v6278 = vadd.f32 %v6246, %v6126
        %v6279 = vadd.f32 %v6247, %v6129
        %v6280 = vadd.f32 %v6248, %v6134
        %v6281 = vadd.f32 %v6249, %v6137
        %v6282 = vadd.f32 %v6250, %v6142
        %v6283 = vadd.f32 %v6251, %v6145
        %v6284 = vadd.f32 %v6252, %v6150
        %v6285 = vadd.f32 %v6253, %v6153
        %v6286 = vadd.f32 %v6254, %v6158
        %v6287 = vadd.f32 %v6255, %v6161
        %v6288 = vadd.f32 %v6256, %v6166
        %v6289 = vadd.f32 %v6257, %v6169
        %v6290 = vadd.f32 %v6258, %v6174
        %v6291 = vadd.f32 %v6259, %v6177
        %v6292 = vadd.f32 %v6260, %v6182
        %v6293 = vadd.f32 %v6261, %v6185
        %v6294 = vadd.f32 %v6262, %v6190
        %v6295 = vadd.f32 %v6263, %v6193
        %v6296 = vadd.f32 %v6264, %v6198
        %v6297 = vadd.f32 %v6265, %v6201
        %v6298 = vadd.f32 %v6266, %v6206
        %v6299 = vadd.f32 %v6267, %v6209
        %v6300 = vadd.f32 %v6268, %v6214
        %v6301 = vadd.f32 %v6269, %v6217
        %v6302 = vadd.f32 %v6270, %v6222
        %v6303 = vadd.f32 %v6271, %v6225
        %v6304 = vadd.f32 %v6272, %v6230
        %v6305 = vadd.f32 %v6273, %v6233
        %v6306 = vadd.f32 %v6274, %v6238
        %v6307 = vadd.f32 %v6275, %v6241
        %6308 = vst [vmem:[#allocation2] sm:$0xff] %v6276
        %6309 = vst [vmem:[#allocation2 + $0x8] sm:$0xff] %v6277
        %6310 = vst [vmem:[#allocation2 + $0x10] sm:$0xff] %v6278
        %6311 = vst [vmem:[#allocation2 + $0x18] sm:$0xff] %v6279
        %6312 = vst [vmem:[#allocation2 + $0x20] sm:$0xff] %v6280
        %6313 = vst [vmem:[#allocation2 + $0x28] sm:$0xff] %v6281
        %6314 = vst [vmem:[#allocation2 + $0x30] sm:$0xff] %v6282
        %6315 = vst [vmem:[#allocation2 + $0x38] sm:$0xff] %v6283
        %6316 = vst [vmem:[#allocation2 + $0x40] sm:$0xff] %v6284
        %6317 = vst [vmem:[#allocation2 + $0x48] sm:$0xff] %v6285
        %6318 = vst [vmem:[#allocation2 + $0x50] sm:$0xff] %v6286
        %6319 = vst [vmem:[#allocation2 + $0x58] sm:$0xff] %v6287
        %6320 = vst [vmem:[#allocation2 + $0x60] sm:$0xff] %v6288
        %6321 = vst [vmem:[#allocation2 + $0x68] sm:$0xff] %v6289
        %6322 = vst [vmem:[#allocation2 + $0x70] sm:$0xff] %v6290
        %6323 = vst [vmem:[#allocation2 + $0x78] sm:$0xff] %v6291
        %6324 = vst [vmem:[#allocation2 + $0x80] sm:$0xff] %v6292
        %6325 = vst [vmem:[#allocation2 + $0x88] sm:$0xff] %v6293
        %6326 = vst [vmem:[#allocation2 + $0x90] sm:$0xff] %v6294
        %6327 = vst [vmem:[#allocation2 + $0x98] sm:$0xff] %v6295
        %6328 = vst [vmem:[#allocation2 + $0xa0] sm:$0xff] %v6296
        %6329 = vst [vmem:[#allocation2 + $0xa8] sm:$0xff] %v6297
        %6330 = vst [vmem:[#allocation2 + $0xb0] sm:$0xff] %v6298
        %6331 = vst [vmem:[#allocation2 + $0xb8] sm:$0xff] %v6299
        %6332 = vst [vmem:[#allocation2 + $0xc0] sm:$0xff] %v6300
        %6333 = vst [vmem:[#allocation2 + $0xc8] sm:$0xff] %v6301
        %6334 = vst [vmem:[#allocation2 + $0xd0] sm:$0xff] %v6302
        %6335 = vst [vmem:[#allocation2 + $0xd8] sm:$0xff] %v6303
        %6336 = vst [vmem:[#allocation2 + $0xe0] sm:$0xff] %v6304
        %6337 = vst [vmem:[#allocation2 + $0xe8] sm:$0xff] %v6305
        %6338 = vst [vmem:[#allocation2 + $0xf0] sm:$0xff] %v6306
        %6339 = vst [vmem:[#allocation2 + $0xf8] sm:$0xff] %v6307
        %v6340 = vld [vmem:[#allocation2] sm:$0xff]
        %v6341 = vld [vmem:[#allocation2 + $0x8] sm:$0xff]
        %v6342 = vld [vmem:[#allocation2 + $0x10] sm:$0xff]
        %v6343 = vld [vmem:[#allocation2 + $0x18] sm:$0xff]
        %v6344 = vld [vmem:[#allocation2 + $0x20] sm:$0xff]
        %v6345 = vld [vmem:[#allocation2 + $0x28] sm:$0xff]
        %v6346 = vld [vmem:[#allocation2 + $0x30] sm:$0xff]
        %v6347 = vld [vmem:[#allocation2 + $0x38] sm:$0xff]
        %v6348 = vld [vmem:[#allocation2 + $0x40] sm:$0xff]
        %v6349 = vld [vmem:[#allocation2 + $0x48] sm:$0xff]
        %v6350 = vld [vmem:[#allocation2 + $0x50] sm:$0xff]
        %v6351 = vld [vmem:[#allocation2 + $0x58] sm:$0xff]
        %v6352 = vld [vmem:[#allocation2 + $0x60] sm:$0xff]
        %v6353 = vld [vmem:[#allocation2 + $0x68] sm:$0xff]
        %v6354 = vld [vmem:[#allocation2 + $0x70] sm:$0xff]
        %v6355 = vld [vmem:[#allocation2 + $0x78] sm:$0xff]
        %v6356 = vld [vmem:[#allocation2 + $0x80] sm:$0xff]
        %v6357 = vld [vmem:[#allocation2 + $0x88] sm:$0xff]
        %v6358 = vld [vmem:[#allocation2 + $0x90] sm:$0xff]
        %v6359 = vld [vmem:[#allocation2 + $0x98] sm:$0xff]
        %v6360 = vld [vmem:[#allocation2 + $0xa0] sm:$0xff]
        %v6361 = vld [vmem:[#allocation2 + $0xa8] sm:$0xff]
        %v6362 = vld [vmem:[#allocation2 + $0xb0] sm:$0xff]
        %v6363 = vld [vmem:[#allocation2 + $0xb8] sm:$0xff]
        %v6364 = vld [vmem:[#allocation2 + $0xc0] sm:$0xff]
        %v6365 = vld [vmem:[#allocation2 + $0xc8] sm:$0xff]
        %v6366 = vld [vmem:[#allocation2 + $0xd0] sm:$0xff]
        %v6367 = vld [vmem:[#allocation2 + $0xd8] sm:$0xff]
        %v6368 = vld [vmem:[#allocation2 + $0xe0] sm:$0xff]
        %v6369 = vld [vmem:[#allocation2 + $0xe8] sm:$0xff]
        %v6370 = vld [vmem:[#allocation2 + $0xf0] sm:$0xff]
        %v6371 = vld [vmem:[#allocation2 + $0xf8] sm:$0xff]
        %v6372 = vld [vmem:[%s5] sm:$0x1]
        %v6374 = vlaneseq
        %v6375 = vshrl.u32 %v6374, 7
        %v6376 = vsub.s32 0, %v6375
        %v6377 = vrot.slane %v6372, %v6376
        %v6379 = vmul.f32 %v6340, %v6377
        %v6380 = vmul.f32 %v6341, %v6377
        %v6381 = vmul.f32 %v6342, %v6377
        %v6382 = vmul.f32 %v6343, %v6377
        %v6383 = vmul.f32 %v6344, %v6377
        %v6384 = vmul.f32 %v6345, %v6377
        %v6385 = vmul.f32 %v6346, %v6377
        %v6386 = vmul.f32 %v6347, %v6377
        %v6387 = vmul.f32 %v6348, %v6377
        %v6388 = vmul.f32 %v6349, %v6377
        %v6389 = vmul.f32 %v6350, %v6377
        %v6390 = vmul.f32 %v6351, %v6377
        %v6391 = vmul.f32 %v6352, %v6377
        %v6392 = vmul.f32 %v6353, %v6377
        %v6393 = vmul.f32 %v6354, %v6377
        %v6394 = vmul.f32 %v6355, %v6377
        %v6395 = vmul.f32 %v6356, %v6377
        %v6396 = vmul.f32 %v6357, %v6377
        %v6397 = vmul.f32 %v6358, %v6377
        %v6398 = vmul.f32 %v6359, %v6377
        %v6399 = vmul.f32 %v6360, %v6377
        %v6400 = vmul.f32 %v6361, %v6377
        %v6401 = vmul.f32 %v6362, %v6377
        %v6402 = vmul.f32 %v6363, %v6377
        %v6403 = vmul.f32 %v6364, %v6377
        %v6404 = vmul.f32 %v6365, %v6377
        %v6405 = vmul.f32 %v6366, %v6377
        %v6406 = vmul.f32 %v6367, %v6377
        %v6407 = vmul.f32 %v6368, %v6377
        %v6408 = vmul.f32 %v6369, %v6377
        %v6409 = vmul.f32 %v6370, %v6377
        %v6410 = vmul.f32 %v6371, %v6377
        %v6411 = vld [vmem:[%s6] sm:$0x1]
        %v6413 = vlaneseq
        %v6414 = vshrl.u32 %v6413, 7
        %v6415 = vsub.s32 0, %v6414
        %v6416 = vrot.slane %v6411, %v6415
        %v6418 = vadd.f32 %v6379, %v6416
        %v6419 = vadd.f32 %v6380, %v6416
        %v6420 = vadd.f32 %v6381, %v6416
        %v6421 = vadd.f32 %v6382, %v6416
        %v6422 = vadd.f32 %v6383, %v6416
        %v6423 = vadd.f32 %v6384, %v6416
        %v6424 = vadd.f32 %v6385, %v6416
        %v6425 = vadd.f32 %v6386, %v6416
        %v6426 = vadd.f32 %v6387, %v6416
        %v6427 = vadd.f32 %v6388, %v6416
        %v6428 = vadd.f32 %v6389, %v6416
        %v6429 = vadd.f32 %v6390, %v6416
        %v6430 = vadd.f32 %v6391, %v6416
        %v6431 = vadd.f32 %v6392, %v6416
        %v6432 = vadd.f32 %v6393, %v6416
        %v6433 = vadd.f32 %v6394, %v6416
        %v6434 = vadd.f32 %v6395, %v6416
        %v6435 = vadd.f32 %v6396, %v6416
        %v6436 = vadd.f32 %v6397, %v6416
        %v6437 = vadd.f32 %v6398, %v6416
        %v6438 = vadd.f32 %v6399, %v6416
        %v6439 = vadd.f32 %v6400, %v6416
        %v6440 = vadd.f32 %v6401, %v6416
        %v6441 = vadd.f32 %v6402, %v6416
        %v6442 = vadd.f32 %v6403, %v6416
        %v6443 = vadd.f32 %v6404, %v6416
        %v6444 = vadd.f32 %v6405, %v6416
        %v6445 = vadd.f32 %v6406, %v6416
        %v6446 = vadd.f32 %v6407, %v6416
        %v6447 = vadd.f32 %v6408, %v6416
        %v6448 = vadd.f32 %v6409, %v6416
        %v6449 = vadd.f32 %v6410, %v6416
        %s6450 = scalar_lea.vmem %s287, 12 [#allocation4]
        %v6451 = vld [vmem:[%s6450] sm:$0xf]
        %v6452 = vld [vmem:[%s6450 + $0x4] sm:$0xf]
        %v6453 = vld [vmem:[%s6450 + $0x8] sm:$0x1]
        %v6454 = vld [vmem:[%s6450 + $0xc] sm:$0xf]
        %v6455 = vld [vmem:[%s6450 + $0x10] sm:$0xf]
        %v6456 = vld [vmem:[%s6450 + $0x14] sm:$0x1]
        %v6457 = vld [vmem:[%s6450 + $0x18] sm:$0xf]
        %v6458 = vld [vmem:[%s6450 + $0x1c] sm:$0xf]
        %v6459 = vld [vmem:[%s6450 + $0x20] sm:$0x1]
        %v6460 = vld [vmem:[%s6450 + $0x24] sm:$0xf]
        %v6461 = vld [vmem:[%s6450 + $0x28] sm:$0xf]
        %v6462 = vld [vmem:[%s6450 + $0x2c] sm:$0x1]
        %v6463 = vld [vmem:[%s6450 + $0x30] sm:$0xf]
        %v6464 = vld [vmem:[%s6450 + $0x34] sm:$0xf]
        %v6465 = vld [vmem:[%s6450 + $0x38] sm:$0x1]
        %v6466 = vld [vmem:[%s6450 + $0x3c] sm:$0xf]
        %v6467 = vld [vmem:[%s6450 + $0x40] sm:$0xf]
        %v6468 = vld [vmem:[%s6450 + $0x44] sm:$0x1]
        %v6469 = vld [vmem:[%s6450 + $0x48] sm:$0xf]
        %v6470 = vld [vmem:[%s6450 + $0x4c] sm:$0xf]
        %v6471 = vld [vmem:[%s6450 + $0x50] sm:$0x1]
        %v6472 = vld [vmem:[%s6450 + $0x54] sm:$0xf]
        %v6473 = vld [vmem:[%s6450 + $0x58] sm:$0xf]
        %v6474 = vld [vmem:[%s6450 + $0x5c] sm:$0x1]
        %v6475 = vld [vmem:[%s6450 + $0x60] sm:$0xf]
        %v6476 = vld [vmem:[%s6450 + $0x64] sm:$0xf]
        %v6477 = vld [vmem:[%s6450 + $0x68] sm:$0x1]
        %v6478 = vld [vmem:[%s6450 + $0x6c] sm:$0xf]
        %v6479 = vld [vmem:[%s6450 + $0x70] sm:$0xf]
        %v6480 = vld [vmem:[%s6450 + $0x74] sm:$0x1]
        %v6481 = vld [vmem:[%s6450 + $0x78] sm:$0xf]
        %v6482 = vld [vmem:[%s6450 + $0x7c] sm:$0xf]
        %v6483 = vld [vmem:[%s6450 + $0x80] sm:$0x1]
        %v6484 = vld [vmem:[%s6450 + $0x84] sm:$0xf]
        %v6485 = vld [vmem:[%s6450 + $0x88] sm:$0xf]
        %v6486 = vld [vmem:[%s6450 + $0x8c] sm:$0x1]
        %v6487 = vld [vmem:[%s6450 + $0x90] sm:$0xf]
        %v6488 = vld [vmem:[%s6450 + $0x94] sm:$0xf]
        %v6489 = vld [vmem:[%s6450 + $0x98] sm:$0x1]
        %v6490 = vld [vmem:[%s6450 + $0x9c] sm:$0xf]
        %v6491 = vld [vmem:[%s6450 + $0xa0] sm:$0xf]
        %v6492 = vld [vmem:[%s6450 + $0xa4] sm:$0x1]
        %v6493 = vld [vmem:[%s6450 + $0xa8] sm:$0xf]
        %v6494 = vld [vmem:[%s6450 + $0xac] sm:$0xf]
        %v6495 = vld [vmem:[%s6450 + $0xb0] sm:$0x1]
        %v6496 = vld [vmem:[%s6450 + $0xb4] sm:$0xf]
        %v6497 = vld [vmem:[%s6450 + $0xb8] sm:$0xf]
        %v6498 = vld [vmem:[%s6450 + $0xbc] sm:$0x1]
        %vm6499 = vsmask.f32 3328
        %vm6500 = vsmask.f32 7440
        %vm6501 = vmor %vm6499, %vm6500
        %v6503 = vshrl.u32 %v6451, 16
        %v6505 = vrot.slane %v6503, 4
        %v6506 = vshll.u32 %v6451, 16
        %v6508 = vrot.slane %v6506, 5
        %v6509 = vor.u32 %v6505, %v6508
        %v6510 = vrot.slane %v6509, 4
        %v6512 = vshll.u32 %v6452, 16
        %v6514 = vrot.slane %v6512, 5
        %v6515 = vsel %vm6501, %v6510, %v6514
        %v6516 = vshrl.u32 %v6452, 16
        %v6518 = vrot.slane %v6516, 4
        %v6519 = vor.u32 %v6518, %v6514
        %v6520 = vrot.slane %v6519, 4
        %v6522 = vshll.u32 %v6453, 16
        %v6524 = vrot.slane %v6522, 5
        %v6525 = vsel %vm6501, %v6520, %v6524
        %v6527 = vshrl.u32 %v6454, 16
        %v6529 = vrot.slane %v6527, 4
        %v6530 = vshll.u32 %v6454, 16
        %v6532 = vrot.slane %v6530, 5
        %v6533 = vor.u32 %v6529, %v6532
        %v6534 = vrot.slane %v6533, 4
        %v6536 = vshll.u32 %v6455, 16
        %v6538 = vrot.slane %v6536, 5
        %v6539 = vsel %vm6501, %v6534, %v6538
        %v6540 = vshrl.u32 %v6455, 16
        %v6542 = vrot.slane %v6540, 4
        %v6543 = vor.u32 %v6542, %v6538
        %v6544 = vrot.slane %v6543, 4
        %v6546 = vshll.u32 %v6456, 16
        %v6548 = vrot.slane %v6546, 5
        %v6549 = vsel %vm6501, %v6544, %v6548
        %v6551 = vshrl.u32 %v6457, 16
        %v6553 = vrot.slane %v6551, 4
        %v6554 = vshll.u32 %v6457, 16
        %v6556 = vrot.slane %v6554, 5
        %v6557 = vor.u32 %v6553, %v6556
        %v6558 = vrot.slane %v6557, 4
        %v6560 = vshll.u32 %v6458, 16
        %v6562 = vrot.slane %v6560, 5
        %v6563 = vsel %vm6501, %v6558, %v6562
        %v6564 = vshrl.u32 %v6458, 16
        %v6566 = vrot.slane %v6564, 4
        %v6567 = vor.u32 %v6566, %v6562
        %v6568 = vrot.slane %v6567, 4
        %v6570 = vshll.u32 %v6459, 16
        %v6572 = vrot.slane %v6570, 5
        %v6573 = vsel %vm6501, %v6568, %v6572
        %v6575 = vshrl.u32 %v6460, 16
        %v6577 = vrot.slane %v6575, 4
        %v6578 = vshll.u32 %v6460, 16
        %v6580 = vrot.slane %v6578, 5
        %v6581 = vor.u32 %v6577, %v6580
        %v6582 = vrot.slane %v6581, 4
        %v6584 = vshll.u32 %v6461, 16
        %v6586 = vrot.slane %v6584, 5
        %v6587 = vsel %vm6501, %v6582, %v6586
        %v6588 = vshrl.u32 %v6461, 16
        %v6590 = vrot.slane %v6588, 4
        %v6591 = vor.u32 %v6590, %v6586
        %v6592 = vrot.slane %v6591, 4
        %v6594 = vshll.u32 %v6462, 16
        %v6596 = vrot.slane %v6594, 5
        %v6597 = vsel %vm6501, %v6592, %v6596
        %v6599 = vshrl.u32 %v6463, 16
        %v6601 = vrot.slane %v6599, 4
        %v6602 = vshll.u32 %v6463, 16
        %v6604 = vrot.slane %v6602, 5
        %v6605 = vor.u32 %v6601, %v6604
        %v6606 = vrot.slane %v6605, 4
        %v6608 = vshll.u32 %v6464, 16
        %v6610 = vrot.slane %v6608, 5
        %v6611 = vsel %vm6501, %v6606, %v6610
        %v6612 = vshrl.u32 %v6464, 16
        %v6614 = vrot.slane %v6612, 4
        %v6615 = vor.u32 %v6614, %v6610
        %v6616 = vrot.slane %v6615, 4
        %v6618 = vshll.u32 %v6465, 16
        %v6620 = vrot.slane %v6618, 5
        %v6621 = vsel %vm6501, %v6616, %v6620
        %v6623 = vshrl.u32 %v6466, 16
        %v6625 = vrot.slane %v6623, 4
        %v6626 = vshll.u32 %v6466, 16
        %v6628 = vrot.slane %v6626, 5
        %v6629 = vor.u32 %v6625, %v6628
        %v6630 = vrot.slane %v6629, 4
        %v6632 = vshll.u32 %v6467, 16
        %v6634 = vrot.slane %v6632, 5
        %v6635 = vsel %vm6501, %v6630, %v6634
        %v6636 = vshrl.u32 %v6467, 16
        %v6638 = vrot.slane %v6636, 4
        %v6639 = vor.u32 %v6638, %v6634
        %v6640 = vrot.slane %v6639, 4
        %v6642 = vshll.u32 %v6468, 16
        %v6644 = vrot.slane %v6642, 5
        %v6645 = vsel %vm6501, %v6640, %v6644
        %v6647 = vshrl.u32 %v6469, 16
        %v6649 = vrot.slane %v6647, 4
        %v6650 = vshll.u32 %v6469, 16
        %v6652 = vrot.slane %v6650, 5
        %v6653 = vor.u32 %v6649, %v6652
        %v6654 = vrot.slane %v6653, 4
        %v6656 = vshll.u32 %v6470, 16
        %v6658 = vrot.slane %v6656, 5
        %v6659 = vsel %vm6501, %v6654, %v6658
        %v6660 = vshrl.u32 %v6470, 16
        %v6662 = vrot.slane %v6660, 4
        %v6663 = vor.u32 %v6662, %v6658
        %v6664 = vrot.slane %v6663, 4
        %v6666 = vshll.u32 %v6471, 16
        %v6668 = vrot.slane %v6666, 5
        %v6669 = vsel %vm6501, %v6664, %v6668
        %v6671 = vshrl.u32 %v6472, 16
        %v6673 = vrot.slane %v6671, 4
        %v6674 = vshll.u32 %v6472, 16
        %v6676 = vrot.slane %v6674, 5
        %v6677 = vor.u32 %v6673, %v6676
        %v6678 = vrot.slane %v6677, 4
        %v6680 = vshll.u32 %v6473, 16
        %v6682 = vrot.slane %v6680, 5
        %v6683 = vsel %vm6501, %v6678, %v6682
        %v6684 = vshrl.u32 %v6473, 16
        %v6686 = vrot.slane %v6684, 4
        %v6687 = vor.u32 %v6686, %v6682
        %v6688 = vrot.slane %v6687, 4
        %v6690 = vshll.u32 %v6474, 16
        %v6692 = vrot.slane %v6690, 5
        %v6693 = vsel %vm6501, %v6688, %v6692
        %v6695 = vshrl.u32 %v6475, 16
        %v6697 = vrot.slane %v6695, 4
        %v6698 = vshll.u32 %v6475, 16
        %v6700 = vrot.slane %v6698, 5
        %v6701 = vor.u32 %v6697, %v6700
        %v6702 = vrot.slane %v6701, 4
        %v6704 = vshll.u32 %v6476, 16
        %v6706 = vrot.slane %v6704, 5
        %v6707 = vsel %vm6501, %v6702, %v6706
        %v6708 = vshrl.u32 %v6476, 16
        %v6710 = vrot.slane %v6708, 4
        %v6711 = vor.u32 %v6710, %v6706
        %v6712 = vrot.slane %v6711, 4
        %v6714 = vshll.u32 %v6477, 16
        %v6716 = vrot.slane %v6714, 5
        %v6717 = vsel %vm6501, %v6712, %v6716
        %v6719 = vshrl.u32 %v6478, 16
        %v6721 = vrot.slane %v6719, 4
        %v6722 = vshll.u32 %v6478, 16
        %v6724 = vrot.slane %v6722, 5
        %v6725 = vor.u32 %v6721, %v6724
        %v6726 = vrot.slane %v6725, 4
        %v6728 = vshll.u32 %v6479, 16
        %v6730 = vrot.slane %v6728, 5
        %v6731 = vsel %vm6501, %v6726, %v6730
        %v6732 = vshrl.u32 %v6479, 16
        %v6734 = vrot.slane %v6732, 4
        %v6735 = vor.u32 %v6734, %v6730
        %v6736 = vrot.slane %v6735, 4
        %v6738 = vshll.u32 %v6480, 16
        %v6740 = vrot.slane %v6738, 5
        %v6741 = vsel %vm6501, %v6736, %v6740
        %v6743 = vshrl.u32 %v6481, 16
        %v6745 = vrot.slane %v6743, 4
        %v6746 = vshll.u32 %v6481, 16
        %v6748 = vrot.slane %v6746, 5
        %v6749 = vor.u32 %v6745, %v6748
        %v6750 = vrot.slane %v6749, 4
        %v6752 = vshll.u32 %v6482, 16
        %v6754 = vrot.slane %v6752, 5
        %v6755 = vsel %vm6501, %v6750, %v6754
        %v6756 = vshrl.u32 %v6482, 16
        %v6758 = vrot.slane %v6756, 4
        %v6759 = vor.u32 %v6758, %v6754
        %v6760 = vrot.slane %v6759, 4
        %v6762 = vshll.u32 %v6483, 16
        %v6764 = vrot.slane %v6762, 5
        %v6765 = vsel %vm6501, %v6760, %v6764
        %v6767 = vshrl.u32 %v6484, 16
        %v6769 = vrot.slane %v6767, 4
        %v6770 = vshll.u32 %v6484, 16
        %v6772 = vrot.slane %v6770, 5
        %v6773 = vor.u32 %v6769, %v6772
        %v6774 = vrot.slane %v6773, 4
        %v6776 = vshll.u32 %v6485, 16
        %v6778 = vrot.slane %v6776, 5
        %v6779 = vsel %vm6501, %v6774, %v6778
        %v6780 = vshrl.u32 %v6485, 16
        %v6782 = vrot.slane %v6780, 4
        %v6783 = vor.u32 %v6782, %v6778
        %v6784 = vrot.slane %v6783, 4
        %v6786 = vshll.u32 %v6486, 16
        %v6788 = vrot.slane %v6786, 5
        %v6789 = vsel %vm6501, %v6784, %v6788
        %v6791 = vshrl.u32 %v6487, 16
        %v6793 = vrot.slane %v6791, 4
        %v6794 = vshll.u32 %v6487, 16
        %v6796 = vrot.slane %v6794, 5
        %v6797 = vor.u32 %v6793, %v6796
        %v6798 = vrot.slane %v6797, 4
        %v6800 = vshll.u32 %v6488, 16
        %v6802 = vrot.slane %v6800, 5
        %v6803 = vsel %vm6501, %v6798, %v6802
        %v6804 = vshrl.u32 %v6488, 16
        %v6806 = vrot.slane %v6804, 4
        %v6807 = vor.u32 %v6806, %v6802
        %v6808 = vrot.slane %v6807, 4
        %v6810 = vshll.u32 %v6489, 16
        %v6812 = vrot.slane %v6810, 5
        %v6813 = vsel %vm6501, %v6808, %v6812
        %v6815 = vshrl.u32 %v6490, 16
        %v6817 = vrot.slane %v6815, 4
        %v6818 = vshll.u32 %v6490, 16
        %v6820 = vrot.slane %v6818, 5
        %v6821 = vor.u32 %v6817, %v6820
        %v6822 = vrot.slane %v6821, 4
        %v6824 = vshll.u32 %v6491, 16
        %v6826 = vrot.slane %v6824, 5
        %v6827 = vsel %vm6501, %v6822, %v6826
        %v6828 = vshrl.u32 %v6491, 16
        %v6830 = vrot.slane %v6828, 4
        %v6831 = vor.u32 %v6830, %v6826
        %v6832 = vrot.slane %v6831, 4
        %v6834 = vshll.u32 %v6492, 16
        %v6836 = vrot.slane %v6834, 5
        %v6837 = vsel %vm6501, %v6832, %v6836
        %v6839 = vshrl.u32 %v6493, 16
        %v6841 = vrot.slane %v6839, 4
        %v6842 = vshll.u32 %v6493, 16
        %v6844 = vrot.slane %v6842, 5
        %v6845 = vor.u32 %v6841, %v6844
        %v6846 = vrot.slane %v6845, 4
        %v6848 = vshll.u32 %v6494, 16
        %v6850 = vrot.slane %v6848, 5
        %v6851 = vsel %vm6501, %v6846, %v6850
        %v6852 = vshrl.u32 %v6494, 16
        %v6854 = vrot.slane %v6852, 4
        %v6855 = vor.u32 %v6854, %v6850
        %v6856 = vrot.slane %v6855, 4
        %v6858 = vshll.u32 %v6495, 16
        %v6860 = vrot.slane %v6858, 5
        %v6861 = vsel %vm6501, %v6856, %v6860
        %v6863 = vshrl.u32 %v6496, 16
        %v6865 = vrot.slane %v6863, 4
        %v6866 = vshll.u32 %v6496, 16
        %v6868 = vrot.slane %v6866, 5
        %v6869 = vor.u32 %v6865, %v6868
        %v6870 = vrot.slane %v6869, 4
        %v6872 = vshll.u32 %v6497, 16
        %v6874 = vrot.slane %v6872, 5
        %v6875 = vsel %vm6501, %v6870, %v6874
        %v6876 = vshrl.u32 %v6497, 16
        %v6878 = vrot.slane %v6876, 4
        %v6879 = vor.u32 %v6878, %v6874
        %v6880 = vrot.slane %v6879, 4
        %v6882 = vshll.u32 %v6498, 16
        %v6884 = vrot.slane %v6882, 5
        %v6885 = vsel %vm6501, %v6880, %v6884
        %v6918 = vunpack.c.l.bf16 %v6515
        %v6919 = vunpack.c.l.bf16 %v6525
        %v6920 = vunpack.c.l.bf16 %v6539
        %v6921 = vunpack.c.l.bf16 %v6549
        %v6922 = vunpack.c.l.bf16 %v6563
        %v6923 = vunpack.c.l.bf16 %v6573
        %v6924 = vunpack.c.l.bf16 %v6587
        %v6925 = vunpack.c.l.bf16 %v6597
        %v6926 = vunpack.c.l.bf16 %v6611
        %v6927 = vunpack.c.l.bf16 %v6621
        %v6928 = vunpack.c.l.bf16 %v6635
        %v6929 = vunpack.c.l.bf16 %v6645
        %v6930 = vunpack.c.l.bf16 %v6659
        %v6931 = vunpack.c.l.bf16 %v6669
        %v6932 = vunpack.c.l.bf16 %v6683
        %v6933 = vunpack.c.l.bf16 %v6693
        %v6934 = vunpack.c.l.bf16 %v6707
        %v6935 = vunpack.c.l.bf16 %v6717
        %v6936 = vunpack.c.l.bf16 %v6731
        %v6937 = vunpack.c.l.bf16 %v6741
        %v6938 = vunpack.c.l.bf16 %v6755
        %v6939 = vunpack.c.l.bf16 %v6765
        %v6940 = vunpack.c.l.bf16 %v6779
        %v6941 = vunpack.c.l.bf16 %v6789
        %v6942 = vunpack.c.l.bf16 %v6803
        %v6943 = vunpack.c.l.bf16 %v6813
        %v6944 = vunpack.c.l.bf16 %v6827
        %v6945 = vunpack.c.l.bf16 %v6837
        %v6946 = vunpack.c.l.bf16 %v6851
        %v6947 = vunpack.c.l.bf16 %v6861
        %v6948 = vunpack.c.l.bf16 %v6875
        %v6949 = vunpack.c.l.bf16 %v6885
        %v6950 = vadd.f32 %v6418, %v6918
        %v6951 = vadd.f32 %v6419, %v6919
        %v6952 = vadd.f32 %v6420, %v6920
        %v6953 = vadd.f32 %v6421, %v6921
        %v6954 = vadd.f32 %v6422, %v6922
        %v6955 = vadd.f32 %v6423, %v6923
        %v6956 = vadd.f32 %v6424, %v6924
        %v6957 = vadd.f32 %v6425, %v6925
        %v6958 = vadd.f32 %v6426, %v6926
        %v6959 = vadd.f32 %v6427, %v6927
        %v6960 = vadd.f32 %v6428, %v6928
        %v6961 = vadd.f32 %v6429, %v6929
        %v6962 = vadd.f32 %v6430, %v6930
        %v6963 = vadd.f32 %v6431, %v6931
        %v6964 = vadd.f32 %v6432, %v6932
        %v6965 = vadd.f32 %v6433, %v6933
        %v6966 = vadd.f32 %v6434, %v6934
        %v6967 = vadd.f32 %v6435, %v6935
        %v6968 = vadd.f32 %v6436, %v6936
        %v6969 = vadd.f32 %v6437, %v6937
        %v6970 = vadd.f32 %v6438, %v6938
        %v6971 = vadd.f32 %v6439, %v6939
        %v6972 = vadd.f32 %v6440, %v6940
        %v6973 = vadd.f32 %v6441, %v6941
        %v6974 = vadd.f32 %v6442, %v6942
        %v6975 = vadd.f32 %v6443, %v6943
        %v6976 = vadd.f32 %v6444, %v6944
        %v6977 = vadd.f32 %v6445, %v6945
        %v6978 = vadd.f32 %v6446, %v6946
        %v6979 = vadd.f32 %v6447, %v6947
        %v6980 = vadd.f32 %v6448, %v6948
        %v6981 = vadd.f32 %v6449, %v6949
        %v6982 = vmax.f32 %v6950, 0.0
        %v6983 = vmax.f32 %v6951, 0.0
        %v6984 = vmax.f32 %v6952, 0.0
        %v6985 = vmax.f32 %v6953, 0.0
        %v6986 = vmax.f32 %v6954, 0.0
        %v6987 = vmax.f32 %v6955, 0.0
        %v6988 = vmax.f32 %v6956, 0.0
        %v6989 = vmax.f32 %v6957, 0.0
        %v6990 = vmax.f32 %v6958, 0.0
        %v6991 = vmax.f32 %v6959, 0.0
        %v6992 = vmax.f32 %v6960, 0.0
        %v6993 = vmax.f32 %v6961, 0.0
        %v6994 = vmax.f32 %v6962, 0.0
        %v6995 = vmax.f32 %v6963, 0.0
        %v6996 = vmax.f32 %v6964, 0.0
        %v6997 = vmax.f32 %v6965, 0.0
        %v6998 = vmax.f32 %v6966, 0.0
        %v6999 = vmax.f32 %v6967, 0.0
        %v7000 = vmax.f32 %v6968, 0.0
        %v7001 = vmax.f32 %v6969, 0.0
        %v7002 = vmax.f32 %v6970, 0.0
        %v7003 = vmax.f32 %v6971, 0.0
        %v7004 = vmax.f32 %v6972, 0.0
        %v7005 = vmax.f32 %v6973, 0.0
        %v7006 = vmax.f32 %v6974, 0.0
        %v7007 = vmax.f32 %v6975, 0.0
        %v7008 = vmax.f32 %v6976, 0.0
        %v7009 = vmax.f32 %v6977, 0.0
        %v7010 = vmax.f32 %v6978, 0.0
        %v7011 = vmax.f32 %v6979, 0.0
        %v7012 = vmax.f32 %v6980, 0.0
        %v7013 = vmax.f32 %v6981, 0.0
        %7014 = vst [vmem:[%s325] sm:$0xff] %v6982
        %7015 = vst [vmem:[%s325 + $0x8] sm:$0xff] %v6983
        %7016 = vst [vmem:[%s325 + $0x10] sm:$0xff] %v6984
        %7017 = vst [vmem:[%s325 + $0x18] sm:$0xff] %v6985
        %7018 = vst [vmem:[%s325 + $0x20] sm:$0xff] %v6986
        %7019 = vst [vmem:[%s325 + $0x28] sm:$0xff] %v6987
        %7020 = vst [vmem:[%s325 + $0x30] sm:$0xff] %v6988
        %7021 = vst [vmem:[%s325 + $0x38] sm:$0xff] %v6989
        %7022 = vst [vmem:[%s325 + $0x40] sm:$0xff] %v6990
        %7023 = vst [vmem:[%s325 + $0x48] sm:$0xff] %v6991
        %7024 = vst [vmem:[%s325 + $0x50] sm:$0xff] %v6992
        %7025 = vst [vmem:[%s325 + $0x58] sm:$0xff] %v6993
        %7026 = vst [vmem:[%s325 + $0x60] sm:$0xff] %v6994
        %7027 = vst [vmem:[%s325 + $0x68] sm:$0xff] %v6995
        %7028 = vst [vmem:[%s325 + $0x70] sm:$0xff] %v6996
        %7029 = vst [vmem:[%s325 + $0x78] sm:$0xff] %v6997
        %7030 = vst [vmem:[%s325 + $0x80] sm:$0xff] %v6998
        %7031 = vst [vmem:[%s325 + $0x88] sm:$0xff] %v6999
        %7032 = vst [vmem:[%s325 + $0x90] sm:$0xff] %v7000
        %7033 = vst [vmem:[%s325 + $0x98] sm:$0xff] %v7001
        %7034 = vst [vmem:[%s325 + $0xa0] sm:$0xff] %v7002
        %7035 = vst [vmem:[%s325 + $0xa8] sm:$0xff] %v7003
        %7036 = vst [vmem:[%s325 + $0xb0] sm:$0xff] %v7004
        %7037 = vst [vmem:[%s325 + $0xb8] sm:$0xff] %v7005
        %7038 = vst [vmem:[%s325 + $0xc0] sm:$0xff] %v7006
        %7039 = vst [vmem:[%s325 + $0xc8] sm:$0xff] %v7007
        %7040 = vst [vmem:[%s325 + $0xd0] sm:$0xff] %v7008
        %7041 = vst [vmem:[%s325 + $0xd8] sm:$0xff] %v7009
        %7042 = vst [vmem:[%s325 + $0xe0] sm:$0xff] %v7010
        %7043 = vst [vmem:[%s325 + $0xe8] sm:$0xff] %v7011
        %7044 = vst [vmem:[%s325 + $0xf0] sm:$0xff] %v7012
        %7045 = vst [vmem:[%s325 + $0xf8] sm:$0xff] %v7013
        %s7046 = sand.u32 %s185, 1
        %s7047 = scalar_lea.sflag [#allocation6], %s7046
        %s7048 = sand.u32 %s185, 1
        %s7049 = smul.addr %s7048, 256
        %s7050 = scalar_lea.vmem [#allocation10], %s7049
        // Predicated region
        $region61: #{tpu_custom_call.1} parent=47 // pred_check
          %p7051 = pneg %p195
        $region62: #{tpu_custom_call.1} parent=47 // pred_check_branch
          %7053 = sbr.rel (%p7051) target = $region64
        $region63: #{tpu_custom_call.1} parent=47 // pred_region
          %s7055 = ssub.s32 4096, 4096
          %7056 = vsyncadd %s7047, %s7055
          %s7057 = smul.addr %s25, 32
          %s7058 = smul.addr %s7057, 128
          %s7059 = scalar_lea.hbm %s7, %s7058
          %s7060 = sshll.u32 %s7050, 4
          %s7061 = int_to_ptr.vmem [resolvable:$true] %s7060
          %7066 = dma.vmem_to_hbm [thread:$0]  %s7061, 4096, %s7059, %s7047, 128, 128, 8
        $region64: #{tpu_custom_call.1} parent=47 // pred_fallthru
          _
      $region48: #{tpu_custom_call.1} parent=5 // pred_fallthru
        _
      %p7067 = scmp.le.s32.totalorder 2, %s20
      // Predicated region
      $region65: #{tpu_custom_call.1} parent=5 // pred_check
        %p7068 = pneg %p7067
      $region66: #{tpu_custom_call.1} parent=5 // pred_check_branch
        %7070 = sbr.rel (%p7068) target = $region68
      $region67: #{tpu_custom_call.1} parent=5 // pred_region
        %s7071 = ssub.s32 %s20, 2
        // Predicated region
        $region69: #{tpu_custom_call.1} parent=67 // pred_check
          %p7072 = pneg %p201
        $region70: #{tpu_custom_call.1} parent=67 // pred_check_branch
          %7074 = sbr.rel (%p7072) target = $region72
        $region71: #{tpu_custom_call.1} parent=67 // pred_region
          %s7075 = sand.u32 %s186, 1
          %s7076 = scalar_lea.sflag [#allocation6], %s7075
          %s7077 = sand.u32 %s186, 1
          %s7078 = smul.addr %s7077, 256
          %s7079 = scalar_lea.vmem [#allocation10], %s7078
          %7080 = dma.done %s7076, 4096
        $region72: #{tpu_custom_call.1} parent=67 // pred_fallthru
          _
      $region68: #{tpu_custom_call.1} parent=5 // pred_fallthru
        _
    $region6: #{tpu_custom_call.1} parent=1 // loop_footer
      %s24 = sadd.s32 1, %s20
    $region7: #{tpu_custom_call.1} parent=1 // loop_footer_branch
      %19 = sbr.rel target = $region3
    $region8: #{tpu_custom_call.1} parent=1 // loop_exit
      _
    %7081 = vsyncpa [#allocation5], 1
    %s7082 = scalar_lea.sflag [#allocation5], 1
    %7083 = vsyncpa %s7082, 1
    %7084 = vsyncpa [#allocation8], 1
    %7085 = vsyncpa [#allocation6], 1
    %s7086 = scalar_lea.sflag [#allocation6], 1
    %7087 = vsyncpa %s7086, 1

</llo_original>
